<compile_context>
chip_gen: v7x
topology: tpu7x:2x2x1
jax: 0.10.0
libtpu: 0.0.40
codegen_flags: <defaults>
</compile_context>

<pallas_src>
import functools

import jax
import jax.numpy as jnp
from jax import lax
from jax.experimental import pallas as pl
from jax.experimental.pallas import tpu as pltpu


_MERGED_WEIGHTS = ("w1", "b1", "w2", "b2", "ow1", "ob1", "ow2", "ob2")
_SPLIT_WEIGHTS = ("sw1", "sb1", "sw2", "sb2", "jw1", "jb1", "jw2", "jb2",
                  "ow1_s", "ow1_j", "ob1", "ow2", "ob2")


# --------------------------------------------------------------------------- kernels
def _mscn_kernel_merged(x_ref, mask_ref, w1_ref, b1_ref, w2_ref, b2_ref,
                        ow1_ref, ob1_ref, ow2_ref, ob2_ref, out_ref):
    """Both set branches fused into one block-diagonal matmul chain (v6e/v7x path)."""
    f32 = jnp.float32
    tb = out_ref.shape[-1]              # batch-tile size (lane-dense output row)
    rows = x_ref.shape[0]               # tb * n_set
    n = rows // tb
    hp = ow1_ref.shape[-1]              # padded hidden width of one branch
    hp2 = w2_ref.shape[-1]              # 2 * hp (sample lanes | join lanes)
    cdt = w1_ref.dtype                  # bf16 by default -- all matmul operands

    # In-kernel cast (hidden under the MXU) instead of a wrapper-side astype.
    x = x_ref[...].astype(cdt)
    h = jnp.dot(x, w1_ref[...], preferred_element_type=f32) + b1_ref[...]
    h = jnp.maximum(h, 0.0)
    h = jnp.dot(h.astype(cdt), w2_ref[...], preferred_element_type=f32) + b2_ref[...]
    h = jnp.maximum(h, 0.0)                                     # (rows, 2*hp) f32

    # Masked mean-pool per branch; mask_ref packs [sample_mask | join_mask] in 2 lanes.
    m = mask_ref[...]                                           # (rows, 2) f32
    lane = lax.broadcasted_iota(jnp.int32, (rows, hp2), 1)
    h = h * jnp.where(lane < hp, m[:, 0:1], m[:, 1:2])
    pooled = jnp.sum(h.reshape(tb, n, hp2), axis=1)             # (tb, 2*hp)
    norm = jnp.sum(m.reshape(tb, n, 2), axis=1)                 # (tb, 2)
    # EUP reciprocal; the max() only guards garbage rows of a partial last tile.
    inv = pl.reciprocal(jnp.maximum(norm, 1e-30), approx=True)
    lane_p = lax.broadcasted_iota(jnp.int32, (tb, hp2), 1)
    pooled = pooled * jnp.where(lane_p < hp, inv[:, 0:1], inv[:, 1:2])

    # Head: pooled == [hid_sample | hid_join], so the original out_mlp1 weight applies
    # directly (no split-weight pair of dots).
    hid = jnp.dot(pooled.astype(cdt), ow1_ref[...],
                  preferred_element_type=f32) + ob1_ref[...]
    hid = jnp.maximum(hid, 0.0)                                  # (tb, hp)
    # Final (hp -> 1) layer as a VPU lane-reduce; store lane-dense as a (1, tb) row.
    logit = jnp.sum(hid * ow2_ref[...], axis=-1, keepdims=True) + ob2_ref[...]
    out_ref[...] = jnp.transpose(jax.nn.sigmoid(logit))[None].astype(out_ref.dtype)


def _mscn_kernel_split(samples_ref, smask_ref, joins_ref, jmask_ref,
                       sw1_ref, sb1_ref, sw2_ref, sb2_ref,
                       jw1_ref, jb1_ref, jw2_ref, jb2_ref,
                       ow1_s_ref, ow1_j_ref, ob1_ref, ow2_ref, ob2_ref, out_ref):
    """Two separate branch chains -- v5e fallback (128-wide MXU) / unequal set sizes."""
    f32 = jnp.float32
    tb = out_ref.shape[-1]

    def branch(x_ref, m_ref, w1_ref, b1_ref, w2_ref, b2_ref):
        n = x_ref.shape[0] // tb
        cdt = w1_ref.dtype
        h = jnp.dot(x_ref[...].astype(cdt), w1_ref[...],
                    preferred_element_type=f32) + b1_ref[...]
        h = jnp.maximum(h, 0.0)
        h = jnp.dot(h.astype(cdt), w2_ref[...],
                    preferred_element_type=f32) + b2_ref[...]
        h = jnp.maximum(h, 0.0)                                  # (tb*n, Hp) f32
        m = m_ref[...]                                           # (tb*n, 1)  f32
        h = h * m
        hp = h.shape[-1]
        pooled = jnp.sum(h.reshape(tb, n, hp), axis=1)
        norm = jnp.sum(m.reshape(tb, n, 1), axis=1)
        inv = pl.reciprocal(jnp.maximum(norm, 1e-30), approx=True)
        return pooled * inv                                      # (tb, Hp)

    hs = branch(samples_ref, smask_ref, sw1_ref, sb1_ref, sw2_ref, sb2_ref)
    hj = branch(joins_ref, jmask_ref, jw1_ref, jb1_ref, jw2_ref, jb2_ref)
    cdt = ow1_s_ref.dtype
    hid = (jnp.dot(hs.astype(cdt), ow1_s_ref[...], preferred_element_type=f32)
           + jnp.dot(hj.astype(cdt), ow1_j_ref[...], preferred_element_type=f32)
           + ob1_ref[...])
    hid = jnp.maximum(hid, 0.0)
    logit = jnp.sum(hid * ow2_ref[...], axis=-1, keepdims=True) + ob2_ref[...]
    out_ref[...] = jnp.transpose(jax.nn.sigmoid(logit))[None].astype(out_ref.dtype)


# ----------------------------------------------------------------- params & packing
def _linear_params(key, fan_in, fan_out, dtype=jnp.float32):
    """PyTorch-default-style init; weight stored as (in, out) so y = x @ W + b."""
    kw, kb = jax.random.split(key)
    bound = 1.0 / jnp.sqrt(jnp.asarray(fan_in, dtype))
    w = jax.random.uniform(kw, (fan_in, fan_out), dtype, -bound, bound)
    b = jax.random.uniform(kb, (fan_out,), dtype, -bound, bound)
    return w, b


def init_nopred_setconv_params(key, sample_feats, predicate_feats, join_feats, hid_units):
    del predicate_feats  # parity with the PyTorch ctor; unused in forward
    ks = jax.random.split(key, 6)
    sw1, sb1 = _linear_params(ks[0], sample_feats, hid_units)
    sw2, sb2 = _linear_params(ks[1], hid_units, hid_units)
    jw1, jb1 = _linear_params(ks[2], join_feats, hid_units)
    jw2, jb2 = _linear_params(ks[3], hid_units, hid_units)
    ow1, ob1 = _linear_params(ks[4], hid_units * 2, hid_units)
    ow2, ob2 = _linear_params(ks[5], hid_units, 1)
    return dict(sw1=sw1, sb1=sb1, sw2=sw2, sb2=sb2, jw1=jw1, jb1=jb1, jw2=jw2, jb2=jb2,
                ow1=ow1, ob1=ob1, ow2=ow2, ob2=ob2)


def _default_merge_branches():
    """Merge branches into block-diagonal matmuls only on >=256-deep MXUs (v6e/v7x);
    on v5e's 128x128 MXUs the merged 256x256 layer-2 would double the pass count."""
    try:
        kind = jax.devices()[0].device_kind.lower()
    except Exception:
        return True
    return not any(old in kind for old in ("v2", "v3", "v4", "v5"))


def pack_params(params, *, compute_dtype=jnp.bfloat16, merge_branches=None, lane=128):
    """Pad the hidden dim to a lane multiple, cast every matmul operand to
    `compute_dtype` (bf16 by default -- the kernel is MXU-bound and the MXU is
    bf16-native), and optionally fuse the two set branches into block-diagonal
    weights. Done ONCE; the per-call wrapper never touches the weights."""
    if merge_branches is None:
        merge_branches = _default_merge_branches()
    f32 = jnp.float32
    cdt = compute_dtype
    H = params["sw1"].shape[1]
    Hp = -(-H // lane) * lane

    def pad_cols(w, cols):                  # (in, H) -> (in, cols), zero-padded
        w = w.astype(f32)
        return jnp.pad(w, ((0, 0), (0, cols - w.shape[1])))

    def pad_both(w, rows, cols):            # zero-pad to (rows, cols)
        w = w.astype(f32)
        return jnp.pad(w, ((0, rows - w.shape[0]), (0, cols - w.shape[1])))

    def pad_bias(b, cols):                  # (H,) -> (1, cols)
        return jnp.pad(b.astype(f32), (0, cols - b.shape[0]))[None, :]

    ow1 = params["ow1"].astype(f32)                     # (2H, H): rows [sample; join]
    ow2_row = params["ow2"].astype(f32)[:, 0]           # (H,) head lane-reduce row
    ob2 = params["ob2"].astype(f32).reshape(1, 1)

    if not merge_branches:
        return dict(
            sw1=pad_cols(params["sw1"], Hp).astype(cdt), sb1=pad_bias(params["sb1"], Hp),
            sw2=pad_both(params["sw2"], Hp, Hp).astype(cdt), sb2=pad_bias(params["sb2"], Hp),
            jw1=pad_cols(params["jw1"], Hp).astype(cdt), jb1=pad_bias(params["jb1"], Hp),
            jw2=pad_both(params["jw2"], Hp, Hp).astype(cdt), jb2=pad_bias(params["jb2"], Hp),
            ow1_s=pad_both(ow1[:H], Hp, Hp).astype(cdt),     # sample half of concat weight
            ow1_j=pad_both(ow1[H:], Hp, Hp).astype(cdt),     # join half
            ob1=pad_bias(params["ob1"], Hp),
            ow2=pad_bias(ow2_row, Hp), ob2=ob2,
        )

    fs = params["sw1"].shape[0]
    fj = params["jw1"].shape[0]
    # Block-diagonal layer-1/2 weights: kernel input row = [sample | join] features,
    # hidden row = [sample hidden (lane-padded) | join hidden (lane-padded)].
    w1 = jnp.zeros((fs + fj, 2 * Hp), f32)
    w1 = w1.at[:fs, :H].set(params["sw1"].astype(f32))
    w1 = w1.at[fs:, Hp:Hp + H].set(params["jw1"].astype(f32))
    w2 = jnp.zeros((2 * Hp, 2 * Hp), f32)
    w2 = w2.at[:H, :H].set(params["sw2"].astype(f32))
    w2 = w2.at[Hp:Hp + H, Hp:Hp + H].set(params["jw2"].astype(f32))
    b1 = jnp.concatenate([pad_bias(params["sb1"], Hp), pad_bias(params["jb1"], Hp)], axis=-1)
    b2 = jnp.concatenate([pad_bias(params["sb2"], Hp), pad_bias(params["jb2"], Hp)], axis=-1)
    ow1_m = jnp.zeros((2 * Hp, Hp), f32)
    ow1_m = ow1_m.at[:H, :H].set(ow1[:H])
    ow1_m = ow1_m.at[Hp:Hp + H, :H].set(ow1[H:])
    return dict(
        w1=w1.astype(cdt), b1=b1, w2=w2.astype(cdt), b2=b2,
        ow1=ow1_m.astype(cdt), ob1=pad_bias(params["ob1"], Hp),
        ow2=pad_bias(ow2_row, Hp), ob2=ob2,
    )


# ----------------------------------------------------------------------- tiling utils
def _pick_tile_b(batch, tile_b):
    """Lane-aligned batch tile: as large as requested, never tiling far past the batch,
    and preferring >= 2 grid steps so the 'parallel' axis can feed both v7x cores."""
    tile_b = max(128, min(tile_b, pl.cdiv(batch, 128) * 128))
    tile_b -= tile_b % 128
    while tile_b > 128 and pl.cdiv(batch, tile_b) < 2:
        tile_b -= 128
    return tile_b


def _round_lanes(cols):
    return -(-cols // 128) * 128


def _vmem_limit_bytes(tile_b, streamed, hid_cols, weight_bytes):
    """Per-grid-step VMEM budget: double-buffered (lane-padded) input tiles, live f32
    activations, resident weights, plus slack.  Floor 48 MiB (above v5e's 16 MiB /
    v6e's 32 MiB scoped defaults, <= v7x's 64 MiB physical), cap 96 MiB.  If tile_b is
    raised on v7x keep the total under ~48 MiB."""
    total = 0
    n_max = 1
    for rows_per_batch, cols, itemsize in streamed:
        total += 2 * tile_b * rows_per_batch * _round_lanes(cols) * itemsize
        n_max = max(n_max, rows_per_batch)
    total += 4 * tile_b * n_max * _round_lanes(hid_cols) * 4    # live f32 activations
    total += 2 * weight_bytes                                   # resident weight buffers
    total += 4 << 20                                            # output / bias / scratch
    return int(min(max(total, 48 << 20), 96 << 20))


# ---------------------------------------------------------------------------- forward
@functools.partial(jax.jit, static_argnames=("tile_b",))
def nopred_setconv_forward(packed, samples, predicates, joins,
                           sample_mask, predicate_mask, join_mask, *, tile_b=512):
    # predicates / predicate_mask accepted for signature parity, never used (spec).
    del predicates, predicate_mask

    merged = "w1" in packed                 # static: depends on how params were packed
    B, ns, fs = samples.shape
    _, nj, fj = joins.shape
    tile_b = _pick_tile_b(B, tile_b)
    nb = pl.cdiv(B, tile_b)

    out_shape = jax.ShapeDtypeStruct((nb, 1, tile_b), jnp.float32)
    out_spec = pl.BlockSpec((1, 1, tile_b), lambda b: (b, 0, 0))

    def full_spec(a):                       # weights: resident across all grid steps
        nd = a.ndim
        return pl.BlockSpec(a.shape, lambda b: (0,) * nd)

    if merged:
        if ns != nj:
            raise ValueError("merged packing requires equal set sizes for samples and "
                             "joins; use pack_params(..., merge_branches=False).")
        # Interleave features so each row is [sample_feats | join_feats]; masks packed
        # into 2 lanes so VMEM lane-padding is paid once.  No dtype cast here.
        x = jnp.concatenate([samples, joins], axis=-1).reshape(B * ns, fs + fj)
        mask = jnp.concatenate([sample_mask, join_mask], axis=-1)
        mask = mask.astype(jnp.float32).reshape(B * ns, 2)
        weights = [packed[k] for k in _MERGED_WEIGHTS]
        in_specs = ([pl.BlockSpec((tile_b * ns, fs + fj), lambda b: (b, 0)),
                     pl.BlockSpec((tile_b * ns, 2), lambda b: (b, 0))]
                    + [full_spec(w) for w in weights])
        operands = [x, mask] + weights
        kernel = _mscn_kernel_merged
        hid_cols = packed["w2"].shape[-1]
        streamed = [(ns, fs + fj, x.dtype.itemsize), (ns, 2, 4)]
    else:
        # Flatten the set axis into the batch axis (free in HBM); no cast, no pad.
        samples2 = samples.reshape(B * ns, fs)
        joins2 = joins.reshape(B * nj, fj)
        smask2 = sample_mask.astype(jnp.float32).reshape(B * ns, 1)
        jmask2 = join_mask.astype(jnp.float32).reshape(B * nj, 1)
        weights = [packed[k] for k in _SPLIT_WEIGHTS]
        in_specs = ([pl.BlockSpec((tile_b * ns, fs), lambda b: (b, 0)),
                     pl.BlockSpec((tile_b * ns, 1), lambda b: (b, 0)),
                     pl.BlockSpec((tile_b * nj, fj), lambda b: (b, 0)),
                     pl.BlockSpec((tile_b * nj, 1), lambda b: (b, 0))]
                    + [full_spec(w) for w in weights])
        operands = [samples2, smask2, joins2, jmask2] + weights
        kernel = _mscn_kernel_split
        hid_cols = packed["sw2"].shape[-1]
        streamed = [(ns, fs, samples2.dtype.itemsize), (ns, 1, 4),
                    (nj, fj, joins2.dtype.itemsize), (nj, 1, 4)]

    weight_bytes = sum(int(w.size) * w.dtype.itemsize for w in weights)
    vmem_limit = _vmem_limit_bytes(tile_b, streamed, hid_cols, weight_bytes)

    out = pl.pallas_call(
        kernel,
        grid=(nb,),
        out_shape=out_shape,
        in_specs=in_specs,
        out_specs=out_spec,
        compiler_params=pltpu.CompilerParams(
            # independent batch tiles -> shard across TensorCores on v7x
            dimension_semantics=("parallel",),
            vmem_limit_bytes=vmem_limit,
        ),
    )(*operands)

    # Rows >= B of the (ragged) last tile are garbage and sliced off here.
    return out.reshape(nb * tile_b, 1)[:B]


# ------------------------------------------------------------------------- reference
def _reference_forward(params, samples, predicates, joins,
                       sample_mask, predicate_mask, join_mask):
    """Plain-JAX reference matching the PyTorch forward (correctness check)."""
    del predicates, predicate_mask
    hs = jax.nn.relu(samples @ params["sw1"] + params["sb1"])
    hs = jax.nn.relu(hs @ params["sw2"] + params["sb2"])
    hs = hs * sample_mask
    hs = jnp.sum(hs, axis=1) / jnp.sum(sample_mask, axis=1)
    hj = jax.nn.relu(joins @ params["jw1"] + params["jb1"])
    hj = jax.nn.relu(hj @ params["jw2"] + params["jb2"])
    hj = hj * join_mask
    hj = jnp.sum(hj, axis=1) / jnp.sum(join_mask, axis=1)
    hid = jnp.concatenate([hs, hj], axis=1)
    hid = jax.nn.relu(hid @ params["ow1"] + params["ob1"])
    return jax.nn.sigmoid(hid @ params["ow2"] + params["ob2"])


if __name__ == "__main__":
    SAMPLE_FEATS, PREDICATE_FEATS, JOIN_FEATS = 16, 12, 16
    HID = 32
    N_SAMPLES = N_JOINS = 8
    N_PREDS = 8

    key = jax.random.PRNGKey(0)
    k_params, k_data = jax.random.split(key)
    params = init_nopred_setconv_params(
        k_params, SAMPLE_FEATS, PREDICATE_FEATS, JOIN_FEATS, HID)

    def make_inputs(k, B):
        ks = jax.random.split(k, 5)
        samples = jax.random.normal(ks[0], (B, N_SAMPLES, SAMPLE_FEATS), jnp.float32)
        predicates = jax.random.normal(ks[1], (B, N_PREDS, PREDICATE_FEATS), jnp.float32)
        joins = jax.random.normal(ks[2], (B, N_JOINS, JOIN_FEATS), jnp.float32)
        s_valid = jax.random.randint(ks[3], (B,), 1, N_SAMPLES + 1)
        j_valid = jax.random.randint(ks[4], (B,), 1, N_JOINS + 1)
        sample_mask = (jnp.arange(N_SAMPLES)[None, :, None]
                       < s_valid[:, None, None]).astype(jnp.float32)
        join_mask = (jnp.arange(N_JOINS)[None, :, None]
                     < j_valid[:, None, None]).astype(jnp.float32)
        predicate_mask = jnp.ones((B, N_PREDS, 1), jnp.float32)   # unused by the model
        return samples, predicates, joins, sample_mask, predicate_mask, join_mask

    inputs_small = make_inputs(jax.random.fold_in(k_data, 0), 2)     # B < one tile
    inputs_big = make_inputs(jax.random.fold_in(k_data, 1), 300)     # ragged multi-tile
    ref_small = _reference_forward(params, *inputs_small)
    ref_big = _reference_forward(params, *inputs_big)

    # ---- merged (block-diagonal) path: the v6e / v7x default ------------------------
    packed_m_f32 = pack_params(params, compute_dtype=jnp.float32, merge_branches=True)
    out = jax.block_until_ready(nopred_setconv_forward(packed_m_f32, *inputs_small))
    assert out.shape == (2, 1)
    assert jnp.allclose(out, ref_small, atol=1e-2), (out, ref_small)   # approx recip
    out = jax.block_until_ready(nopred_setconv_forward(packed_m_f32, *inputs_big))
    assert out.shape == (300, 1)
    assert jnp.allclose(out, ref_big, atol=1e-2)

    packed_m_bf16 = pack_params(params, merge_branches=True)          # bf16 is default
    out = jax.block_until_ready(nopred_setconv_forward(packed_m_bf16, *inputs_big))
    assert out.shape == (300, 1)
    assert jnp.allclose(out, ref_big, atol=3e-2)                       # bf16 operands

    # ---- split-branch fallback path: v5e / unequal set sizes ------------------------
    packed_s_bf16 = pack_params(params, merge_branches=False)
    out = jax.block_until_ready(nopred_setconv_forward(packed_s_bf16, *inputs_big))
    assert out.shape == (300, 1)
    assert jnp.allclose(out, ref_big, atol=3e-2)

    packed_s_f32 = pack_params(params, compute_dtype=jnp.float32, merge_branches=False)
    out = jax.block_until_ready(nopred_setconv_forward(packed_s_f32, *inputs_small))
    assert out.shape == (2, 1)
    assert jnp.allclose(out, ref_small, atol=1e-2)

    print("KERNEL_OK")
</pallas_src>

<mosaic_0001>
module attributes {stable_mosaic.version = 11 : i64} {
  func.func @_mscn_kernel_merged(%arg0: i32, %arg1: memref<1024x32xf32, #tpu.memory_space<vmem>>, %arg2: memref<1024x2xf32, #tpu.memory_space<vmem>>, %arg3: memref<32x256xf32, #tpu.memory_space<vmem>>, %arg4: memref<1x256xf32, #tpu.memory_space<vmem>>, %arg5: memref<256x256xf32, #tpu.memory_space<vmem>>, %arg6: memref<1x256xf32, #tpu.memory_space<vmem>>, %arg7: memref<256x128xf32, #tpu.memory_space<vmem>>, %arg8: memref<1x128xf32, #tpu.memory_space<vmem>>, %arg9: memref<1x128xf32, #tpu.memory_space<vmem>>, %arg10: memref<1x1xf32, #tpu.memory_space<vmem>>, %arg11: memref<1x1x128xf32, #tpu.memory_space<vmem>>) attributes {dimension_semantics = [#tpu.dimension_semantics<parallel>], iteration_bounds = array<i64: 1>, scalar_prefetch = 0 : i64, scratch_operands = 0 : i64, tpu.core_type = #tpu.core_type<tc>, window_params = [{transform_indices = @transform_0, window_bounds = array<i64: 1024, 32>}, {transform_indices = @transform_1, window_bounds = array<i64: 1024, 2>}, {pipeline_mode = #tpu.pipeline_mode<synchronous>, transform_indices = @transform_2, window_bounds = array<i64: 32, 256>}, {pipeline_mode = #tpu.pipeline_mode<synchronous>, transform_indices = @transform_3, window_bounds = array<i64: 1, 256>}, {pipeline_mode = #tpu.pipeline_mode<synchronous>, transform_indices = @transform_4, window_bounds = array<i64: 256, 256>}, {pipeline_mode = #tpu.pipeline_mode<synchronous>, transform_indices = @transform_5, window_bounds = array<i64: 1, 256>}, {pipeline_mode = #tpu.pipeline_mode<synchronous>, transform_indices = @transform_6, window_bounds = array<i64: 256, 128>}, {pipeline_mode = #tpu.pipeline_mode<synchronous>, transform_indices = @transform_7, window_bounds = array<i64: 1, 128>}, {pipeline_mode = #tpu.pipeline_mode<synchronous>, transform_indices = @transform_8, window_bounds = array<i64: 1, 128>}, {pipeline_mode = #tpu.pipeline_mode<synchronous>, transform_indices = @transform_9, window_bounds = array<i64: 1, 1>}, {transform_indices = @transform_10, window_bounds = array<i64: 1, 1, 128>}]} {
    %c0 = arith.constant 0 : index
    %c0_0 = arith.constant 0 : index
    %0 = vector.load %arg1[%c0, %c0_0] : memref<1024x32xf32, #tpu.memory_space<vmem>>, vector<1024x32xf32>
    %c0_1 = arith.constant 0 : index
    %c0_2 = arith.constant 0 : index
    %1 = vector.load %arg3[%c0_1, %c0_2] : memref<32x256xf32, #tpu.memory_space<vmem>>, vector<32x256xf32>
    %cst = arith.constant dense<0.000000e+00> : vector<1024x256xf32>
    %2 = tpu.matmul %0, %1, %cst {dimension_numbers = #tpu.dot_dimension_numbers<[1], [0], [0], [1], [0, 0, 1, 1], [], []>} : vector<1024x32xf32>, vector<32x256xf32>, vector<1024x256xf32> -> vector<1024x256xf32>
    %c0_3 = arith.constant 0 : index
    %c0_4 = arith.constant 0 : index
    %3 = vector.load %arg4[%c0_3, %c0_4] : memref<1x256xf32, #tpu.memory_space<vmem>>, vector<1x256xf32>
    %4 = vector.broadcast %3 : vector<1x256xf32> to vector<1024x256xf32>
    %5 = arith.addf %2, %4 : vector<1024x256xf32>
    %cst_5 = arith.constant 0.000000e+00 : f32
    %6 = vector.broadcast %cst_5 : f32 to vector<1024x256xf32>
    %7 = arith.maximumf %5, %6 : vector<1024x256xf32>
    %c0_6 = arith.constant 0 : index
    %c0_7 = arith.constant 0 : index
    %8 = vector.load %arg5[%c0_6, %c0_7] : memref<256x256xf32, #tpu.memory_space<vmem>>, vector<256x256xf32>
    %cst_8 = arith.constant dense<0.000000e+00> : vector<1024x256xf32>
    %9 = tpu.matmul %7, %8, %cst_8 {dimension_numbers = #tpu.dot_dimension_numbers<[1], [0], [0], [1], [0, 0, 1, 1], [], []>} : vector<1024x256xf32>, vector<256x256xf32>, vector<1024x256xf32> -> vector<1024x256xf32>
    %c0_9 = arith.constant 0 : index
    %c0_10 = arith.constant 0 : index
    %10 = vector.load %arg6[%c0_9, %c0_10] : memref<1x256xf32, #tpu.memory_space<vmem>>, vector<1x256xf32>
    %11 = vector.broadcast %10 : vector<1x256xf32> to vector<1024x256xf32>
    %12 = arith.addf %9, %11 : vector<1024x256xf32>
    %cst_11 = arith.constant 0.000000e+00 : f32
    %13 = vector.broadcast %cst_11 : f32 to vector<1024x256xf32>
    %14 = arith.maximumf %12, %13 : vector<1024x256xf32>
    %c0_12 = arith.constant 0 : index
    %c0_13 = arith.constant 0 : index
    %15 = vector.load %arg2[%c0_12, %c0_13] : memref<1024x2xf32, #tpu.memory_space<vmem>>, vector<1024x2xf32>
    %16 = tpu.iota {dimensions = array<i32: 1>} : vector<1024x256xi32>
    %c128_i32 = arith.constant 128 : i32
    %17 = vector.broadcast %c128_i32 : i32 to vector<1024x256xi32>
    %18 = arith.cmpi slt, %16, %17 : vector<1024x256xi32>
    %19 = vector.extract_strided_slice %15 {offsets = [0, 0], sizes = [1024, 1], strides = [1, 1]} : vector<1024x2xf32> to vector<1024x1xf32>
    %20 = vector.extract_strided_slice %15 {offsets = [0, 1], sizes = [1024, 1], strides = [1, 1]} : vector<1024x2xf32> to vector<1024x1xf32>
    %21 = vector.shape_cast %19 : vector<1024x1xf32> to vector<1024x1xf32>
    %22 = vector.broadcast %21 : vector<1024x1xf32> to vector<1024x256xf32>
    %23 = vector.shape_cast %20 : vector<1024x1xf32> to vector<1024x1xf32>
    %24 = vector.broadcast %23 : vector<1024x1xf32> to vector<1024x256xf32>
    %25 = arith.select %18, %22, %24 : vector<1024x256xi1>, vector<1024x256xf32>
    %26 = arith.mulf %14, %25 : vector<1024x256xf32>
    %27 = vector.shape_cast %26 : vector<1024x256xf32> to vector<128x8x256xf32>
    %cst_14 = arith.constant dense<0.000000e+00> : vector<128x256xf32>
    %28 = vector.multi_reduction <add>, %27, %cst_14 [1] : vector<128x8x256xf32> to vector<128x256xf32>
    %29 = vector.shape_cast %15 : vector<1024x2xf32> to vector<128x8x2xf32>
    %cst_15 = arith.constant dense<0.000000e+00> : vector<128x2xf32>
    %30 = vector.multi_reduction <add>, %29, %cst_15 [1] : vector<128x8x2xf32> to vector<128x2xf32>
    %cst_16 = arith.constant 1.000000e-30 : f32
    %31 = vector.broadcast %cst_16 : f32 to vector<128x2xf32>
    %32 = arith.maximumf %30, %31 : vector<128x2xf32>
    %33 = tpu.reciprocal %32 {approx = true} : vector<128x2xf32> -> vector<128x2xf32>
    %34 = tpu.iota {dimensions = array<i32: 1>} : vector<128x256xi32>
    %c128_i32_17 = arith.constant 128 : i32
    %35 = vector.broadcast %c128_i32_17 : i32 to vector<128x256xi32>
    %36 = arith.cmpi slt, %34, %35 : vector<128x256xi32>
    %37 = vector.extract_strided_slice %33 {offsets = [0, 0], sizes = [128, 1], strides = [1, 1]} : vector<128x2xf32> to vector<128x1xf32>
    %38 = vector.extract_strided_slice %33 {offsets = [0, 1], sizes = [128, 1], strides = [1, 1]} : vector<128x2xf32> to vector<128x1xf32>
    %39 = vector.shape_cast %37 : vector<128x1xf32> to vector<128x1xf32>
    %40 = vector.broadcast %39 : vector<128x1xf32> to vector<128x256xf32>
    %41 = vector.shape_cast %38 : vector<128x1xf32> to vector<128x1xf32>
    %42 = vector.broadcast %41 : vector<128x1xf32> to vector<128x256xf32>
    %43 = arith.select %36, %40, %42 : vector<128x256xi1>, vector<128x256xf32>
    %44 = arith.mulf %28, %43 : vector<128x256xf32>
    %c0_18 = arith.constant 0 : index
    %c0_19 = arith.constant 0 : index
    %45 = vector.load %arg7[%c0_18, %c0_19] : memref<256x128xf32, #tpu.memory_space<vmem>>, vector<256x128xf32>
    %cst_20 = arith.constant dense<0.000000e+00> : vector<128x128xf32>
    %46 = tpu.matmul %44, %45, %cst_20 {dimension_numbers = #tpu.dot_dimension_numbers<[1], [0], [0], [1], [0, 0, 1, 1], [], []>} : vector<128x256xf32>, vector<256x128xf32>, vector<128x128xf32> -> vector<128x128xf32>
    %c0_21 = arith.constant 0 : index
    %c0_22 = arith.constant 0 : index
    %47 = vector.load %arg8[%c0_21, %c0_22] : memref<1x128xf32, #tpu.memory_space<vmem>>, vector<1x128xf32>
    %48 = vector.broadcast %47 : vector<1x128xf32> to vector<128x128xf32>
    %49 = arith.addf %46, %48 : vector<128x128xf32>
    %cst_23 = arith.constant 0.000000e+00 : f32
    %50 = vector.broadcast %cst_23 : f32 to vector<128x128xf32>
    %51 = arith.maximumf %49, %50 : vector<128x128xf32>
    %c0_24 = arith.constant 0 : index
    %c0_25 = arith.constant 0 : index
    %52 = vector.load %arg9[%c0_24, %c0_25] : memref<1x128xf32, #tpu.memory_space<vmem>>, vector<1x128xf32>
    %53 = vector.broadcast %52 : vector<1x128xf32> to vector<128x128xf32>
    %54 = arith.mulf %51, %53 : vector<128x128xf32>
    %cst_26 = arith.constant dense<0.000000e+00> : vector<128xf32>
    %55 = vector.multi_reduction <add>, %54, %cst_26 [1] : vector<128x128xf32> to vector<128xf32>
    %56 = vector.shape_cast %55 : vector<128xf32> to vector<128x1xf32>
    %c0_27 = arith.constant 0 : index
    %c0_28 = arith.constant 0 : index
    %57 = vector.load %arg10[%c0_27, %c0_28] : memref<1x1xf32, #tpu.memory_space<vmem>>, vector<1x1xf32>
    %58 = vector.broadcast %57 : vector<1x1xf32> to vector<128x1xf32>
    %59 = arith.addf %56, %58 : vector<128x1xf32>
    %60 = arith.negf %59 : vector<128x1xf32>
    %61 = math.exp %60 : vector<128x1xf32>
    %cst_29 = arith.constant 1.000000e+00 : f32
    %62 = vector.broadcast %cst_29 : f32 to vector<128x1xf32>
    %63 = arith.addf %62, %61 : vector<128x1xf32>
    %64 = arith.divf %62, %63 : vector<128x1xf32>
    %65 = tpu.transpose %64, [1, 0] : vector<128x1xf32> -> vector<1x128xf32>
    %66 = vector.shape_cast %65 : vector<1x128xf32> to vector<1x1x128xf32>
    %c0_30 = arith.constant 0 : index
    %c0_31 = arith.constant 0 : index
    %c0_32 = arith.constant 0 : index
    %67 = vector.load %arg11[%c0_30, %c0_31, %c0_32] : memref<1x1x128xf32, #tpu.memory_space<vmem>>, vector<1x1x128xf32>
    tpu.vector_store %arg11[%c0_30, %c0_31, %c0_32], %66 {strides = array<i32>} : memref<1x1x128xf32, #tpu.memory_space<vmem>>, vector<1x1x128xf32>,
    return
  }
  func.func @transform_0(%arg0: i32) -> (i32, i32) {
    %c0_i32 = arith.constant 0 : i32
    %c0_i32_0 = arith.constant 0 : i32
    return %arg0, %c0_i32 : i32, i32
  }
  func.func @transform_1(%arg0: i32) -> (i32, i32) {
    %c0_i32 = arith.constant 0 : i32
    %c0_i32_0 = arith.constant 0 : i32
    return %arg0, %c0_i32 : i32, i32
  }
  func.func @transform_2(%arg0: i32) -> (i32, i32) {
    %c0_i32 = arith.constant 0 : i32
    %c0_i32_0 = arith.constant 0 : i32
    %c0_i32_1 = arith.constant 0 : i32
    return %c0_i32, %c0_i32_0 : i32, i32
  }
  func.func @transform_3(%arg0: i32) -> (i32, i32) {
    %c0_i32 = arith.constant 0 : i32
    %c0_i32_0 = arith.constant 0 : i32
    %c0_i32_1 = arith.constant 0 : i32
    return %c0_i32, %c0_i32_0 : i32, i32
  }
  func.func @transform_4(%arg0: i32) -> (i32, i32) {
    %c0_i32 = arith.constant 0 : i32
    %c0_i32_0 = arith.constant 0 : i32
    %c0_i32_1 = arith.constant 0 : i32
    return %c0_i32, %c0_i32_0 : i32, i32
  }
  func.func @transform_5(%arg0: i32) -> (i32, i32) {
    %c0_i32 = arith.constant 0 : i32
    %c0_i32_0 = arith.constant 0 : i32
    %c0_i32_1 = arith.constant 0 : i32
    return %c0_i32, %c0_i32_0 : i32, i32
  }
  func.func @transform_6(%arg0: i32) -> (i32, i32) {
    %c0_i32 = arith.constant 0 : i32
    %c0_i32_0 = arith.constant 0 : i32
    %c0_i32_1 = arith.constant 0 : i32
    return %c0_i32, %c0_i32_0 : i32, i32
  }
  func.func @transform_7(%arg0: i32) -> (i32, i32) {
    %c0_i32 = arith.constant 0 : i32
    %c0_i32_0 = arith.constant 0 : i32
    %c0_i32_1 = arith.constant 0 : i32
    return %c0_i32, %c0_i32_0 : i32, i32
  }
  func.func @transform_8(%arg0: i32) -> (i32, i32) {
    %c0_i32 = arith.constant 0 : i32
    %c0_i32_0 = arith.constant 0 : i32
    %c0_i32_1 = arith.constant 0 : i32
    return %c0_i32, %c0_i32_0 : i32, i32
  }
  func.func @transform_9(%arg0: i32) -> (i32, i32) {
    %c0_i32 = arith.constant 0 : i32
    %c0_i32_0 = arith.constant 0 : i32
    %c0_i32_1 = arith.constant 0 : i32
    return %c0_i32, %c0_i32_0 : i32, i32
  }
  func.func @transform_10(%arg0: i32) -> (i32, i32, i32) {
    %c0_i32 = arith.constant 0 : i32
    %c0_i32_0 = arith.constant 0 : i32
    %c0_i32_1 = arith.constant 0 : i32
    return %arg0, %c0_i32, %c0_i32_0 : i32, i32, i32
  }
}

</mosaic_0001>

<llo_original>
// kernel: nopred_setconv_forward.1
$region0: #{nopred_setconv_forward.1}
  #allocation0 [shape = 'u32[]', space=smem, size = 0x4, offset = 0x4, fixed_abs, tag = 'smem constant byte address 0x4 - core index']
  #allocation1 [shape = 'u32[144,128]{1,0:T(1,128)}', space=vmem, size = 0x12000, scoped, tag = 'internal scratch']
  #allocation2 [shape = 'f32[1,1]{1,0:T(1,128)S(1)}', space=vmem, size = 0x200, scoped, tag = 'scoped memory for nopred_setconv_forward.1']
  %s0 = inlined_call_operand.vmem [shape: f32[16,32], index: 0, kind: input, shape index: {}]
  %s1 = inlined_call_operand.vmem [shape: f32[16,2], index: 1, kind: input, shape index: {}]
  %s2 = inlined_call_operand.vmem [shape: f32[32,256], index: 2, kind: input, shape index: {}]
  %s3 = inlined_call_operand.vmem [shape: f32[1,256], index: 3, kind: input, shape index: {}]
  %s4 = inlined_call_operand.hbm [shape: f32[256,256], index: 4, kind: input, shape index: {}]
  %s5 = inlined_call_operand.vmem [shape: f32[1,256], index: 5, kind: input, shape index: {}]
  %s6 = inlined_call_operand.hbm [shape: f32[256,128], index: 6, kind: input, shape index: {}]
  %s7 = inlined_call_operand.vmem [shape: f32[1,128], index: 7, kind: input, shape index: {}]
  %s8 = inlined_call_operand.vmem [shape: f32[1,128], index: 8, kind: input, shape index: {}]
  %s9 = inlined_call_operand.<no memory space> [shape: f32[1,1], index: 9, kind: input, shape index: {}]
  %s10 = inlined_call_operand.vmem [shape: f32[1,1,128], index: 10, kind: output, shape index: {}]
  %s11 = sld [smem:[#allocation0]]
  $region58: #{nopred_setconv_forward.1} parent=0
    _
  %s13 = ssub.s32 1, %s11
  %s14 = scalar_select 0, %s13, %s11
  %v15 = vstv %s9
  %16 = vst [vmem:[#allocation2] sm:$0x1] %v15
  $region1: #{nopred_setconv_forward.1} parent=0
    #allocation3 [shape = 'u8[262144]{0}', space=vmem, size = 0x40000, scoped, tag = 'input window, operand 4, single buffered']
    #allocation4 [shape = 's32[1]{0}', space=sflag, size = 0x4, scoped, tag = 'scoped memory for nopred_setconv_forward.1']
    #allocation5 [shape = 'u8[131072]{0}', space=vmem, size = 0x20000, scoped, tag = 'input window, operand 6, single buffered']
    #allocation6 [shape = 's32[1]{0}', space=sflag, size = 0x4, scoped, tag = 'scoped memory for nopred_setconv_forward.1']
    %17 = vsyncpa [#allocation4], 0
    %18 = vsyncpa [#allocation6], 0
    // Predicated region
    $region2: #{nopred_setconv_forward.1} parent=1 // pred_check
      _
    $region3: #{nopred_setconv_forward.1} parent=1 // pred_check_branch
      %20 = sbr.rel (0) target = $region5
    $region4: #{nopred_setconv_forward.1} parent=1 // pred_region
      _
    $region5: #{nopred_setconv_forward.1} parent=1 // pred_fallthru
      _
    // Predicated region
    $region6: #{nopred_setconv_forward.1} parent=1 // pred_check
      _
    $region7: #{nopred_setconv_forward.1} parent=1 // pred_check_branch
      %22 = sbr.rel (0) target = $region9
    $region8: #{nopred_setconv_forward.1} parent=1 // pred_region
      _
    $region9: #{nopred_setconv_forward.1} parent=1 // pred_fallthru
      _
    // Predicated region
    $region10: #{nopred_setconv_forward.1} parent=1 // pred_check
      _
    $region11: #{nopred_setconv_forward.1} parent=1 // pred_check_branch
      %24 = sbr.rel (0) target = $region13
    $region12: #{nopred_setconv_forward.1} parent=1 // pred_region
      _
    $region13: #{nopred_setconv_forward.1} parent=1 // pred_fallthru
      _
    // Predicated region
    $region14: #{nopred_setconv_forward.1} parent=1 // pred_check
      _
    $region15: #{nopred_setconv_forward.1} parent=1 // pred_check_branch
      %26 = sbr.rel (0) target = $region17
    $region16: #{nopred_setconv_forward.1} parent=1 // pred_region
      _
    $region17: #{nopred_setconv_forward.1} parent=1 // pred_fallthru
      _
    // Predicated region
    $region18: #{nopred_setconv_forward.1} parent=1 // pred_check
      _
    $region19: #{nopred_setconv_forward.1} parent=1 // pred_check_branch
      %28 = sbr.rel (0) target = $region21
    $region20: #{nopred_setconv_forward.1} parent=1 // pred_region
      %s30 = ssub.s32 8192, 8192
      %31 = vsyncadd [#allocation4], %s30
      %s32 = sshll.u32 [#allocation3], 4
      %s33 = int_to_ptr.vmem [resolvable:$true] %s32
      %38 = dma.hbm_to_vmem [thread:$0]  %s4, 8192, %s33, [#allocation4], 256, 256, 16
    $region21: #{nopred_setconv_forward.1} parent=1 // pred_fallthru
      _
    // Predicated region
    $region22: #{nopred_setconv_forward.1} parent=1 // pred_check
      _
    $region23: #{nopred_setconv_forward.1} parent=1 // pred_check_branch
      %40 = sbr.rel (0) target = $region25
    $region24: #{nopred_setconv_forward.1} parent=1 // pred_region
      _
    $region25: #{nopred_setconv_forward.1} parent=1 // pred_fallthru
      _
    // Predicated region
    $region26: #{nopred_setconv_forward.1} parent=1 // pred_check
      _
    $region27: #{nopred_setconv_forward.1} parent=1 // pred_check_branch
      %42 = sbr.rel (0) target = $region29
    $region28: #{nopred_setconv_forward.1} parent=1 // pred_region
      %s44 = ssub.s32 4096, 4096
      %45 = vsyncadd [#allocation6], %s44
      %s46 = sshll.u32 [#allocation5], 4
      %s47 = int_to_ptr.vmem [resolvable:$true] %s46
      %52 = dma.hbm_to_vmem [thread:$0]  %s6, 4096, %s47, [#allocation6], 128, 128, 8
    $region29: #{nopred_setconv_forward.1} parent=1 // pred_fallthru
      _
    // Predicated region
    $region30: #{nopred_setconv_forward.1} parent=1 // pred_check
      _
    $region31: #{nopred_setconv_forward.1} parent=1 // pred_check_branch
      %54 = sbr.rel (0) target = $region33
    $region32: #{nopred_setconv_forward.1} parent=1 // pred_region
      _
    $region33: #{nopred_setconv_forward.1} parent=1 // pred_fallthru
      _
    // Predicated region
    $region34: #{nopred_setconv_forward.1} parent=1 // pred_check
      _
    $region35: #{nopred_setconv_forward.1} parent=1 // pred_check_branch
      %56 = sbr.rel (0) target = $region37
    $region36: #{nopred_setconv_forward.1} parent=1 // pred_region
      _
    $region37: #{nopred_setconv_forward.1} parent=1 // pred_fallthru
      _
    // Predicated region
    $region38: #{nopred_setconv_forward.1} parent=1 // pred_check
      _
    $region39: #{nopred_setconv_forward.1} parent=1 // pred_check_branch
      %58 = sbr.rel (0) target = $region41
    $region40: #{nopred_setconv_forward.1} parent=1 // pred_region
      _
    $region41: #{nopred_setconv_forward.1} parent=1 // pred_fallthru
      _
    // Predicated region
    $region42: #{nopred_setconv_forward.1} parent=1 // pred_check
      _
    $region43: #{nopred_setconv_forward.1} parent=1 // pred_check_branch
      %60 = sbr.rel (0) target = $region45
    $region44: #{nopred_setconv_forward.1} parent=1 // pred_region
      %61 = dma.done [#allocation4], 8192
    $region45: #{nopred_setconv_forward.1} parent=1 // pred_fallthru
      _
    // Predicated region
    $region46: #{nopred_setconv_forward.1} parent=1 // pred_check
      _
    $region47: #{nopred_setconv_forward.1} parent=1 // pred_check_branch
      %63 = sbr.rel (0) target = $region49
    $region48: #{nopred_setconv_forward.1} parent=1 // pred_region
      %64 = dma.done [#allocation6], 4096
    $region49: #{nopred_setconv_forward.1} parent=1 // pred_fallthru
      _
    %v65 = vld [vmem:[%s0] sm:$0xff]
    %v66 = vld [vmem:[%s0 + $0x8] sm:$0xff]
    %v67 = vld [vmem:[%s0 + $0x10] sm:$0xff]
    %v68 = vld [vmem:[%s0 + $0x18] sm:$0xff]
    %v69 = vld [vmem:[%s0 + $0x20] sm:$0xff]
    %v70 = vld [vmem:[%s0 + $0x28] sm:$0xff]
    %v71 = vld [vmem:[%s0 + $0x30] sm:$0xff]
    %v72 = vld [vmem:[%s0 + $0x38] sm:$0xff]
    %v73 = vld [vmem:[%s0 + $0x40] sm:$0xff]
    %v74 = vld [vmem:[%s0 + $0x48] sm:$0xff]
    %v75 = vld [vmem:[%s0 + $0x50] sm:$0xff]
    %v76 = vld [vmem:[%s0 + $0x58] sm:$0xff]
    %v77 = vld [vmem:[%s0 + $0x60] sm:$0xff]
    %v78 = vld [vmem:[%s0 + $0x68] sm:$0xff]
    %v79 = vld [vmem:[%s0 + $0x70] sm:$0xff]
    %v80 = vld [vmem:[%s0 + $0x78] sm:$0xff]
    %v81 = vld [vmem:[%s0 + $0x80] sm:$0xff]
    %v82 = vld [vmem:[%s0 + $0x88] sm:$0xff]
    %v83 = vld [vmem:[%s0 + $0x90] sm:$0xff]
    %v84 = vld [vmem:[%s0 + $0x98] sm:$0xff]
    %v85 = vld [vmem:[%s0 + $0xa0] sm:$0xff]
    %v86 = vld [vmem:[%s0 + $0xa8] sm:$0xff]
    %v87 = vld [vmem:[%s0 + $0xb0] sm:$0xff]
    %v88 = vld [vmem:[%s0 + $0xb8] sm:$0xff]
    %v89 = vld [vmem:[%s0 + $0xc0] sm:$0xff]
    %v90 = vld [vmem:[%s0 + $0xc8] sm:$0xff]
    %v91 = vld [vmem:[%s0 + $0xd0] sm:$0xff]
    %v92 = vld [vmem:[%s0 + $0xd8] sm:$0xff]
    %v93 = vld [vmem:[%s0 + $0xe0] sm:$0xff]
    %v94 = vld [vmem:[%s0 + $0xe8] sm:$0xff]
    %v95 = vld [vmem:[%s0 + $0xf0] sm:$0xff]
    %v96 = vld [vmem:[%s0 + $0xf8] sm:$0xff]
    %v97 = vld [vmem:[%s0 + $0x100] sm:$0xff]
    %v98 = vld [vmem:[%s0 + $0x108] sm:$0xff]
    %v99 = vld [vmem:[%s0 + $0x110] sm:$0xff]
    %v100 = vld [vmem:[%s0 + $0x118] sm:$0xff]
    %v101 = vld [vmem:[%s0 + $0x120] sm:$0xff]
    %v102 = vld [vmem:[%s0 + $0x128] sm:$0xff]
    %v103 = vld [vmem:[%s0 + $0x130] sm:$0xff]
    %v104 = vld [vmem:[%s0 + $0x138] sm:$0xff]
    %v105 = vld [vmem:[%s0 + $0x140] sm:$0xff]
    %v106 = vld [vmem:[%s0 + $0x148] sm:$0xff]
    %v107 = vld [vmem:[%s0 + $0x150] sm:$0xff]
    %v108 = vld [vmem:[%s0 + $0x158] sm:$0xff]
    %v109 = vld [vmem:[%s0 + $0x160] sm:$0xff]
    %v110 = vld [vmem:[%s0 + $0x168] sm:$0xff]
    %v111 = vld [vmem:[%s0 + $0x170] sm:$0xff]
    %v112 = vld [vmem:[%s0 + $0x178] sm:$0xff]
    %v113 = vld [vmem:[%s0 + $0x180] sm:$0xff]
    %v114 = vld [vmem:[%s0 + $0x188] sm:$0xff]
    %v115 = vld [vmem:[%s0 + $0x190] sm:$0xff]
    %v116 = vld [vmem:[%s0 + $0x198] sm:$0xff]
    %v117 = vld [vmem:[%s0 + $0x1a0] sm:$0xff]
    %v118 = vld [vmem:[%s0 + $0x1a8] sm:$0xff]
    %v119 = vld [vmem:[%s0 + $0x1b0] sm:$0xff]
    %v120 = vld [vmem:[%s0 + $0x1b8] sm:$0xff]
    %v121 = vld [vmem:[%s0 + $0x1c0] sm:$0xff]
    %v122 = vld [vmem:[%s0 + $0x1c8] sm:$0xff]
    %v123 = vld [vmem:[%s0 + $0x1d0] sm:$0xff]
    %v124 = vld [vmem:[%s0 + $0x1d8] sm:$0xff]
    %v125 = vld [vmem:[%s0 + $0x1e0] sm:$0xff]
    %v126 = vld [vmem:[%s0 + $0x1e8] sm:$0xff]
    %v127 = vld [vmem:[%s0 + $0x1f0] sm:$0xff]
    %v128 = vld [vmem:[%s0 + $0x1f8] sm:$0xff]
    %v129 = vld [vmem:[%s0 + $0x200] sm:$0xff]
    %v130 = vld [vmem:[%s0 + $0x208] sm:$0xff]
    %v131 = vld [vmem:[%s0 + $0x210] sm:$0xff]
    %v132 = vld [vmem:[%s0 + $0x218] sm:$0xff]
    %v133 = vld [vmem:[%s0 + $0x220] sm:$0xff]
    %v134 = vld [vmem:[%s0 + $0x228] sm:$0xff]
    %v135 = vld [vmem:[%s0 + $0x230] sm:$0xff]
    %v136 = vld [vmem:[%s0 + $0x238] sm:$0xff]
    %v137 = vld [vmem:[%s0 + $0x240] sm:$0xff]
    %v138 = vld [vmem:[%s0 + $0x248] sm:$0xff]
    %v139 = vld [vmem:[%s0 + $0x250] sm:$0xff]
    %v140 = vld [vmem:[%s0 + $0x258] sm:$0xff]
    %v141 = vld [vmem:[%s0 + $0x260] sm:$0xff]
    %v142 = vld [vmem:[%s0 + $0x268] sm:$0xff]
    %v143 = vld [vmem:[%s0 + $0x270] sm:$0xff]
    %v144 = vld [vmem:[%s0 + $0x278] sm:$0xff]
    %v145 = vld [vmem:[%s0 + $0x280] sm:$0xff]
    %v146 = vld [vmem:[%s0 + $0x288] sm:$0xff]
    %v147 = vld [vmem:[%s0 + $0x290] sm:$0xff]
    %v148 = vld [vmem:[%s0 + $0x298] sm:$0xff]
    %v149 = vld [vmem:[%s0 + $0x2a0] sm:$0xff]
    %v150 = vld [vmem:[%s0 + $0x2a8] sm:$0xff]
    %v151 = vld [vmem:[%s0 + $0x2b0] sm:$0xff]
    %v152 = vld [vmem:[%s0 + $0x2b8] sm:$0xff]
    %v153 = vld [vmem:[%s0 + $0x2c0] sm:$0xff]
    %v154 = vld [vmem:[%s0 + $0x2c8] sm:$0xff]
    %v155 = vld [vmem:[%s0 + $0x2d0] sm:$0xff]
    %v156 = vld [vmem:[%s0 + $0x2d8] sm:$0xff]
    %v157 = vld [vmem:[%s0 + $0x2e0] sm:$0xff]
    %v158 = vld [vmem:[%s0 + $0x2e8] sm:$0xff]
    %v159 = vld [vmem:[%s0 + $0x2f0] sm:$0xff]
    %v160 = vld [vmem:[%s0 + $0x2f8] sm:$0xff]
    %v161 = vld [vmem:[%s0 + $0x300] sm:$0xff]
    %v162 = vld [vmem:[%s0 + $0x308] sm:$0xff]
    %v163 = vld [vmem:[%s0 + $0x310] sm:$0xff]
    %v164 = vld [vmem:[%s0 + $0x318] sm:$0xff]
    %v165 = vld [vmem:[%s0 + $0x320] sm:$0xff]
    %v166 = vld [vmem:[%s0 + $0x328] sm:$0xff]
    %v167 = vld [vmem:[%s0 + $0x330] sm:$0xff]
    %v168 = vld [vmem:[%s0 + $0x338] sm:$0xff]
    %v169 = vld [vmem:[%s0 + $0x340] sm:$0xff]
    %v170 = vld [vmem:[%s0 + $0x348] sm:$0xff]
    %v171 = vld [vmem:[%s0 + $0x350] sm:$0xff]
    %v172 = vld [vmem:[%s0 + $0x358] sm:$0xff]
    %v173 = vld [vmem:[%s0 + $0x360] sm:$0xff]
    %v174 = vld [vmem:[%s0 + $0x368] sm:$0xff]
    %v175 = vld [vmem:[%s0 + $0x370] sm:$0xff]
    %v176 = vld [vmem:[%s0 + $0x378] sm:$0xff]
    %v177 = vld [vmem:[%s0 + $0x380] sm:$0xff]
    %v178 = vld [vmem:[%s0 + $0x388] sm:$0xff]
    %v179 = vld [vmem:[%s0 + $0x390] sm:$0xff]
    %v180 = vld [vmem:[%s0 + $0x398] sm:$0xff]
    %v181 = vld [vmem:[%s0 + $0x3a0] sm:$0xff]
    %v182 = vld [vmem:[%s0 + $0x3a8] sm:$0xff]
    %v183 = vld [vmem:[%s0 + $0x3b0] sm:$0xff]
    %v184 = vld [vmem:[%s0 + $0x3b8] sm:$0xff]
    %v185 = vld [vmem:[%s0 + $0x3c0] sm:$0xff]
    %v186 = vld [vmem:[%s0 + $0x3c8] sm:$0xff]
    %v187 = vld [vmem:[%s0 + $0x3d0] sm:$0xff]
    %v188 = vld [vmem:[%s0 + $0x3d8] sm:$0xff]
    %v189 = vld [vmem:[%s0 + $0x3e0] sm:$0xff]
    %v190 = vld [vmem:[%s0 + $0x3e8] sm:$0xff]
    %v191 = vld [vmem:[%s0 + $0x3f0] sm:$0xff]
    %v192 = vld [vmem:[%s0 + $0x3f8] sm:$0xff]
    %v193 = vld [vmem:[%s2] sm:$0xff]
    %v194 = vld [vmem:[%s2 + $0x8] sm:$0xff]
    %v195 = vld [vmem:[%s2 + $0x10] sm:$0xff]
    %v196 = vld [vmem:[%s2 + $0x18] sm:$0xff]
    %v197 = vld [vmem:[%s2 + $0x20] sm:$0xff]
    %v198 = vld [vmem:[%s2 + $0x28] sm:$0xff]
    %v199 = vld [vmem:[%s2 + $0x30] sm:$0xff]
    %v200 = vld [vmem:[%s2 + $0x38] sm:$0xff]
    %v201 = vld [vmem:[%s3] sm:$0x3]
    %v203 = vlaneseq
    %v204 = vshrl.u32 %v203, 7
    %v205 = vsub.s32 0, %v204
    %v206 = vrot.slane %v201, %v205
    %v207 = vlaneseq
    %v208 = vshrl.u32 %v207, 7
    %v209 = vsub.s32 1, %v208
    %v210 = vrot.slane %v201, %v209
    %vm213 = vcmask 261120
    %v215 = vsel %vm213, %v65, 0
    %v218 = vsel %vm213, %v66, 0
    %v221 = vsel %vm213, %v67, 0
    %v224 = vsel %vm213, %v68, 0
    %v227 = vsel %vm213, %v69, 0
    %v230 = vsel %vm213, %v70, 0
    %v233 = vsel %vm213, %v71, 0
    %v236 = vsel %vm213, %v72, 0
    %v239 = vsel %vm213, %v73, 0
    %v242 = vsel %vm213, %v74, 0
    %v245 = vsel %vm213, %v75, 0
    %v248 = vsel %vm213, %v76, 0
    %v251 = vsel %vm213, %v77, 0
    %v254 = vsel %vm213, %v78, 0
    %v257 = vsel %vm213, %v79, 0
    %v260 = vsel %vm213, %v80, 0
    %v263 = vsel %vm213, %v81, 0
    %v266 = vsel %vm213, %v82, 0
    %v269 = vsel %vm213, %v83, 0
    %v272 = vsel %vm213, %v84, 0
    %v275 = vsel %vm213, %v85, 0
    %v278 = vsel %vm213, %v86, 0
    %v281 = vsel %vm213, %v87, 0
    %v284 = vsel %vm213, %v88, 0
    %v287 = vsel %vm213, %v89, 0
    %v290 = vsel %vm213, %v90, 0
    %v293 = vsel %vm213, %v91, 0
    %v296 = vsel %vm213, %v92, 0
    %v299 = vsel %vm213, %v93, 0
    %v302 = vsel %vm213, %v94, 0
    %v305 = vsel %vm213, %v95, 0
    %v308 = vsel %vm213, %v96, 0
    %v311 = vsel %vm213, %v97, 0
    %v314 = vsel %vm213, %v98, 0
    %v317 = vsel %vm213, %v99, 0
    %v320 = vsel %vm213, %v100, 0
    %v323 = vsel %vm213, %v101, 0
    %v326 = vsel %vm213, %v102, 0
    %v329 = vsel %vm213, %v103, 0
    %v332 = vsel %vm213, %v104, 0
    %v335 = vsel %vm213, %v105, 0
    %v338 = vsel %vm213, %v106, 0
    %v341 = vsel %vm213, %v107, 0
    %v344 = vsel %vm213, %v108, 0
    %v347 = vsel %vm213, %v109, 0
    %v350 = vsel %vm213, %v110, 0
    %v353 = vsel %vm213, %v111, 0
    %v356 = vsel %vm213, %v112, 0
    %v359 = vsel %vm213, %v113, 0
    %v362 = vsel %vm213, %v114, 0
    %v365 = vsel %vm213, %v115, 0
    %v368 = vsel %vm213, %v116, 0
    %v371 = vsel %vm213, %v117, 0
    %v374 = vsel %vm213, %v118, 0
    %v377 = vsel %vm213, %v119, 0
    %v380 = vsel %vm213, %v120, 0
    %v383 = vsel %vm213, %v121, 0
    %v386 = vsel %vm213, %v122, 0
    %v389 = vsel %vm213, %v123, 0
    %v392 = vsel %vm213, %v124, 0
    %v395 = vsel %vm213, %v125, 0
    %v398 = vsel %vm213, %v126, 0
    %v401 = vsel %vm213, %v127, 0
    %v404 = vsel %vm213, %v128, 0
    %v407 = vsel %vm213, %v129, 0
    %v410 = vsel %vm213, %v130, 0
    %v413 = vsel %vm213, %v131, 0
    %v416 = vsel %vm213, %v132, 0
    %v419 = vsel %vm213, %v133, 0
    %v422 = vsel %vm213, %v134, 0
    %v425 = vsel %vm213, %v135, 0
    %v428 = vsel %vm213, %v136, 0
    %v431 = vsel %vm213, %v137, 0
    %v434 = vsel %vm213, %v138, 0
    %v437 = vsel %vm213, %v139, 0
    %v440 = vsel %vm213, %v140, 0
    %v443 = vsel %vm213, %v141, 0
    %v446 = vsel %vm213, %v142, 0
    %v449 = vsel %vm213, %v143, 0
    %v452 = vsel %vm213, %v144, 0
    %v455 = vsel %vm213, %v145, 0
    %v458 = vsel %vm213, %v146, 0
    %v461 = vsel %vm213, %v147, 0
    %v464 = vsel %vm213, %v148, 0
    %v467 = vsel %vm213, %v149, 0
    %v470 = vsel %vm213, %v150, 0
    %v473 = vsel %vm213, %v151, 0
    %v476 = vsel %vm213, %v152, 0
    %v479 = vsel %vm213, %v153, 0
    %v482 = vsel %vm213, %v154, 0
    %v485 = vsel %vm213, %v155, 0
    %v488 = vsel %vm213, %v156, 0
    %v491 = vsel %vm213, %v157, 0
    %v494 = vsel %vm213, %v158, 0
    %v497 = vsel %vm213, %v159, 0
    %v500 = vsel %vm213, %v160, 0
    %v503 = vsel %vm213, %v161, 0
    %v506 = vsel %vm213, %v162, 0
    %v509 = vsel %vm213, %v163, 0
    %v512 = vsel %vm213, %v164, 0
    %v515 = vsel %vm213, %v165, 0
    %v518 = vsel %vm213, %v166, 0
    %v521 = vsel %vm213, %v167, 0
    %v524 = vsel %vm213, %v168, 0
    %v527 = vsel %vm213, %v169, 0
    %v530 = vsel %vm213, %v170, 0
    %v533 = vsel %vm213, %v171, 0
    %v536 = vsel %vm213, %v172, 0
    %v539 = vsel %vm213, %v173, 0
    %v542 = vsel %vm213, %v174, 0
    %v545 = vsel %vm213, %v175, 0
    %v548 = vsel %vm213, %v176, 0
    %v551 = vsel %vm213, %v177, 0
    %v554 = vsel %vm213, %v178, 0
    %v557 = vsel %vm213, %v179, 0
    %v560 = vsel %vm213, %v180, 0
    %v563 = vsel %vm213, %v181, 0
    %v566 = vsel %vm213, %v182, 0
    %v569 = vsel %vm213, %v183, 0
    %v572 = vsel %vm213, %v184, 0
    %v575 = vsel %vm213, %v185, 0
    %v578 = vsel %vm213, %v186, 0
    %v581 = vsel %vm213, %v187, 0
    %v584 = vsel %vm213, %v188, 0
    %v587 = vsel %vm213, %v189, 0
    %v590 = vsel %vm213, %v190, 0
    %v593 = vsel %vm213, %v191, 0
    %v596 = vsel %vm213, %v192, 0
    %598 = vmatprep.subr.mxu0 %v194
    %599 = vmatpush1.msra.mxu0 %v193
    %600 = vmatprep.subr.mxu0 %v196
    %601 = vmatpush1.msra.mxu0 %v195
    %602 = vmatprep.subr.mxu0 %v198
    %603 = vmatpush1.msra.mxu0 %v197
    %604 = vmatprep.subr.mxu0 %v200
    %605 = vmatpush1.msra.mxu0 %v199
    %606 = vmatprep.subr.mxu0 0.0
    %607 = vmatpush1.msra.mxu0 0.0
    %608 = vmatprep.subr.mxu0 0.0
    %609 = vmatpush1.msra.mxu0 0.0
    %610 = vmatprep.subr.mxu0 0.0
    %611 = vmatpush1.msra.mxu0 0.0
    %612 = vmatprep.subr.mxu0 0.0
    %613 = vmatpush1.msra.mxu0 0.0
    %614 = vmatprep.subr.mxu0 0.0
    %615 = vmatpush1.msra.mxu0 0.0
    %616 = vmatprep.subr.mxu0 0.0
    %617 = vmatpush1.msra.mxu0 0.0
    %618 = vmatprep.subr.mxu0 0.0
    %619 = vmatpush1.msra.mxu0 0.0
    %620 = vmatprep.subr.mxu0 0.0
    %621 = vmatpush1.msra.mxu0 0.0
    %622 = vmatprep.subr.mxu0 0.0
    %623 = vmatpush1.msra.mxu0 0.0
    %624 = vmatprep.subr.mxu0 0.0
    %625 = vmatpush1.msra.mxu0 0.0
    %626 = vmatprep.subr.mxu0 0.0
    %627 = vmatpush1.msra.mxu0 0.0
    %628 = vmatprep.subr.mxu0 0.0
    %629 = vmatpush1.msra.mxu0 0.0
    %630 = vmatprep.subr.mxu0 0.0
    %631 = vmatpush1.msra.mxu0 0.0
    %632 = vmatprep.subr.mxu0 0.0
    %633 = vmatpush1.msra.mxu0 0.0
    %634 = vmatprep.subr.mxu0 0.0
    %635 = vmatpush1.msra.mxu0 0.0
    %636 = vmatprep.subr.mxu0 0.0
    %637 = vmatpush1.msra.mxu0 0.0
    %638 = vmatprep.subr.mxu0 0.0
    %639 = vmatpush1.msra.mxu0 0.0
    %640 = vmatprep.subr.mxu0 0.0
    %641 = vmatpush1.msra.mxu0 0.0
    %642 = vmatprep.subr.mxu0 0.0
    %643 = vmatpush1.msra.mxu0 0.0
    %644 = vmatprep.subr.mxu0 0.0
    %645 = vmatpush1.msra.mxu0 0.0
    %646 = vmatprep.subr.mxu0 0.0
    %647 = vmatpush1.msra.mxu0 0.0
    %648 = vmatprep.subr.mxu0 0.0
    %649 = vmatpush1.msra.mxu0 0.0
    %650 = vmatprep.subr.mxu0 0.0
    %651 = vmatpush1.msra.mxu0 0.0
    %652 = vmatprep.subr.mxu0 0.0
    %653 = vmatpush1.msra.mxu0 0.0
    %654 = vmatprep.subr.mxu0 0.0
    %655 = vmatpush1.msra.mxu0 0.0
    %656 = vmatprep.subr.mxu0 0.0
    %657 = vmatpush1.msra.mxu0 0.0
    %658 = vmatprep.subr.mxu0 0.0
    %659 = vmatpush1.msra.mxu0 0.0
    %660 = vmatprep.subr.mxu0 0.0
    %661 = vmatpush1.msra.mxu0 0.0
    %662 = vmatprep.mubr.f32.mxu0 0.0
    %663 = vmatmul.mubr.f32.gmra.mrb[0].mxu0 %v215
    %v664 = vpop.f32.mrb[0].mxu0
    %v665 = vadd.f32 %v206, %v664
    %v666 = vpop.f32.mrb[0].mxu0
    %v667 = vadd.f32 %v210, %v666
    %668 = vmatprep.mubr.f32.mxu0 0.0
    %669 = vmatmul.mubr.f32.gmra.mrb[0].mxu0 %v218
    %v670 = vpop.f32.mrb[0].mxu0
    %v671 = vadd.f32 %v206, %v670
    %v672 = vpop.f32.mrb[0].mxu0
    %v673 = vadd.f32 %v210, %v672
    %674 = vmatprep.mubr.f32.mxu0 0.0
    %675 = vmatmul.mubr.f32.gmra.mrb[0].mxu0 %v221
    %v676 = vpop.f32.mrb[0].mxu0
    %v677 = vadd.f32 %v206, %v676
    %v678 = vpop.f32.mrb[0].mxu0
    %v679 = vadd.f32 %v210, %v678
    %680 = vmatprep.mubr.f32.mxu0 0.0
    %681 = vmatmul.mubr.f32.gmra.mrb[0].mxu0 %v224
    %v682 = vpop.f32.mrb[0].mxu0
    %v683 = vadd.f32 %v206, %v682
    %v684 = vpop.f32.mrb[0].mxu0
    %v685 = vadd.f32 %v210, %v684
    %686 = vmatprep.mubr.f32.mxu0 0.0
    %687 = vmatmul.mubr.f32.gmra.mrb[0].mxu0 %v227
    %v688 = vpop.f32.mrb[0].mxu0
    %v689 = vadd.f32 %v206, %v688
    %v690 = vpop.f32.mrb[0].mxu0
    %v691 = vadd.f32 %v210, %v690
    %692 = vmatprep.mubr.f32.mxu0 0.0
    %693 = vmatmul.mubr.f32.gmra.mrb[0].mxu0 %v230
    %v694 = vpop.f32.mrb[0].mxu0
    %v695 = vadd.f32 %v206, %v694
    %v696 = vpop.f32.mrb[0].mxu0
    %v697 = vadd.f32 %v210, %v696
    %698 = vmatprep.mubr.f32.mxu0 0.0
    %699 = vmatmul.mubr.f32.gmra.mrb[0].mxu0 %v233
    %v700 = vpop.f32.mrb[0].mxu0
    %v701 = vadd.f32 %v206, %v700
    %v702 = vpop.f32.mrb[0].mxu0
    %v703 = vadd.f32 %v210, %v702
    %704 = vmatprep.mubr.f32.mxu0 0.0
    %705 = vmatmul.mubr.f32.gmra.mrb[0].mxu0 %v236
    %v706 = vpop.f32.mrb[0].mxu0
    %v707 = vadd.f32 %v206, %v706
    %v708 = vpop.f32.mrb[0].mxu0
    %v709 = vadd.f32 %v210, %v708
    %710 = vmatprep.mubr.f32.mxu0 0.0
    %711 = vmatmul.mubr.f32.gmra.mrb[0].mxu0 %v239
    %v712 = vpop.f32.mrb[0].mxu0
    %v713 = vadd.f32 %v206, %v712
    %v714 = vpop.f32.mrb[0].mxu0
    %v715 = vadd.f32 %v210, %v714
    %716 = vmatprep.mubr.f32.mxu0 0.0
    %717 = vmatmul.mubr.f32.gmra.mrb[0].mxu0 %v242
    %v718 = vpop.f32.mrb[0].mxu0
    %v719 = vadd.f32 %v206, %v718
    %v720 = vpop.f32.mrb[0].mxu0
    %v721 = vadd.f32 %v210, %v720
    %722 = vmatprep.mubr.f32.mxu0 0.0
    %723 = vmatmul.mubr.f32.gmra.mrb[0].mxu0 %v245
    %v724 = vpop.f32.mrb[0].mxu0
    %v725 = vadd.f32 %v206, %v724
    %v726 = vpop.f32.mrb[0].mxu0
    %v727 = vadd.f32 %v210, %v726
    %728 = vmatprep.mubr.f32.mxu0 0.0
    %729 = vmatmul.mubr.f32.gmra.mrb[0].mxu0 %v248
    %v730 = vpop.f32.mrb[0].mxu0
    %v731 = vadd.f32 %v206, %v730
    %v732 = vpop.f32.mrb[0].mxu0
    %v733 = vadd.f32 %v210, %v732
    %734 = vmatprep.mubr.f32.mxu0 0.0
    %735 = vmatmul.mubr.f32.gmra.mrb[0].mxu0 %v251
    %v736 = vpop.f32.mrb[0].mxu0
    %v737 = vadd.f32 %v206, %v736
    %v738 = vpop.f32.mrb[0].mxu0
    %v739 = vadd.f32 %v210, %v738
    %740 = vmatprep.mubr.f32.mxu0 0.0
    %741 = vmatmul.mubr.f32.gmra.mrb[0].mxu0 %v254
    %v742 = vpop.f32.mrb[0].mxu0
    %v743 = vadd.f32 %v206, %v742
    %v744 = vpop.f32.mrb[0].mxu0
    %v745 = vadd.f32 %v210, %v744
    %746 = vmatprep.mubr.f32.mxu0 0.0
    %747 = vmatmul.mubr.f32.gmra.mrb[0].mxu0 %v257
    %v748 = vpop.f32.mrb[0].mxu0
    %v749 = vadd.f32 %v206, %v748
    %v750 = vpop.f32.mrb[0].mxu0
    %v751 = vadd.f32 %v210, %v750
    %752 = vmatprep.mubr.f32.mxu0 0.0
    %753 = vmatmul.mubr.f32.gmra.mrb[0].mxu0 %v260
    %v754 = vpop.f32.mrb[0].mxu0
    %v755 = vadd.f32 %v206, %v754
    %v756 = vpop.f32.mrb[0].mxu0
    %v757 = vadd.f32 %v210, %v756
    %758 = vmatprep.mubr.f32.mxu0 0.0
    %759 = vmatmul.mubr.f32.gmra.mrb[0].mxu0 %v263
    %v760 = vpop.f32.mrb[0].mxu0
    %v761 = vadd.f32 %v206, %v760
    %v762 = vpop.f32.mrb[0].mxu0
    %v763 = vadd.f32 %v210, %v762
    %764 = vmatprep.mubr.f32.mxu0 0.0
    %765 = vmatmul.mubr.f32.gmra.mrb[0].mxu0 %v266
    %v766 = vpop.f32.mrb[0].mxu0
    %v767 = vadd.f32 %v206, %v766
    %v768 = vpop.f32.mrb[0].mxu0
    %v769 = vadd.f32 %v210, %v768
    %770 = vmatprep.mubr.f32.mxu0 0.0
    %771 = vmatmul.mubr.f32.gmra.mrb[0].mxu0 %v269
    %v772 = vpop.f32.mrb[0].mxu0
    %v773 = vadd.f32 %v206, %v772
    %v774 = vpop.f32.mrb[0].mxu0
    %v775 = vadd.f32 %v210, %v774
    %776 = vmatprep.mubr.f32.mxu0 0.0
    %777 = vmatmul.mubr.f32.gmra.mrb[0].mxu0 %v272
    %v778 = vpop.f32.mrb[0].mxu0
    %v779 = vadd.f32 %v206, %v778
    %v780 = vpop.f32.mrb[0].mxu0
    %v781 = vadd.f32 %v210, %v780
    %782 = vmatprep.mubr.f32.mxu0 0.0
    %783 = vmatmul.mubr.f32.gmra.mrb[0].mxu0 %v275
    %v784 = vpop.f32.mrb[0].mxu0
    %v785 = vadd.f32 %v206, %v784
    %v786 = vpop.f32.mrb[0].mxu0
    %v787 = vadd.f32 %v210, %v786
    %788 = vmatprep.mubr.f32.mxu0 0.0
    %789 = vmatmul.mubr.f32.gmra.mrb[0].mxu0 %v278
    %v790 = vpop.f32.mrb[0].mxu0
    %v791 = vadd.f32 %v206, %v790
    %v792 = vpop.f32.mrb[0].mxu0
    %v793 = vadd.f32 %v210, %v792
    %794 = vmatprep.mubr.f32.mxu0 0.0
    %795 = vmatmul.mubr.f32.gmra.mrb[0].mxu0 %v281
    %v796 = vpop.f32.mrb[0].mxu0
    %v797 = vadd.f32 %v206, %v796
    %v798 = vpop.f32.mrb[0].mxu0
    %v799 = vadd.f32 %v210, %v798
    %800 = vmatprep.mubr.f32.mxu0 0.0
    %801 = vmatmul.mubr.f32.gmra.mrb[0].mxu0 %v284
    %v802 = vpop.f32.mrb[0].mxu0
    %v803 = vadd.f32 %v206, %v802
    %v804 = vpop.f32.mrb[0].mxu0
    %v805 = vadd.f32 %v210, %v804
    %806 = vmatprep.mubr.f32.mxu0 0.0
    %807 = vmatmul.mubr.f32.gmra.mrb[0].mxu0 %v287
    %v808 = vpop.f32.mrb[0].mxu0
    %v809 = vadd.f32 %v206, %v808
    %v810 = vpop.f32.mrb[0].mxu0
    %v811 = vadd.f32 %v210, %v810
    %812 = vmatprep.mubr.f32.mxu0 0.0
    %813 = vmatmul.mubr.f32.gmra.mrb[0].mxu0 %v290
    %v814 = vpop.f32.mrb[0].mxu0
    %v815 = vadd.f32 %v206, %v814
    %v816 = vpop.f32.mrb[0].mxu0
    %v817 = vadd.f32 %v210, %v816
    %818 = vmatprep.mubr.f32.mxu0 0.0
    %819 = vmatmul.mubr.f32.gmra.mrb[0].mxu0 %v293
    %v820 = vpop.f32.mrb[0].mxu0
    %v821 = vadd.f32 %v206, %v820
    %v822 = vpop.f32.mrb[0].mxu0
    %v823 = vadd.f32 %v210, %v822
    %824 = vmatprep.mubr.f32.mxu0 0.0
    %825 = vmatmul.mubr.f32.gmra.mrb[0].mxu0 %v296
    %v826 = vpop.f32.mrb[0].mxu0
    %v827 = vadd.f32 %v206, %v826
    %v828 = vpop.f32.mrb[0].mxu0
    %v829 = vadd.f32 %v210, %v828
    %830 = vmatprep.mubr.f32.mxu0 0.0
    %831 = vmatmul.mubr.f32.gmra.mrb[0].mxu0 %v299
    %v832 = vpop.f32.mrb[0].mxu0
    %v833 = vadd.f32 %v206, %v832
    %v834 = vpop.f32.mrb[0].mxu0
    %v835 = vadd.f32 %v210, %v834
    %836 = vmatprep.mubr.f32.mxu0 0.0
    %837 = vmatmul.mubr.f32.gmra.mrb[0].mxu0 %v302
    %v838 = vpop.f32.mrb[0].mxu0
    %v839 = vadd.f32 %v206, %v838
    %v840 = vpop.f32.mrb[0].mxu0
    %v841 = vadd.f32 %v210, %v840
    %842 = vmatprep.mubr.f32.mxu0 0.0
    %843 = vmatmul.mubr.f32.gmra.mrb[0].mxu0 %v305
    %v844 = vpop.f32.mrb[0].mxu0
    %v845 = vadd.f32 %v206, %v844
    %v846 = vpop.f32.mrb[0].mxu0
    %v847 = vadd.f32 %v210, %v846
    %848 = vmatprep.mubr.f32.mxu0 0.0
    %849 = vmatmul.mubr.f32.gmra.mrb[0].mxu0 %v308
    %v850 = vpop.f32.mrb[0].mxu0
    %v851 = vadd.f32 %v206, %v850
    %v852 = vpop.f32.mrb[0].mxu0
    %v853 = vadd.f32 %v210, %v852
    %854 = vmatprep.mubr.f32.mxu0 0.0
    %855 = vmatmul.mubr.f32.gmra.mrb[0].mxu0 %v311
    %v856 = vpop.f32.mrb[0].mxu0
    %v857 = vadd.f32 %v206, %v856
    %v858 = vpop.f32.mrb[0].mxu0
    %v859 = vadd.f32 %v210, %v858
    %860 = vmatprep.mubr.f32.mxu0 0.0
    %861 = vmatmul.mubr.f32.gmra.mrb[0].mxu0 %v314
    %v862 = vpop.f32.mrb[0].mxu0
    %v863 = vadd.f32 %v206, %v862
    %v864 = vpop.f32.mrb[0].mxu0
    %v865 = vadd.f32 %v210, %v864
    %866 = vmatprep.mubr.f32.mxu0 0.0
    %867 = vmatmul.mubr.f32.gmra.mrb[0].mxu0 %v317
    %v868 = vpop.f32.mrb[0].mxu0
    %v869 = vadd.f32 %v206, %v868
    %v870 = vpop.f32.mrb[0].mxu0
    %v871 = vadd.f32 %v210, %v870
    %872 = vmatprep.mubr.f32.mxu0 0.0
    %873 = vmatmul.mubr.f32.gmra.mrb[0].mxu0 %v320
    %v874 = vpop.f32.mrb[0].mxu0
    %v875 = vadd.f32 %v206, %v874
    %v876 = vpop.f32.mrb[0].mxu0
    %v877 = vadd.f32 %v210, %v876
    %878 = vmatprep.mubr.f32.mxu0 0.0
    %879 = vmatmul.mubr.f32.gmra.mrb[0].mxu0 %v323
    %v880 = vpop.f32.mrb[0].mxu0
    %v881 = vadd.f32 %v206, %v880
    %v882 = vpop.f32.mrb[0].mxu0
    %v883 = vadd.f32 %v210, %v882
    %884 = vmatprep.mubr.f32.mxu0 0.0
    %885 = vmatmul.mubr.f32.gmra.mrb[0].mxu0 %v326
    %v886 = vpop.f32.mrb[0].mxu0
    %v887 = vadd.f32 %v206, %v886
    %v888 = vpop.f32.mrb[0].mxu0
    %v889 = vadd.f32 %v210, %v888
    %890 = vmatprep.mubr.f32.mxu0 0.0
    %891 = vmatmul.mubr.f32.gmra.mrb[0].mxu0 %v329
    %v892 = vpop.f32.mrb[0].mxu0
    %v893 = vadd.f32 %v206, %v892
    %v894 = vpop.f32.mrb[0].mxu0
    %v895 = vadd.f32 %v210, %v894
    %896 = vmatprep.mubr.f32.mxu0 0.0
    %897 = vmatmul.mubr.f32.gmra.mrb[0].mxu0 %v332
    %v898 = vpop.f32.mrb[0].mxu0
    %v899 = vadd.f32 %v206, %v898
    %v900 = vpop.f32.mrb[0].mxu0
    %v901 = vadd.f32 %v210, %v900
    %902 = vmatprep.mubr.f32.mxu0 0.0
    %903 = vmatmul.mubr.f32.gmra.mrb[0].mxu0 %v335
    %v904 = vpop.f32.mrb[0].mxu0
    %v905 = vadd.f32 %v206, %v904
    %v906 = vpop.f32.mrb[0].mxu0
    %v907 = vadd.f32 %v210, %v906
    %908 = vmatprep.mubr.f32.mxu0 0.0
    %909 = vmatmul.mubr.f32.gmra.mrb[0].mxu0 %v338
    %v910 = vpop.f32.mrb[0].mxu0
    %v911 = vadd.f32 %v206, %v910
    %v912 = vpop.f32.mrb[0].mxu0
    %v913 = vadd.f32 %v210, %v912
    %914 = vmatprep.mubr.f32.mxu0 0.0
    %915 = vmatmul.mubr.f32.gmra.mrb[0].mxu0 %v341
    %v916 = vpop.f32.mrb[0].mxu0
    %v917 = vadd.f32 %v206, %v916
    %v918 = vpop.f32.mrb[0].mxu0
    %v919 = vadd.f32 %v210, %v918
    %920 = vmatprep.mubr.f32.mxu0 0.0
    %921 = vmatmul.mubr.f32.gmra.mrb[0].mxu0 %v344
    %v922 = vpop.f32.mrb[0].mxu0
    %v923 = vadd.f32 %v206, %v922
    %v924 = vpop.f32.mrb[0].mxu0
    %v925 = vadd.f32 %v210, %v924
    %926 = vmatprep.mubr.f32.mxu0 0.0
    %927 = vmatmul.mubr.f32.gmra.mrb[0].mxu0 %v347
    %v928 = vpop.f32.mrb[0].mxu0
    %v929 = vadd.f32 %v206, %v928
    %v930 = vpop.f32.mrb[0].mxu0
    %v931 = vadd.f32 %v210, %v930
    %932 = vmatprep.mubr.f32.mxu0 0.0
    %933 = vmatmul.mubr.f32.gmra.mrb[0].mxu0 %v350
    %v934 = vpop.f32.mrb[0].mxu0
    %v935 = vadd.f32 %v206, %v934
    %v936 = vpop.f32.mrb[0].mxu0
    %v937 = vadd.f32 %v210, %v936
    %938 = vmatprep.mubr.f32.mxu0 0.0
    %939 = vmatmul.mubr.f32.gmra.mrb[0].mxu0 %v353
    %v940 = vpop.f32.mrb[0].mxu0
    %v941 = vadd.f32 %v206, %v940
    %v942 = vpop.f32.mrb[0].mxu0
    %v943 = vadd.f32 %v210, %v942
    %944 = vmatprep.mubr.f32.mxu0 0.0
    %945 = vmatmul.mubr.f32.gmra.mrb[0].mxu0 %v356
    %v946 = vpop.f32.mrb[0].mxu0
    %v947 = vadd.f32 %v206, %v946
    %v948 = vpop.f32.mrb[0].mxu0
    %v949 = vadd.f32 %v210, %v948
    %950 = vmatprep.mubr.f32.mxu0 0.0
    %951 = vmatmul.mubr.f32.gmra.mrb[0].mxu0 %v359
    %v952 = vpop.f32.mrb[0].mxu0
    %v953 = vadd.f32 %v206, %v952
    %v954 = vpop.f32.mrb[0].mxu0
    %v955 = vadd.f32 %v210, %v954
    %956 = vmatprep.mubr.f32.mxu0 0.0
    %957 = vmatmul.mubr.f32.gmra.mrb[0].mxu0 %v362
    %v958 = vpop.f32.mrb[0].mxu0
    %v959 = vadd.f32 %v206, %v958
    %v960 = vpop.f32.mrb[0].mxu0
    %v961 = vadd.f32 %v210, %v960
    %962 = vmatprep.mubr.f32.mxu0 0.0
    %963 = vmatmul.mubr.f32.gmra.mrb[0].mxu0 %v365
    %v964 = vpop.f32.mrb[0].mxu0
    %v965 = vadd.f32 %v206, %v964
    %v966 = vpop.f32.mrb[0].mxu0
    %v967 = vadd.f32 %v210, %v966
    %968 = vmatprep.mubr.f32.mxu0 0.0
    %969 = vmatmul.mubr.f32.gmra.mrb[0].mxu0 %v368
    %v970 = vpop.f32.mrb[0].mxu0
    %v971 = vadd.f32 %v206, %v970
    %v972 = vpop.f32.mrb[0].mxu0
    %v973 = vadd.f32 %v210, %v972
    %974 = vmatprep.mubr.f32.mxu0 0.0
    %975 = vmatmul.mubr.f32.gmra.mrb[0].mxu0 %v371
    %v976 = vpop.f32.mrb[0].mxu0
    %v977 = vadd.f32 %v206, %v976
    %v978 = vpop.f32.mrb[0].mxu0
    %v979 = vadd.f32 %v210, %v978
    %980 = vmatprep.mubr.f32.mxu0 0.0
    %981 = vmatmul.mubr.f32.gmra.mrb[0].mxu0 %v374
    %v982 = vpop.f32.mrb[0].mxu0
    %v983 = vadd.f32 %v206, %v982
    %v984 = vpop.f32.mrb[0].mxu0
    %v985 = vadd.f32 %v210, %v984
    %986 = vmatprep.mubr.f32.mxu0 0.0
    %987 = vmatmul.mubr.f32.gmra.mrb[0].mxu0 %v377
    %v988 = vpop.f32.mrb[0].mxu0
    %v989 = vadd.f32 %v206, %v988
    %v990 = vpop.f32.mrb[0].mxu0
    %v991 = vadd.f32 %v210, %v990
    %992 = vmatprep.mubr.f32.mxu0 0.0
    %993 = vmatmul.mubr.f32.gmra.mrb[0].mxu0 %v380
    %v994 = vpop.f32.mrb[0].mxu0
    %v995 = vadd.f32 %v206, %v994
    %v996 = vpop.f32.mrb[0].mxu0
    %v997 = vadd.f32 %v210, %v996
    %998 = vmatprep.mubr.f32.mxu0 0.0
    %999 = vmatmul.mubr.f32.gmra.mrb[0].mxu0 %v383
    %v1000 = vpop.f32.mrb[0].mxu0
    %v1001 = vadd.f32 %v206, %v1000
    %v1002 = vpop.f32.mrb[0].mxu0
    %v1003 = vadd.f32 %v210, %v1002
    %1004 = vmatprep.mubr.f32.mxu0 0.0
    %1005 = vmatmul.mubr.f32.gmra.mrb[0].mxu0 %v386
    %v1006 = vpop.f32.mrb[0].mxu0
    %v1007 = vadd.f32 %v206, %v1006
    %v1008 = vpop.f32.mrb[0].mxu0
    %v1009 = vadd.f32 %v210, %v1008
    %1010 = vmatprep.mubr.f32.mxu0 0.0
    %1011 = vmatmul.mubr.f32.gmra.mrb[0].mxu0 %v389
    %v1012 = vpop.f32.mrb[0].mxu0
    %v1013 = vadd.f32 %v206, %v1012
    %v1014 = vpop.f32.mrb[0].mxu0
    %v1015 = vadd.f32 %v210, %v1014
    %1016 = vmatprep.mubr.f32.mxu0 0.0
    %1017 = vmatmul.mubr.f32.gmra.mrb[0].mxu0 %v392
    %v1018 = vpop.f32.mrb[0].mxu0
    %v1019 = vadd.f32 %v206, %v1018
    %v1020 = vpop.f32.mrb[0].mxu0
    %v1021 = vadd.f32 %v210, %v1020
    %1022 = vmatprep.mubr.f32.mxu0 0.0
    %1023 = vmatmul.mubr.f32.gmra.mrb[0].mxu0 %v395
    %v1024 = vpop.f32.mrb[0].mxu0
    %v1025 = vadd.f32 %v206, %v1024
    %v1026 = vpop.f32.mrb[0].mxu0
    %v1027 = vadd.f32 %v210, %v1026
    %1028 = vmatprep.mubr.f32.mxu0 0.0
    %1029 = vmatmul.mubr.f32.gmra.mrb[0].mxu0 %v398
    %v1030 = vpop.f32.mrb[0].mxu0
    %v1031 = vadd.f32 %v206, %v1030
    %v1032 = vpop.f32.mrb[0].mxu0
    %v1033 = vadd.f32 %v210, %v1032
    %1034 = vmatprep.mubr.f32.mxu0 0.0
    %1035 = vmatmul.mubr.f32.gmra.mrb[0].mxu0 %v401
    %v1036 = vpop.f32.mrb[0].mxu0
    %v1037 = vadd.f32 %v206, %v1036
    %v1038 = vpop.f32.mrb[0].mxu0
    %v1039 = vadd.f32 %v210, %v1038
    %1040 = vmatprep.mubr.f32.mxu0 0.0
    %1041 = vmatmul.mubr.f32.gmra.mrb[0].mxu0 %v404
    %v1042 = vpop.f32.mrb[0].mxu0
    %v1043 = vadd.f32 %v206, %v1042
    %v1044 = vpop.f32.mrb[0].mxu0
    %v1045 = vadd.f32 %v210, %v1044
    %1046 = vmatprep.mubr.f32.mxu0 0.0
    %1047 = vmatmul.mubr.f32.gmra.mrb[0].mxu0 %v407
    %v1048 = vpop.f32.mrb[0].mxu0
    %v1049 = vadd.f32 %v206, %v1048
    %v1050 = vpop.f32.mrb[0].mxu0
    %v1051 = vadd.f32 %v210, %v1050
    %1052 = vmatprep.mubr.f32.mxu0 0.0
    %1053 = vmatmul.mubr.f32.gmra.mrb[0].mxu0 %v410
    %v1054 = vpop.f32.mrb[0].mxu0
    %v1055 = vadd.f32 %v206, %v1054
    %v1056 = vpop.f32.mrb[0].mxu0
    %v1057 = vadd.f32 %v210, %v1056
    %1058 = vmatprep.mubr.f32.mxu0 0.0
    %1059 = vmatmul.mubr.f32.gmra.mrb[0].mxu0 %v413
    %v1060 = vpop.f32.mrb[0].mxu0
    %v1061 = vadd.f32 %v206, %v1060
    %v1062 = vpop.f32.mrb[0].mxu0
    %v1063 = vadd.f32 %v210, %v1062
    %1064 = vmatprep.mubr.f32.mxu0 0.0
    %1065 = vmatmul.mubr.f32.gmra.mrb[0].mxu0 %v416
    %v1066 = vpop.f32.mrb[0].mxu0
    %v1067 = vadd.f32 %v206, %v1066
    %v1068 = vpop.f32.mrb[0].mxu0
    %v1069 = vadd.f32 %v210, %v1068
    %1070 = vmatprep.mubr.f32.mxu0 0.0
    %1071 = vmatmul.mubr.f32.gmra.mrb[0].mxu0 %v419
    %v1072 = vpop.f32.mrb[0].mxu0
    %v1073 = vadd.f32 %v206, %v1072
    %v1074 = vpop.f32.mrb[0].mxu0
    %v1075 = vadd.f32 %v210, %v1074
    %1076 = vmatprep.mubr.f32.mxu0 0.0
    %1077 = vmatmul.mubr.f32.gmra.mrb[0].mxu0 %v422
    %v1078 = vpop.f32.mrb[0].mxu0
    %v1079 = vadd.f32 %v206, %v1078
    %v1080 = vpop.f32.mrb[0].mxu0
    %v1081 = vadd.f32 %v210, %v1080
    %1082 = vmatprep.mubr.f32.mxu0 0.0
    %1083 = vmatmul.mubr.f32.gmra.mrb[0].mxu0 %v425
    %v1084 = vpop.f32.mrb[0].mxu0
    %v1085 = vadd.f32 %v206, %v1084
    %v1086 = vpop.f32.mrb[0].mxu0
    %v1087 = vadd.f32 %v210, %v1086
    %1088 = vmatprep.mubr.f32.mxu0 0.0
    %1089 = vmatmul.mubr.f32.gmra.mrb[0].mxu0 %v428
    %v1090 = vpop.f32.mrb[0].mxu0
    %v1091 = vadd.f32 %v206, %v1090
    %v1092 = vpop.f32.mrb[0].mxu0
    %v1093 = vadd.f32 %v210, %v1092
    %1094 = vmatprep.mubr.f32.mxu0 0.0
    %1095 = vmatmul.mubr.f32.gmra.mrb[0].mxu0 %v431
    %v1096 = vpop.f32.mrb[0].mxu0
    %v1097 = vadd.f32 %v206, %v1096
    %v1098 = vpop.f32.mrb[0].mxu0
    %v1099 = vadd.f32 %v210, %v1098
    %1100 = vmatprep.mubr.f32.mxu0 0.0
    %1101 = vmatmul.mubr.f32.gmra.mrb[0].mxu0 %v434
    %v1102 = vpop.f32.mrb[0].mxu0
    %v1103 = vadd.f32 %v206, %v1102
    %v1104 = vpop.f32.mrb[0].mxu0
    %v1105 = vadd.f32 %v210, %v1104
    %1106 = vmatprep.mubr.f32.mxu0 0.0
    %1107 = vmatmul.mubr.f32.gmra.mrb[0].mxu0 %v437
    %v1108 = vpop.f32.mrb[0].mxu0
    %v1109 = vadd.f32 %v206, %v1108
    %v1110 = vpop.f32.mrb[0].mxu0
    %v1111 = vadd.f32 %v210, %v1110
    %1112 = vmatprep.mubr.f32.mxu0 0.0
    %1113 = vmatmul.mubr.f32.gmra.mrb[0].mxu0 %v440
    %v1114 = vpop.f32.mrb[0].mxu0
    %v1115 = vadd.f32 %v206, %v1114
    %v1116 = vpop.f32.mrb[0].mxu0
    %v1117 = vadd.f32 %v210, %v1116
    %1118 = vmatprep.mubr.f32.mxu0 0.0
    %1119 = vmatmul.mubr.f32.gmra.mrb[0].mxu0 %v443
    %v1120 = vpop.f32.mrb[0].mxu0
    %v1121 = vadd.f32 %v206, %v1120
    %v1122 = vpop.f32.mrb[0].mxu0
    %v1123 = vadd.f32 %v210, %v1122
    %1124 = vmatprep.mubr.f32.mxu0 0.0
    %1125 = vmatmul.mubr.f32.gmra.mrb[0].mxu0 %v446
    %v1126 = vpop.f32.mrb[0].mxu0
    %v1127 = vadd.f32 %v206, %v1126
    %v1128 = vpop.f32.mrb[0].mxu0
    %v1129 = vadd.f32 %v210, %v1128
    %1130 = vmatprep.mubr.f32.mxu0 0.0
    %1131 = vmatmul.mubr.f32.gmra.mrb[0].mxu0 %v449
    %v1132 = vpop.f32.mrb[0].mxu0
    %v1133 = vadd.f32 %v206, %v1132
    %v1134 = vpop.f32.mrb[0].mxu0
    %v1135 = vadd.f32 %v210, %v1134
    %1136 = vmatprep.mubr.f32.mxu0 0.0
    %1137 = vmatmul.mubr.f32.gmra.mrb[0].mxu0 %v452
    %v1138 = vpop.f32.mrb[0].mxu0
    %v1139 = vadd.f32 %v206, %v1138
    %v1140 = vpop.f32.mrb[0].mxu0
    %v1141 = vadd.f32 %v210, %v1140
    %1142 = vmatprep.mubr.f32.mxu0 0.0
    %1143 = vmatmul.mubr.f32.gmra.mrb[0].mxu0 %v455
    %v1144 = vpop.f32.mrb[0].mxu0
    %v1145 = vadd.f32 %v206, %v1144
    %v1146 = vpop.f32.mrb[0].mxu0
    %v1147 = vadd.f32 %v210, %v1146
    %1148 = vmatprep.mubr.f32.mxu0 0.0
    %1149 = vmatmul.mubr.f32.gmra.mrb[0].mxu0 %v458
    %v1150 = vpop.f32.mrb[0].mxu0
    %v1151 = vadd.f32 %v206, %v1150
    %v1152 = vpop.f32.mrb[0].mxu0
    %v1153 = vadd.f32 %v210, %v1152
    %1154 = vmatprep.mubr.f32.mxu0 0.0
    %1155 = vmatmul.mubr.f32.gmra.mrb[0].mxu0 %v461
    %v1156 = vpop.f32.mrb[0].mxu0
    %v1157 = vadd.f32 %v206, %v1156
    %v1158 = vpop.f32.mrb[0].mxu0
    %v1159 = vadd.f32 %v210, %v1158
    %1160 = vmatprep.mubr.f32.mxu0 0.0
    %1161 = vmatmul.mubr.f32.gmra.mrb[0].mxu0 %v464
    %v1162 = vpop.f32.mrb[0].mxu0
    %v1163 = vadd.f32 %v206, %v1162
    %v1164 = vpop.f32.mrb[0].mxu0
    %v1165 = vadd.f32 %v210, %v1164
    %1166 = vmatprep.mubr.f32.mxu0 0.0
    %1167 = vmatmul.mubr.f32.gmra.mrb[0].mxu0 %v467
    %v1168 = vpop.f32.mrb[0].mxu0
    %v1169 = vadd.f32 %v206, %v1168
    %v1170 = vpop.f32.mrb[0].mxu0
    %v1171 = vadd.f32 %v210, %v1170
    %1172 = vmatprep.mubr.f32.mxu0 0.0
    %1173 = vmatmul.mubr.f32.gmra.mrb[0].mxu0 %v470
    %v1174 = vpop.f32.mrb[0].mxu0
    %v1175 = vadd.f32 %v206, %v1174
    %v1176 = vpop.f32.mrb[0].mxu0
    %v1177 = vadd.f32 %v210, %v1176
    %1178 = vmatprep.mubr.f32.mxu0 0.0
    %1179 = vmatmul.mubr.f32.gmra.mrb[0].mxu0 %v473
    %v1180 = vpop.f32.mrb[0].mxu0
    %v1181 = vadd.f32 %v206, %v1180
    %v1182 = vpop.f32.mrb[0].mxu0
    %v1183 = vadd.f32 %v210, %v1182
    %1184 = vmatprep.mubr.f32.mxu0 0.0
    %1185 = vmatmul.mubr.f32.gmra.mrb[0].mxu0 %v476
    %v1186 = vpop.f32.mrb[0].mxu0
    %v1187 = vadd.f32 %v206, %v1186
    %v1188 = vpop.f32.mrb[0].mxu0
    %v1189 = vadd.f32 %v210, %v1188
    %1190 = vmatprep.mubr.f32.mxu0 0.0
    %1191 = vmatmul.mubr.f32.gmra.mrb[0].mxu0 %v479
    %v1192 = vpop.f32.mrb[0].mxu0
    %v1193 = vadd.f32 %v206, %v1192
    %v1194 = vpop.f32.mrb[0].mxu0
    %v1195 = vadd.f32 %v210, %v1194
    %1196 = vmatprep.mubr.f32.mxu0 0.0
    %1197 = vmatmul.mubr.f32.gmra.mrb[0].mxu0 %v482
    %v1198 = vpop.f32.mrb[0].mxu0
    %v1199 = vadd.f32 %v206, %v1198
    %v1200 = vpop.f32.mrb[0].mxu0
    %v1201 = vadd.f32 %v210, %v1200
    %1202 = vmatprep.mubr.f32.mxu0 0.0
    %1203 = vmatmul.mubr.f32.gmra.mrb[0].mxu0 %v485
    %v1204 = vpop.f32.mrb[0].mxu0
    %v1205 = vadd.f32 %v206, %v1204
    %v1206 = vpop.f32.mrb[0].mxu0
    %v1207 = vadd.f32 %v210, %v1206
    %1208 = vmatprep.mubr.f32.mxu0 0.0
    %1209 = vmatmul.mubr.f32.gmra.mrb[0].mxu0 %v488
    %v1210 = vpop.f32.mrb[0].mxu0
    %v1211 = vadd.f32 %v206, %v1210
    %v1212 = vpop.f32.mrb[0].mxu0
    %v1213 = vadd.f32 %v210, %v1212
    %1214 = vmatprep.mubr.f32.mxu0 0.0
    %1215 = vmatmul.mubr.f32.gmra.mrb[0].mxu0 %v491
    %v1216 = vpop.f32.mrb[0].mxu0
    %v1217 = vadd.f32 %v206, %v1216
    %v1218 = vpop.f32.mrb[0].mxu0
    %v1219 = vadd.f32 %v210, %v1218
    %1220 = vmatprep.mubr.f32.mxu0 0.0
    %1221 = vmatmul.mubr.f32.gmra.mrb[0].mxu0 %v494
    %v1222 = vpop.f32.mrb[0].mxu0
    %v1223 = vadd.f32 %v206, %v1222
    %v1224 = vpop.f32.mrb[0].mxu0
    %v1225 = vadd.f32 %v210, %v1224
    %1226 = vmatprep.mubr.f32.mxu0 0.0
    %1227 = vmatmul.mubr.f32.gmra.mrb[0].mxu0 %v497
    %v1228 = vpop.f32.mrb[0].mxu0
    %v1229 = vadd.f32 %v206, %v1228
    %v1230 = vpop.f32.mrb[0].mxu0
    %v1231 = vadd.f32 %v210, %v1230
    %1232 = vmatprep.mubr.f32.mxu0 0.0
    %1233 = vmatmul.mubr.f32.gmra.mrb[0].mxu0 %v500
    %v1234 = vpop.f32.mrb[0].mxu0
    %v1235 = vadd.f32 %v206, %v1234
    %v1236 = vpop.f32.mrb[0].mxu0
    %v1237 = vadd.f32 %v210, %v1236
    %1238 = vmatprep.mubr.f32.mxu0 0.0
    %1239 = vmatmul.mubr.f32.gmra.mrb[0].mxu0 %v503
    %v1240 = vpop.f32.mrb[0].mxu0
    %v1241 = vadd.f32 %v206, %v1240
    %v1242 = vpop.f32.mrb[0].mxu0
    %v1243 = vadd.f32 %v210, %v1242
    %1244 = vmatprep.mubr.f32.mxu0 0.0
    %1245 = vmatmul.mubr.f32.gmra.mrb[0].mxu0 %v506
    %v1246 = vpop.f32.mrb[0].mxu0
    %v1247 = vadd.f32 %v206, %v1246
    %v1248 = vpop.f32.mrb[0].mxu0
    %v1249 = vadd.f32 %v210, %v1248
    %1250 = vmatprep.mubr.f32.mxu0 0.0
    %1251 = vmatmul.mubr.f32.gmra.mrb[0].mxu0 %v509
    %v1252 = vpop.f32.mrb[0].mxu0
    %v1253 = vadd.f32 %v206, %v1252
    %v1254 = vpop.f32.mrb[0].mxu0
    %v1255 = vadd.f32 %v210, %v1254
    %1256 = vmatprep.mubr.f32.mxu0 0.0
    %1257 = vmatmul.mubr.f32.gmra.mrb[0].mxu0 %v512
    %v1258 = vpop.f32.mrb[0].mxu0
    %v1259 = vadd.f32 %v206, %v1258
    %v1260 = vpop.f32.mrb[0].mxu0
    %v1261 = vadd.f32 %v210, %v1260
    %1262 = vmatprep.mubr.f32.mxu0 0.0
    %1263 = vmatmul.mubr.f32.gmra.mrb[0].mxu0 %v515
    %v1264 = vpop.f32.mrb[0].mxu0
    %v1265 = vadd.f32 %v206, %v1264
    %v1266 = vpop.f32.mrb[0].mxu0
    %v1267 = vadd.f32 %v210, %v1266
    %1268 = vmatprep.mubr.f32.mxu0 0.0
    %1269 = vmatmul.mubr.f32.gmra.mrb[0].mxu0 %v518
    %v1270 = vpop.f32.mrb[0].mxu0
    %v1271 = vadd.f32 %v206, %v1270
    %v1272 = vpop.f32.mrb[0].mxu0
    %v1273 = vadd.f32 %v210, %v1272
    %1274 = vmatprep.mubr.f32.mxu0 0.0
    %1275 = vmatmul.mubr.f32.gmra.mrb[0].mxu0 %v521
    %v1276 = vpop.f32.mrb[0].mxu0
    %v1277 = vadd.f32 %v206, %v1276
    %v1278 = vpop.f32.mrb[0].mxu0
    %v1279 = vadd.f32 %v210, %v1278
    %1280 = vmatprep.mubr.f32.mxu0 0.0
    %1281 = vmatmul.mubr.f32.gmra.mrb[0].mxu0 %v524
    %v1282 = vpop.f32.mrb[0].mxu0
    %v1283 = vadd.f32 %v206, %v1282
    %v1284 = vpop.f32.mrb[0].mxu0
    %v1285 = vadd.f32 %v210, %v1284
    %1286 = vmatprep.mubr.f32.mxu0 0.0
    %1287 = vmatmul.mubr.f32.gmra.mrb[0].mxu0 %v527
    %v1288 = vpop.f32.mrb[0].mxu0
    %v1289 = vadd.f32 %v206, %v1288
    %v1290 = vpop.f32.mrb[0].mxu0
    %v1291 = vadd.f32 %v210, %v1290
    %1292 = vmatprep.mubr.f32.mxu0 0.0
    %1293 = vmatmul.mubr.f32.gmra.mrb[0].mxu0 %v530
    %v1294 = vpop.f32.mrb[0].mxu0
    %v1295 = vadd.f32 %v206, %v1294
    %v1296 = vpop.f32.mrb[0].mxu0
    %v1297 = vadd.f32 %v210, %v1296
    %1298 = vmatprep.mubr.f32.mxu0 0.0
    %1299 = vmatmul.mubr.f32.gmra.mrb[0].mxu0 %v533
    %v1300 = vpop.f32.mrb[0].mxu0
    %v1301 = vadd.f32 %v206, %v1300
    %v1302 = vpop.f32.mrb[0].mxu0
    %v1303 = vadd.f32 %v210, %v1302
    %1304 = vmatprep.mubr.f32.mxu0 0.0
    %1305 = vmatmul.mubr.f32.gmra.mrb[0].mxu0 %v536
    %v1306 = vpop.f32.mrb[0].mxu0
    %v1307 = vadd.f32 %v206, %v1306
    %v1308 = vpop.f32.mrb[0].mxu0
    %v1309 = vadd.f32 %v210, %v1308
    %1310 = vmatprep.mubr.f32.mxu0 0.0
    %1311 = vmatmul.mubr.f32.gmra.mrb[0].mxu0 %v539
    %v1312 = vpop.f32.mrb[0].mxu0
    %v1313 = vadd.f32 %v206, %v1312
    %v1314 = vpop.f32.mrb[0].mxu0
    %v1315 = vadd.f32 %v210, %v1314
    %1316 = vmatprep.mubr.f32.mxu0 0.0
    %1317 = vmatmul.mubr.f32.gmra.mrb[0].mxu0 %v542
    %v1318 = vpop.f32.mrb[0].mxu0
    %v1319 = vadd.f32 %v206, %v1318
    %v1320 = vpop.f32.mrb[0].mxu0
    %v1321 = vadd.f32 %v210, %v1320
    %1322 = vmatprep.mubr.f32.mxu0 0.0
    %1323 = vmatmul.mubr.f32.gmra.mrb[0].mxu0 %v545
    %v1324 = vpop.f32.mrb[0].mxu0
    %v1325 = vadd.f32 %v206, %v1324
    %v1326 = vpop.f32.mrb[0].mxu0
    %v1327 = vadd.f32 %v210, %v1326
    %1328 = vmatprep.mubr.f32.mxu0 0.0
    %1329 = vmatmul.mubr.f32.gmra.mrb[0].mxu0 %v548
    %v1330 = vpop.f32.mrb[0].mxu0
    %v1331 = vadd.f32 %v206, %v1330
    %v1332 = vpop.f32.mrb[0].mxu0
    %v1333 = vadd.f32 %v210, %v1332
    %1334 = vmatprep.mubr.f32.mxu0 0.0
    %1335 = vmatmul.mubr.f32.gmra.mrb[0].mxu0 %v551
    %v1336 = vpop.f32.mrb[0].mxu0
    %v1337 = vadd.f32 %v206, %v1336
    %v1338 = vpop.f32.mrb[0].mxu0
    %v1339 = vadd.f32 %v210, %v1338
    %1340 = vmatprep.mubr.f32.mxu0 0.0
    %1341 = vmatmul.mubr.f32.gmra.mrb[0].mxu0 %v554
    %v1342 = vpop.f32.mrb[0].mxu0
    %v1343 = vadd.f32 %v206, %v1342
    %v1344 = vpop.f32.mrb[0].mxu0
    %v1345 = vadd.f32 %v210, %v1344
    %1346 = vmatprep.mubr.f32.mxu0 0.0
    %1347 = vmatmul.mubr.f32.gmra.mrb[0].mxu0 %v557
    %v1348 = vpop.f32.mrb[0].mxu0
    %v1349 = vadd.f32 %v206, %v1348
    %v1350 = vpop.f32.mrb[0].mxu0
    %v1351 = vadd.f32 %v210, %v1350
    %1352 = vmatprep.mubr.f32.mxu0 0.0
    %1353 = vmatmul.mubr.f32.gmra.mrb[0].mxu0 %v560
    %v1354 = vpop.f32.mrb[0].mxu0
    %v1355 = vadd.f32 %v206, %v1354
    %v1356 = vpop.f32.mrb[0].mxu0
    %v1357 = vadd.f32 %v210, %v1356
    %1358 = vmatprep.mubr.f32.mxu0 0.0
    %1359 = vmatmul.mubr.f32.gmra.mrb[0].mxu0 %v563
    %v1360 = vpop.f32.mrb[0].mxu0
    %v1361 = vadd.f32 %v206, %v1360
    %v1362 = vpop.f32.mrb[0].mxu0
    %v1363 = vadd.f32 %v210, %v1362
    %1364 = vmatprep.mubr.f32.mxu0 0.0
    %1365 = vmatmul.mubr.f32.gmra.mrb[0].mxu0 %v566
    %v1366 = vpop.f32.mrb[0].mxu0
    %v1367 = vadd.f32 %v206, %v1366
    %v1368 = vpop.f32.mrb[0].mxu0
    %v1369 = vadd.f32 %v210, %v1368
    %1370 = vmatprep.mubr.f32.mxu0 0.0
    %1371 = vmatmul.mubr.f32.gmra.mrb[0].mxu0 %v569
    %v1372 = vpop.f32.mrb[0].mxu0
    %v1373 = vadd.f32 %v206, %v1372
    %v1374 = vpop.f32.mrb[0].mxu0
    %v1375 = vadd.f32 %v210, %v1374
    %1376 = vmatprep.mubr.f32.mxu0 0.0
    %1377 = vmatmul.mubr.f32.gmra.mrb[0].mxu0 %v572
    %v1378 = vpop.f32.mrb[0].mxu0
    %v1379 = vadd.f32 %v206, %v1378
    %v1380 = vpop.f32.mrb[0].mxu0
    %v1381 = vadd.f32 %v210, %v1380
    %1382 = vmatprep.mubr.f32.mxu0 0.0
    %1383 = vmatmul.mubr.f32.gmra.mrb[0].mxu0 %v575
    %v1384 = vpop.f32.mrb[0].mxu0
    %v1385 = vadd.f32 %v206, %v1384
    %v1386 = vpop.f32.mrb[0].mxu0
    %v1387 = vadd.f32 %v210, %v1386
    %1388 = vmatprep.mubr.f32.mxu0 0.0
    %1389 = vmatmul.mubr.f32.gmra.mrb[0].mxu0 %v578
    %v1390 = vpop.f32.mrb[0].mxu0
    %v1391 = vadd.f32 %v206, %v1390
    %v1392 = vpop.f32.mrb[0].mxu0
    %v1393 = vadd.f32 %v210, %v1392
    %1394 = vmatprep.mubr.f32.mxu0 0.0
    %1395 = vmatmul.mubr.f32.gmra.mrb[0].mxu0 %v581
    %v1396 = vpop.f32.mrb[0].mxu0
    %v1397 = vadd.f32 %v206, %v1396
    %v1398 = vpop.f32.mrb[0].mxu0
    %v1399 = vadd.f32 %v210, %v1398
    %1400 = vmatprep.mubr.f32.mxu0 0.0
    %1401 = vmatmul.mubr.f32.gmra.mrb[0].mxu0 %v584
    %v1402 = vpop.f32.mrb[0].mxu0
    %v1403 = vadd.f32 %v206, %v1402
    %v1404 = vpop.f32.mrb[0].mxu0
    %v1405 = vadd.f32 %v210, %v1404
    %1406 = vmatprep.mubr.f32.mxu0 0.0
    %1407 = vmatmul.mubr.f32.gmra.mrb[0].mxu0 %v587
    %v1408 = vpop.f32.mrb[0].mxu0
    %v1409 = vadd.f32 %v206, %v1408
    %v1410 = vpop.f32.mrb[0].mxu0
    %v1411 = vadd.f32 %v210, %v1410
    %1412 = vmatprep.mubr.f32.mxu0 0.0
    %1413 = vmatmul.mubr.f32.gmra.mrb[0].mxu0 %v590
    %v1414 = vpop.f32.mrb[0].mxu0
    %v1415 = vadd.f32 %v206, %v1414
    %v1416 = vpop.f32.mrb[0].mxu0
    %v1417 = vadd.f32 %v210, %v1416
    %1418 = vmatprep.mubr.f32.mxu0 0.0
    %1419 = vmatmul.mubr.f32.gmra.mrb[0].mxu0 %v593
    %v1420 = vpop.f32.mrb[0].mxu0
    %v1421 = vadd.f32 %v206, %v1420
    %v1422 = vpop.f32.mrb[0].mxu0
    %v1423 = vadd.f32 %v210, %v1422
    %1424 = vmatprep.mubr.f32.mxu0 0.0
    %1425 = vmatmul.mubr.f32.gmra.mrb[0].mxu0 %v596
    %v1426 = vpop.f32.mrb[0].mxu0
    %v1427 = vadd.f32 %v206, %v1426
    %v1428 = vpop.f32.mrb[0].mxu0
    %v1429 = vadd.f32 %v210, %v1428
    %1430 = vdwg.mxu0
    %v1431 = vmax.f32 %v665, 0.0
    %v1432 = vmax.f32 %v667, 0.0
    %v1433 = vmax.f32 %v671, 0.0
    %v1434 = vmax.f32 %v673, 0.0
    %v1435 = vmax.f32 %v677, 0.0
    %v1436 = vmax.f32 %v679, 0.0
    %v1437 = vmax.f32 %v683, 0.0
    %v1438 = vmax.f32 %v685, 0.0
    %v1439 = vmax.f32 %v689, 0.0
    %v1440 = vmax.f32 %v691, 0.0
    %v1441 = vmax.f32 %v695, 0.0
    %v1442 = vmax.f32 %v697, 0.0
    %v1443 = vmax.f32 %v701, 0.0
    %v1444 = vmax.f32 %v703, 0.0
    %v1445 = vmax.f32 %v707, 0.0
    %v1446 = vmax.f32 %v709, 0.0
    %v1447 = vmax.f32 %v713, 0.0
    %v1448 = vmax.f32 %v715, 0.0
    %v1449 = vmax.f32 %v719, 0.0
    %v1450 = vmax.f32 %v721, 0.0
    %v1451 = vmax.f32 %v725, 0.0
    %v1452 = vmax.f32 %v727, 0.0
    %v1453 = vmax.f32 %v731, 0.0
    %v1454 = vmax.f32 %v733, 0.0
    %v1455 = vmax.f32 %v737, 0.0
    %v1456 = vmax.f32 %v739, 0.0
    %v1457 = vmax.f32 %v743, 0.0
    %v1458 = vmax.f32 %v745, 0.0
    %v1459 = vmax.f32 %v749, 0.0
    %v1460 = vmax.f32 %v751, 0.0
    %v1461 = vmax.f32 %v755, 0.0
    %v1462 = vmax.f32 %v757, 0.0
    %v1463 = vmax.f32 %v761, 0.0
    %v1464 = vmax.f32 %v763, 0.0
    %v1465 = vmax.f32 %v767, 0.0
    %v1466 = vmax.f32 %v769, 0.0
    %v1467 = vmax.f32 %v773, 0.0
    %v1468 = vmax.f32 %v775, 0.0
    %v1469 = vmax.f32 %v779, 0.0
    %v1470 = vmax.f32 %v781, 0.0
    %v1471 = vmax.f32 %v785, 0.0
    %v1472 = vmax.f32 %v787, 0.0
    %v1473 = vmax.f32 %v791, 0.0
    %v1474 = vmax.f32 %v793, 0.0
    %v1475 = vmax.f32 %v797, 0.0
    %v1476 = vmax.f32 %v799, 0.0
    %v1477 = vmax.f32 %v803, 0.0
    %v1478 = vmax.f32 %v805, 0.0
    %v1479 = vmax.f32 %v809, 0.0
    %v1480 = vmax.f32 %v811, 0.0
    %v1481 = vmax.f32 %v815, 0.0
    %v1482 = vmax.f32 %v817, 0.0
    %v1483 = vmax.f32 %v821, 0.0
    %v1484 = vmax.f32 %v823, 0.0
    %v1485 = vmax.f32 %v827, 0.0
    %v1486 = vmax.f32 %v829, 0.0
    %v1487 = vmax.f32 %v833, 0.0
    %v1488 = vmax.f32 %v835, 0.0
    %v1489 = vmax.f32 %v839, 0.0
    %v1490 = vmax.f32 %v841, 0.0
    %v1491 = vmax.f32 %v845, 0.0
    %v1492 = vmax.f32 %v847, 0.0
    %v1493 = vmax.f32 %v851, 0.0
    %v1494 = vmax.f32 %v853, 0.0
    %v1495 = vmax.f32 %v857, 0.0
    %v1496 = vmax.f32 %v859, 0.0
    %v1497 = vmax.f32 %v863, 0.0
    %v1498 = vmax.f32 %v865, 0.0
    %v1499 = vmax.f32 %v869, 0.0
    %v1500 = vmax.f32 %v871, 0.0
    %v1501 = vmax.f32 %v875, 0.0
    %v1502 = vmax.f32 %v877, 0.0
    %v1503 = vmax.f32 %v881, 0.0
    %v1504 = vmax.f32 %v883, 0.0
    %v1505 = vmax.f32 %v887, 0.0
    %v1506 = vmax.f32 %v889, 0.0
    %v1507 = vmax.f32 %v893, 0.0
    %v1508 = vmax.f32 %v895, 0.0
    %v1509 = vmax.f32 %v899, 0.0
    %v1510 = vmax.f32 %v901, 0.0
    %v1511 = vmax.f32 %v905, 0.0
    %v1512 = vmax.f32 %v907, 0.0
    %v1513 = vmax.f32 %v911, 0.0
    %v1514 = vmax.f32 %v913, 0.0
    %v1515 = vmax.f32 %v917, 0.0
    %v1516 = vmax.f32 %v919, 0.0
    %v1517 = vmax.f32 %v923, 0.0
    %v1518 = vmax.f32 %v925, 0.0
    %v1519 = vmax.f32 %v929, 0.0
    %v1520 = vmax.f32 %v931, 0.0
    %v1521 = vmax.f32 %v935, 0.0
    %v1522 = vmax.f32 %v937, 0.0
    %v1523 = vmax.f32 %v941, 0.0
    %v1524 = vmax.f32 %v943, 0.0
    %v1525 = vmax.f32 %v947, 0.0
    %v1526 = vmax.f32 %v949, 0.0
    %v1527 = vmax.f32 %v953, 0.0
    %v1528 = vmax.f32 %v955, 0.0
    %v1529 = vmax.f32 %v959, 0.0
    %v1530 = vmax.f32 %v961, 0.0
    %v1531 = vmax.f32 %v965, 0.0
    %v1532 = vmax.f32 %v967, 0.0
    %v1533 = vmax.f32 %v971, 0.0
    %v1534 = vmax.f32 %v973, 0.0
    %v1535 = vmax.f32 %v977, 0.0
    %v1536 = vmax.f32 %v979, 0.0
    %v1537 = vmax.f32 %v983, 0.0
    %v1538 = vmax.f32 %v985, 0.0
    %v1539 = vmax.f32 %v989, 0.0
    %v1540 = vmax.f32 %v991, 0.0
    %v1541 = vmax.f32 %v995, 0.0
    %v1542 = vmax.f32 %v997, 0.0
    %v1543 = vmax.f32 %v1001, 0.0
    %v1544 = vmax.f32 %v1003, 0.0
    %v1545 = vmax.f32 %v1007, 0.0
    %v1546 = vmax.f32 %v1009, 0.0
    %v1547 = vmax.f32 %v1013, 0.0
    %v1548 = vmax.f32 %v1015, 0.0
    %v1549 = vmax.f32 %v1019, 0.0
    %v1550 = vmax.f32 %v1021, 0.0
    %v1551 = vmax.f32 %v1025, 0.0
    %v1552 = vmax.f32 %v1027, 0.0
    %v1553 = vmax.f32 %v1031, 0.0
    %v1554 = vmax.f32 %v1033, 0.0
    %v1555 = vmax.f32 %v1037, 0.0
    %v1556 = vmax.f32 %v1039, 0.0
    %v1557 = vmax.f32 %v1043, 0.0
    %v1558 = vmax.f32 %v1045, 0.0
    %v1559 = vmax.f32 %v1049, 0.0
    %v1560 = vmax.f32 %v1051, 0.0
    %v1561 = vmax.f32 %v1055, 0.0
    %v1562 = vmax.f32 %v1057, 0.0
    %v1563 = vmax.f32 %v1061, 0.0
    %v1564 = vmax.f32 %v1063, 0.0
    %v1565 = vmax.f32 %v1067, 0.0
    %v1566 = vmax.f32 %v1069, 0.0
    %v1567 = vmax.f32 %v1073, 0.0
    %v1568 = vmax.f32 %v1075, 0.0
    %v1569 = vmax.f32 %v1079, 0.0
    %v1570 = vmax.f32 %v1081, 0.0
    %v1571 = vmax.f32 %v1085, 0.0
    %v1572 = vmax.f32 %v1087, 0.0
    %v1573 = vmax.f32 %v1091, 0.0
    %v1574 = vmax.f32 %v1093, 0.0
    %v1575 = vmax.f32 %v1097, 0.0
    %v1576 = vmax.f32 %v1099, 0.0
    %v1577 = vmax.f32 %v1103, 0.0
    %v1578 = vmax.f32 %v1105, 0.0
    %v1579 = vmax.f32 %v1109, 0.0
    %v1580 = vmax.f32 %v1111, 0.0
    %v1581 = vmax.f32 %v1115, 0.0
    %v1582 = vmax.f32 %v1117, 0.0
    %v1583 = vmax.f32 %v1121, 0.0
    %v1584 = vmax.f32 %v1123, 0.0
    %v1585 = vmax.f32 %v1127, 0.0
    %v1586 = vmax.f32 %v1129, 0.0
    %v1587 = vmax.f32 %v1133, 0.0
    %v1588 = vmax.f32 %v1135, 0.0
    %v1589 = vmax.f32 %v1139, 0.0
    %v1590 = vmax.f32 %v1141, 0.0
    %v1591 = vmax.f32 %v1145, 0.0
    %v1592 = vmax.f32 %v1147, 0.0
    %v1593 = vmax.f32 %v1151, 0.0
    %v1594 = vmax.f32 %v1153, 0.0
    %v1595 = vmax.f32 %v1157, 0.0
    %v1596 = vmax.f32 %v1159, 0.0
    %v1597 = vmax.f32 %v1163, 0.0
    %v1598 = vmax.f32 %v1165, 0.0
    %v1599 = vmax.f32 %v1169, 0.0
    %v1600 = vmax.f32 %v1171, 0.0
    %v1601 = vmax.f32 %v1175, 0.0
    %v1602 = vmax.f32 %v1177, 0.0
    %v1603 = vmax.f32 %v1181, 0.0
    %v1604 = vmax.f32 %v1183, 0.0
    %v1605 = vmax.f32 %v1187, 0.0
    %v1606 = vmax.f32 %v1189, 0.0
    %v1607 = vmax.f32 %v1193, 0.0
    %v1608 = vmax.f32 %v1195, 0.0
    %v1609 = vmax.f32 %v1199, 0.0
    %v1610 = vmax.f32 %v1201, 0.0
    %v1611 = vmax.f32 %v1205, 0.0
    %v1612 = vmax.f32 %v1207, 0.0
    %v1613 = vmax.f32 %v1211, 0.0
    %v1614 = vmax.f32 %v1213, 0.0
    %v1615 = vmax.f32 %v1217, 0.0
    %v1616 = vmax.f32 %v1219, 0.0
    %v1617 = vmax.f32 %v1223, 0.0
    %v1618 = vmax.f32 %v1225, 0.0
    %v1619 = vmax.f32 %v1229, 0.0
    %v1620 = vmax.f32 %v1231, 0.0
    %v1621 = vmax.f32 %v1235, 0.0
    %v1622 = vmax.f32 %v1237, 0.0
    %v1623 = vmax.f32 %v1241, 0.0
    %v1624 = vmax.f32 %v1243, 0.0
    %v1625 = vmax.f32 %v1247, 0.0
    %v1626 = vmax.f32 %v1249, 0.0
    %v1627 = vmax.f32 %v1253, 0.0
    %v1628 = vmax.f32 %v1255, 0.0
    %v1629 = vmax.f32 %v1259, 0.0
    %v1630 = vmax.f32 %v1261, 0.0
    %v1631 = vmax.f32 %v1265, 0.0
    %v1632 = vmax.f32 %v1267, 0.0
    %v1633 = vmax.f32 %v1271, 0.0
    %v1634 = vmax.f32 %v1273, 0.0
    %v1635 = vmax.f32 %v1277, 0.0
    %v1636 = vmax.f32 %v1279, 0.0
    %v1637 = vmax.f32 %v1283, 0.0
    %v1638 = vmax.f32 %v1285, 0.0
    %v1639 = vmax.f32 %v1289, 0.0
    %v1640 = vmax.f32 %v1291, 0.0
    %v1641 = vmax.f32 %v1295, 0.0
    %v1642 = vmax.f32 %v1297, 0.0
    %v1643 = vmax.f32 %v1301, 0.0
    %v1644 = vmax.f32 %v1303, 0.0
    %v1645 = vmax.f32 %v1307, 0.0
    %v1646 = vmax.f32 %v1309, 0.0
    %v1647 = vmax.f32 %v1313, 0.0
    %v1648 = vmax.f32 %v1315, 0.0
    %v1649 = vmax.f32 %v1319, 0.0
    %v1650 = vmax.f32 %v1321, 0.0
    %v1651 = vmax.f32 %v1325, 0.0
    %v1652 = vmax.f32 %v1327, 0.0
    %v1653 = vmax.f32 %v1331, 0.0
    %v1654 = vmax.f32 %v1333, 0.0
    %v1655 = vmax.f32 %v1337, 0.0
    %v1656 = vmax.f32 %v1339, 0.0
    %v1657 = vmax.f32 %v1343, 0.0
    %v1658 = vmax.f32 %v1345, 0.0
    %v1659 = vmax.f32 %v1349, 0.0
    %v1660 = vmax.f32 %v1351, 0.0
    %v1661 = vmax.f32 %v1355, 0.0
    %v1662 = vmax.f32 %v1357, 0.0
    %v1663 = vmax.f32 %v1361, 0.0
    %v1664 = vmax.f32 %v1363, 0.0
    %v1665 = vmax.f32 %v1367, 0.0
    %v1666 = vmax.f32 %v1369, 0.0
    %v1667 = vmax.f32 %v1373, 0.0
    %v1668 = vmax.f32 %v1375, 0.0
    %v1669 = vmax.f32 %v1379, 0.0
    %v1670 = vmax.f32 %v1381, 0.0
    %v1671 = vmax.f32 %v1385, 0.0
    %v1672 = vmax.f32 %v1387, 0.0
    %v1673 = vmax.f32 %v1391, 0.0
    %v1674 = vmax.f32 %v1393, 0.0
    %v1675 = vmax.f32 %v1397, 0.0
    %v1676 = vmax.f32 %v1399, 0.0
    %v1677 = vmax.f32 %v1403, 0.0
    %v1678 = vmax.f32 %v1405, 0.0
    %v1679 = vmax.f32 %v1409, 0.0
    %v1680 = vmax.f32 %v1411, 0.0
    %v1681 = vmax.f32 %v1415, 0.0
    %v1682 = vmax.f32 %v1417, 0.0
    %v1683 = vmax.f32 %v1421, 0.0
    %v1684 = vmax.f32 %v1423, 0.0
    %v1685 = vmax.f32 %v1427, 0.0
    %v1686 = vmax.f32 %v1429, 0.0
    %v1687 = vld [vmem:[#allocation3] sm:$0xff]
    %v1688 = vld [vmem:[#allocation3 + $0x8] sm:$0xff]
    %v1689 = vld [vmem:[#allocation3 + $0x10] sm:$0xff]
    %v1690 = vld [vmem:[#allocation3 + $0x18] sm:$0xff]
    %v1691 = vld [vmem:[#allocation3 + $0x20] sm:$0xff]
    %v1692 = vld [vmem:[#allocation3 + $0x28] sm:$0xff]
    %v1693 = vld [vmem:[#allocation3 + $0x30] sm:$0xff]
    %v1694 = vld [vmem:[#allocation3 + $0x38] sm:$0xff]
    %v1695 = vld [vmem:[#allocation3 + $0x40] sm:$0xff]
    %v1696 = vld [vmem:[#allocation3 + $0x48] sm:$0xff]
    %v1697 = vld [vmem:[#allocation3 + $0x50] sm:$0xff]
    %v1698 = vld [vmem:[#allocation3 + $0x58] sm:$0xff]
    %v1699 = vld [vmem:[#allocation3 + $0x60] sm:$0xff]
    %v1700 = vld [vmem:[#allocation3 + $0x68] sm:$0xff]
    %v1701 = vld [vmem:[#allocation3 + $0x70] sm:$0xff]
    %v1702 = vld [vmem:[#allocation3 + $0x78] sm:$0xff]
    %v1703 = vld [vmem:[#allocation3 + $0x80] sm:$0xff]
    %v1704 = vld [vmem:[#allocation3 + $0x88] sm:$0xff]
    %v1705 = vld [vmem:[#allocation3 + $0x90] sm:$0xff]
    %v1706 = vld [vmem:[#allocation3 + $0x98] sm:$0xff]
    %v1707 = vld [vmem:[#allocation3 + $0xa0] sm:$0xff]
    %v1708 = vld [vmem:[#allocation3 + $0xa8] sm:$0xff]
    %v1709 = vld [vmem:[#allocation3 + $0xb0] sm:$0xff]
    %v1710 = vld [vmem:[#allocation3 + $0xb8] sm:$0xff]
    %v1711 = vld [vmem:[#allocation3 + $0xc0] sm:$0xff]
    %v1712 = vld [vmem:[#allocation3 + $0xc8] sm:$0xff]
    %v1713 = vld [vmem:[#allocation3 + $0xd0] sm:$0xff]
    %v1714 = vld [vmem:[#allocation3 + $0xd8] sm:$0xff]
    %v1715 = vld [vmem:[#allocation3 + $0xe0] sm:$0xff]
    %v1716 = vld [vmem:[#allocation3 + $0xe8] sm:$0xff]
    %v1717 = vld [vmem:[#allocation3 + $0xf0] sm:$0xff]
    %v1718 = vld [vmem:[#allocation3 + $0xf8] sm:$0xff]
    %v1719 = vld [vmem:[#allocation3 + $0x100] sm:$0xff]
    %v1720 = vld [vmem:[#allocation3 + $0x108] sm:$0xff]
    %v1721 = vld [vmem:[#allocation3 + $0x110] sm:$0xff]
    %v1722 = vld [vmem:[#allocation3 + $0x118] sm:$0xff]
    %v1723 = vld [vmem:[#allocation3 + $0x120] sm:$0xff]
    %v1724 = vld [vmem:[#allocation3 + $0x128] sm:$0xff]
    %v1725 = vld [vmem:[#allocation3 + $0x130] sm:$0xff]
    %v1726 = vld [vmem:[#allocation3 + $0x138] sm:$0xff]
    %v1727 = vld [vmem:[#allocation3 + $0x140] sm:$0xff]
    %v1728 = vld [vmem:[#allocation3 + $0x148] sm:$0xff]
    %v1729 = vld [vmem:[#allocation3 + $0x150] sm:$0xff]
    %v1730 = vld [vmem:[#allocation3 + $0x158] sm:$0xff]
    %v1731 = vld [vmem:[#allocation3 + $0x160] sm:$0xff]
    %v1732 = vld [vmem:[#allocation3 + $0x168] sm:$0xff]
    %v1733 = vld [vmem:[#allocation3 + $0x170] sm:$0xff]
    %v1734 = vld [vmem:[#allocation3 + $0x178] sm:$0xff]
    %v1735 = vld [vmem:[#allocation3 + $0x180] sm:$0xff]
    %v1736 = vld [vmem:[#allocation3 + $0x188] sm:$0xff]
    %v1737 = vld [vmem:[#allocation3 + $0x190] sm:$0xff]
    %v1738 = vld [vmem:[#allocation3 + $0x198] sm:$0xff]
    %v1739 = vld [vmem:[#allocation3 + $0x1a0] sm:$0xff]
    %v1740 = vld [vmem:[#allocation3 + $0x1a8] sm:$0xff]
    %v1741 = vld [vmem:[#allocation3 + $0x1b0] sm:$0xff]
    %v1742 = vld [vmem:[#allocation3 + $0x1b8] sm:$0xff]
    %v1743 = vld [vmem:[#allocation3 + $0x1c0] sm:$0xff]
    %v1744 = vld [vmem:[#allocation3 + $0x1c8] sm:$0xff]
    %v1745 = vld [vmem:[#allocation3 + $0x1d0] sm:$0xff]
    %v1746 = vld [vmem:[#allocation3 + $0x1d8] sm:$0xff]
    %v1747 = vld [vmem:[#allocation3 + $0x1e0] sm:$0xff]
    %v1748 = vld [vmem:[#allocation3 + $0x1e8] sm:$0xff]
    %v1749 = vld [vmem:[#allocation3 + $0x1f0] sm:$0xff]
    %v1750 = vld [vmem:[#allocation3 + $0x1f8] sm:$0xff]
    %v1751 = vld [vmem:[%s5] sm:$0x3]
    %v1753 = vlaneseq
    %v1754 = vshrl.u32 %v1753, 7
    %v1755 = vsub.s32 0, %v1754
    %v1756 = vrot.slane %v1751, %v1755
    %v1757 = vlaneseq
    %v1758 = vshrl.u32 %v1757, 7
    %v1759 = vsub.s32 1, %v1758
    %v1760 = vrot.slane %v1751, %v1759
    %1763 = vmatprep.subr.mxu0 %v1688
    %1764 = vmatpush1.msra.mxu0 %v1687
    %1765 = vmatprep.subr.mxu0 %v1690
    %1766 = vmatpush1.msra.mxu0 %v1689
    %1767 = vmatprep.subr.mxu0 %v1692
    %1768 = vmatpush1.msra.mxu0 %v1691
    %1769 = vmatprep.subr.mxu0 %v1694
    %1770 = vmatpush1.msra.mxu0 %v1693
    %1771 = vmatprep.subr.mxu0 %v1696
    %1772 = vmatpush1.msra.mxu0 %v1695
    %1773 = vmatprep.subr.mxu0 %v1698
    %1774 = vmatpush1.msra.mxu0 %v1697
    %1775 = vmatprep.subr.mxu0 %v1700
    %1776 = vmatpush1.msra.mxu0 %v1699
    %1777 = vmatprep.subr.mxu0 %v1702
    %1778 = vmatpush1.msra.mxu0 %v1701
    %1779 = vmatprep.subr.mxu0 %v1704
    %1780 = vmatpush1.msra.mxu0 %v1703
    %1781 = vmatprep.subr.mxu0 %v1706
    %1782 = vmatpush1.msra.mxu0 %v1705
    %1783 = vmatprep.subr.mxu0 %v1708
    %1784 = vmatpush1.msra.mxu0 %v1707
    %1785 = vmatprep.subr.mxu0 %v1710
    %1786 = vmatpush1.msra.mxu0 %v1709
    %1787 = vmatprep.subr.mxu0 %v1712
    %1788 = vmatpush1.msra.mxu0 %v1711
    %1789 = vmatprep.subr.mxu0 %v1714
    %1790 = vmatpush1.msra.mxu0 %v1713
    %1791 = vmatprep.subr.mxu0 %v1716
    %1792 = vmatpush1.msra.mxu0 %v1715
    %1793 = vmatprep.subr.mxu0 %v1718
    %1794 = vmatpush1.msra.mxu0 %v1717
    %1795 = vmatprep.subr.mxu0 %v1720
    %1796 = vmatpush1.msra.mxu0 %v1719
    %1797 = vmatprep.subr.mxu0 %v1722
    %1798 = vmatpush1.msra.mxu0 %v1721
    %1799 = vmatprep.subr.mxu0 %v1724
    %1800 = vmatpush1.msra.mxu0 %v1723
    %1801 = vmatprep.subr.mxu0 %v1726
    %1802 = vmatpush1.msra.mxu0 %v1725
    %1803 = vmatprep.subr.mxu0 %v1728
    %1804 = vmatpush1.msra.mxu0 %v1727
    %1805 = vmatprep.subr.mxu0 %v1730
    %1806 = vmatpush1.msra.mxu0 %v1729
    %1807 = vmatprep.subr.mxu0 %v1732
    %1808 = vmatpush1.msra.mxu0 %v1731
    %1809 = vmatprep.subr.mxu0 %v1734
    %1810 = vmatpush1.msra.mxu0 %v1733
    %1811 = vmatprep.subr.mxu0 %v1736
    %1812 = vmatpush1.msra.mxu0 %v1735
    %1813 = vmatprep.subr.mxu0 %v1738
    %1814 = vmatpush1.msra.mxu0 %v1737
    %1815 = vmatprep.subr.mxu0 %v1740
    %1816 = vmatpush1.msra.mxu0 %v1739
    %1817 = vmatprep.subr.mxu0 %v1742
    %1818 = vmatpush1.msra.mxu0 %v1741
    %1819 = vmatprep.subr.mxu0 %v1744
    %1820 = vmatpush1.msra.mxu0 %v1743
    %1821 = vmatprep.subr.mxu0 %v1746
    %1822 = vmatpush1.msra.mxu0 %v1745
    %1823 = vmatprep.subr.mxu0 %v1748
    %1824 = vmatpush1.msra.mxu0 %v1747
    %1825 = vmatprep.subr.mxu0 %v1750
    %1826 = vmatpush1.msra.mxu0 %v1749
    %1827 = vmatprep.mubr.f32.mxu0 %v1432
    %1828 = vmatmul.mubr.f32.gmra.mrb[0].mxu0 %v1431
    %v1829 = vpop.f32.mrb[0].mxu0
    %v1830 = vadd.f32 %v1756, %v1829
    %v1831 = vpop.f32.mrb[0].mxu0
    %v1832 = vadd.f32 %v1760, %v1831
    %1833 = vmatprep.mubr.f32.mxu0 %v1434
    %1834 = vmatmul.mubr.f32.gmra.mrb[0].mxu0 %v1433
    %v1835 = vpop.f32.mrb[0].mxu0
    %v1836 = vadd.f32 %v1756, %v1835
    %v1837 = vpop.f32.mrb[0].mxu0
    %v1838 = vadd.f32 %v1760, %v1837
    %1839 = vmatprep.mubr.f32.mxu0 %v1436
    %1840 = vmatmul.mubr.f32.gmra.mrb[0].mxu0 %v1435
    %v1841 = vpop.f32.mrb[0].mxu0
    %v1842 = vadd.f32 %v1756, %v1841
    %v1843 = vpop.f32.mrb[0].mxu0
    %v1844 = vadd.f32 %v1760, %v1843
    %1845 = vmatprep.mubr.f32.mxu0 %v1438
    %1846 = vmatmul.mubr.f32.gmra.mrb[0].mxu0 %v1437
    %v1847 = vpop.f32.mrb[0].mxu0
    %v1848 = vadd.f32 %v1756, %v1847
    %v1849 = vpop.f32.mrb[0].mxu0
    %v1850 = vadd.f32 %v1760, %v1849
    %1851 = vmatprep.mubr.f32.mxu0 %v1440
    %1852 = vmatmul.mubr.f32.gmra.mrb[0].mxu0 %v1439
    %v1853 = vpop.f32.mrb[0].mxu0
    %v1854 = vadd.f32 %v1756, %v1853
    %v1855 = vpop.f32.mrb[0].mxu0
    %v1856 = vadd.f32 %v1760, %v1855
    %1857 = vmatprep.mubr.f32.mxu0 %v1442
    %1858 = vmatmul.mubr.f32.gmra.mrb[0].mxu0 %v1441
    %v1859 = vpop.f32.mrb[0].mxu0
    %v1860 = vadd.f32 %v1756, %v1859
    %v1861 = vpop.f32.mrb[0].mxu0
    %v1862 = vadd.f32 %v1760, %v1861
    %1863 = vmatprep.mubr.f32.mxu0 %v1444
    %1864 = vmatmul.mubr.f32.gmra.mrb[0].mxu0 %v1443
    %v1865 = vpop.f32.mrb[0].mxu0
    %v1866 = vadd.f32 %v1756, %v1865
    %v1867 = vpop.f32.mrb[0].mxu0
    %v1868 = vadd.f32 %v1760, %v1867
    %1869 = vmatprep.mubr.f32.mxu0 %v1446
    %1870 = vmatmul.mubr.f32.gmra.mrb[0].mxu0 %v1445
    %v1871 = vpop.f32.mrb[0].mxu0
    %v1872 = vadd.f32 %v1756, %v1871
    %v1873 = vpop.f32.mrb[0].mxu0
    %v1874 = vadd.f32 %v1760, %v1873
    %1875 = vmatprep.mubr.f32.mxu0 %v1448
    %1876 = vmatmul.mubr.f32.gmra.mrb[0].mxu0 %v1447
    %v1877 = vpop.f32.mrb[0].mxu0
    %v1878 = vadd.f32 %v1756, %v1877
    %v1879 = vpop.f32.mrb[0].mxu0
    %v1880 = vadd.f32 %v1760, %v1879
    %1881 = vmatprep.mubr.f32.mxu0 %v1450
    %1882 = vmatmul.mubr.f32.gmra.mrb[0].mxu0 %v1449
    %v1883 = vpop.f32.mrb[0].mxu0
    %v1884 = vadd.f32 %v1756, %v1883
    %v1885 = vpop.f32.mrb[0].mxu0
    %v1886 = vadd.f32 %v1760, %v1885
    %1887 = vmatprep.mubr.f32.mxu0 %v1452
    %1888 = vmatmul.mubr.f32.gmra.mrb[0].mxu0 %v1451
    %v1889 = vpop.f32.mrb[0].mxu0
    %v1890 = vadd.f32 %v1756, %v1889
    %v1891 = vpop.f32.mrb[0].mxu0
    %v1892 = vadd.f32 %v1760, %v1891
    %1893 = vmatprep.mubr.f32.mxu0 %v1454
    %1894 = vmatmul.mubr.f32.gmra.mrb[0].mxu0 %v1453
    %v1895 = vpop.f32.mrb[0].mxu0
    %v1896 = vadd.f32 %v1756, %v1895
    %v1897 = vpop.f32.mrb[0].mxu0
    %v1898 = vadd.f32 %v1760, %v1897
    %1899 = vmatprep.mubr.f32.mxu0 %v1456
    %1900 = vmatmul.mubr.f32.gmra.mrb[0].mxu0 %v1455
    %v1901 = vpop.f32.mrb[0].mxu0
    %v1902 = vadd.f32 %v1756, %v1901
    %v1903 = vpop.f32.mrb[0].mxu0
    %v1904 = vadd.f32 %v1760, %v1903
    %1905 = vmatprep.mubr.f32.mxu0 %v1458
    %1906 = vmatmul.mubr.f32.gmra.mrb[0].mxu0 %v1457
    %v1907 = vpop.f32.mrb[0].mxu0
    %v1908 = vadd.f32 %v1756, %v1907
    %v1909 = vpop.f32.mrb[0].mxu0
    %v1910 = vadd.f32 %v1760, %v1909
    %1911 = vmatprep.mubr.f32.mxu0 %v1460
    %1912 = vmatmul.mubr.f32.gmra.mrb[0].mxu0 %v1459
    %v1913 = vpop.f32.mrb[0].mxu0
    %v1914 = vadd.f32 %v1756, %v1913
    %v1915 = vpop.f32.mrb[0].mxu0
    %v1916 = vadd.f32 %v1760, %v1915
    %1917 = vmatprep.mubr.f32.mxu0 %v1462
    %1918 = vmatmul.mubr.f32.gmra.mrb[0].mxu0 %v1461
    %v1919 = vpop.f32.mrb[0].mxu0
    %v1920 = vadd.f32 %v1756, %v1919
    %v1921 = vpop.f32.mrb[0].mxu0
    %v1922 = vadd.f32 %v1760, %v1921
    %1923 = vmatprep.mubr.f32.mxu0 %v1464
    %1924 = vmatmul.mubr.f32.gmra.mrb[0].mxu0 %v1463
    %v1925 = vpop.f32.mrb[0].mxu0
    %v1926 = vadd.f32 %v1756, %v1925
    %v1927 = vpop.f32.mrb[0].mxu0
    %v1928 = vadd.f32 %v1760, %v1927
    %1929 = vmatprep.mubr.f32.mxu0 %v1466
    %1930 = vmatmul.mubr.f32.gmra.mrb[0].mxu0 %v1465
    %v1931 = vpop.f32.mrb[0].mxu0
    %v1932 = vadd.f32 %v1756, %v1931
    %v1933 = vpop.f32.mrb[0].mxu0
    %v1934 = vadd.f32 %v1760, %v1933
    %1935 = vmatprep.mubr.f32.mxu0 %v1468
    %1936 = vmatmul.mubr.f32.gmra.mrb[0].mxu0 %v1467
    %v1937 = vpop.f32.mrb[0].mxu0
    %v1938 = vadd.f32 %v1756, %v1937
    %v1939 = vpop.f32.mrb[0].mxu0
    %v1940 = vadd.f32 %v1760, %v1939
    %1941 = vmatprep.mubr.f32.mxu0 %v1470
    %1942 = vmatmul.mubr.f32.gmra.mrb[0].mxu0 %v1469
    %v1943 = vpop.f32.mrb[0].mxu0
    %v1944 = vadd.f32 %v1756, %v1943
    %v1945 = vpop.f32.mrb[0].mxu0
    %v1946 = vadd.f32 %v1760, %v1945
    %1947 = vmatprep.mubr.f32.mxu0 %v1472
    %1948 = vmatmul.mubr.f32.gmra.mrb[0].mxu0 %v1471
    %v1949 = vpop.f32.mrb[0].mxu0
    %v1950 = vadd.f32 %v1756, %v1949
    %v1951 = vpop.f32.mrb[0].mxu0
    %v1952 = vadd.f32 %v1760, %v1951
    %1953 = vmatprep.mubr.f32.mxu0 %v1474
    %1954 = vmatmul.mubr.f32.gmra.mrb[0].mxu0 %v1473
    %v1955 = vpop.f32.mrb[0].mxu0
    %v1956 = vadd.f32 %v1756, %v1955
    %v1957 = vpop.f32.mrb[0].mxu0
    %v1958 = vadd.f32 %v1760, %v1957
    %1959 = vmatprep.mubr.f32.mxu0 %v1476
    %1960 = vmatmul.mubr.f32.gmra.mrb[0].mxu0 %v1475
    %v1961 = vpop.f32.mrb[0].mxu0
    %v1962 = vadd.f32 %v1756, %v1961
    %v1963 = vpop.f32.mrb[0].mxu0
    %v1964 = vadd.f32 %v1760, %v1963
    %1965 = vmatprep.mubr.f32.mxu0 %v1478
    %1966 = vmatmul.mubr.f32.gmra.mrb[0].mxu0 %v1477
    %v1967 = vpop.f32.mrb[0].mxu0
    %v1968 = vadd.f32 %v1756, %v1967
    %v1969 = vpop.f32.mrb[0].mxu0
    %v1970 = vadd.f32 %v1760, %v1969
    %1971 = vmatprep.mubr.f32.mxu0 %v1480
    %1972 = vmatmul.mubr.f32.gmra.mrb[0].mxu0 %v1479
    %v1973 = vpop.f32.mrb[0].mxu0
    %v1974 = vadd.f32 %v1756, %v1973
    %v1975 = vpop.f32.mrb[0].mxu0
    %v1976 = vadd.f32 %v1760, %v1975
    %1977 = vmatprep.mubr.f32.mxu0 %v1482
    %1978 = vmatmul.mubr.f32.gmra.mrb[0].mxu0 %v1481
    %v1979 = vpop.f32.mrb[0].mxu0
    %v1980 = vadd.f32 %v1756, %v1979
    %v1981 = vpop.f32.mrb[0].mxu0
    %v1982 = vadd.f32 %v1760, %v1981
    %1983 = vmatprep.mubr.f32.mxu0 %v1484
    %1984 = vmatmul.mubr.f32.gmra.mrb[0].mxu0 %v1483
    %v1985 = vpop.f32.mrb[0].mxu0
    %v1986 = vadd.f32 %v1756, %v1985
    %v1987 = vpop.f32.mrb[0].mxu0
    %v1988 = vadd.f32 %v1760, %v1987
    %1989 = vmatprep.mubr.f32.mxu0 %v1486
    %1990 = vmatmul.mubr.f32.gmra.mrb[0].mxu0 %v1485
    %v1991 = vpop.f32.mrb[0].mxu0
    %v1992 = vadd.f32 %v1756, %v1991
    %v1993 = vpop.f32.mrb[0].mxu0
    %v1994 = vadd.f32 %v1760, %v1993
    %1995 = vmatprep.mubr.f32.mxu0 %v1488
    %1996 = vmatmul.mubr.f32.gmra.mrb[0].mxu0 %v1487
    %v1997 = vpop.f32.mrb[0].mxu0
    %v1998 = vadd.f32 %v1756, %v1997
    %v1999 = vpop.f32.mrb[0].mxu0
    %v2000 = vadd.f32 %v1760, %v1999
    %2001 = vmatprep.mubr.f32.mxu0 %v1490
    %2002 = vmatmul.mubr.f32.gmra.mrb[0].mxu0 %v1489
    %v2003 = vpop.f32.mrb[0].mxu0
    %v2004 = vadd.f32 %v1756, %v2003
    %v2005 = vpop.f32.mrb[0].mxu0
    %v2006 = vadd.f32 %v1760, %v2005
    %2007 = vmatprep.mubr.f32.mxu0 %v1492
    %2008 = vmatmul.mubr.f32.gmra.mrb[0].mxu0 %v1491
    %v2009 = vpop.f32.mrb[0].mxu0
    %v2010 = vadd.f32 %v1756, %v2009
    %v2011 = vpop.f32.mrb[0].mxu0
    %v2012 = vadd.f32 %v1760, %v2011
    %2013 = vmatprep.mubr.f32.mxu0 %v1494
    %2014 = vmatmul.mubr.f32.gmra.mrb[0].mxu0 %v1493
    %v2015 = vpop.f32.mrb[0].mxu0
    %v2016 = vadd.f32 %v1756, %v2015
    %v2017 = vpop.f32.mrb[0].mxu0
    %v2018 = vadd.f32 %v1760, %v2017
    %2019 = vmatprep.mubr.f32.mxu0 %v1496
    %2020 = vmatmul.mubr.f32.gmra.mrb[0].mxu0 %v1495
    %v2021 = vpop.f32.mrb[0].mxu0
    %v2022 = vadd.f32 %v1756, %v2021
    %v2023 = vpop.f32.mrb[0].mxu0
    %v2024 = vadd.f32 %v1760, %v2023
    %2025 = vmatprep.mubr.f32.mxu0 %v1498
    %2026 = vmatmul.mubr.f32.gmra.mrb[0].mxu0 %v1497
    %v2027 = vpop.f32.mrb[0].mxu0
    %v2028 = vadd.f32 %v1756, %v2027
    %v2029 = vpop.f32.mrb[0].mxu0
    %v2030 = vadd.f32 %v1760, %v2029
    %2031 = vmatprep.mubr.f32.mxu0 %v1500
    %2032 = vmatmul.mubr.f32.gmra.mrb[0].mxu0 %v1499
    %v2033 = vpop.f32.mrb[0].mxu0
    %v2034 = vadd.f32 %v1756, %v2033
    %v2035 = vpop.f32.mrb[0].mxu0
    %v2036 = vadd.f32 %v1760, %v2035
    %2037 = vmatprep.mubr.f32.mxu0 %v1502
    %2038 = vmatmul.mubr.f32.gmra.mrb[0].mxu0 %v1501
    %v2039 = vpop.f32.mrb[0].mxu0
    %v2040 = vadd.f32 %v1756, %v2039
    %v2041 = vpop.f32.mrb[0].mxu0
    %v2042 = vadd.f32 %v1760, %v2041
    %2043 = vmatprep.mubr.f32.mxu0 %v1504
    %2044 = vmatmul.mubr.f32.gmra.mrb[0].mxu0 %v1503
    %v2045 = vpop.f32.mrb[0].mxu0
    %v2046 = vadd.f32 %v1756, %v2045
    %v2047 = vpop.f32.mrb[0].mxu0
    %v2048 = vadd.f32 %v1760, %v2047
    %2049 = vmatprep.mubr.f32.mxu0 %v1506
    %2050 = vmatmul.mubr.f32.gmra.mrb[0].mxu0 %v1505
    %v2051 = vpop.f32.mrb[0].mxu0
    %v2052 = vadd.f32 %v1756, %v2051
    %v2053 = vpop.f32.mrb[0].mxu0
    %v2054 = vadd.f32 %v1760, %v2053
    %2055 = vmatprep.mubr.f32.mxu0 %v1508
    %2056 = vmatmul.mubr.f32.gmra.mrb[0].mxu0 %v1507
    %v2057 = vpop.f32.mrb[0].mxu0
    %v2058 = vadd.f32 %v1756, %v2057
    %v2059 = vpop.f32.mrb[0].mxu0
    %v2060 = vadd.f32 %v1760, %v2059
    %2061 = vmatprep.mubr.f32.mxu0 %v1510
    %2062 = vmatmul.mubr.f32.gmra.mrb[0].mxu0 %v1509
    %v2063 = vpop.f32.mrb[0].mxu0
    %v2064 = vadd.f32 %v1756, %v2063
    %v2065 = vpop.f32.mrb[0].mxu0
    %v2066 = vadd.f32 %v1760, %v2065
    %2067 = vmatprep.mubr.f32.mxu0 %v1512
    %2068 = vmatmul.mubr.f32.gmra.mrb[0].mxu0 %v1511
    %v2069 = vpop.f32.mrb[0].mxu0
    %v2070 = vadd.f32 %v1756, %v2069
    %v2071 = vpop.f32.mrb[0].mxu0
    %v2072 = vadd.f32 %v1760, %v2071
    %2073 = vmatprep.mubr.f32.mxu0 %v1514
    %2074 = vmatmul.mubr.f32.gmra.mrb[0].mxu0 %v1513
    %v2075 = vpop.f32.mrb[0].mxu0
    %v2076 = vadd.f32 %v1756, %v2075
    %v2077 = vpop.f32.mrb[0].mxu0
    %v2078 = vadd.f32 %v1760, %v2077
    %2079 = vmatprep.mubr.f32.mxu0 %v1516
    %2080 = vmatmul.mubr.f32.gmra.mrb[0].mxu0 %v1515
    %v2081 = vpop.f32.mrb[0].mxu0
    %v2082 = vadd.f32 %v1756, %v2081
    %v2083 = vpop.f32.mrb[0].mxu0
    %v2084 = vadd.f32 %v1760, %v2083
    %2085 = vmatprep.mubr.f32.mxu0 %v1518
    %2086 = vmatmul.mubr.f32.gmra.mrb[0].mxu0 %v1517
    %v2087 = vpop.f32.mrb[0].mxu0
    %v2088 = vadd.f32 %v1756, %v2087
    %v2089 = vpop.f32.mrb[0].mxu0
    %v2090 = vadd.f32 %v1760, %v2089
    %2091 = vmatprep.mubr.f32.mxu0 %v1520
    %2092 = vmatmul.mubr.f32.gmra.mrb[0].mxu0 %v1519
    %v2093 = vpop.f32.mrb[0].mxu0
    %v2094 = vadd.f32 %v1756, %v2093
    %v2095 = vpop.f32.mrb[0].mxu0
    %v2096 = vadd.f32 %v1760, %v2095
    %2097 = vmatprep.mubr.f32.mxu0 %v1522
    %2098 = vmatmul.mubr.f32.gmra.mrb[0].mxu0 %v1521
    %v2099 = vpop.f32.mrb[0].mxu0
    %v2100 = vadd.f32 %v1756, %v2099
    %v2101 = vpop.f32.mrb[0].mxu0
    %v2102 = vadd.f32 %v1760, %v2101
    %2103 = vmatprep.mubr.f32.mxu0 %v1524
    %2104 = vmatmul.mubr.f32.gmra.mrb[0].mxu0 %v1523
    %v2105 = vpop.f32.mrb[0].mxu0
    %v2106 = vadd.f32 %v1756, %v2105
    %v2107 = vpop.f32.mrb[0].mxu0
    %v2108 = vadd.f32 %v1760, %v2107
    %2109 = vmatprep.mubr.f32.mxu0 %v1526
    %2110 = vmatmul.mubr.f32.gmra.mrb[0].mxu0 %v1525
    %v2111 = vpop.f32.mrb[0].mxu0
    %v2112 = vadd.f32 %v1756, %v2111
    %v2113 = vpop.f32.mrb[0].mxu0
    %v2114 = vadd.f32 %v1760, %v2113
    %2115 = vmatprep.mubr.f32.mxu0 %v1528
    %2116 = vmatmul.mubr.f32.gmra.mrb[0].mxu0 %v1527
    %v2117 = vpop.f32.mrb[0].mxu0
    %v2118 = vadd.f32 %v1756, %v2117
    %v2119 = vpop.f32.mrb[0].mxu0
    %v2120 = vadd.f32 %v1760, %v2119
    %2121 = vmatprep.mubr.f32.mxu0 %v1530
    %2122 = vmatmul.mubr.f32.gmra.mrb[0].mxu0 %v1529
    %v2123 = vpop.f32.mrb[0].mxu0
    %v2124 = vadd.f32 %v1756, %v2123
    %v2125 = vpop.f32.mrb[0].mxu0
    %v2126 = vadd.f32 %v1760, %v2125
    %2127 = vmatprep.mubr.f32.mxu0 %v1532
    %2128 = vmatmul.mubr.f32.gmra.mrb[0].mxu0 %v1531
    %v2129 = vpop.f32.mrb[0].mxu0
    %v2130 = vadd.f32 %v1756, %v2129
    %v2131 = vpop.f32.mrb[0].mxu0
    %v2132 = vadd.f32 %v1760, %v2131
    %2133 = vmatprep.mubr.f32.mxu0 %v1534
    %2134 = vmatmul.mubr.f32.gmra.mrb[0].mxu0 %v1533
    %v2135 = vpop.f32.mrb[0].mxu0
    %v2136 = vadd.f32 %v1756, %v2135
    %v2137 = vpop.f32.mrb[0].mxu0
    %v2138 = vadd.f32 %v1760, %v2137
    %2139 = vmatprep.mubr.f32.mxu0 %v1536
    %2140 = vmatmul.mubr.f32.gmra.mrb[0].mxu0 %v1535
    %v2141 = vpop.f32.mrb[0].mxu0
    %v2142 = vadd.f32 %v1756, %v2141
    %v2143 = vpop.f32.mrb[0].mxu0
    %v2144 = vadd.f32 %v1760, %v2143
    %2145 = vmatprep.mubr.f32.mxu0 %v1538
    %2146 = vmatmul.mubr.f32.gmra.mrb[0].mxu0 %v1537
    %v2147 = vpop.f32.mrb[0].mxu0
    %v2148 = vadd.f32 %v1756, %v2147
    %v2149 = vpop.f32.mrb[0].mxu0
    %v2150 = vadd.f32 %v1760, %v2149
    %2151 = vmatprep.mubr.f32.mxu0 %v1540
    %2152 = vmatmul.mubr.f32.gmra.mrb[0].mxu0 %v1539
    %v2153 = vpop.f32.mrb[0].mxu0
    %v2154 = vadd.f32 %v1756, %v2153
    %v2155 = vpop.f32.mrb[0].mxu0
    %v2156 = vadd.f32 %v1760, %v2155
    %2157 = vmatprep.mubr.f32.mxu0 %v1542
    %2158 = vmatmul.mubr.f32.gmra.mrb[0].mxu0 %v1541
    %v2159 = vpop.f32.mrb[0].mxu0
    %v2160 = vadd.f32 %v1756, %v2159
    %v2161 = vpop.f32.mrb[0].mxu0
    %v2162 = vadd.f32 %v1760, %v2161
    %2163 = vmatprep.mubr.f32.mxu0 %v1544
    %2164 = vmatmul.mubr.f32.gmra.mrb[0].mxu0 %v1543
    %v2165 = vpop.f32.mrb[0].mxu0
    %v2166 = vadd.f32 %v1756, %v2165
    %v2167 = vpop.f32.mrb[0].mxu0
    %v2168 = vadd.f32 %v1760, %v2167
    %2169 = vmatprep.mubr.f32.mxu0 %v1546
    %2170 = vmatmul.mubr.f32.gmra.mrb[0].mxu0 %v1545
    %v2171 = vpop.f32.mrb[0].mxu0
    %v2172 = vadd.f32 %v1756, %v2171
    %v2173 = vpop.f32.mrb[0].mxu0
    %v2174 = vadd.f32 %v1760, %v2173
    %2175 = vmatprep.mubr.f32.mxu0 %v1548
    %2176 = vmatmul.mubr.f32.gmra.mrb[0].mxu0 %v1547
    %v2177 = vpop.f32.mrb[0].mxu0
    %v2178 = vadd.f32 %v1756, %v2177
    %v2179 = vpop.f32.mrb[0].mxu0
    %v2180 = vadd.f32 %v1760, %v2179
    %2181 = vmatprep.mubr.f32.mxu0 %v1550
    %2182 = vmatmul.mubr.f32.gmra.mrb[0].mxu0 %v1549
    %v2183 = vpop.f32.mrb[0].mxu0
    %v2184 = vadd.f32 %v1756, %v2183
    %v2185 = vpop.f32.mrb[0].mxu0
    %v2186 = vadd.f32 %v1760, %v2185
    %2187 = vmatprep.mubr.f32.mxu0 %v1552
    %2188 = vmatmul.mubr.f32.gmra.mrb[0].mxu0 %v1551
    %v2189 = vpop.f32.mrb[0].mxu0
    %v2190 = vadd.f32 %v1756, %v2189
    %v2191 = vpop.f32.mrb[0].mxu0
    %v2192 = vadd.f32 %v1760, %v2191
    %2193 = vmatprep.mubr.f32.mxu0 %v1554
    %2194 = vmatmul.mubr.f32.gmra.mrb[0].mxu0 %v1553
    %v2195 = vpop.f32.mrb[0].mxu0
    %v2196 = vadd.f32 %v1756, %v2195
    %v2197 = vpop.f32.mrb[0].mxu0
    %v2198 = vadd.f32 %v1760, %v2197
    %2199 = vmatprep.mubr.f32.mxu0 %v1556
    %2200 = vmatmul.mubr.f32.gmra.mrb[0].mxu0 %v1555
    %v2201 = vpop.f32.mrb[0].mxu0
    %v2202 = vadd.f32 %v1756, %v2201
    %v2203 = vpop.f32.mrb[0].mxu0
    %v2204 = vadd.f32 %v1760, %v2203
    %2205 = vmatprep.mubr.f32.mxu0 %v1558
    %2206 = vmatmul.mubr.f32.gmra.mrb[0].mxu0 %v1557
    %v2207 = vpop.f32.mrb[0].mxu0
    %v2208 = vadd.f32 %v1756, %v2207
    %v2209 = vpop.f32.mrb[0].mxu0
    %v2210 = vadd.f32 %v1760, %v2209
    %2211 = vmatprep.mubr.f32.mxu0 %v1560
    %2212 = vmatmul.mubr.f32.gmra.mrb[0].mxu0 %v1559
    %v2213 = vpop.f32.mrb[0].mxu0
    %v2214 = vadd.f32 %v1756, %v2213
    %v2215 = vpop.f32.mrb[0].mxu0
    %v2216 = vadd.f32 %v1760, %v2215
    %2217 = vmatprep.mubr.f32.mxu0 %v1562
    %2218 = vmatmul.mubr.f32.gmra.mrb[0].mxu0 %v1561
    %v2219 = vpop.f32.mrb[0].mxu0
    %v2220 = vadd.f32 %v1756, %v2219
    %v2221 = vpop.f32.mrb[0].mxu0
    %v2222 = vadd.f32 %v1760, %v2221
    %2223 = vmatprep.mubr.f32.mxu0 %v1564
    %2224 = vmatmul.mubr.f32.gmra.mrb[0].mxu0 %v1563
    %v2225 = vpop.f32.mrb[0].mxu0
    %v2226 = vadd.f32 %v1756, %v2225
    %v2227 = vpop.f32.mrb[0].mxu0
    %v2228 = vadd.f32 %v1760, %v2227
    %2229 = vmatprep.mubr.f32.mxu0 %v1566
    %2230 = vmatmul.mubr.f32.gmra.mrb[0].mxu0 %v1565
    %v2231 = vpop.f32.mrb[0].mxu0
    %v2232 = vadd.f32 %v1756, %v2231
    %v2233 = vpop.f32.mrb[0].mxu0
    %v2234 = vadd.f32 %v1760, %v2233
    %2235 = vmatprep.mubr.f32.mxu0 %v1568
    %2236 = vmatmul.mubr.f32.gmra.mrb[0].mxu0 %v1567
    %v2237 = vpop.f32.mrb[0].mxu0
    %v2238 = vadd.f32 %v1756, %v2237
    %v2239 = vpop.f32.mrb[0].mxu0
    %v2240 = vadd.f32 %v1760, %v2239
    %2241 = vmatprep.mubr.f32.mxu0 %v1570
    %2242 = vmatmul.mubr.f32.gmra.mrb[0].mxu0 %v1569
    %v2243 = vpop.f32.mrb[0].mxu0
    %v2244 = vadd.f32 %v1756, %v2243
    %v2245 = vpop.f32.mrb[0].mxu0
    %v2246 = vadd.f32 %v1760, %v2245
    %2247 = vmatprep.mubr.f32.mxu0 %v1572
    %2248 = vmatmul.mubr.f32.gmra.mrb[0].mxu0 %v1571
    %v2249 = vpop.f32.mrb[0].mxu0
    %v2250 = vadd.f32 %v1756, %v2249
    %v2251 = vpop.f32.mrb[0].mxu0
    %v2252 = vadd.f32 %v1760, %v2251
    %2253 = vmatprep.mubr.f32.mxu0 %v1574
    %2254 = vmatmul.mubr.f32.gmra.mrb[0].mxu0 %v1573
    %v2255 = vpop.f32.mrb[0].mxu0
    %v2256 = vadd.f32 %v1756, %v2255
    %v2257 = vpop.f32.mrb[0].mxu0
    %v2258 = vadd.f32 %v1760, %v2257
    %2259 = vmatprep.mubr.f32.mxu0 %v1576
    %2260 = vmatmul.mubr.f32.gmra.mrb[0].mxu0 %v1575
    %v2261 = vpop.f32.mrb[0].mxu0
    %v2262 = vadd.f32 %v1756, %v2261
    %v2263 = vpop.f32.mrb[0].mxu0
    %v2264 = vadd.f32 %v1760, %v2263
    %2265 = vmatprep.mubr.f32.mxu0 %v1578
    %2266 = vmatmul.mubr.f32.gmra.mrb[0].mxu0 %v1577
    %v2267 = vpop.f32.mrb[0].mxu0
    %v2268 = vadd.f32 %v1756, %v2267
    %v2269 = vpop.f32.mrb[0].mxu0
    %v2270 = vadd.f32 %v1760, %v2269
    %2271 = vmatprep.mubr.f32.mxu0 %v1580
    %2272 = vmatmul.mubr.f32.gmra.mrb[0].mxu0 %v1579
    %v2273 = vpop.f32.mrb[0].mxu0
    %v2274 = vadd.f32 %v1756, %v2273
    %v2275 = vpop.f32.mrb[0].mxu0
    %v2276 = vadd.f32 %v1760, %v2275
    %2277 = vmatprep.mubr.f32.mxu0 %v1582
    %2278 = vmatmul.mubr.f32.gmra.mrb[0].mxu0 %v1581
    %v2279 = vpop.f32.mrb[0].mxu0
    %v2280 = vadd.f32 %v1756, %v2279
    %v2281 = vpop.f32.mrb[0].mxu0
    %v2282 = vadd.f32 %v1760, %v2281
    %2283 = vmatprep.mubr.f32.mxu0 %v1584
    %2284 = vmatmul.mubr.f32.gmra.mrb[0].mxu0 %v1583
    %v2285 = vpop.f32.mrb[0].mxu0
    %v2286 = vadd.f32 %v1756, %v2285
    %v2287 = vpop.f32.mrb[0].mxu0
    %v2288 = vadd.f32 %v1760, %v2287
    %2289 = vmatprep.mubr.f32.mxu0 %v1586
    %2290 = vmatmul.mubr.f32.gmra.mrb[0].mxu0 %v1585
    %v2291 = vpop.f32.mrb[0].mxu0
    %v2292 = vadd.f32 %v1756, %v2291
    %v2293 = vpop.f32.mrb[0].mxu0
    %v2294 = vadd.f32 %v1760, %v2293
    %2295 = vmatprep.mubr.f32.mxu0 %v1588
    %2296 = vmatmul.mubr.f32.gmra.mrb[0].mxu0 %v1587
    %v2297 = vpop.f32.mrb[0].mxu0
    %v2298 = vadd.f32 %v1756, %v2297
    %v2299 = vpop.f32.mrb[0].mxu0
    %v2300 = vadd.f32 %v1760, %v2299
    %2301 = vmatprep.mubr.f32.mxu0 %v1590
    %2302 = vmatmul.mubr.f32.gmra.mrb[0].mxu0 %v1589
    %v2303 = vpop.f32.mrb[0].mxu0
    %v2304 = vadd.f32 %v1756, %v2303
    %v2305 = vpop.f32.mrb[0].mxu0
    %v2306 = vadd.f32 %v1760, %v2305
    %2307 = vmatprep.mubr.f32.mxu0 %v1592
    %2308 = vmatmul.mubr.f32.gmra.mrb[0].mxu0 %v1591
    %v2309 = vpop.f32.mrb[0].mxu0
    %v2310 = vadd.f32 %v1756, %v2309
    %v2311 = vpop.f32.mrb[0].mxu0
    %v2312 = vadd.f32 %v1760, %v2311
    %2313 = vmatprep.mubr.f32.mxu0 %v1594
    %2314 = vmatmul.mubr.f32.gmra.mrb[0].mxu0 %v1593
    %v2315 = vpop.f32.mrb[0].mxu0
    %v2316 = vadd.f32 %v1756, %v2315
    %v2317 = vpop.f32.mrb[0].mxu0
    %v2318 = vadd.f32 %v1760, %v2317
    %2319 = vmatprep.mubr.f32.mxu0 %v1596
    %2320 = vmatmul.mubr.f32.gmra.mrb[0].mxu0 %v1595
    %v2321 = vpop.f32.mrb[0].mxu0
    %v2322 = vadd.f32 %v1756, %v2321
    %v2323 = vpop.f32.mrb[0].mxu0
    %v2324 = vadd.f32 %v1760, %v2323
    %2325 = vmatprep.mubr.f32.mxu0 %v1598
    %2326 = vmatmul.mubr.f32.gmra.mrb[0].mxu0 %v1597
    %v2327 = vpop.f32.mrb[0].mxu0
    %v2328 = vadd.f32 %v1756, %v2327
    %v2329 = vpop.f32.mrb[0].mxu0
    %v2330 = vadd.f32 %v1760, %v2329
    %2331 = vmatprep.mubr.f32.mxu0 %v1600
    %2332 = vmatmul.mubr.f32.gmra.mrb[0].mxu0 %v1599
    %v2333 = vpop.f32.mrb[0].mxu0
    %v2334 = vadd.f32 %v1756, %v2333
    %v2335 = vpop.f32.mrb[0].mxu0
    %v2336 = vadd.f32 %v1760, %v2335
    %2337 = vmatprep.mubr.f32.mxu0 %v1602
    %2338 = vmatmul.mubr.f32.gmra.mrb[0].mxu0 %v1601
    %v2339 = vpop.f32.mrb[0].mxu0
    %v2340 = vadd.f32 %v1756, %v2339
    %v2341 = vpop.f32.mrb[0].mxu0
    %v2342 = vadd.f32 %v1760, %v2341
    %2343 = vmatprep.mubr.f32.mxu0 %v1604
    %2344 = vmatmul.mubr.f32.gmra.mrb[0].mxu0 %v1603
    %v2345 = vpop.f32.mrb[0].mxu0
    %v2346 = vadd.f32 %v1756, %v2345
    %v2347 = vpop.f32.mrb[0].mxu0
    %v2348 = vadd.f32 %v1760, %v2347
    %2349 = vmatprep.mubr.f32.mxu0 %v1606
    %2350 = vmatmul.mubr.f32.gmra.mrb[0].mxu0 %v1605
    %v2351 = vpop.f32.mrb[0].mxu0
    %v2352 = vadd.f32 %v1756, %v2351
    %v2353 = vpop.f32.mrb[0].mxu0
    %v2354 = vadd.f32 %v1760, %v2353
    %2355 = vmatprep.mubr.f32.mxu0 %v1608
    %2356 = vmatmul.mubr.f32.gmra.mrb[0].mxu0 %v1607
    %v2357 = vpop.f32.mrb[0].mxu0
    %v2358 = vadd.f32 %v1756, %v2357
    %v2359 = vpop.f32.mrb[0].mxu0
    %v2360 = vadd.f32 %v1760, %v2359
    %2361 = vmatprep.mubr.f32.mxu0 %v1610
    %2362 = vmatmul.mubr.f32.gmra.mrb[0].mxu0 %v1609
    %v2363 = vpop.f32.mrb[0].mxu0
    %v2364 = vadd.f32 %v1756, %v2363
    %v2365 = vpop.f32.mrb[0].mxu0
    %v2366 = vadd.f32 %v1760, %v2365
    %2367 = vmatprep.mubr.f32.mxu0 %v1612
    %2368 = vmatmul.mubr.f32.gmra.mrb[0].mxu0 %v1611
    %v2369 = vpop.f32.mrb[0].mxu0
    %v2370 = vadd.f32 %v1756, %v2369
    %v2371 = vpop.f32.mrb[0].mxu0
    %v2372 = vadd.f32 %v1760, %v2371
    %2373 = vmatprep.mubr.f32.mxu0 %v1614
    %2374 = vmatmul.mubr.f32.gmra.mrb[0].mxu0 %v1613
    %v2375 = vpop.f32.mrb[0].mxu0
    %v2376 = vadd.f32 %v1756, %v2375
    %v2377 = vpop.f32.mrb[0].mxu0
    %v2378 = vadd.f32 %v1760, %v2377
    %2379 = vmatprep.mubr.f32.mxu0 %v1616
    %2380 = vmatmul.mubr.f32.gmra.mrb[0].mxu0 %v1615
    %v2381 = vpop.f32.mrb[0].mxu0
    %v2382 = vadd.f32 %v1756, %v2381
    %v2383 = vpop.f32.mrb[0].mxu0
    %v2384 = vadd.f32 %v1760, %v2383
    %2385 = vmatprep.mubr.f32.mxu0 %v1618
    %2386 = vmatmul.mubr.f32.gmra.mrb[0].mxu0 %v1617
    %v2387 = vpop.f32.mrb[0].mxu0
    %v2388 = vadd.f32 %v1756, %v2387
    %v2389 = vpop.f32.mrb[0].mxu0
    %v2390 = vadd.f32 %v1760, %v2389
    %2391 = vmatprep.mubr.f32.mxu0 %v1620
    %2392 = vmatmul.mubr.f32.gmra.mrb[0].mxu0 %v1619
    %v2393 = vpop.f32.mrb[0].mxu0
    %v2394 = vadd.f32 %v1756, %v2393
    %v2395 = vpop.f32.mrb[0].mxu0
    %v2396 = vadd.f32 %v1760, %v2395
    %2397 = vmatprep.mubr.f32.mxu0 %v1622
    %2398 = vmatmul.mubr.f32.gmra.mrb[0].mxu0 %v1621
    %v2399 = vpop.f32.mrb[0].mxu0
    %v2400 = vadd.f32 %v1756, %v2399
    %v2401 = vpop.f32.mrb[0].mxu0
    %v2402 = vadd.f32 %v1760, %v2401
    %2403 = vmatprep.mubr.f32.mxu0 %v1624
    %2404 = vmatmul.mubr.f32.gmra.mrb[0].mxu0 %v1623
    %v2405 = vpop.f32.mrb[0].mxu0
    %v2406 = vadd.f32 %v1756, %v2405
    %v2407 = vpop.f32.mrb[0].mxu0
    %v2408 = vadd.f32 %v1760, %v2407
    %2409 = vmatprep.mubr.f32.mxu0 %v1626
    %2410 = vmatmul.mubr.f32.gmra.mrb[0].mxu0 %v1625
    %v2411 = vpop.f32.mrb[0].mxu0
    %v2412 = vadd.f32 %v1756, %v2411
    %v2413 = vpop.f32.mrb[0].mxu0
    %v2414 = vadd.f32 %v1760, %v2413
    %2415 = vmatprep.mubr.f32.mxu0 %v1628
    %2416 = vmatmul.mubr.f32.gmra.mrb[0].mxu0 %v1627
    %v2417 = vpop.f32.mrb[0].mxu0
    %v2418 = vadd.f32 %v1756, %v2417
    %v2419 = vpop.f32.mrb[0].mxu0
    %v2420 = vadd.f32 %v1760, %v2419
    %2421 = vmatprep.mubr.f32.mxu0 %v1630
    %2422 = vmatmul.mubr.f32.gmra.mrb[0].mxu0 %v1629
    %v2423 = vpop.f32.mrb[0].mxu0
    %v2424 = vadd.f32 %v1756, %v2423
    %v2425 = vpop.f32.mrb[0].mxu0
    %v2426 = vadd.f32 %v1760, %v2425
    %2427 = vmatprep.mubr.f32.mxu0 %v1632
    %2428 = vmatmul.mubr.f32.gmra.mrb[0].mxu0 %v1631
    %v2429 = vpop.f32.mrb[0].mxu0
    %v2430 = vadd.f32 %v1756, %v2429
    %v2431 = vpop.f32.mrb[0].mxu0
    %v2432 = vadd.f32 %v1760, %v2431
    %2433 = vmatprep.mubr.f32.mxu0 %v1634
    %2434 = vmatmul.mubr.f32.gmra.mrb[0].mxu0 %v1633
    %v2435 = vpop.f32.mrb[0].mxu0
    %v2436 = vadd.f32 %v1756, %v2435
    %v2437 = vpop.f32.mrb[0].mxu0
    %v2438 = vadd.f32 %v1760, %v2437
    %2439 = vmatprep.mubr.f32.mxu0 %v1636
    %2440 = vmatmul.mubr.f32.gmra.mrb[0].mxu0 %v1635
    %v2441 = vpop.f32.mrb[0].mxu0
    %v2442 = vadd.f32 %v1756, %v2441
    %v2443 = vpop.f32.mrb[0].mxu0
    %v2444 = vadd.f32 %v1760, %v2443
    %2445 = vmatprep.mubr.f32.mxu0 %v1638
    %2446 = vmatmul.mubr.f32.gmra.mrb[0].mxu0 %v1637
    %v2447 = vpop.f32.mrb[0].mxu0
    %v2448 = vadd.f32 %v1756, %v2447
    %v2449 = vpop.f32.mrb[0].mxu0
    %v2450 = vadd.f32 %v1760, %v2449
    %2451 = vmatprep.mubr.f32.mxu0 %v1640
    %2452 = vmatmul.mubr.f32.gmra.mrb[0].mxu0 %v1639
    %v2453 = vpop.f32.mrb[0].mxu0
    %v2454 = vadd.f32 %v1756, %v2453
    %v2455 = vpop.f32.mrb[0].mxu0
    %v2456 = vadd.f32 %v1760, %v2455
    %2457 = vmatprep.mubr.f32.mxu0 %v1642
    %2458 = vmatmul.mubr.f32.gmra.mrb[0].mxu0 %v1641
    %v2459 = vpop.f32.mrb[0].mxu0
    %v2460 = vadd.f32 %v1756, %v2459
    %v2461 = vpop.f32.mrb[0].mxu0
    %v2462 = vadd.f32 %v1760, %v2461
    %2463 = vmatprep.mubr.f32.mxu0 %v1644
    %2464 = vmatmul.mubr.f32.gmra.mrb[0].mxu0 %v1643
    %v2465 = vpop.f32.mrb[0].mxu0
    %v2466 = vadd.f32 %v1756, %v2465
    %v2467 = vpop.f32.mrb[0].mxu0
    %v2468 = vadd.f32 %v1760, %v2467
    %2469 = vmatprep.mubr.f32.mxu0 %v1646
    %2470 = vmatmul.mubr.f32.gmra.mrb[0].mxu0 %v1645
    %v2471 = vpop.f32.mrb[0].mxu0
    %v2472 = vadd.f32 %v1756, %v2471
    %v2473 = vpop.f32.mrb[0].mxu0
    %v2474 = vadd.f32 %v1760, %v2473
    %2475 = vmatprep.mubr.f32.mxu0 %v1648
    %2476 = vmatmul.mubr.f32.gmra.mrb[0].mxu0 %v1647
    %v2477 = vpop.f32.mrb[0].mxu0
    %v2478 = vadd.f32 %v1756, %v2477
    %v2479 = vpop.f32.mrb[0].mxu0
    %v2480 = vadd.f32 %v1760, %v2479
    %2481 = vmatprep.mubr.f32.mxu0 %v1650
    %2482 = vmatmul.mubr.f32.gmra.mrb[0].mxu0 %v1649
    %v2483 = vpop.f32.mrb[0].mxu0
    %v2484 = vadd.f32 %v1756, %v2483
    %v2485 = vpop.f32.mrb[0].mxu0
    %v2486 = vadd.f32 %v1760, %v2485
    %2487 = vmatprep.mubr.f32.mxu0 %v1652
    %2488 = vmatmul.mubr.f32.gmra.mrb[0].mxu0 %v1651
    %v2489 = vpop.f32.mrb[0].mxu0
    %v2490 = vadd.f32 %v1756, %v2489
    %v2491 = vpop.f32.mrb[0].mxu0
    %v2492 = vadd.f32 %v1760, %v2491
    %2493 = vmatprep.mubr.f32.mxu0 %v1654
    %2494 = vmatmul.mubr.f32.gmra.mrb[0].mxu0 %v1653
    %v2495 = vpop.f32.mrb[0].mxu0
    %v2496 = vadd.f32 %v1756, %v2495
    %v2497 = vpop.f32.mrb[0].mxu0
    %v2498 = vadd.f32 %v1760, %v2497
    %2499 = vmatprep.mubr.f32.mxu0 %v1656
    %2500 = vmatmul.mubr.f32.gmra.mrb[0].mxu0 %v1655
    %v2501 = vpop.f32.mrb[0].mxu0
    %v2502 = vadd.f32 %v1756, %v2501
    %v2503 = vpop.f32.mrb[0].mxu0
    %v2504 = vadd.f32 %v1760, %v2503
    %2505 = vmatprep.mubr.f32.mxu0 %v1658
    %2506 = vmatmul.mubr.f32.gmra.mrb[0].mxu0 %v1657
    %v2507 = vpop.f32.mrb[0].mxu0
    %v2508 = vadd.f32 %v1756, %v2507
    %v2509 = vpop.f32.mrb[0].mxu0
    %v2510 = vadd.f32 %v1760, %v2509
    %2511 = vmatprep.mubr.f32.mxu0 %v1660
    %2512 = vmatmul.mubr.f32.gmra.mrb[0].mxu0 %v1659
    %v2513 = vpop.f32.mrb[0].mxu0
    %v2514 = vadd.f32 %v1756, %v2513
    %v2515 = vpop.f32.mrb[0].mxu0
    %v2516 = vadd.f32 %v1760, %v2515
    %2517 = vmatprep.mubr.f32.mxu0 %v1662
    %2518 = vmatmul.mubr.f32.gmra.mrb[0].mxu0 %v1661
    %v2519 = vpop.f32.mrb[0].mxu0
    %v2520 = vadd.f32 %v1756, %v2519
    %v2521 = vpop.f32.mrb[0].mxu0
    %v2522 = vadd.f32 %v1760, %v2521
    %2523 = vmatprep.mubr.f32.mxu0 %v1664
    %2524 = vmatmul.mubr.f32.gmra.mrb[0].mxu0 %v1663
    %v2525 = vpop.f32.mrb[0].mxu0
    %v2526 = vadd.f32 %v1756, %v2525
    %v2527 = vpop.f32.mrb[0].mxu0
    %v2528 = vadd.f32 %v1760, %v2527
    %2529 = vmatprep.mubr.f32.mxu0 %v1666
    %2530 = vmatmul.mubr.f32.gmra.mrb[0].mxu0 %v1665
    %v2531 = vpop.f32.mrb[0].mxu0
    %v2532 = vadd.f32 %v1756, %v2531
    %v2533 = vpop.f32.mrb[0].mxu0
    %v2534 = vadd.f32 %v1760, %v2533
    %2535 = vmatprep.mubr.f32.mxu0 %v1668
    %2536 = vmatmul.mubr.f32.gmra.mrb[0].mxu0 %v1667
    %v2537 = vpop.f32.mrb[0].mxu0
    %v2538 = vadd.f32 %v1756, %v2537
    %v2539 = vpop.f32.mrb[0].mxu0
    %v2540 = vadd.f32 %v1760, %v2539
    %2541 = vmatprep.mubr.f32.mxu0 %v1670
    %2542 = vmatmul.mubr.f32.gmra.mrb[0].mxu0 %v1669
    %v2543 = vpop.f32.mrb[0].mxu0
    %v2544 = vadd.f32 %v1756, %v2543
    %v2545 = vpop.f32.mrb[0].mxu0
    %v2546 = vadd.f32 %v1760, %v2545
    %2547 = vmatprep.mubr.f32.mxu0 %v1672
    %2548 = vmatmul.mubr.f32.gmra.mrb[0].mxu0 %v1671
    %v2549 = vpop.f32.mrb[0].mxu0
    %v2550 = vadd.f32 %v1756, %v2549
    %v2551 = vpop.f32.mrb[0].mxu0
    %v2552 = vadd.f32 %v1760, %v2551
    %2553 = vmatprep.mubr.f32.mxu0 %v1674
    %2554 = vmatmul.mubr.f32.gmra.mrb[0].mxu0 %v1673
    %v2555 = vpop.f32.mrb[0].mxu0
    %v2556 = vadd.f32 %v1756, %v2555
    %v2557 = vpop.f32.mrb[0].mxu0
    %v2558 = vadd.f32 %v1760, %v2557
    %2559 = vmatprep.mubr.f32.mxu0 %v1676
    %2560 = vmatmul.mubr.f32.gmra.mrb[0].mxu0 %v1675
    %v2561 = vpop.f32.mrb[0].mxu0
    %v2562 = vadd.f32 %v1756, %v2561
    %v2563 = vpop.f32.mrb[0].mxu0
    %v2564 = vadd.f32 %v1760, %v2563
    %2565 = vmatprep.mubr.f32.mxu0 %v1678
    %2566 = vmatmul.mubr.f32.gmra.mrb[0].mxu0 %v1677
    %v2567 = vpop.f32.mrb[0].mxu0
    %v2568 = vadd.f32 %v1756, %v2567
    %v2569 = vpop.f32.mrb[0].mxu0
    %v2570 = vadd.f32 %v1760, %v2569
    %2571 = vmatprep.mubr.f32.mxu0 %v1680
    %2572 = vmatmul.mubr.f32.gmra.mrb[0].mxu0 %v1679
    %v2573 = vpop.f32.mrb[0].mxu0
    %v2574 = vadd.f32 %v1756, %v2573
    %v2575 = vpop.f32.mrb[0].mxu0
    %v2576 = vadd.f32 %v1760, %v2575
    %2577 = vmatprep.mubr.f32.mxu0 %v1682
    %2578 = vmatmul.mubr.f32.gmra.mrb[0].mxu0 %v1681
    %v2579 = vpop.f32.mrb[0].mxu0
    %v2580 = vadd.f32 %v1756, %v2579
    %v2581 = vpop.f32.mrb[0].mxu0
    %v2582 = vadd.f32 %v1760, %v2581
    %2583 = vmatprep.mubr.f32.mxu0 %v1684
    %2584 = vmatmul.mubr.f32.gmra.mrb[0].mxu0 %v1683
    %v2585 = vpop.f32.mrb[0].mxu0
    %v2586 = vadd.f32 %v1756, %v2585
    %v2587 = vpop.f32.mrb[0].mxu0
    %v2588 = vadd.f32 %v1760, %v2587
    %2589 = vmatprep.mubr.f32.mxu0 %v1686
    %2590 = vmatmul.mubr.f32.gmra.mrb[0].mxu0 %v1685
    %v2591 = vpop.f32.mrb[0].mxu0
    %v2592 = vadd.f32 %v1756, %v2591
    %v2593 = vpop.f32.mrb[0].mxu0
    %v2594 = vadd.f32 %v1760, %v2593
    %2595 = vdwg.mxu0
    %v2596 = vmax.f32 %v1830, 0.0
    %v2597 = vmax.f32 %v1832, 0.0
    %v2598 = vmax.f32 %v1836, 0.0
    %v2599 = vmax.f32 %v1838, 0.0
    %v2600 = vmax.f32 %v1842, 0.0
    %v2601 = vmax.f32 %v1844, 0.0
    %v2602 = vmax.f32 %v1848, 0.0
    %v2603 = vmax.f32 %v1850, 0.0
    %v2604 = vmax.f32 %v1854, 0.0
    %v2605 = vmax.f32 %v1856, 0.0
    %v2606 = vmax.f32 %v1860, 0.0
    %v2607 = vmax.f32 %v1862, 0.0
    %v2608 = vmax.f32 %v1866, 0.0
    %v2609 = vmax.f32 %v1868, 0.0
    %v2610 = vmax.f32 %v1872, 0.0
    %v2611 = vmax.f32 %v1874, 0.0
    %v2612 = vmax.f32 %v1878, 0.0
    %v2613 = vmax.f32 %v1880, 0.0
    %v2614 = vmax.f32 %v1884, 0.0
    %v2615 = vmax.f32 %v1886, 0.0
    %v2616 = vmax.f32 %v1890, 0.0
    %v2617 = vmax.f32 %v1892, 0.0
    %v2618 = vmax.f32 %v1896, 0.0
    %v2619 = vmax.f32 %v1898, 0.0
    %v2620 = vmax.f32 %v1902, 0.0
    %v2621 = vmax.f32 %v1904, 0.0
    %v2622 = vmax.f32 %v1908, 0.0
    %v2623 = vmax.f32 %v1910, 0.0
    %v2624 = vmax.f32 %v1914, 0.0
    %v2625 = vmax.f32 %v1916, 0.0
    %v2626 = vmax.f32 %v1920, 0.0
    %v2627 = vmax.f32 %v1922, 0.0
    %v2628 = vmax.f32 %v1926, 0.0
    %v2629 = vmax.f32 %v1928, 0.0
    %v2630 = vmax.f32 %v1932, 0.0
    %v2631 = vmax.f32 %v1934, 0.0
    %v2632 = vmax.f32 %v1938, 0.0
    %v2633 = vmax.f32 %v1940, 0.0
    %v2634 = vmax.f32 %v1944, 0.0
    %v2635 = vmax.f32 %v1946, 0.0
    %v2636 = vmax.f32 %v1950, 0.0
    %v2637 = vmax.f32 %v1952, 0.0
    %v2638 = vmax.f32 %v1956, 0.0
    %v2639 = vmax.f32 %v1958, 0.0
    %v2640 = vmax.f32 %v1962, 0.0
    %v2641 = vmax.f32 %v1964, 0.0
    %v2642 = vmax.f32 %v1968, 0.0
    %v2643 = vmax.f32 %v1970, 0.0
    %v2644 = vmax.f32 %v1974, 0.0
    %v2645 = vmax.f32 %v1976, 0.0
    %v2646 = vmax.f32 %v1980, 0.0
    %v2647 = vmax.f32 %v1982, 0.0
    %v2648 = vmax.f32 %v1986, 0.0
    %v2649 = vmax.f32 %v1988, 0.0
    %v2650 = vmax.f32 %v1992, 0.0
    %v2651 = vmax.f32 %v1994, 0.0
    %v2652 = vmax.f32 %v1998, 0.0
    %v2653 = vmax.f32 %v2000, 0.0
    %v2654 = vmax.f32 %v2004, 0.0
    %v2655 = vmax.f32 %v2006, 0.0
    %v2656 = vmax.f32 %v2010, 0.0
    %v2657 = vmax.f32 %v2012, 0.0
    %v2658 = vmax.f32 %v2016, 0.0
    %v2659 = vmax.f32 %v2018, 0.0
    %v2660 = vmax.f32 %v2022, 0.0
    %v2661 = vmax.f32 %v2024, 0.0
    %v2662 = vmax.f32 %v2028, 0.0
    %v2663 = vmax.f32 %v2030, 0.0
    %v2664 = vmax.f32 %v2034, 0.0
    %v2665 = vmax.f32 %v2036, 0.0
    %v2666 = vmax.f32 %v2040, 0.0
    %v2667 = vmax.f32 %v2042, 0.0
    %v2668 = vmax.f32 %v2046, 0.0
    %v2669 = vmax.f32 %v2048, 0.0
    %v2670 = vmax.f32 %v2052, 0.0
    %v2671 = vmax.f32 %v2054, 0.0
    %v2672 = vmax.f32 %v2058, 0.0
    %v2673 = vmax.f32 %v2060, 0.0
    %v2674 = vmax.f32 %v2064, 0.0
    %v2675 = vmax.f32 %v2066, 0.0
    %v2676 = vmax.f32 %v2070, 0.0
    %v2677 = vmax.f32 %v2072, 0.0
    %v2678 = vmax.f32 %v2076, 0.0
    %v2679 = vmax.f32 %v2078, 0.0
    %v2680 = vmax.f32 %v2082, 0.0
    %v2681 = vmax.f32 %v2084, 0.0
    %v2682 = vmax.f32 %v2088, 0.0
    %v2683 = vmax.f32 %v2090, 0.0
    %v2684 = vmax.f32 %v2094, 0.0
    %v2685 = vmax.f32 %v2096, 0.0
    %v2686 = vmax.f32 %v2100, 0.0
    %v2687 = vmax.f32 %v2102, 0.0
    %v2688 = vmax.f32 %v2106, 0.0
    %v2689 = vmax.f32 %v2108, 0.0
    %v2690 = vmax.f32 %v2112, 0.0
    %v2691 = vmax.f32 %v2114, 0.0
    %v2692 = vmax.f32 %v2118, 0.0
    %v2693 = vmax.f32 %v2120, 0.0
    %v2694 = vmax.f32 %v2124, 0.0
    %v2695 = vmax.f32 %v2126, 0.0
    %v2696 = vmax.f32 %v2130, 0.0
    %v2697 = vmax.f32 %v2132, 0.0
    %v2698 = vmax.f32 %v2136, 0.0
    %v2699 = vmax.f32 %v2138, 0.0
    %v2700 = vmax.f32 %v2142, 0.0
    %v2701 = vmax.f32 %v2144, 0.0
    %v2702 = vmax.f32 %v2148, 0.0
    %v2703 = vmax.f32 %v2150, 0.0
    %v2704 = vmax.f32 %v2154, 0.0
    %v2705 = vmax.f32 %v2156, 0.0
    %v2706 = vmax.f32 %v2160, 0.0
    %v2707 = vmax.f32 %v2162, 0.0
    %v2708 = vmax.f32 %v2166, 0.0
    %v2709 = vmax.f32 %v2168, 0.0
    %v2710 = vmax.f32 %v2172, 0.0
    %v2711 = vmax.f32 %v2174, 0.0
    %v2712 = vmax.f32 %v2178, 0.0
    %v2713 = vmax.f32 %v2180, 0.0
    %v2714 = vmax.f32 %v2184, 0.0
    %v2715 = vmax.f32 %v2186, 0.0
    %v2716 = vmax.f32 %v2190, 0.0
    %v2717 = vmax.f32 %v2192, 0.0
    %v2718 = vmax.f32 %v2196, 0.0
    %v2719 = vmax.f32 %v2198, 0.0
    %v2720 = vmax.f32 %v2202, 0.0
    %v2721 = vmax.f32 %v2204, 0.0
    %v2722 = vmax.f32 %v2208, 0.0
    %v2723 = vmax.f32 %v2210, 0.0
    %v2724 = vmax.f32 %v2214, 0.0
    %v2725 = vmax.f32 %v2216, 0.0
    %v2726 = vmax.f32 %v2220, 0.0
    %v2727 = vmax.f32 %v2222, 0.0
    %v2728 = vmax.f32 %v2226, 0.0
    %v2729 = vmax.f32 %v2228, 0.0
    %v2730 = vmax.f32 %v2232, 0.0
    %v2731 = vmax.f32 %v2234, 0.0
    %v2732 = vmax.f32 %v2238, 0.0
    %v2733 = vmax.f32 %v2240, 0.0
    %v2734 = vmax.f32 %v2244, 0.0
    %v2735 = vmax.f32 %v2246, 0.0
    %v2736 = vmax.f32 %v2250, 0.0
    %v2737 = vmax.f32 %v2252, 0.0
    %v2738 = vmax.f32 %v2256, 0.0
    %v2739 = vmax.f32 %v2258, 0.0
    %v2740 = vmax.f32 %v2262, 0.0
    %v2741 = vmax.f32 %v2264, 0.0
    %v2742 = vmax.f32 %v2268, 0.0
    %v2743 = vmax.f32 %v2270, 0.0
    %v2744 = vmax.f32 %v2274, 0.0
    %v2745 = vmax.f32 %v2276, 0.0
    %v2746 = vmax.f32 %v2280, 0.0
    %v2747 = vmax.f32 %v2282, 0.0
    %v2748 = vmax.f32 %v2286, 0.0
    %v2749 = vmax.f32 %v2288, 0.0
    %v2750 = vmax.f32 %v2292, 0.0
    %v2751 = vmax.f32 %v2294, 0.0
    %v2752 = vmax.f32 %v2298, 0.0
    %v2753 = vmax.f32 %v2300, 0.0
    %v2754 = vmax.f32 %v2304, 0.0
    %v2755 = vmax.f32 %v2306, 0.0
    %v2756 = vmax.f32 %v2310, 0.0
    %v2757 = vmax.f32 %v2312, 0.0
    %v2758 = vmax.f32 %v2316, 0.0
    %v2759 = vmax.f32 %v2318, 0.0
    %v2760 = vmax.f32 %v2322, 0.0
    %v2761 = vmax.f32 %v2324, 0.0
    %v2762 = vmax.f32 %v2328, 0.0
    %v2763 = vmax.f32 %v2330, 0.0
    %v2764 = vmax.f32 %v2334, 0.0
    %v2765 = vmax.f32 %v2336, 0.0
    %v2766 = vmax.f32 %v2340, 0.0
    %v2767 = vmax.f32 %v2342, 0.0
    %v2768 = vmax.f32 %v2346, 0.0
    %v2769 = vmax.f32 %v2348, 0.0
    %v2770 = vmax.f32 %v2352, 0.0
    %v2771 = vmax.f32 %v2354, 0.0
    %v2772 = vmax.f32 %v2358, 0.0
    %v2773 = vmax.f32 %v2360, 0.0
    %v2774 = vmax.f32 %v2364, 0.0
    %v2775 = vmax.f32 %v2366, 0.0
    %v2776 = vmax.f32 %v2370, 0.0
    %v2777 = vmax.f32 %v2372, 0.0
    %v2778 = vmax.f32 %v2376, 0.0
    %v2779 = vmax.f32 %v2378, 0.0
    %v2780 = vmax.f32 %v2382, 0.0
    %v2781 = vmax.f32 %v2384, 0.0
    %v2782 = vmax.f32 %v2388, 0.0
    %v2783 = vmax.f32 %v2390, 0.0
    %v2784 = vmax.f32 %v2394, 0.0
    %v2785 = vmax.f32 %v2396, 0.0
    %v2786 = vmax.f32 %v2400, 0.0
    %v2787 = vmax.f32 %v2402, 0.0
    %v2788 = vmax.f32 %v2406, 0.0
    %v2789 = vmax.f32 %v2408, 0.0
    %v2790 = vmax.f32 %v2412, 0.0
    %v2791 = vmax.f32 %v2414, 0.0
    %v2792 = vmax.f32 %v2418, 0.0
    %v2793 = vmax.f32 %v2420, 0.0
    %v2794 = vmax.f32 %v2424, 0.0
    %v2795 = vmax.f32 %v2426, 0.0
    %v2796 = vmax.f32 %v2430, 0.0
    %v2797 = vmax.f32 %v2432, 0.0
    %v2798 = vmax.f32 %v2436, 0.0
    %v2799 = vmax.f32 %v2438, 0.0
    %v2800 = vmax.f32 %v2442, 0.0
    %v2801 = vmax.f32 %v2444, 0.0
    %v2802 = vmax.f32 %v2448, 0.0
    %v2803 = vmax.f32 %v2450, 0.0
    %v2804 = vmax.f32 %v2454, 0.0
    %v2805 = vmax.f32 %v2456, 0.0
    %v2806 = vmax.f32 %v2460, 0.0
    %v2807 = vmax.f32 %v2462, 0.0
    %v2808 = vmax.f32 %v2466, 0.0
    %v2809 = vmax.f32 %v2468, 0.0
    %v2810 = vmax.f32 %v2472, 0.0
    %v2811 = vmax.f32 %v2474, 0.0
    %v2812 = vmax.f32 %v2478, 0.0
    %v2813 = vmax.f32 %v2480, 0.0
    %v2814 = vmax.f32 %v2484, 0.0
    %v2815 = vmax.f32 %v2486, 0.0
    %v2816 = vmax.f32 %v2490, 0.0
    %v2817 = vmax.f32 %v2492, 0.0
    %v2818 = vmax.f32 %v2496, 0.0
    %v2819 = vmax.f32 %v2498, 0.0
    %v2820 = vmax.f32 %v2502, 0.0
    %v2821 = vmax.f32 %v2504, 0.0
    %v2822 = vmax.f32 %v2508, 0.0
    %v2823 = vmax.f32 %v2510, 0.0
    %v2824 = vmax.f32 %v2514, 0.0
    %v2825 = vmax.f32 %v2516, 0.0
    %v2826 = vmax.f32 %v2520, 0.0
    %v2827 = vmax.f32 %v2522, 0.0
    %v2828 = vmax.f32 %v2526, 0.0
    %v2829 = vmax.f32 %v2528, 0.0
    %v2830 = vmax.f32 %v2532, 0.0
    %v2831 = vmax.f32 %v2534, 0.0
    %v2832 = vmax.f32 %v2538, 0.0
    %v2833 = vmax.f32 %v2540, 0.0
    %v2834 = vmax.f32 %v2544, 0.0
    %v2835 = vmax.f32 %v2546, 0.0
    %v2836 = vmax.f32 %v2550, 0.0
    %v2837 = vmax.f32 %v2552, 0.0
    %v2838 = vmax.f32 %v2556, 0.0
    %v2839 = vmax.f32 %v2558, 0.0
    %v2840 = vmax.f32 %v2562, 0.0
    %v2841 = vmax.f32 %v2564, 0.0
    %v2842 = vmax.f32 %v2568, 0.0
    %v2843 = vmax.f32 %v2570, 0.0
    %v2844 = vmax.f32 %v2574, 0.0
    %v2845 = vmax.f32 %v2576, 0.0
    %v2846 = vmax.f32 %v2580, 0.0
    %v2847 = vmax.f32 %v2582, 0.0
    %v2848 = vmax.f32 %v2586, 0.0
    %v2849 = vmax.f32 %v2588, 0.0
    %v2850 = vmax.f32 %v2592, 0.0
    %v2851 = vmax.f32 %v2594, 0.0
    %v2852 = vld [vmem:[%s1] sm:$0xff]
    %v2853 = vld [vmem:[%s1 + $0x8] sm:$0xff]
    %v2854 = vld [vmem:[%s1 + $0x10] sm:$0xff]
    %v2855 = vld [vmem:[%s1 + $0x18] sm:$0xff]
    %v2856 = vld [vmem:[%s1 + $0x20] sm:$0xff]
    %v2857 = vld [vmem:[%s1 + $0x28] sm:$0xff]
    %v2858 = vld [vmem:[%s1 + $0x30] sm:$0xff]
    %v2859 = vld [vmem:[%s1 + $0x38] sm:$0xff]
    %v2860 = vld [vmem:[%s1 + $0x40] sm:$0xff]
    %v2861 = vld [vmem:[%s1 + $0x48] sm:$0xff]
    %v2862 = vld [vmem:[%s1 + $0x50] sm:$0xff]
    %v2863 = vld [vmem:[%s1 + $0x58] sm:$0xff]
    %v2864 = vld [vmem:[%s1 + $0x60] sm:$0xff]
    %v2865 = vld [vmem:[%s1 + $0x68] sm:$0xff]
    %v2866 = vld [vmem:[%s1 + $0x70] sm:$0xff]
    %v2867 = vld [vmem:[%s1 + $0x78] sm:$0xff]
    %v2868 = vld [vmem:[%s1 + $0x80] sm:$0xff]
    %v2869 = vld [vmem:[%s1 + $0x88] sm:$0xff]
    %v2870 = vld [vmem:[%s1 + $0x90] sm:$0xff]
    %v2871 = vld [vmem:[%s1 + $0x98] sm:$0xff]
    %v2872 = vld [vmem:[%s1 + $0xa0] sm:$0xff]
    %v2873 = vld [vmem:[%s1 + $0xa8] sm:$0xff]
    %v2874 = vld [vmem:[%s1 + $0xb0] sm:$0xff]
    %v2875 = vld [vmem:[%s1 + $0xb8] sm:$0xff]
    %v2876 = vld [vmem:[%s1 + $0xc0] sm:$0xff]
    %v2877 = vld [vmem:[%s1 + $0xc8] sm:$0xff]
    %v2878 = vld [vmem:[%s1 + $0xd0] sm:$0xff]
    %v2879 = vld [vmem:[%s1 + $0xd8] sm:$0xff]
    %v2880 = vld [vmem:[%s1 + $0xe0] sm:$0xff]
    %v2881 = vld [vmem:[%s1 + $0xe8] sm:$0xff]
    %v2882 = vld [vmem:[%s1 + $0xf0] sm:$0xff]
    %v2883 = vld [vmem:[%s1 + $0xf8] sm:$0xff]
    %v2884 = vld [vmem:[%s1 + $0x100] sm:$0xff]
    %v2885 = vld [vmem:[%s1 + $0x108] sm:$0xff]
    %v2886 = vld [vmem:[%s1 + $0x110] sm:$0xff]
    %v2887 = vld [vmem:[%s1 + $0x118] sm:$0xff]
    %v2888 = vld [vmem:[%s1 + $0x120] sm:$0xff]
    %v2889 = vld [vmem:[%s1 + $0x128] sm:$0xff]
    %v2890 = vld [vmem:[%s1 + $0x130] sm:$0xff]
    %v2891 = vld [vmem:[%s1 + $0x138] sm:$0xff]
    %v2892 = vld [vmem:[%s1 + $0x140] sm:$0xff]
    %v2893 = vld [vmem:[%s1 + $0x148] sm:$0xff]
    %v2894 = vld [vmem:[%s1 + $0x150] sm:$0xff]
    %v2895 = vld [vmem:[%s1 + $0x158] sm:$0xff]
    %v2896 = vld [vmem:[%s1 + $0x160] sm:$0xff]
    %v2897 = vld [vmem:[%s1 + $0x168] sm:$0xff]
    %v2898 = vld [vmem:[%s1 + $0x170] sm:$0xff]
    %v2899 = vld [vmem:[%s1 + $0x178] sm:$0xff]
    %v2900 = vld [vmem:[%s1 + $0x180] sm:$0xff]
    %v2901 = vld [vmem:[%s1 + $0x188] sm:$0xff]
    %v2902 = vld [vmem:[%s1 + $0x190] sm:$0xff]
    %v2903 = vld [vmem:[%s1 + $0x198] sm:$0xff]
    %v2904 = vld [vmem:[%s1 + $0x1a0] sm:$0xff]
    %v2905 = vld [vmem:[%s1 + $0x1a8] sm:$0xff]
    %v2906 = vld [vmem:[%s1 + $0x1b0] sm:$0xff]
    %v2907 = vld [vmem:[%s1 + $0x1b8] sm:$0xff]
    %v2908 = vld [vmem:[%s1 + $0x1c0] sm:$0xff]
    %v2909 = vld [vmem:[%s1 + $0x1c8] sm:$0xff]
    %v2910 = vld [vmem:[%s1 + $0x1d0] sm:$0xff]
    %v2911 = vld [vmem:[%s1 + $0x1d8] sm:$0xff]
    %v2912 = vld [vmem:[%s1 + $0x1e0] sm:$0xff]
    %v2913 = vld [vmem:[%s1 + $0x1e8] sm:$0xff]
    %v2914 = vld [vmem:[%s1 + $0x1f0] sm:$0xff]
    %v2915 = vld [vmem:[%s1 + $0x1f8] sm:$0xff]
    %v2916 = vld [vmem:[%s1 + $0x200] sm:$0xff]
    %v2917 = vld [vmem:[%s1 + $0x208] sm:$0xff]
    %v2918 = vld [vmem:[%s1 + $0x210] sm:$0xff]
    %v2919 = vld [vmem:[%s1 + $0x218] sm:$0xff]
    %v2920 = vld [vmem:[%s1 + $0x220] sm:$0xff]
    %v2921 = vld [vmem:[%s1 + $0x228] sm:$0xff]
    %v2922 = vld [vmem:[%s1 + $0x230] sm:$0xff]
    %v2923 = vld [vmem:[%s1 + $0x238] sm:$0xff]
    %v2924 = vld [vmem:[%s1 + $0x240] sm:$0xff]
    %v2925 = vld [vmem:[%s1 + $0x248] sm:$0xff]
    %v2926 = vld [vmem:[%s1 + $0x250] sm:$0xff]
    %v2927 = vld [vmem:[%s1 + $0x258] sm:$0xff]
    %v2928 = vld [vmem:[%s1 + $0x260] sm:$0xff]
    %v2929 = vld [vmem:[%s1 + $0x268] sm:$0xff]
    %v2930 = vld [vmem:[%s1 + $0x270] sm:$0xff]
    %v2931 = vld [vmem:[%s1 + $0x278] sm:$0xff]
    %v2932 = vld [vmem:[%s1 + $0x280] sm:$0xff]
    %v2933 = vld [vmem:[%s1 + $0x288] sm:$0xff]
    %v2934 = vld [vmem:[%s1 + $0x290] sm:$0xff]
    %v2935 = vld [vmem:[%s1 + $0x298] sm:$0xff]
    %v2936 = vld [vmem:[%s1 + $0x2a0] sm:$0xff]
    %v2937 = vld [vmem:[%s1 + $0x2a8] sm:$0xff]
    %v2938 = vld [vmem:[%s1 + $0x2b0] sm:$0xff]
    %v2939 = vld [vmem:[%s1 + $0x2b8] sm:$0xff]
    %v2940 = vld [vmem:[%s1 + $0x2c0] sm:$0xff]
    %v2941 = vld [vmem:[%s1 + $0x2c8] sm:$0xff]
    %v2942 = vld [vmem:[%s1 + $0x2d0] sm:$0xff]
    %v2943 = vld [vmem:[%s1 + $0x2d8] sm:$0xff]
    %v2944 = vld [vmem:[%s1 + $0x2e0] sm:$0xff]
    %v2945 = vld [vmem:[%s1 + $0x2e8] sm:$0xff]
    %v2946 = vld [vmem:[%s1 + $0x2f0] sm:$0xff]
    %v2947 = vld [vmem:[%s1 + $0x2f8] sm:$0xff]
    %v2948 = vld [vmem:[%s1 + $0x300] sm:$0xff]
    %v2949 = vld [vmem:[%s1 + $0x308] sm:$0xff]
    %v2950 = vld [vmem:[%s1 + $0x310] sm:$0xff]
    %v2951 = vld [vmem:[%s1 + $0x318] sm:$0xff]
    %v2952 = vld [vmem:[%s1 + $0x320] sm:$0xff]
    %v2953 = vld [vmem:[%s1 + $0x328] sm:$0xff]
    %v2954 = vld [vmem:[%s1 + $0x330] sm:$0xff]
    %v2955 = vld [vmem:[%s1 + $0x338] sm:$0xff]
    %v2956 = vld [vmem:[%s1 + $0x340] sm:$0xff]
    %v2957 = vld [vmem:[%s1 + $0x348] sm:$0xff]
    %v2958 = vld [vmem:[%s1 + $0x350] sm:$0xff]
    %v2959 = vld [vmem:[%s1 + $0x358] sm:$0xff]
    %v2960 = vld [vmem:[%s1 + $0x360] sm:$0xff]
    %v2961 = vld [vmem:[%s1 + $0x368] sm:$0xff]
    %v2962 = vld [vmem:[%s1 + $0x370] sm:$0xff]
    %v2963 = vld [vmem:[%s1 + $0x378] sm:$0xff]
    %v2964 = vld [vmem:[%s1 + $0x380] sm:$0xff]
    %v2965 = vld [vmem:[%s1 + $0x388] sm:$0xff]
    %v2966 = vld [vmem:[%s1 + $0x390] sm:$0xff]
    %v2967 = vld [vmem:[%s1 + $0x398] sm:$0xff]
    %v2968 = vld [vmem:[%s1 + $0x3a0] sm:$0xff]
    %v2969 = vld [vmem:[%s1 + $0x3a8] sm:$0xff]
    %v2970 = vld [vmem:[%s1 + $0x3b0] sm:$0xff]
    %v2971 = vld [vmem:[%s1 + $0x3b8] sm:$0xff]
    %v2972 = vld [vmem:[%s1 + $0x3c0] sm:$0xff]
    %v2973 = vld [vmem:[%s1 + $0x3c8] sm:$0xff]
    %v2974 = vld [vmem:[%s1 + $0x3d0] sm:$0xff]
    %v2975 = vld [vmem:[%s1 + $0x3d8] sm:$0xff]
    %v2976 = vld [vmem:[%s1 + $0x3e0] sm:$0xff]
    %v2977 = vld [vmem:[%s1 + $0x3e8] sm:$0xff]
    %v2978 = vld [vmem:[%s1 + $0x3f0] sm:$0xff]
    %v2979 = vld [vmem:[%s1 + $0x3f8] sm:$0xff]
    %v2980 = vlaneseq
    %v2981 = vand.u32 %v2980, 127
    %v2982 = vadd.s32 %v2981, 128
    %vm2983 = vcmp.lt.s32.totalorder %v2981, 128
    %vm2984 = vcmp.lt.s32.totalorder %v2982, 128
    %2986 = vset.pattern.permute.xlu0 0
    %2987 = vperm.xlu0 %2986, %v2852
    %v2988 = vpop.permute.xlu0 %2987
    %2991 = vset.pattern.permute.xlu0 0
    %2992 = vperm.xlu0 %2991, %v2853
    %v2993 = vpop.permute.xlu0 %2992
    %2996 = vset.pattern.permute.xlu0 0
    %2997 = vperm.xlu0 %2996, %v2854
    %v2998 = vpop.permute.xlu0 %2997
    %3001 = vset.pattern.permute.xlu0 0
    %3002 = vperm.xlu0 %3001, %v2855
    %v3003 = vpop.permute.xlu0 %3002
    %3006 = vset.pattern.permute.xlu0 0
    %3007 = vperm.xlu0 %3006, %v2856
    %v3008 = vpop.permute.xlu0 %3007
    %3011 = vset.pattern.permute.xlu0 0
    %3012 = vperm.xlu0 %3011, %v2857
    %v3013 = vpop.permute.xlu0 %3012
    %3016 = vset.pattern.permute.xlu0 0
    %3017 = vperm.xlu0 %3016, %v2858
    %v3018 = vpop.permute.xlu0 %3017
    %3021 = vset.pattern.permute.xlu0 0
    %3022 = vperm.xlu0 %3021, %v2859
    %v3023 = vpop.permute.xlu0 %3022
    %3026 = vset.pattern.permute.xlu0 0
    %3027 = vperm.xlu0 %3026, %v2860
    %v3028 = vpop.permute.xlu0 %3027
    %3031 = vset.pattern.permute.xlu0 0
    %3032 = vperm.xlu0 %3031, %v2861
    %v3033 = vpop.permute.xlu0 %3032
    %3036 = vset.pattern.permute.xlu0 0
    %3037 = vperm.xlu0 %3036, %v2862
    %v3038 = vpop.permute.xlu0 %3037
    %3041 = vset.pattern.permute.xlu0 0
    %3042 = vperm.xlu0 %3041, %v2863
    %v3043 = vpop.permute.xlu0 %3042
    %3046 = vset.pattern.permute.xlu0 0
    %3047 = vperm.xlu0 %3046, %v2864
    %v3048 = vpop.permute.xlu0 %3047
    %3051 = vset.pattern.permute.xlu0 0
    %3052 = vperm.xlu0 %3051, %v2865
    %v3053 = vpop.permute.xlu0 %3052
    %3056 = vset.pattern.permute.xlu0 0
    %3057 = vperm.xlu0 %3056, %v2866
    %v3058 = vpop.permute.xlu0 %3057
    %3061 = vset.pattern.permute.xlu0 0
    %3062 = vperm.xlu0 %3061, %v2867
    %v3063 = vpop.permute.xlu0 %3062
    %3066 = vset.pattern.permute.xlu0 0
    %3067 = vperm.xlu0 %3066, %v2868
    %v3068 = vpop.permute.xlu0 %3067
    %3071 = vset.pattern.permute.xlu0 0
    %3072 = vperm.xlu0 %3071, %v2869
    %v3073 = vpop.permute.xlu0 %3072
    %3076 = vset.pattern.permute.xlu0 0
    %3077 = vperm.xlu0 %3076, %v2870
    %v3078 = vpop.permute.xlu0 %3077
    %3081 = vset.pattern.permute.xlu0 0
    %3082 = vperm.xlu0 %3081, %v2871
    %v3083 = vpop.permute.xlu0 %3082
    %3086 = vset.pattern.permute.xlu0 0
    %3087 = vperm.xlu0 %3086, %v2872
    %v3088 = vpop.permute.xlu0 %3087
    %3091 = vset.pattern.permute.xlu0 0
    %3092 = vperm.xlu0 %3091, %v2873
    %v3093 = vpop.permute.xlu0 %3092
    %3096 = vset.pattern.permute.xlu0 0
    %3097 = vperm.xlu0 %3096, %v2874
    %v3098 = vpop.permute.xlu0 %3097
    %3101 = vset.pattern.permute.xlu0 0
    %3102 = vperm.xlu0 %3101, %v2875
    %v3103 = vpop.permute.xlu0 %3102
    %3106 = vset.pattern.permute.xlu0 0
    %3107 = vperm.xlu0 %3106, %v2876
    %v3108 = vpop.permute.xlu0 %3107
    %3111 = vset.pattern.permute.xlu0 0
    %3112 = vperm.xlu0 %3111, %v2877
    %v3113 = vpop.permute.xlu0 %3112
    %3116 = vset.pattern.permute.xlu0 0
    %3117 = vperm.xlu0 %3116, %v2878
    %v3118 = vpop.permute.xlu0 %3117
    %3121 = vset.pattern.permute.xlu0 0
    %3122 = vperm.xlu0 %3121, %v2879
    %v3123 = vpop.permute.xlu0 %3122
    %3126 = vset.pattern.permute.xlu0 0
    %3127 = vperm.xlu0 %3126, %v2880
    %v3128 = vpop.permute.xlu0 %3127
    %3131 = vset.pattern.permute.xlu0 0
    %3132 = vperm.xlu0 %3131, %v2881
    %v3133 = vpop.permute.xlu0 %3132
    %3136 = vset.pattern.permute.xlu0 0
    %3137 = vperm.xlu0 %3136, %v2882
    %v3138 = vpop.permute.xlu0 %3137
    %3141 = vset.pattern.permute.xlu0 0
    %3142 = vperm.xlu0 %3141, %v2883
    %v3143 = vpop.permute.xlu0 %3142
    %3146 = vset.pattern.permute.xlu0 0
    %3147 = vperm.xlu0 %3146, %v2884
    %v3148 = vpop.permute.xlu0 %3147
    %3151 = vset.pattern.permute.xlu0 0
    %3152 = vperm.xlu0 %3151, %v2885
    %v3153 = vpop.permute.xlu0 %3152
    %3156 = vset.pattern.permute.xlu0 0
    %3157 = vperm.xlu0 %3156, %v2886
    %v3158 = vpop.permute.xlu0 %3157
    %3161 = vset.pattern.permute.xlu0 0
    %3162 = vperm.xlu0 %3161, %v2887
    %v3163 = vpop.permute.xlu0 %3162
    %3166 = vset.pattern.permute.xlu0 0
    %3167 = vperm.xlu0 %3166, %v2888
    %v3168 = vpop.permute.xlu0 %3167
    %3171 = vset.pattern.permute.xlu0 0
    %3172 = vperm.xlu0 %3171, %v2889
    %v3173 = vpop.permute.xlu0 %3172
    %3176 = vset.pattern.permute.xlu0 0
    %3177 = vperm.xlu0 %3176, %v2890
    %v3178 = vpop.permute.xlu0 %3177
    %3181 = vset.pattern.permute.xlu0 0
    %3182 = vperm.xlu0 %3181, %v2891
    %v3183 = vpop.permute.xlu0 %3182
    %3186 = vset.pattern.permute.xlu0 0
    %3187 = vperm.xlu0 %3186, %v2892
    %v3188 = vpop.permute.xlu0 %3187
    %3191 = vset.pattern.permute.xlu0 0
    %3192 = vperm.xlu0 %3191, %v2893
    %v3193 = vpop.permute.xlu0 %3192
    %3196 = vset.pattern.permute.xlu0 0
    %3197 = vperm.xlu0 %3196, %v2894
    %v3198 = vpop.permute.xlu0 %3197
    %3201 = vset.pattern.permute.xlu0 0
    %3202 = vperm.xlu0 %3201, %v2895
    %v3203 = vpop.permute.xlu0 %3202
    %3206 = vset.pattern.permute.xlu0 0
    %3207 = vperm.xlu0 %3206, %v2896
    %v3208 = vpop.permute.xlu0 %3207
    %3211 = vset.pattern.permute.xlu0 0
    %3212 = vperm.xlu0 %3211, %v2897
    %v3213 = vpop.permute.xlu0 %3212
    %3216 = vset.pattern.permute.xlu0 0
    %3217 = vperm.xlu0 %3216, %v2898
    %v3218 = vpop.permute.xlu0 %3217
    %3221 = vset.pattern.permute.xlu0 0
    %3222 = vperm.xlu0 %3221, %v2899
    %v3223 = vpop.permute.xlu0 %3222
    %3226 = vset.pattern.permute.xlu0 0
    %3227 = vperm.xlu0 %3226, %v2900
    %v3228 = vpop.permute.xlu0 %3227
    %3231 = vset.pattern.permute.xlu0 0
    %3232 = vperm.xlu0 %3231, %v2901
    %v3233 = vpop.permute.xlu0 %3232
    %3236 = vset.pattern.permute.xlu0 0
    %3237 = vperm.xlu0 %3236, %v2902
    %v3238 = vpop.permute.xlu0 %3237
    %3241 = vset.pattern.permute.xlu0 0
    %3242 = vperm.xlu0 %3241, %v2903
    %v3243 = vpop.permute.xlu0 %3242
    %3246 = vset.pattern.permute.xlu0 0
    %3247 = vperm.xlu0 %3246, %v2904
    %v3248 = vpop.permute.xlu0 %3247
    %3251 = vset.pattern.permute.xlu0 0
    %3252 = vperm.xlu0 %3251, %v2905
    %v3253 = vpop.permute.xlu0 %3252
    %3256 = vset.pattern.permute.xlu0 0
    %3257 = vperm.xlu0 %3256, %v2906
    %v3258 = vpop.permute.xlu0 %3257
    %3261 = vset.pattern.permute.xlu0 0
    %3262 = vperm.xlu0 %3261, %v2907
    %v3263 = vpop.permute.xlu0 %3262
    %3266 = vset.pattern.permute.xlu0 0
    %3267 = vperm.xlu0 %3266, %v2908
    %v3268 = vpop.permute.xlu0 %3267
    %3271 = vset.pattern.permute.xlu0 0
    %3272 = vperm.xlu0 %3271, %v2909
    %v3273 = vpop.permute.xlu0 %3272
    %3276 = vset.pattern.permute.xlu0 0
    %3277 = vperm.xlu0 %3276, %v2910
    %v3278 = vpop.permute.xlu0 %3277
    %3281 = vset.pattern.permute.xlu0 0
    %3282 = vperm.xlu0 %3281, %v2911
    %v3283 = vpop.permute.xlu0 %3282
    %3286 = vset.pattern.permute.xlu0 0
    %3287 = vperm.xlu0 %3286, %v2912
    %v3288 = vpop.permute.xlu0 %3287
    %3291 = vset.pattern.permute.xlu0 0
    %3292 = vperm.xlu0 %3291, %v2913
    %v3293 = vpop.permute.xlu0 %3292
    %3296 = vset.pattern.permute.xlu0 0
    %3297 = vperm.xlu0 %3296, %v2914
    %v3298 = vpop.permute.xlu0 %3297
    %3301 = vset.pattern.permute.xlu0 0
    %3302 = vperm.xlu0 %3301, %v2915
    %v3303 = vpop.permute.xlu0 %3302
    %3306 = vset.pattern.permute.xlu0 0
    %3307 = vperm.xlu0 %3306, %v2916
    %v3308 = vpop.permute.xlu0 %3307
    %3311 = vset.pattern.permute.xlu0 0
    %3312 = vperm.xlu0 %3311, %v2917
    %v3313 = vpop.permute.xlu0 %3312
    %3316 = vset.pattern.permute.xlu0 0
    %3317 = vperm.xlu0 %3316, %v2918
    %v3318 = vpop.permute.xlu0 %3317
    %3321 = vset.pattern.permute.xlu0 0
    %3322 = vperm.xlu0 %3321, %v2919
    %v3323 = vpop.permute.xlu0 %3322
    %3326 = vset.pattern.permute.xlu0 0
    %3327 = vperm.xlu0 %3326, %v2920
    %v3328 = vpop.permute.xlu0 %3327
    %3331 = vset.pattern.permute.xlu0 0
    %3332 = vperm.xlu0 %3331, %v2921
    %v3333 = vpop.permute.xlu0 %3332
    %3336 = vset.pattern.permute.xlu0 0
    %3337 = vperm.xlu0 %3336, %v2922
    %v3338 = vpop.permute.xlu0 %3337
    %3341 = vset.pattern.permute.xlu0 0
    %3342 = vperm.xlu0 %3341, %v2923
    %v3343 = vpop.permute.xlu0 %3342
    %3346 = vset.pattern.permute.xlu0 0
    %3347 = vperm.xlu0 %3346, %v2924
    %v3348 = vpop.permute.xlu0 %3347
    %3351 = vset.pattern.permute.xlu0 0
    %3352 = vperm.xlu0 %3351, %v2925
    %v3353 = vpop.permute.xlu0 %3352
    %3356 = vset.pattern.permute.xlu0 0
    %3357 = vperm.xlu0 %3356, %v2926
    %v3358 = vpop.permute.xlu0 %3357
    %3361 = vset.pattern.permute.xlu0 0
    %3362 = vperm.xlu0 %3361, %v2927
    %v3363 = vpop.permute.xlu0 %3362
    %3366 = vset.pattern.permute.xlu0 0
    %3367 = vperm.xlu0 %3366, %v2928
    %v3368 = vpop.permute.xlu0 %3367
    %3371 = vset.pattern.permute.xlu0 0
    %3372 = vperm.xlu0 %3371, %v2929
    %v3373 = vpop.permute.xlu0 %3372
    %3376 = vset.pattern.permute.xlu0 0
    %3377 = vperm.xlu0 %3376, %v2930
    %v3378 = vpop.permute.xlu0 %3377
    %3381 = vset.pattern.permute.xlu0 0
    %3382 = vperm.xlu0 %3381, %v2931
    %v3383 = vpop.permute.xlu0 %3382
    %3386 = vset.pattern.permute.xlu0 0
    %3387 = vperm.xlu0 %3386, %v2932
    %v3388 = vpop.permute.xlu0 %3387
    %3391 = vset.pattern.permute.xlu0 0
    %3392 = vperm.xlu0 %3391, %v2933
    %v3393 = vpop.permute.xlu0 %3392
    %3396 = vset.pattern.permute.xlu0 0
    %3397 = vperm.xlu0 %3396, %v2934
    %v3398 = vpop.permute.xlu0 %3397
    %3401 = vset.pattern.permute.xlu0 0
    %3402 = vperm.xlu0 %3401, %v2935
    %v3403 = vpop.permute.xlu0 %3402
    %3406 = vset.pattern.permute.xlu0 0
    %3407 = vperm.xlu0 %3406, %v2936
    %v3408 = vpop.permute.xlu0 %3407
    %3411 = vset.pattern.permute.xlu0 0
    %3412 = vperm.xlu0 %3411, %v2937
    %v3413 = vpop.permute.xlu0 %3412
    %3416 = vset.pattern.permute.xlu0 0
    %3417 = vperm.xlu0 %3416, %v2938
    %v3418 = vpop.permute.xlu0 %3417
    %3421 = vset.pattern.permute.xlu0 0
    %3422 = vperm.xlu0 %3421, %v2939
    %v3423 = vpop.permute.xlu0 %3422
    %3426 = vset.pattern.permute.xlu0 0
    %3427 = vperm.xlu0 %3426, %v2940
    %v3428 = vpop.permute.xlu0 %3427
    %3431 = vset.pattern.permute.xlu0 0
    %3432 = vperm.xlu0 %3431, %v2941
    %v3433 = vpop.permute.xlu0 %3432
    %3436 = vset.pattern.permute.xlu0 0
    %3437 = vperm.xlu0 %3436, %v2942
    %v3438 = vpop.permute.xlu0 %3437
    %3441 = vset.pattern.permute.xlu0 0
    %3442 = vperm.xlu0 %3441, %v2943
    %v3443 = vpop.permute.xlu0 %3442
    %3446 = vset.pattern.permute.xlu0 0
    %3447 = vperm.xlu0 %3446, %v2944
    %v3448 = vpop.permute.xlu0 %3447
    %3451 = vset.pattern.permute.xlu0 0
    %3452 = vperm.xlu0 %3451, %v2945
    %v3453 = vpop.permute.xlu0 %3452
    %3456 = vset.pattern.permute.xlu0 0
    %3457 = vperm.xlu0 %3456, %v2946
    %v3458 = vpop.permute.xlu0 %3457
    %3461 = vset.pattern.permute.xlu0 0
    %3462 = vperm.xlu0 %3461, %v2947
    %v3463 = vpop.permute.xlu0 %3462
    %3466 = vset.pattern.permute.xlu0 0
    %3467 = vperm.xlu0 %3466, %v2948
    %v3468 = vpop.permute.xlu0 %3467
    %3471 = vset.pattern.permute.xlu0 0
    %3472 = vperm.xlu0 %3471, %v2949
    %v3473 = vpop.permute.xlu0 %3472
    %3476 = vset.pattern.permute.xlu0 0
    %3477 = vperm.xlu0 %3476, %v2950
    %v3478 = vpop.permute.xlu0 %3477
    %3481 = vset.pattern.permute.xlu0 0
    %3482 = vperm.xlu0 %3481, %v2951
    %v3483 = vpop.permute.xlu0 %3482
    %3486 = vset.pattern.permute.xlu0 0
    %3487 = vperm.xlu0 %3486, %v2952
    %v3488 = vpop.permute.xlu0 %3487
    %3491 = vset.pattern.permute.xlu0 0
    %3492 = vperm.xlu0 %3491, %v2953
    %v3493 = vpop.permute.xlu0 %3492
    %3496 = vset.pattern.permute.xlu0 0
    %3497 = vperm.xlu0 %3496, %v2954
    %v3498 = vpop.permute.xlu0 %3497
    %3501 = vset.pattern.permute.xlu0 0
    %3502 = vperm.xlu0 %3501, %v2955
    %v3503 = vpop.permute.xlu0 %3502
    %3506 = vset.pattern.permute.xlu0 0
    %3507 = vperm.xlu0 %3506, %v2956
    %v3508 = vpop.permute.xlu0 %3507
    %3511 = vset.pattern.permute.xlu0 0
    %3512 = vperm.xlu0 %3511, %v2957
    %v3513 = vpop.permute.xlu0 %3512
    %3516 = vset.pattern.permute.xlu0 0
    %3517 = vperm.xlu0 %3516, %v2958
    %v3518 = vpop.permute.xlu0 %3517
    %3521 = vset.pattern.permute.xlu0 0
    %3522 = vperm.xlu0 %3521, %v2959
    %v3523 = vpop.permute.xlu0 %3522
    %3526 = vset.pattern.permute.xlu0 0
    %3527 = vperm.xlu0 %3526, %v2960
    %v3528 = vpop.permute.xlu0 %3527
    %3531 = vset.pattern.permute.xlu0 0
    %3532 = vperm.xlu0 %3531, %v2961
    %v3533 = vpop.permute.xlu0 %3532
    %3536 = vset.pattern.permute.xlu0 0
    %3537 = vperm.xlu0 %3536, %v2962
    %v3538 = vpop.permute.xlu0 %3537
    %3541 = vset.pattern.permute.xlu0 0
    %3542 = vperm.xlu0 %3541, %v2963
    %v3543 = vpop.permute.xlu0 %3542
    %3546 = vset.pattern.permute.xlu0 0
    %3547 = vperm.xlu0 %3546, %v2964
    %v3548 = vpop.permute.xlu0 %3547
    %3551 = vset.pattern.permute.xlu0 0
    %3552 = vperm.xlu0 %3551, %v2965
    %v3553 = vpop.permute.xlu0 %3552
    %3556 = vset.pattern.permute.xlu0 0
    %3557 = vperm.xlu0 %3556, %v2966
    %v3558 = vpop.permute.xlu0 %3557
    %3561 = vset.pattern.permute.xlu0 0
    %3562 = vperm.xlu0 %3561, %v2967
    %v3563 = vpop.permute.xlu0 %3562
    %3566 = vset.pattern.permute.xlu0 0
    %3567 = vperm.xlu0 %3566, %v2968
    %v3568 = vpop.permute.xlu0 %3567
    %3571 = vset.pattern.permute.xlu0 0
    %3572 = vperm.xlu0 %3571, %v2969
    %v3573 = vpop.permute.xlu0 %3572
    %3576 = vset.pattern.permute.xlu0 0
    %3577 = vperm.xlu0 %3576, %v2970
    %v3578 = vpop.permute.xlu0 %3577
    %3581 = vset.pattern.permute.xlu0 0
    %3582 = vperm.xlu0 %3581, %v2971
    %v3583 = vpop.permute.xlu0 %3582
    %3586 = vset.pattern.permute.xlu0 0
    %3587 = vperm.xlu0 %3586, %v2972
    %v3588 = vpop.permute.xlu0 %3587
    %3591 = vset.pattern.permute.xlu0 0
    %3592 = vperm.xlu0 %3591, %v2973
    %v3593 = vpop.permute.xlu0 %3592
    %3596 = vset.pattern.permute.xlu0 0
    %3597 = vperm.xlu0 %3596, %v2974
    %v3598 = vpop.permute.xlu0 %3597
    %3601 = vset.pattern.permute.xlu0 0
    %3602 = vperm.xlu0 %3601, %v2975
    %v3603 = vpop.permute.xlu0 %3602
    %3606 = vset.pattern.permute.xlu0 0
    %3607 = vperm.xlu0 %3606, %v2976
    %v3608 = vpop.permute.xlu0 %3607
    %3611 = vset.pattern.permute.xlu0 0
    %3612 = vperm.xlu0 %3611, %v2977
    %v3613 = vpop.permute.xlu0 %3612
    %3616 = vset.pattern.permute.xlu0 0
    %3617 = vperm.xlu0 %3616, %v2978
    %v3618 = vpop.permute.xlu0 %3617
    %3621 = vset.pattern.permute.xlu0 0
    %3622 = vperm.xlu0 %3621, %v2979
    %v3623 = vpop.permute.xlu0 %3622
    %3625 = vset.pattern.permute.xlu0 1
    %3626 = vperm.xlu0 %3625, %v2852
    %v3627 = vpop.permute.xlu0 %3626
    %3629 = vset.pattern.permute.xlu0 1
    %3630 = vperm.xlu0 %3629, %v2853
    %v3631 = vpop.permute.xlu0 %3630
    %3633 = vset.pattern.permute.xlu0 1
    %3634 = vperm.xlu0 %3633, %v2854
    %v3635 = vpop.permute.xlu0 %3634
    %3637 = vset.pattern.permute.xlu0 1
    %3638 = vperm.xlu0 %3637, %v2855
    %v3639 = vpop.permute.xlu0 %3638
    %3641 = vset.pattern.permute.xlu0 1
    %3642 = vperm.xlu0 %3641, %v2856
    %v3643 = vpop.permute.xlu0 %3642
    %3645 = vset.pattern.permute.xlu0 1
    %3646 = vperm.xlu0 %3645, %v2857
    %v3647 = vpop.permute.xlu0 %3646
    %3649 = vset.pattern.permute.xlu0 1
    %3650 = vperm.xlu0 %3649, %v2858
    %v3651 = vpop.permute.xlu0 %3650
    %3653 = vset.pattern.permute.xlu0 1
    %3654 = vperm.xlu0 %3653, %v2859
    %v3655 = vpop.permute.xlu0 %3654
    %3657 = vset.pattern.permute.xlu0 1
    %3658 = vperm.xlu0 %3657, %v2860
    %v3659 = vpop.permute.xlu0 %3658
    %3661 = vset.pattern.permute.xlu0 1
    %3662 = vperm.xlu0 %3661, %v2861
    %v3663 = vpop.permute.xlu0 %3662
    %3665 = vset.pattern.permute.xlu0 1
    %3666 = vperm.xlu0 %3665, %v2862
    %v3667 = vpop.permute.xlu0 %3666
    %3669 = vset.pattern.permute.xlu0 1
    %3670 = vperm.xlu0 %3669, %v2863
    %v3671 = vpop.permute.xlu0 %3670
    %3673 = vset.pattern.permute.xlu0 1
    %3674 = vperm.xlu0 %3673, %v2864
    %v3675 = vpop.permute.xlu0 %3674
    %3677 = vset.pattern.permute.xlu0 1
    %3678 = vperm.xlu0 %3677, %v2865
    %v3679 = vpop.permute.xlu0 %3678
    %3681 = vset.pattern.permute.xlu0 1
    %3682 = vperm.xlu0 %3681, %v2866
    %v3683 = vpop.permute.xlu0 %3682
    %3685 = vset.pattern.permute.xlu0 1
    %3686 = vperm.xlu0 %3685, %v2867
    %v3687 = vpop.permute.xlu0 %3686
    %3689 = vset.pattern.permute.xlu0 1
    %3690 = vperm.xlu0 %3689, %v2868
    %v3691 = vpop.permute.xlu0 %3690
    %3693 = vset.pattern.permute.xlu0 1
    %3694 = vperm.xlu0 %3693, %v2869
    %v3695 = vpop.permute.xlu0 %3694
    %3697 = vset.pattern.permute.xlu0 1
    %3698 = vperm.xlu0 %3697, %v2870
    %v3699 = vpop.permute.xlu0 %3698
    %3701 = vset.pattern.permute.xlu0 1
    %3702 = vperm.xlu0 %3701, %v2871
    %v3703 = vpop.permute.xlu0 %3702
    %3705 = vset.pattern.permute.xlu0 1
    %3706 = vperm.xlu0 %3705, %v2872
    %v3707 = vpop.permute.xlu0 %3706
    %3709 = vset.pattern.permute.xlu0 1
    %3710 = vperm.xlu0 %3709, %v2873
    %v3711 = vpop.permute.xlu0 %3710
    %3713 = vset.pattern.permute.xlu0 1
    %3714 = vperm.xlu0 %3713, %v2874
    %v3715 = vpop.permute.xlu0 %3714
    %3717 = vset.pattern.permute.xlu0 1
    %3718 = vperm.xlu0 %3717, %v2875
    %v3719 = vpop.permute.xlu0 %3718
    %3721 = vset.pattern.permute.xlu0 1
    %3722 = vperm.xlu0 %3721, %v2876
    %v3723 = vpop.permute.xlu0 %3722
    %3725 = vset.pattern.permute.xlu0 1
    %3726 = vperm.xlu0 %3725, %v2877
    %v3727 = vpop.permute.xlu0 %3726
    %3729 = vset.pattern.permute.xlu0 1
    %3730 = vperm.xlu0 %3729, %v2878
    %v3731 = vpop.permute.xlu0 %3730
    %3733 = vset.pattern.permute.xlu0 1
    %3734 = vperm.xlu0 %3733, %v2879
    %v3735 = vpop.permute.xlu0 %3734
    %3737 = vset.pattern.permute.xlu0 1
    %3738 = vperm.xlu0 %3737, %v2880
    %v3739 = vpop.permute.xlu0 %3738
    %3741 = vset.pattern.permute.xlu0 1
    %3742 = vperm.xlu0 %3741, %v2881
    %v3743 = vpop.permute.xlu0 %3742
    %3745 = vset.pattern.permute.xlu0 1
    %3746 = vperm.xlu0 %3745, %v2882
    %v3747 = vpop.permute.xlu0 %3746
    %3749 = vset.pattern.permute.xlu0 1
    %3750 = vperm.xlu0 %3749, %v2883
    %v3751 = vpop.permute.xlu0 %3750
    %3753 = vset.pattern.permute.xlu0 1
    %3754 = vperm.xlu0 %3753, %v2884
    %v3755 = vpop.permute.xlu0 %3754
    %3757 = vset.pattern.permute.xlu0 1
    %3758 = vperm.xlu0 %3757, %v2885
    %v3759 = vpop.permute.xlu0 %3758
    %3761 = vset.pattern.permute.xlu0 1
    %3762 = vperm.xlu0 %3761, %v2886
    %v3763 = vpop.permute.xlu0 %3762
    %3765 = vset.pattern.permute.xlu0 1
    %3766 = vperm.xlu0 %3765, %v2887
    %v3767 = vpop.permute.xlu0 %3766
    %3769 = vset.pattern.permute.xlu0 1
    %3770 = vperm.xlu0 %3769, %v2888
    %v3771 = vpop.permute.xlu0 %3770
    %3773 = vset.pattern.permute.xlu0 1
    %3774 = vperm.xlu0 %3773, %v2889
    %v3775 = vpop.permute.xlu0 %3774
    %3777 = vset.pattern.permute.xlu0 1
    %3778 = vperm.xlu0 %3777, %v2890
    %v3779 = vpop.permute.xlu0 %3778
    %3781 = vset.pattern.permute.xlu0 1
    %3782 = vperm.xlu0 %3781, %v2891
    %v3783 = vpop.permute.xlu0 %3782
    %3785 = vset.pattern.permute.xlu0 1
    %3786 = vperm.xlu0 %3785, %v2892
    %v3787 = vpop.permute.xlu0 %3786
    %3789 = vset.pattern.permute.xlu0 1
    %3790 = vperm.xlu0 %3789, %v2893
    %v3791 = vpop.permute.xlu0 %3790
    %3793 = vset.pattern.permute.xlu0 1
    %3794 = vperm.xlu0 %3793, %v2894
    %v3795 = vpop.permute.xlu0 %3794
    %3797 = vset.pattern.permute.xlu0 1
    %3798 = vperm.xlu0 %3797, %v2895
    %v3799 = vpop.permute.xlu0 %3798
    %3801 = vset.pattern.permute.xlu0 1
    %3802 = vperm.xlu0 %3801, %v2896
    %v3803 = vpop.permute.xlu0 %3802
    %3805 = vset.pattern.permute.xlu0 1
    %3806 = vperm.xlu0 %3805, %v2897
    %v3807 = vpop.permute.xlu0 %3806
    %3809 = vset.pattern.permute.xlu0 1
    %3810 = vperm.xlu0 %3809, %v2898
    %v3811 = vpop.permute.xlu0 %3810
    %3813 = vset.pattern.permute.xlu0 1
    %3814 = vperm.xlu0 %3813, %v2899
    %v3815 = vpop.permute.xlu0 %3814
    %3817 = vset.pattern.permute.xlu0 1
    %3818 = vperm.xlu0 %3817, %v2900
    %v3819 = vpop.permute.xlu0 %3818
    %3821 = vset.pattern.permute.xlu0 1
    %3822 = vperm.xlu0 %3821, %v2901
    %v3823 = vpop.permute.xlu0 %3822
    %3825 = vset.pattern.permute.xlu0 1
    %3826 = vperm.xlu0 %3825, %v2902
    %v3827 = vpop.permute.xlu0 %3826
    %3829 = vset.pattern.permute.xlu0 1
    %3830 = vperm.xlu0 %3829, %v2903
    %v3831 = vpop.permute.xlu0 %3830
    %3833 = vset.pattern.permute.xlu0 1
    %3834 = vperm.xlu0 %3833, %v2904
    %v3835 = vpop.permute.xlu0 %3834
    %3837 = vset.pattern.permute.xlu0 1
    %3838 = vperm.xlu0 %3837, %v2905
    %v3839 = vpop.permute.xlu0 %3838
    %3841 = vset.pattern.permute.xlu0 1
    %3842 = vperm.xlu0 %3841, %v2906
    %v3843 = vpop.permute.xlu0 %3842
    %3845 = vset.pattern.permute.xlu0 1
    %3846 = vperm.xlu0 %3845, %v2907
    %v3847 = vpop.permute.xlu0 %3846
    %3849 = vset.pattern.permute.xlu0 1
    %3850 = vperm.xlu0 %3849, %v2908
    %v3851 = vpop.permute.xlu0 %3850
    %3853 = vset.pattern.permute.xlu0 1
    %3854 = vperm.xlu0 %3853, %v2909
    %v3855 = vpop.permute.xlu0 %3854
    %3857 = vset.pattern.permute.xlu0 1
    %3858 = vperm.xlu0 %3857, %v2910
    %v3859 = vpop.permute.xlu0 %3858
    %3861 = vset.pattern.permute.xlu0 1
    %3862 = vperm.xlu0 %3861, %v2911
    %v3863 = vpop.permute.xlu0 %3862
    %3865 = vset.pattern.permute.xlu0 1
    %3866 = vperm.xlu0 %3865, %v2912
    %v3867 = vpop.permute.xlu0 %3866
    %3869 = vset.pattern.permute.xlu0 1
    %3870 = vperm.xlu0 %3869, %v2913
    %v3871 = vpop.permute.xlu0 %3870
    %3873 = vset.pattern.permute.xlu0 1
    %3874 = vperm.xlu0 %3873, %v2914
    %v3875 = vpop.permute.xlu0 %3874
    %3877 = vset.pattern.permute.xlu0 1
    %3878 = vperm.xlu0 %3877, %v2915
    %v3879 = vpop.permute.xlu0 %3878
    %3881 = vset.pattern.permute.xlu0 1
    %3882 = vperm.xlu0 %3881, %v2916
    %v3883 = vpop.permute.xlu0 %3882
    %3885 = vset.pattern.permute.xlu0 1
    %3886 = vperm.xlu0 %3885, %v2917
    %v3887 = vpop.permute.xlu0 %3886
    %3889 = vset.pattern.permute.xlu0 1
    %3890 = vperm.xlu0 %3889, %v2918
    %v3891 = vpop.permute.xlu0 %3890
    %3893 = vset.pattern.permute.xlu0 1
    %3894 = vperm.xlu0 %3893, %v2919
    %v3895 = vpop.permute.xlu0 %3894
    %3897 = vset.pattern.permute.xlu0 1
    %3898 = vperm.xlu0 %3897, %v2920
    %v3899 = vpop.permute.xlu0 %3898
    %3901 = vset.pattern.permute.xlu0 1
    %3902 = vperm.xlu0 %3901, %v2921
    %v3903 = vpop.permute.xlu0 %3902
    %3905 = vset.pattern.permute.xlu0 1
    %3906 = vperm.xlu0 %3905, %v2922
    %v3907 = vpop.permute.xlu0 %3906
    %3909 = vset.pattern.permute.xlu0 1
    %3910 = vperm.xlu0 %3909, %v2923
    %v3911 = vpop.permute.xlu0 %3910
    %3913 = vset.pattern.permute.xlu0 1
    %3914 = vperm.xlu0 %3913, %v2924
    %v3915 = vpop.permute.xlu0 %3914
    %3917 = vset.pattern.permute.xlu0 1
    %3918 = vperm.xlu0 %3917, %v2925
    %v3919 = vpop.permute.xlu0 %3918
    %3921 = vset.pattern.permute.xlu0 1
    %3922 = vperm.xlu0 %3921, %v2926
    %v3923 = vpop.permute.xlu0 %3922
    %3925 = vset.pattern.permute.xlu0 1
    %3926 = vperm.xlu0 %3925, %v2927
    %v3927 = vpop.permute.xlu0 %3926
    %3929 = vset.pattern.permute.xlu0 1
    %3930 = vperm.xlu0 %3929, %v2928
    %v3931 = vpop.permute.xlu0 %3930
    %3933 = vset.pattern.permute.xlu0 1
    %3934 = vperm.xlu0 %3933, %v2929
    %v3935 = vpop.permute.xlu0 %3934
    %3937 = vset.pattern.permute.xlu0 1
    %3938 = vperm.xlu0 %3937, %v2930
    %v3939 = vpop.permute.xlu0 %3938
    %3941 = vset.pattern.permute.xlu0 1
    %3942 = vperm.xlu0 %3941, %v2931
    %v3943 = vpop.permute.xlu0 %3942
    %3945 = vset.pattern.permute.xlu0 1
    %3946 = vperm.xlu0 %3945, %v2932
    %v3947 = vpop.permute.xlu0 %3946
    %3949 = vset.pattern.permute.xlu0 1
    %3950 = vperm.xlu0 %3949, %v2933
    %v3951 = vpop.permute.xlu0 %3950
    %3953 = vset.pattern.permute.xlu0 1
    %3954 = vperm.xlu0 %3953, %v2934
    %v3955 = vpop.permute.xlu0 %3954
    %3957 = vset.pattern.permute.xlu0 1
    %3958 = vperm.xlu0 %3957, %v2935
    %v3959 = vpop.permute.xlu0 %3958
    %3961 = vset.pattern.permute.xlu0 1
    %3962 = vperm.xlu0 %3961, %v2936
    %v3963 = vpop.permute.xlu0 %3962
    %3965 = vset.pattern.permute.xlu0 1
    %3966 = vperm.xlu0 %3965, %v2937
    %v3967 = vpop.permute.xlu0 %3966
    %3969 = vset.pattern.permute.xlu0 1
    %3970 = vperm.xlu0 %3969, %v2938
    %v3971 = vpop.permute.xlu0 %3970
    %3973 = vset.pattern.permute.xlu0 1
    %3974 = vperm.xlu0 %3973, %v2939
    %v3975 = vpop.permute.xlu0 %3974
    %3977 = vset.pattern.permute.xlu0 1
    %3978 = vperm.xlu0 %3977, %v2940
    %v3979 = vpop.permute.xlu0 %3978
    %3981 = vset.pattern.permute.xlu0 1
    %3982 = vperm.xlu0 %3981, %v2941
    %v3983 = vpop.permute.xlu0 %3982
    %3985 = vset.pattern.permute.xlu0 1
    %3986 = vperm.xlu0 %3985, %v2942
    %v3987 = vpop.permute.xlu0 %3986
    %3989 = vset.pattern.permute.xlu0 1
    %3990 = vperm.xlu0 %3989, %v2943
    %v3991 = vpop.permute.xlu0 %3990
    %3993 = vset.pattern.permute.xlu0 1
    %3994 = vperm.xlu0 %3993, %v2944
    %v3995 = vpop.permute.xlu0 %3994
    %3997 = vset.pattern.permute.xlu0 1
    %3998 = vperm.xlu0 %3997, %v2945
    %v3999 = vpop.permute.xlu0 %3998
    %4001 = vset.pattern.permute.xlu0 1
    %4002 = vperm.xlu0 %4001, %v2946
    %v4003 = vpop.permute.xlu0 %4002
    %4005 = vset.pattern.permute.xlu0 1
    %4006 = vperm.xlu0 %4005, %v2947
    %v4007 = vpop.permute.xlu0 %4006
    %4009 = vset.pattern.permute.xlu0 1
    %4010 = vperm.xlu0 %4009, %v2948
    %v4011 = vpop.permute.xlu0 %4010
    %4013 = vset.pattern.permute.xlu0 1
    %4014 = vperm.xlu0 %4013, %v2949
    %v4015 = vpop.permute.xlu0 %4014
    %4017 = vset.pattern.permute.xlu0 1
    %4018 = vperm.xlu0 %4017, %v2950
    %v4019 = vpop.permute.xlu0 %4018
    %4021 = vset.pattern.permute.xlu0 1
    %4022 = vperm.xlu0 %4021, %v2951
    %v4023 = vpop.permute.xlu0 %4022
    %4025 = vset.pattern.permute.xlu0 1
    %4026 = vperm.xlu0 %4025, %v2952
    %v4027 = vpop.permute.xlu0 %4026
    %4029 = vset.pattern.permute.xlu0 1
    %4030 = vperm.xlu0 %4029, %v2953
    %v4031 = vpop.permute.xlu0 %4030
    %4033 = vset.pattern.permute.xlu0 1
    %4034 = vperm.xlu0 %4033, %v2954
    %v4035 = vpop.permute.xlu0 %4034
    %4037 = vset.pattern.permute.xlu0 1
    %4038 = vperm.xlu0 %4037, %v2955
    %v4039 = vpop.permute.xlu0 %4038
    %4041 = vset.pattern.permute.xlu0 1
    %4042 = vperm.xlu0 %4041, %v2956
    %v4043 = vpop.permute.xlu0 %4042
    %4045 = vset.pattern.permute.xlu0 1
    %4046 = vperm.xlu0 %4045, %v2957
    %v4047 = vpop.permute.xlu0 %4046
    %4049 = vset.pattern.permute.xlu0 1
    %4050 = vperm.xlu0 %4049, %v2958
    %v4051 = vpop.permute.xlu0 %4050
    %4053 = vset.pattern.permute.xlu0 1
    %4054 = vperm.xlu0 %4053, %v2959
    %v4055 = vpop.permute.xlu0 %4054
    %4057 = vset.pattern.permute.xlu0 1
    %4058 = vperm.xlu0 %4057, %v2960
    %v4059 = vpop.permute.xlu0 %4058
    %4061 = vset.pattern.permute.xlu0 1
    %4062 = vperm.xlu0 %4061, %v2961
    %v4063 = vpop.permute.xlu0 %4062
    %4065 = vset.pattern.permute.xlu0 1
    %4066 = vperm.xlu0 %4065, %v2962
    %v4067 = vpop.permute.xlu0 %4066
    %4069 = vset.pattern.permute.xlu0 1
    %4070 = vperm.xlu0 %4069, %v2963
    %v4071 = vpop.permute.xlu0 %4070
    %4073 = vset.pattern.permute.xlu0 1
    %4074 = vperm.xlu0 %4073, %v2964
    %v4075 = vpop.permute.xlu0 %4074
    %4077 = vset.pattern.permute.xlu0 1
    %4078 = vperm.xlu0 %4077, %v2965
    %v4079 = vpop.permute.xlu0 %4078
    %4081 = vset.pattern.permute.xlu0 1
    %4082 = vperm.xlu0 %4081, %v2966
    %v4083 = vpop.permute.xlu0 %4082
    %4085 = vset.pattern.permute.xlu0 1
    %4086 = vperm.xlu0 %4085, %v2967
    %v4087 = vpop.permute.xlu0 %4086
    %4089 = vset.pattern.permute.xlu0 1
    %4090 = vperm.xlu0 %4089, %v2968
    %v4091 = vpop.permute.xlu0 %4090
    %4093 = vset.pattern.permute.xlu0 1
    %4094 = vperm.xlu0 %4093, %v2969
    %v4095 = vpop.permute.xlu0 %4094
    %4097 = vset.pattern.permute.xlu0 1
    %4098 = vperm.xlu0 %4097, %v2970
    %v4099 = vpop.permute.xlu0 %4098
    %4101 = vset.pattern.permute.xlu0 1
    %4102 = vperm.xlu0 %4101, %v2971
    %v4103 = vpop.permute.xlu0 %4102
    %4105 = vset.pattern.permute.xlu0 1
    %4106 = vperm.xlu0 %4105, %v2972
    %v4107 = vpop.permute.xlu0 %4106
    %4109 = vset.pattern.permute.xlu0 1
    %4110 = vperm.xlu0 %4109, %v2973
    %v4111 = vpop.permute.xlu0 %4110
    %4113 = vset.pattern.permute.xlu0 1
    %4114 = vperm.xlu0 %4113, %v2974
    %v4115 = vpop.permute.xlu0 %4114
    %4117 = vset.pattern.permute.xlu0 1
    %4118 = vperm.xlu0 %4117, %v2975
    %v4119 = vpop.permute.xlu0 %4118
    %4121 = vset.pattern.permute.xlu0 1
    %4122 = vperm.xlu0 %4121, %v2976
    %v4123 = vpop.permute.xlu0 %4122
    %4125 = vset.pattern.permute.xlu0 1
    %4126 = vperm.xlu0 %4125, %v2977
    %v4127 = vpop.permute.xlu0 %4126
    %4129 = vset.pattern.permute.xlu0 1
    %4130 = vperm.xlu0 %4129, %v2978
    %v4131 = vpop.permute.xlu0 %4130
    %4133 = vset.pattern.permute.xlu0 1
    %4134 = vperm.xlu0 %4133, %v2979
    %v4135 = vpop.permute.xlu0 %4134
    %v4137 = vsel %vm2983, %v2988, %v3627
    %v4138 = vsel %vm2984, %v2988, %v3627
    %v4139 = vsel %vm2983, %v2993, %v3631
    %v4140 = vsel %vm2984, %v2993, %v3631
    %v4141 = vsel %vm2983, %v2998, %v3635
    %v4142 = vsel %vm2984, %v2998, %v3635
    %v4143 = vsel %vm2983, %v3003, %v3639
    %v4144 = vsel %vm2984, %v3003, %v3639
    %v4145 = vsel %vm2983, %v3008, %v3643
    %v4146 = vsel %vm2984, %v3008, %v3643
    %v4147 = vsel %vm2983, %v3013, %v3647
    %v4148 = vsel %vm2984, %v3013, %v3647
    %v4149 = vsel %vm2983, %v3018, %v3651
    %v4150 = vsel %vm2984, %v3018, %v3651
    %v4151 = vsel %vm2983, %v3023, %v3655
    %v4152 = vsel %vm2984, %v3023, %v3655
    %v4153 = vsel %vm2983, %v3028, %v3659
    %v4154 = vsel %vm2984, %v3028, %v3659
    %v4155 = vsel %vm2983, %v3033, %v3663
    %v4156 = vsel %vm2984, %v3033, %v3663
    %v4157 = vsel %vm2983, %v3038, %v3667
    %v4158 = vsel %vm2984, %v3038, %v3667
    %v4159 = vsel %vm2983, %v3043, %v3671
    %v4160 = vsel %vm2984, %v3043, %v3671
    %v4161 = vsel %vm2983, %v3048, %v3675
    %v4162 = vsel %vm2984, %v3048, %v3675
    %v4163 = vsel %vm2983, %v3053, %v3679
    %v4164 = vsel %vm2984, %v3053, %v3679
    %v4165 = vsel %vm2983, %v3058, %v3683
    %v4166 = vsel %vm2984, %v3058, %v3683
    %v4167 = vsel %vm2983, %v3063, %v3687
    %v4168 = vsel %vm2984, %v3063, %v3687
    %v4169 = vsel %vm2983, %v3068, %v3691
    %v4170 = vsel %vm2984, %v3068, %v3691
    %v4171 = vsel %vm2983, %v3073, %v3695
    %v4172 = vsel %vm2984, %v3073, %v3695
    %v4173 = vsel %vm2983, %v3078, %v3699
    %v4174 = vsel %vm2984, %v3078, %v3699
    %v4175 = vsel %vm2983, %v3083, %v3703
    %v4176 = vsel %vm2984, %v3083, %v3703
    %v4177 = vsel %vm2983, %v3088, %v3707
    %v4178 = vsel %vm2984, %v3088, %v3707
    %v4179 = vsel %vm2983, %v3093, %v3711
    %v4180 = vsel %vm2984, %v3093, %v3711
    %v4181 = vsel %vm2983, %v3098, %v3715
    %v4182 = vsel %vm2984, %v3098, %v3715
    %v4183 = vsel %vm2983, %v3103, %v3719
    %v4184 = vsel %vm2984, %v3103, %v3719
    %v4185 = vsel %vm2983, %v3108, %v3723
    %v4186 = vsel %vm2984, %v3108, %v3723
    %v4187 = vsel %vm2983, %v3113, %v3727
    %v4188 = vsel %vm2984, %v3113, %v3727
    %v4189 = vsel %vm2983, %v3118, %v3731
    %v4190 = vsel %vm2984, %v3118, %v3731
    %v4191 = vsel %vm2983, %v3123, %v3735
    %v4192 = vsel %vm2984, %v3123, %v3735
    %v4193 = vsel %vm2983, %v3128, %v3739
    %v4194 = vsel %vm2984, %v3128, %v3739
    %v4195 = vsel %vm2983, %v3133, %v3743
    %v4196 = vsel %vm2984, %v3133, %v3743
    %v4197 = vsel %vm2983, %v3138, %v3747
    %v4198 = vsel %vm2984, %v3138, %v3747
    %v4199 = vsel %vm2983, %v3143, %v3751
    %v4200 = vsel %vm2984, %v3143, %v3751
    %v4201 = vsel %vm2983, %v3148, %v3755
    %v4202 = vsel %vm2984, %v3148, %v3755
    %v4203 = vsel %vm2983, %v3153, %v3759
    %v4204 = vsel %vm2984, %v3153, %v3759
    %v4205 = vsel %vm2983, %v3158, %v3763
    %v4206 = vsel %vm2984, %v3158, %v3763
    %v4207 = vsel %vm2983, %v3163, %v3767
    %v4208 = vsel %vm2984, %v3163, %v3767
    %v4209 = vsel %vm2983, %v3168, %v3771
    %v4210 = vsel %vm2984, %v3168, %v3771
    %v4211 = vsel %vm2983, %v3173, %v3775
    %v4212 = vsel %vm2984, %v3173, %v3775
    %v4213 = vsel %vm2983, %v3178, %v3779
    %v4214 = vsel %vm2984, %v3178, %v3779
    %v4215 = vsel %vm2983, %v3183, %v3783
    %v4216 = vsel %vm2984, %v3183, %v3783
    %v4217 = vsel %vm2983, %v3188, %v3787
    %v4218 = vsel %vm2984, %v3188, %v3787
    %v4219 = vsel %vm2983, %v3193, %v3791
    %v4220 = vsel %vm2984, %v3193, %v3791
    %v4221 = vsel %vm2983, %v3198, %v3795
    %v4222 = vsel %vm2984, %v3198, %v3795
    %v4223 = vsel %vm2983, %v3203, %v3799
    %v4224 = vsel %vm2984, %v3203, %v3799
    %v4225 = vsel %vm2983, %v3208, %v3803
    %v4226 = vsel %vm2984, %v3208, %v3803
    %v4227 = vsel %vm2983, %v3213, %v3807
    %v4228 = vsel %vm2984, %v3213, %v3807
    %v4229 = vsel %vm2983, %v3218, %v3811
    %v4230 = vsel %vm2984, %v3218, %v3811
    %v4231 = vsel %vm2983, %v3223, %v3815
    %v4232 = vsel %vm2984, %v3223, %v3815
    %v4233 = vsel %vm2983, %v3228, %v3819
    %v4234 = vsel %vm2984, %v3228, %v3819
    %v4235 = vsel %vm2983, %v3233, %v3823
    %v4236 = vsel %vm2984, %v3233, %v3823
    %v4237 = vsel %vm2983, %v3238, %v3827
    %v4238 = vsel %vm2984, %v3238, %v3827
    %v4239 = vsel %vm2983, %v3243, %v3831
    %v4240 = vsel %vm2984, %v3243, %v3831
    %v4241 = vsel %vm2983, %v3248, %v3835
    %v4242 = vsel %vm2984, %v3248, %v3835
    %v4243 = vsel %vm2983, %v3253, %v3839
    %v4244 = vsel %vm2984, %v3253, %v3839
    %v4245 = vsel %vm2983, %v3258, %v3843
    %v4246 = vsel %vm2984, %v3258, %v3843
    %v4247 = vsel %vm2983, %v3263, %v3847
    %v4248 = vsel %vm2984, %v3263, %v3847
    %v4249 = vsel %vm2983, %v3268, %v3851
    %v4250 = vsel %vm2984, %v3268, %v3851
    %v4251 = vsel %vm2983, %v3273, %v3855
    %v4252 = vsel %vm2984, %v3273, %v3855
    %v4253 = vsel %vm2983, %v3278, %v3859
    %v4254 = vsel %vm2984, %v3278, %v3859
    %v4255 = vsel %vm2983, %v3283, %v3863
    %v4256 = vsel %vm2984, %v3283, %v3863
    %v4257 = vsel %vm2983, %v3288, %v3867
    %v4258 = vsel %vm2984, %v3288, %v3867
    %v4259 = vsel %vm2983, %v3293, %v3871
    %v4260 = vsel %vm2984, %v3293, %v3871
    %v4261 = vsel %vm2983, %v3298, %v3875
    %v4262 = vsel %vm2984, %v3298, %v3875
    %v4263 = vsel %vm2983, %v3303, %v3879
    %v4264 = vsel %vm2984, %v3303, %v3879
    %v4265 = vsel %vm2983, %v3308, %v3883
    %v4266 = vsel %vm2984, %v3308, %v3883
    %v4267 = vsel %vm2983, %v3313, %v3887
    %v4268 = vsel %vm2984, %v3313, %v3887
    %v4269 = vsel %vm2983, %v3318, %v3891
    %v4270 = vsel %vm2984, %v3318, %v3891
    %v4271 = vsel %vm2983, %v3323, %v3895
    %v4272 = vsel %vm2984, %v3323, %v3895
    %v4273 = vsel %vm2983, %v3328, %v3899
    %v4274 = vsel %vm2984, %v3328, %v3899
    %v4275 = vsel %vm2983, %v3333, %v3903
    %v4276 = vsel %vm2984, %v3333, %v3903
    %v4277 = vsel %vm2983, %v3338, %v3907
    %v4278 = vsel %vm2984, %v3338, %v3907
    %v4279 = vsel %vm2983, %v3343, %v3911
    %v4280 = vsel %vm2984, %v3343, %v3911
    %v4281 = vsel %vm2983, %v3348, %v3915
    %v4282 = vsel %vm2984, %v3348, %v3915
    %v4283 = vsel %vm2983, %v3353, %v3919
    %v4284 = vsel %vm2984, %v3353, %v3919
    %v4285 = vsel %vm2983, %v3358, %v3923
    %v4286 = vsel %vm2984, %v3358, %v3923
    %v4287 = vsel %vm2983, %v3363, %v3927
    %v4288 = vsel %vm2984, %v3363, %v3927
    %v4289 = vsel %vm2983, %v3368, %v3931
    %v4290 = vsel %vm2984, %v3368, %v3931
    %v4291 = vsel %vm2983, %v3373, %v3935
    %v4292 = vsel %vm2984, %v3373, %v3935
    %v4293 = vsel %vm2983, %v3378, %v3939
    %v4294 = vsel %vm2984, %v3378, %v3939
    %v4295 = vsel %vm2983, %v3383, %v3943
    %v4296 = vsel %vm2984, %v3383, %v3943
    %v4297 = vsel %vm2983, %v3388, %v3947
    %v4298 = vsel %vm2984, %v3388, %v3947
    %v4299 = vsel %vm2983, %v3393, %v3951
    %v4300 = vsel %vm2984, %v3393, %v3951
    %v4301 = vsel %vm2983, %v3398, %v3955
    %v4302 = vsel %vm2984, %v3398, %v3955
    %v4303 = vsel %vm2983, %v3403, %v3959
    %v4304 = vsel %vm2984, %v3403, %v3959
    %v4305 = vsel %vm2983, %v3408, %v3963
    %v4306 = vsel %vm2984, %v3408, %v3963
    %v4307 = vsel %vm2983, %v3413, %v3967
    %v4308 = vsel %vm2984, %v3413, %v3967
    %v4309 = vsel %vm2983, %v3418, %v3971
    %v4310 = vsel %vm2984, %v3418, %v3971
    %v4311 = vsel %vm2983, %v3423, %v3975
    %v4312 = vsel %vm2984, %v3423, %v3975
    %v4313 = vsel %vm2983, %v3428, %v3979
    %v4314 = vsel %vm2984, %v3428, %v3979
    %v4315 = vsel %vm2983, %v3433, %v3983
    %v4316 = vsel %vm2984, %v3433, %v3983
    %v4317 = vsel %vm2983, %v3438, %v3987
    %v4318 = vsel %vm2984, %v3438, %v3987
    %v4319 = vsel %vm2983, %v3443, %v3991
    %v4320 = vsel %vm2984, %v3443, %v3991
    %v4321 = vsel %vm2983, %v3448, %v3995
    %v4322 = vsel %vm2984, %v3448, %v3995
    %v4323 = vsel %vm2983, %v3453, %v3999
    %v4324 = vsel %vm2984, %v3453, %v3999
    %v4325 = vsel %vm2983, %v3458, %v4003
    %v4326 = vsel %vm2984, %v3458, %v4003
    %v4327 = vsel %vm2983, %v3463, %v4007
    %v4328 = vsel %vm2984, %v3463, %v4007
    %v4329 = vsel %vm2983, %v3468, %v4011
    %v4330 = vsel %vm2984, %v3468, %v4011
    %v4331 = vsel %vm2983, %v3473, %v4015
    %v4332 = vsel %vm2984, %v3473, %v4015
    %v4333 = vsel %vm2983, %v3478, %v4019
    %v4334 = vsel %vm2984, %v3478, %v4019
    %v4335 = vsel %vm2983, %v3483, %v4023
    %v4336 = vsel %vm2984, %v3483, %v4023
    %v4337 = vsel %vm2983, %v3488, %v4027
    %v4338 = vsel %vm2984, %v3488, %v4027
    %v4339 = vsel %vm2983, %v3493, %v4031
    %v4340 = vsel %vm2984, %v3493, %v4031
    %v4341 = vsel %vm2983, %v3498, %v4035
    %v4342 = vsel %vm2984, %v3498, %v4035
    %v4343 = vsel %vm2983, %v3503, %v4039
    %v4344 = vsel %vm2984, %v3503, %v4039
    %v4345 = vsel %vm2983, %v3508, %v4043
    %v4346 = vsel %vm2984, %v3508, %v4043
    %v4347 = vsel %vm2983, %v3513, %v4047
    %v4348 = vsel %vm2984, %v3513, %v4047
    %v4349 = vsel %vm2983, %v3518, %v4051
    %v4350 = vsel %vm2984, %v3518, %v4051
    %v4351 = vsel %vm2983, %v3523, %v4055
    %v4352 = vsel %vm2984, %v3523, %v4055
    %v4353 = vsel %vm2983, %v3528, %v4059
    %v4354 = vsel %vm2984, %v3528, %v4059
    %v4355 = vsel %vm2983, %v3533, %v4063
    %v4356 = vsel %vm2984, %v3533, %v4063
    %v4357 = vsel %vm2983, %v3538, %v4067
    %v4358 = vsel %vm2984, %v3538, %v4067
    %v4359 = vsel %vm2983, %v3543, %v4071
    %v4360 = vsel %vm2984, %v3543, %v4071
    %v4361 = vsel %vm2983, %v3548, %v4075
    %v4362 = vsel %vm2984, %v3548, %v4075
    %v4363 = vsel %vm2983, %v3553, %v4079
    %v4364 = vsel %vm2984, %v3553, %v4079
    %v4365 = vsel %vm2983, %v3558, %v4083
    %v4366 = vsel %vm2984, %v3558, %v4083
    %v4367 = vsel %vm2983, %v3563, %v4087
    %v4368 = vsel %vm2984, %v3563, %v4087
    %v4369 = vsel %vm2983, %v3568, %v4091
    %v4370 = vsel %vm2984, %v3568, %v4091
    %v4371 = vsel %vm2983, %v3573, %v4095
    %v4372 = vsel %vm2984, %v3573, %v4095
    %v4373 = vsel %vm2983, %v3578, %v4099
    %v4374 = vsel %vm2984, %v3578, %v4099
    %v4375 = vsel %vm2983, %v3583, %v4103
    %v4376 = vsel %vm2984, %v3583, %v4103
    %v4377 = vsel %vm2983, %v3588, %v4107
    %v4378 = vsel %vm2984, %v3588, %v4107
    %v4379 = vsel %vm2983, %v3593, %v4111
    %v4380 = vsel %vm2984, %v3593, %v4111
    %v4381 = vsel %vm2983, %v3598, %v4115
    %v4382 = vsel %vm2984, %v3598, %v4115
    %v4383 = vsel %vm2983, %v3603, %v4119
    %v4384 = vsel %vm2984, %v3603, %v4119
    %v4385 = vsel %vm2983, %v3608, %v4123
    %v4386 = vsel %vm2984, %v3608, %v4123
    %v4387 = vsel %vm2983, %v3613, %v4127
    %v4388 = vsel %vm2984, %v3613, %v4127
    %v4389 = vsel %vm2983, %v3618, %v4131
    %v4390 = vsel %vm2984, %v3618, %v4131
    %v4391 = vsel %vm2983, %v3623, %v4135
    %v4392 = vsel %vm2984, %v3623, %v4135
    %v4393 = vmul.f32 %v2596, %v4137
    %v4394 = vmul.f32 %v2597, %v4138
    %v4395 = vmul.f32 %v2598, %v4139
    %v4396 = vmul.f32 %v2599, %v4140
    %v4397 = vmul.f32 %v2600, %v4141
    %v4398 = vmul.f32 %v2601, %v4142
    %v4399 = vmul.f32 %v2602, %v4143
    %v4400 = vmul.f32 %v2603, %v4144
    %v4401 = vmul.f32 %v2604, %v4145
    %v4402 = vmul.f32 %v2605, %v4146
    %v4403 = vmul.f32 %v2606, %v4147
    %v4404 = vmul.f32 %v2607, %v4148
    %v4405 = vmul.f32 %v2608, %v4149
    %v4406 = vmul.f32 %v2609, %v4150
    %v4407 = vmul.f32 %v2610, %v4151
    %v4408 = vmul.f32 %v2611, %v4152
    %v4409 = vmul.f32 %v2612, %v4153
    %v4410 = vmul.f32 %v2613, %v4154
    %v4411 = vmul.f32 %v2614, %v4155
    %v4412 = vmul.f32 %v2615, %v4156
    %v4413 = vmul.f32 %v2616, %v4157
    %v4414 = vmul.f32 %v2617, %v4158
    %v4415 = vmul.f32 %v2618, %v4159
    %v4416 = vmul.f32 %v2619, %v4160
    %v4417 = vmul.f32 %v2620, %v4161
    %v4418 = vmul.f32 %v2621, %v4162
    %v4419 = vmul.f32 %v2622, %v4163
    %v4420 = vmul.f32 %v2623, %v4164
    %v4421 = vmul.f32 %v2624, %v4165
    %v4422 = vmul.f32 %v2625, %v4166
    %v4423 = vmul.f32 %v2626, %v4167
    %v4424 = vmul.f32 %v2627, %v4168
    %v4425 = vmul.f32 %v2628, %v4169
    %v4426 = vmul.f32 %v2629, %v4170
    %v4427 = vmul.f32 %v2630, %v4171
    %v4428 = vmul.f32 %v2631, %v4172
    %v4429 = vmul.f32 %v2632, %v4173
    %v4430 = vmul.f32 %v2633, %v4174
    %v4431 = vmul.f32 %v2634, %v4175
    %v4432 = vmul.f32 %v2635, %v4176
    %v4433 = vmul.f32 %v2636, %v4177
    %v4434 = vmul.f32 %v2637, %v4178
    %v4435 = vmul.f32 %v2638, %v4179
    %v4436 = vmul.f32 %v2639, %v4180
    %v4437 = vmul.f32 %v2640, %v4181
    %v4438 = vmul.f32 %v2641, %v4182
    %v4439 = vmul.f32 %v2642, %v4183
    %v4440 = vmul.f32 %v2643, %v4184
    %v4441 = vmul.f32 %v2644, %v4185
    %v4442 = vmul.f32 %v2645, %v4186
    %v4443 = vmul.f32 %v2646, %v4187
    %v4444 = vmul.f32 %v2647, %v4188
    %v4445 = vmul.f32 %v2648, %v4189
    %v4446 = vmul.f32 %v2649, %v4190
    %v4447 = vmul.f32 %v2650, %v4191
    %v4448 = vmul.f32 %v2651, %v4192
    %v4449 = vmul.f32 %v2652, %v4193
    %v4450 = vmul.f32 %v2653, %v4194
    %v4451 = vmul.f32 %v2654, %v4195
    %v4452 = vmul.f32 %v2655, %v4196
    %v4453 = vmul.f32 %v2656, %v4197
    %v4454 = vmul.f32 %v2657, %v4198
    %v4455 = vmul.f32 %v2658, %v4199
    %v4456 = vmul.f32 %v2659, %v4200
    %v4457 = vmul.f32 %v2660, %v4201
    %v4458 = vmul.f32 %v2661, %v4202
    %v4459 = vmul.f32 %v2662, %v4203
    %v4460 = vmul.f32 %v2663, %v4204
    %v4461 = vmul.f32 %v2664, %v4205
    %v4462 = vmul.f32 %v2665, %v4206
    %v4463 = vmul.f32 %v2666, %v4207
    %v4464 = vmul.f32 %v2667, %v4208
    %v4465 = vmul.f32 %v2668, %v4209
    %v4466 = vmul.f32 %v2669, %v4210
    %v4467 = vmul.f32 %v2670, %v4211
    %v4468 = vmul.f32 %v2671, %v4212
    %v4469 = vmul.f32 %v2672, %v4213
    %v4470 = vmul.f32 %v2673, %v4214
    %v4471 = vmul.f32 %v2674, %v4215
    %v4472 = vmul.f32 %v2675, %v4216
    %v4473 = vmul.f32 %v2676, %v4217
    %v4474 = vmul.f32 %v2677, %v4218
    %v4475 = vmul.f32 %v2678, %v4219
    %v4476 = vmul.f32 %v2679, %v4220
    %v4477 = vmul.f32 %v2680, %v4221
    %v4478 = vmul.f32 %v2681, %v4222
    %v4479 = vmul.f32 %v2682, %v4223
    %v4480 = vmul.f32 %v2683, %v4224
    %v4481 = vmul.f32 %v2684, %v4225
    %v4482 = vmul.f32 %v2685, %v4226
    %v4483 = vmul.f32 %v2686, %v4227
    %v4484 = vmul.f32 %v2687, %v4228
    %v4485 = vmul.f32 %v2688, %v4229
    %v4486 = vmul.f32 %v2689, %v4230
    %v4487 = vmul.f32 %v2690, %v4231
    %v4488 = vmul.f32 %v2691, %v4232
    %v4489 = vmul.f32 %v2692, %v4233
    %v4490 = vmul.f32 %v2693, %v4234
    %v4491 = vmul.f32 %v2694, %v4235
    %v4492 = vmul.f32 %v2695, %v4236
    %v4493 = vmul.f32 %v2696, %v4237
    %v4494 = vmul.f32 %v2697, %v4238
    %v4495 = vmul.f32 %v2698, %v4239
    %v4496 = vmul.f32 %v2699, %v4240
    %v4497 = vmul.f32 %v2700, %v4241
    %v4498 = vmul.f32 %v2701, %v4242
    %v4499 = vmul.f32 %v2702, %v4243
    %v4500 = vmul.f32 %v2703, %v4244
    %v4501 = vmul.f32 %v2704, %v4245
    %v4502 = vmul.f32 %v2705, %v4246
    %v4503 = vmul.f32 %v2706, %v4247
    %v4504 = vmul.f32 %v2707, %v4248
    %v4505 = vmul.f32 %v2708, %v4249
    %v4506 = vmul.f32 %v2709, %v4250
    %v4507 = vmul.f32 %v2710, %v4251
    %v4508 = vmul.f32 %v2711, %v4252
    %v4509 = vmul.f32 %v2712, %v4253
    %v4510 = vmul.f32 %v2713, %v4254
    %v4511 = vmul.f32 %v2714, %v4255
    %v4512 = vmul.f32 %v2715, %v4256
    %v4513 = vmul.f32 %v2716, %v4257
    %v4514 = vmul.f32 %v2717, %v4258
    %v4515 = vmul.f32 %v2718, %v4259
    %v4516 = vmul.f32 %v2719, %v4260
    %v4517 = vmul.f32 %v2720, %v4261
    %v4518 = vmul.f32 %v2721, %v4262
    %v4519 = vmul.f32 %v2722, %v4263
    %v4520 = vmul.f32 %v2723, %v4264
    %v4521 = vmul.f32 %v2724, %v4265
    %v4522 = vmul.f32 %v2725, %v4266
    %v4523 = vmul.f32 %v2726, %v4267
    %v4524 = vmul.f32 %v2727, %v4268
    %v4525 = vmul.f32 %v2728, %v4269
    %v4526 = vmul.f32 %v2729, %v4270
    %v4527 = vmul.f32 %v2730, %v4271
    %v4528 = vmul.f32 %v2731, %v4272
    %v4529 = vmul.f32 %v2732, %v4273
    %v4530 = vmul.f32 %v2733, %v4274
    %v4531 = vmul.f32 %v2734, %v4275
    %v4532 = vmul.f32 %v2735, %v4276
    %v4533 = vmul.f32 %v2736, %v4277
    %v4534 = vmul.f32 %v2737, %v4278
    %v4535 = vmul.f32 %v2738, %v4279
    %v4536 = vmul.f32 %v2739, %v4280
    %v4537 = vmul.f32 %v2740, %v4281
    %v4538 = vmul.f32 %v2741, %v4282
    %v4539 = vmul.f32 %v2742, %v4283
    %v4540 = vmul.f32 %v2743, %v4284
    %v4541 = vmul.f32 %v2744, %v4285
    %v4542 = vmul.f32 %v2745, %v4286
    %v4543 = vmul.f32 %v2746, %v4287
    %v4544 = vmul.f32 %v2747, %v4288
    %v4545 = vmul.f32 %v2748, %v4289
    %v4546 = vmul.f32 %v2749, %v4290
    %v4547 = vmul.f32 %v2750, %v4291
    %v4548 = vmul.f32 %v2751, %v4292
    %v4549 = vmul.f32 %v2752, %v4293
    %v4550 = vmul.f32 %v2753, %v4294
    %v4551 = vmul.f32 %v2754, %v4295
    %v4552 = vmul.f32 %v2755, %v4296
    %v4553 = vmul.f32 %v2756, %v4297
    %v4554 = vmul.f32 %v2757, %v4298
    %v4555 = vmul.f32 %v2758, %v4299
    %v4556 = vmul.f32 %v2759, %v4300
    %v4557 = vmul.f32 %v2760, %v4301
    %v4558 = vmul.f32 %v2761, %v4302
    %v4559 = vmul.f32 %v2762, %v4303
    %v4560 = vmul.f32 %v2763, %v4304
    %v4561 = vmul.f32 %v2764, %v4305
    %v4562 = vmul.f32 %v2765, %v4306
    %v4563 = vmul.f32 %v2766, %v4307
    %v4564 = vmul.f32 %v2767, %v4308
    %v4565 = vmul.f32 %v2768, %v4309
    %v4566 = vmul.f32 %v2769, %v4310
    %v4567 = vmul.f32 %v2770, %v4311
    %v4568 = vmul.f32 %v2771, %v4312
    %v4569 = vmul.f32 %v2772, %v4313
    %v4570 = vmul.f32 %v2773, %v4314
    %v4571 = vmul.f32 %v2774, %v4315
    %v4572 = vmul.f32 %v2775, %v4316
    %v4573 = vmul.f32 %v2776, %v4317
    %v4574 = vmul.f32 %v2777, %v4318
    %v4575 = vmul.f32 %v2778, %v4319
    %v4576 = vmul.f32 %v2779, %v4320
    %v4577 = vmul.f32 %v2780, %v4321
    %v4578 = vmul.f32 %v2781, %v4322
    %v4579 = vmul.f32 %v2782, %v4323
    %v4580 = vmul.f32 %v2783, %v4324
    %v4581 = vmul.f32 %v2784, %v4325
    %v4582 = vmul.f32 %v2785, %v4326
    %v4583 = vmul.f32 %v2786, %v4327
    %v4584 = vmul.f32 %v2787, %v4328
    %v4585 = vmul.f32 %v2788, %v4329
    %v4586 = vmul.f32 %v2789, %v4330
    %v4587 = vmul.f32 %v2790, %v4331
    %v4588 = vmul.f32 %v2791, %v4332
    %v4589 = vmul.f32 %v2792, %v4333
    %v4590 = vmul.f32 %v2793, %v4334
    %v4591 = vmul.f32 %v2794, %v4335
    %v4592 = vmul.f32 %v2795, %v4336
    %v4593 = vmul.f32 %v2796, %v4337
    %v4594 = vmul.f32 %v2797, %v4338
    %v4595 = vmul.f32 %v2798, %v4339
    %v4596 = vmul.f32 %v2799, %v4340
    %v4597 = vmul.f32 %v2800, %v4341
    %v4598 = vmul.f32 %v2801, %v4342
    %v4599 = vmul.f32 %v2802, %v4343
    %v4600 = vmul.f32 %v2803, %v4344
    %v4601 = vmul.f32 %v2804, %v4345
    %v4602 = vmul.f32 %v2805, %v4346
    %v4603 = vmul.f32 %v2806, %v4347
    %v4604 = vmul.f32 %v2807, %v4348
    %v4605 = vmul.f32 %v2808, %v4349
    %v4606 = vmul.f32 %v2809, %v4350
    %v4607 = vmul.f32 %v2810, %v4351
    %v4608 = vmul.f32 %v2811, %v4352
    %v4609 = vmul.f32 %v2812, %v4353
    %v4610 = vmul.f32 %v2813, %v4354
    %v4611 = vmul.f32 %v2814, %v4355
    %v4612 = vmul.f32 %v2815, %v4356
    %v4613 = vmul.f32 %v2816, %v4357
    %v4614 = vmul.f32 %v2817, %v4358
    %v4615 = vmul.f32 %v2818, %v4359
    %v4616 = vmul.f32 %v2819, %v4360
    %v4617 = vmul.f32 %v2820, %v4361
    %v4618 = vmul.f32 %v2821, %v4362
    %v4619 = vmul.f32 %v2822, %v4363
    %v4620 = vmul.f32 %v2823, %v4364
    %v4621 = vmul.f32 %v2824, %v4365
    %v4622 = vmul.f32 %v2825, %v4366
    %v4623 = vmul.f32 %v2826, %v4367
    %v4624 = vmul.f32 %v2827, %v4368
    %v4625 = vmul.f32 %v2828, %v4369
    %v4626 = vmul.f32 %v2829, %v4370
    %v4627 = vmul.f32 %v2830, %v4371
    %v4628 = vmul.f32 %v2831, %v4372
    %v4629 = vmul.f32 %v2832, %v4373
    %v4630 = vmul.f32 %v2833, %v4374
    %v4631 = vmul.f32 %v2834, %v4375
    %v4632 = vmul.f32 %v2835, %v4376
    %v4633 = vmul.f32 %v2836, %v4377
    %v4634 = vmul.f32 %v2837, %v4378
    %v4635 = vmul.f32 %v2838, %v4379
    %v4636 = vmul.f32 %v2839, %v4380
    %v4637 = vmul.f32 %v2840, %v4381
    %v4638 = vmul.f32 %v2841, %v4382
    %v4639 = vmul.f32 %v2842, %v4383
    %v4640 = vmul.f32 %v2843, %v4384
    %v4641 = vmul.f32 %v2844, %v4385
    %v4642 = vmul.f32 %v2845, %v4386
    %v4643 = vmul.f32 %v2846, %v4387
    %v4644 = vmul.f32 %v2847, %v4388
    %v4645 = vmul.f32 %v2848, %v4389
    %v4646 = vmul.f32 %v2849, %v4390
    %v4647 = vmul.f32 %v2850, %v4391
    %v4648 = vmul.f32 %v2851, %v4392
    %v4649 = vrot.slane %v4393, 4
    %v4650 = vadd.f32 %v4393, %v4649
    %v4651 = vrot.slane %v4650, 2
    %v4652 = vadd.f32 %v4650, %v4651
    %v4653 = vrot.slane %v4652, 1
    %v4654 = vadd.f32 %v4652, %v4653
    %v4655 = vrot.slane %v4394, 4
    %v4656 = vadd.f32 %v4394, %v4655
    %v4657 = vrot.slane %v4656, 2
    %v4658 = vadd.f32 %v4656, %v4657
    %v4659 = vrot.slane %v4658, 1
    %v4660 = vadd.f32 %v4658, %v4659
    %v4661 = vrot.slane %v4395, 4
    %v4662 = vadd.f32 %v4395, %v4661
    %v4663 = vrot.slane %v4662, 2
    %v4664 = vadd.f32 %v4662, %v4663
    %v4665 = vrot.slane %v4664, 1
    %v4666 = vadd.f32 %v4664, %v4665
    %v4667 = vrot.slane %v4396, 4
    %v4668 = vadd.f32 %v4396, %v4667
    %v4669 = vrot.slane %v4668, 2
    %v4670 = vadd.f32 %v4668, %v4669
    %v4671 = vrot.slane %v4670, 1
    %v4672 = vadd.f32 %v4670, %v4671
    %v4673 = vrot.slane %v4397, 4
    %v4674 = vadd.f32 %v4397, %v4673
    %v4675 = vrot.slane %v4674, 2
    %v4676 = vadd.f32 %v4674, %v4675
    %v4677 = vrot.slane %v4676, 1
    %v4678 = vadd.f32 %v4676, %v4677
    %v4679 = vrot.slane %v4398, 4
    %v4680 = vadd.f32 %v4398, %v4679
    %v4681 = vrot.slane %v4680, 2
    %v4682 = vadd.f32 %v4680, %v4681
    %v4683 = vrot.slane %v4682, 1
    %v4684 = vadd.f32 %v4682, %v4683
    %v4685 = vrot.slane %v4399, 4
    %v4686 = vadd.f32 %v4399, %v4685
    %v4687 = vrot.slane %v4686, 2
    %v4688 = vadd.f32 %v4686, %v4687
    %v4689 = vrot.slane %v4688, 1
    %v4690 = vadd.f32 %v4688, %v4689
    %v4691 = vrot.slane %v4400, 4
    %v4692 = vadd.f32 %v4400, %v4691
    %v4693 = vrot.slane %v4692, 2
    %v4694 = vadd.f32 %v4692, %v4693
    %v4695 = vrot.slane %v4694, 1
    %v4696 = vadd.f32 %v4694, %v4695
    %v4697 = vrot.slane %v4401, 4
    %v4698 = vadd.f32 %v4401, %v4697
    %v4699 = vrot.slane %v4698, 2
    %v4700 = vadd.f32 %v4698, %v4699
    %v4701 = vrot.slane %v4700, 1
    %v4702 = vadd.f32 %v4700, %v4701
    %v4703 = vrot.slane %v4402, 4
    %v4704 = vadd.f32 %v4402, %v4703
    %v4705 = vrot.slane %v4704, 2
    %v4706 = vadd.f32 %v4704, %v4705
    %v4707 = vrot.slane %v4706, 1
    %v4708 = vadd.f32 %v4706, %v4707
    %v4709 = vrot.slane %v4403, 4
    %v4710 = vadd.f32 %v4403, %v4709
    %v4711 = vrot.slane %v4710, 2
    %v4712 = vadd.f32 %v4710, %v4711
    %v4713 = vrot.slane %v4712, 1
    %v4714 = vadd.f32 %v4712, %v4713
    %v4715 = vrot.slane %v4404, 4
    %v4716 = vadd.f32 %v4404, %v4715
    %v4717 = vrot.slane %v4716, 2
    %v4718 = vadd.f32 %v4716, %v4717
    %v4719 = vrot.slane %v4718, 1
    %v4720 = vadd.f32 %v4718, %v4719
    %v4721 = vrot.slane %v4405, 4
    %v4722 = vadd.f32 %v4405, %v4721
    %v4723 = vrot.slane %v4722, 2
    %v4724 = vadd.f32 %v4722, %v4723
    %v4725 = vrot.slane %v4724, 1
    %v4726 = vadd.f32 %v4724, %v4725
    %v4727 = vrot.slane %v4406, 4
    %v4728 = vadd.f32 %v4406, %v4727
    %v4729 = vrot.slane %v4728, 2
    %v4730 = vadd.f32 %v4728, %v4729
    %v4731 = vrot.slane %v4730, 1
    %v4732 = vadd.f32 %v4730, %v4731
    %v4733 = vrot.slane %v4407, 4
    %v4734 = vadd.f32 %v4407, %v4733
    %v4735 = vrot.slane %v4734, 2
    %v4736 = vadd.f32 %v4734, %v4735
    %v4737 = vrot.slane %v4736, 1
    %v4738 = vadd.f32 %v4736, %v4737
    %v4739 = vrot.slane %v4408, 4
    %v4740 = vadd.f32 %v4408, %v4739
    %v4741 = vrot.slane %v4740, 2
    %v4742 = vadd.f32 %v4740, %v4741
    %v4743 = vrot.slane %v4742, 1
    %v4744 = vadd.f32 %v4742, %v4743
    %v4745 = vrot.slane %v4409, 4
    %v4746 = vadd.f32 %v4409, %v4745
    %v4747 = vrot.slane %v4746, 2
    %v4748 = vadd.f32 %v4746, %v4747
    %v4749 = vrot.slane %v4748, 1
    %v4750 = vadd.f32 %v4748, %v4749
    %v4751 = vrot.slane %v4410, 4
    %v4752 = vadd.f32 %v4410, %v4751
    %v4753 = vrot.slane %v4752, 2
    %v4754 = vadd.f32 %v4752, %v4753
    %v4755 = vrot.slane %v4754, 1
    %v4756 = vadd.f32 %v4754, %v4755
    %v4757 = vrot.slane %v4411, 4
    %v4758 = vadd.f32 %v4411, %v4757
    %v4759 = vrot.slane %v4758, 2
    %v4760 = vadd.f32 %v4758, %v4759
    %v4761 = vrot.slane %v4760, 1
    %v4762 = vadd.f32 %v4760, %v4761
    %v4763 = vrot.slane %v4412, 4
    %v4764 = vadd.f32 %v4412, %v4763
    %v4765 = vrot.slane %v4764, 2
    %v4766 = vadd.f32 %v4764, %v4765
    %v4767 = vrot.slane %v4766, 1
    %v4768 = vadd.f32 %v4766, %v4767
    %v4769 = vrot.slane %v4413, 4
    %v4770 = vadd.f32 %v4413, %v4769
    %v4771 = vrot.slane %v4770, 2
    %v4772 = vadd.f32 %v4770, %v4771
    %v4773 = vrot.slane %v4772, 1
    %v4774 = vadd.f32 %v4772, %v4773
    %v4775 = vrot.slane %v4414, 4
    %v4776 = vadd.f32 %v4414, %v4775
    %v4777 = vrot.slane %v4776, 2
    %v4778 = vadd.f32 %v4776, %v4777
    %v4779 = vrot.slane %v4778, 1
    %v4780 = vadd.f32 %v4778, %v4779
    %v4781 = vrot.slane %v4415, 4
    %v4782 = vadd.f32 %v4415, %v4781
    %v4783 = vrot.slane %v4782, 2
    %v4784 = vadd.f32 %v4782, %v4783
    %v4785 = vrot.slane %v4784, 1
    %v4786 = vadd.f32 %v4784, %v4785
    %v4787 = vrot.slane %v4416, 4
    %v4788 = vadd.f32 %v4416, %v4787
    %v4789 = vrot.slane %v4788, 2
    %v4790 = vadd.f32 %v4788, %v4789
    %v4791 = vrot.slane %v4790, 1
    %v4792 = vadd.f32 %v4790, %v4791
    %v4793 = vrot.slane %v4417, 4
    %v4794 = vadd.f32 %v4417, %v4793
    %v4795 = vrot.slane %v4794, 2
    %v4796 = vadd.f32 %v4794, %v4795
    %v4797 = vrot.slane %v4796, 1
    %v4798 = vadd.f32 %v4796, %v4797
    %v4799 = vrot.slane %v4418, 4
    %v4800 = vadd.f32 %v4418, %v4799
    %v4801 = vrot.slane %v4800, 2
    %v4802 = vadd.f32 %v4800, %v4801
    %v4803 = vrot.slane %v4802, 1
    %v4804 = vadd.f32 %v4802, %v4803
    %v4805 = vrot.slane %v4419, 4
    %v4806 = vadd.f32 %v4419, %v4805
    %v4807 = vrot.slane %v4806, 2
    %v4808 = vadd.f32 %v4806, %v4807
    %v4809 = vrot.slane %v4808, 1
    %v4810 = vadd.f32 %v4808, %v4809
    %v4811 = vrot.slane %v4420, 4
    %v4812 = vadd.f32 %v4420, %v4811
    %v4813 = vrot.slane %v4812, 2
    %v4814 = vadd.f32 %v4812, %v4813
    %v4815 = vrot.slane %v4814, 1
    %v4816 = vadd.f32 %v4814, %v4815
    %v4817 = vrot.slane %v4421, 4
    %v4818 = vadd.f32 %v4421, %v4817
    %v4819 = vrot.slane %v4818, 2
    %v4820 = vadd.f32 %v4818, %v4819
    %v4821 = vrot.slane %v4820, 1
    %v4822 = vadd.f32 %v4820, %v4821
    %v4823 = vrot.slane %v4422, 4
    %v4824 = vadd.f32 %v4422, %v4823
    %v4825 = vrot.slane %v4824, 2
    %v4826 = vadd.f32 %v4824, %v4825
    %v4827 = vrot.slane %v4826, 1
    %v4828 = vadd.f32 %v4826, %v4827
    %v4829 = vrot.slane %v4423, 4
    %v4830 = vadd.f32 %v4423, %v4829
    %v4831 = vrot.slane %v4830, 2
    %v4832 = vadd.f32 %v4830, %v4831
    %v4833 = vrot.slane %v4832, 1
    %v4834 = vadd.f32 %v4832, %v4833
    %v4835 = vrot.slane %v4424, 4
    %v4836 = vadd.f32 %v4424, %v4835
    %v4837 = vrot.slane %v4836, 2
    %v4838 = vadd.f32 %v4836, %v4837
    %v4839 = vrot.slane %v4838, 1
    %v4840 = vadd.f32 %v4838, %v4839
    %v4841 = vrot.slane %v4425, 4
    %v4842 = vadd.f32 %v4425, %v4841
    %v4843 = vrot.slane %v4842, 2
    %v4844 = vadd.f32 %v4842, %v4843
    %v4845 = vrot.slane %v4844, 1
    %v4846 = vadd.f32 %v4844, %v4845
    %v4847 = vrot.slane %v4426, 4
    %v4848 = vadd.f32 %v4426, %v4847
    %v4849 = vrot.slane %v4848, 2
    %v4850 = vadd.f32 %v4848, %v4849
    %v4851 = vrot.slane %v4850, 1
    %v4852 = vadd.f32 %v4850, %v4851
    %v4853 = vrot.slane %v4427, 4
    %v4854 = vadd.f32 %v4427, %v4853
    %v4855 = vrot.slane %v4854, 2
    %v4856 = vadd.f32 %v4854, %v4855
    %v4857 = vrot.slane %v4856, 1
    %v4858 = vadd.f32 %v4856, %v4857
    %v4859 = vrot.slane %v4428, 4
    %v4860 = vadd.f32 %v4428, %v4859
    %v4861 = vrot.slane %v4860, 2
    %v4862 = vadd.f32 %v4860, %v4861
    %v4863 = vrot.slane %v4862, 1
    %v4864 = vadd.f32 %v4862, %v4863
    %v4865 = vrot.slane %v4429, 4
    %v4866 = vadd.f32 %v4429, %v4865
    %v4867 = vrot.slane %v4866, 2
    %v4868 = vadd.f32 %v4866, %v4867
    %v4869 = vrot.slane %v4868, 1
    %v4870 = vadd.f32 %v4868, %v4869
    %v4871 = vrot.slane %v4430, 4
    %v4872 = vadd.f32 %v4430, %v4871
    %v4873 = vrot.slane %v4872, 2
    %v4874 = vadd.f32 %v4872, %v4873
    %v4875 = vrot.slane %v4874, 1
    %v4876 = vadd.f32 %v4874, %v4875
    %v4877 = vrot.slane %v4431, 4
    %v4878 = vadd.f32 %v4431, %v4877
    %v4879 = vrot.slane %v4878, 2
    %v4880 = vadd.f32 %v4878, %v4879
    %v4881 = vrot.slane %v4880, 1
    %v4882 = vadd.f32 %v4880, %v4881
    %v4883 = vrot.slane %v4432, 4
    %v4884 = vadd.f32 %v4432, %v4883
    %v4885 = vrot.slane %v4884, 2
    %v4886 = vadd.f32 %v4884, %v4885
    %v4887 = vrot.slane %v4886, 1
    %v4888 = vadd.f32 %v4886, %v4887
    %v4889 = vrot.slane %v4433, 4
    %v4890 = vadd.f32 %v4433, %v4889
    %v4891 = vrot.slane %v4890, 2
    %v4892 = vadd.f32 %v4890, %v4891
    %v4893 = vrot.slane %v4892, 1
    %v4894 = vadd.f32 %v4892, %v4893
    %v4895 = vrot.slane %v4434, 4
    %v4896 = vadd.f32 %v4434, %v4895
    %v4897 = vrot.slane %v4896, 2
    %v4898 = vadd.f32 %v4896, %v4897
    %v4899 = vrot.slane %v4898, 1
    %v4900 = vadd.f32 %v4898, %v4899
    %v4901 = vrot.slane %v4435, 4
    %v4902 = vadd.f32 %v4435, %v4901
    %v4903 = vrot.slane %v4902, 2
    %v4904 = vadd.f32 %v4902, %v4903
    %v4905 = vrot.slane %v4904, 1
    %v4906 = vadd.f32 %v4904, %v4905
    %v4907 = vrot.slane %v4436, 4
    %v4908 = vadd.f32 %v4436, %v4907
    %v4909 = vrot.slane %v4908, 2
    %v4910 = vadd.f32 %v4908, %v4909
    %v4911 = vrot.slane %v4910, 1
    %v4912 = vadd.f32 %v4910, %v4911
    %v4913 = vrot.slane %v4437, 4
    %v4914 = vadd.f32 %v4437, %v4913
    %v4915 = vrot.slane %v4914, 2
    %v4916 = vadd.f32 %v4914, %v4915
    %v4917 = vrot.slane %v4916, 1
    %v4918 = vadd.f32 %v4916, %v4917
    %v4919 = vrot.slane %v4438, 4
    %v4920 = vadd.f32 %v4438, %v4919
    %v4921 = vrot.slane %v4920, 2
    %v4922 = vadd.f32 %v4920, %v4921
    %v4923 = vrot.slane %v4922, 1
    %v4924 = vadd.f32 %v4922, %v4923
    %v4925 = vrot.slane %v4439, 4
    %v4926 = vadd.f32 %v4439, %v4925
    %v4927 = vrot.slane %v4926, 2
    %v4928 = vadd.f32 %v4926, %v4927
    %v4929 = vrot.slane %v4928, 1
    %v4930 = vadd.f32 %v4928, %v4929
    %v4931 = vrot.slane %v4440, 4
    %v4932 = vadd.f32 %v4440, %v4931
    %v4933 = vrot.slane %v4932, 2
    %v4934 = vadd.f32 %v4932, %v4933
    %v4935 = vrot.slane %v4934, 1
    %v4936 = vadd.f32 %v4934, %v4935
    %v4937 = vrot.slane %v4441, 4
    %v4938 = vadd.f32 %v4441, %v4937
    %v4939 = vrot.slane %v4938, 2
    %v4940 = vadd.f32 %v4938, %v4939
    %v4941 = vrot.slane %v4940, 1
    %v4942 = vadd.f32 %v4940, %v4941
    %v4943 = vrot.slane %v4442, 4
    %v4944 = vadd.f32 %v4442, %v4943
    %v4945 = vrot.slane %v4944, 2
    %v4946 = vadd.f32 %v4944, %v4945
    %v4947 = vrot.slane %v4946, 1
    %v4948 = vadd.f32 %v4946, %v4947
    %v4949 = vrot.slane %v4443, 4
    %v4950 = vadd.f32 %v4443, %v4949
    %v4951 = vrot.slane %v4950, 2
    %v4952 = vadd.f32 %v4950, %v4951
    %v4953 = vrot.slane %v4952, 1
    %v4954 = vadd.f32 %v4952, %v4953
    %v4955 = vrot.slane %v4444, 4
    %v4956 = vadd.f32 %v4444, %v4955
    %v4957 = vrot.slane %v4956, 2
    %v4958 = vadd.f32 %v4956, %v4957
    %v4959 = vrot.slane %v4958, 1
    %v4960 = vadd.f32 %v4958, %v4959
    %v4961 = vrot.slane %v4445, 4
    %v4962 = vadd.f32 %v4445, %v4961
    %v4963 = vrot.slane %v4962, 2
    %v4964 = vadd.f32 %v4962, %v4963
    %v4965 = vrot.slane %v4964, 1
    %v4966 = vadd.f32 %v4964, %v4965
    %v4967 = vrot.slane %v4446, 4
    %v4968 = vadd.f32 %v4446, %v4967
    %v4969 = vrot.slane %v4968, 2
    %v4970 = vadd.f32 %v4968, %v4969
    %v4971 = vrot.slane %v4970, 1
    %v4972 = vadd.f32 %v4970, %v4971
    %v4973 = vrot.slane %v4447, 4
    %v4974 = vadd.f32 %v4447, %v4973
    %v4975 = vrot.slane %v4974, 2
    %v4976 = vadd.f32 %v4974, %v4975
    %v4977 = vrot.slane %v4976, 1
    %v4978 = vadd.f32 %v4976, %v4977
    %v4979 = vrot.slane %v4448, 4
    %v4980 = vadd.f32 %v4448, %v4979
    %v4981 = vrot.slane %v4980, 2
    %v4982 = vadd.f32 %v4980, %v4981
    %v4983 = vrot.slane %v4982, 1
    %v4984 = vadd.f32 %v4982, %v4983
    %v4985 = vrot.slane %v4449, 4
    %v4986 = vadd.f32 %v4449, %v4985
    %v4987 = vrot.slane %v4986, 2
    %v4988 = vadd.f32 %v4986, %v4987
    %v4989 = vrot.slane %v4988, 1
    %v4990 = vadd.f32 %v4988, %v4989
    %v4991 = vrot.slane %v4450, 4
    %v4992 = vadd.f32 %v4450, %v4991
    %v4993 = vrot.slane %v4992, 2
    %v4994 = vadd.f32 %v4992, %v4993
    %v4995 = vrot.slane %v4994, 1
    %v4996 = vadd.f32 %v4994, %v4995
    %v4997 = vrot.slane %v4451, 4
    %v4998 = vadd.f32 %v4451, %v4997
    %v4999 = vrot.slane %v4998, 2
    %v5000 = vadd.f32 %v4998, %v4999
    %v5001 = vrot.slane %v5000, 1
    %v5002 = vadd.f32 %v5000, %v5001
    %v5003 = vrot.slane %v4452, 4
    %v5004 = vadd.f32 %v4452, %v5003
    %v5005 = vrot.slane %v5004, 2
    %v5006 = vadd.f32 %v5004, %v5005
    %v5007 = vrot.slane %v5006, 1
    %v5008 = vadd.f32 %v5006, %v5007
    %v5009 = vrot.slane %v4453, 4
    %v5010 = vadd.f32 %v4453, %v5009
    %v5011 = vrot.slane %v5010, 2
    %v5012 = vadd.f32 %v5010, %v5011
    %v5013 = vrot.slane %v5012, 1
    %v5014 = vadd.f32 %v5012, %v5013
    %v5015 = vrot.slane %v4454, 4
    %v5016 = vadd.f32 %v4454, %v5015
    %v5017 = vrot.slane %v5016, 2
    %v5018 = vadd.f32 %v5016, %v5017
    %v5019 = vrot.slane %v5018, 1
    %v5020 = vadd.f32 %v5018, %v5019
    %v5021 = vrot.slane %v4455, 4
    %v5022 = vadd.f32 %v4455, %v5021
    %v5023 = vrot.slane %v5022, 2
    %v5024 = vadd.f32 %v5022, %v5023
    %v5025 = vrot.slane %v5024, 1
    %v5026 = vadd.f32 %v5024, %v5025
    %v5027 = vrot.slane %v4456, 4
    %v5028 = vadd.f32 %v4456, %v5027
    %v5029 = vrot.slane %v5028, 2
    %v5030 = vadd.f32 %v5028, %v5029
    %v5031 = vrot.slane %v5030, 1
    %v5032 = vadd.f32 %v5030, %v5031
    %v5033 = vrot.slane %v4457, 4
    %v5034 = vadd.f32 %v4457, %v5033
    %v5035 = vrot.slane %v5034, 2
    %v5036 = vadd.f32 %v5034, %v5035
    %v5037 = vrot.slane %v5036, 1
    %v5038 = vadd.f32 %v5036, %v5037
    %v5039 = vrot.slane %v4458, 4
    %v5040 = vadd.f32 %v4458, %v5039
    %v5041 = vrot.slane %v5040, 2
    %v5042 = vadd.f32 %v5040, %v5041
    %v5043 = vrot.slane %v5042, 1
    %v5044 = vadd.f32 %v5042, %v5043
    %v5045 = vrot.slane %v4459, 4
    %v5046 = vadd.f32 %v4459, %v5045
    %v5047 = vrot.slane %v5046, 2
    %v5048 = vadd.f32 %v5046, %v5047
    %v5049 = vrot.slane %v5048, 1
    %v5050 = vadd.f32 %v5048, %v5049
    %v5051 = vrot.slane %v4460, 4
    %v5052 = vadd.f32 %v4460, %v5051
    %v5053 = vrot.slane %v5052, 2
    %v5054 = vadd.f32 %v5052, %v5053
    %v5055 = vrot.slane %v5054, 1
    %v5056 = vadd.f32 %v5054, %v5055
    %v5057 = vrot.slane %v4461, 4
    %v5058 = vadd.f32 %v4461, %v5057
    %v5059 = vrot.slane %v5058, 2
    %v5060 = vadd.f32 %v5058, %v5059
    %v5061 = vrot.slane %v5060, 1
    %v5062 = vadd.f32 %v5060, %v5061
    %v5063 = vrot.slane %v4462, 4
    %v5064 = vadd.f32 %v4462, %v5063
    %v5065 = vrot.slane %v5064, 2
    %v5066 = vadd.f32 %v5064, %v5065
    %v5067 = vrot.slane %v5066, 1
    %v5068 = vadd.f32 %v5066, %v5067
    %v5069 = vrot.slane %v4463, 4
    %v5070 = vadd.f32 %v4463, %v5069
    %v5071 = vrot.slane %v5070, 2
    %v5072 = vadd.f32 %v5070, %v5071
    %v5073 = vrot.slane %v5072, 1
    %v5074 = vadd.f32 %v5072, %v5073
    %v5075 = vrot.slane %v4464, 4
    %v5076 = vadd.f32 %v4464, %v5075
    %v5077 = vrot.slane %v5076, 2
    %v5078 = vadd.f32 %v5076, %v5077
    %v5079 = vrot.slane %v5078, 1
    %v5080 = vadd.f32 %v5078, %v5079
    %v5081 = vrot.slane %v4465, 4
    %v5082 = vadd.f32 %v4465, %v5081
    %v5083 = vrot.slane %v5082, 2
    %v5084 = vadd.f32 %v5082, %v5083
    %v5085 = vrot.slane %v5084, 1
    %v5086 = vadd.f32 %v5084, %v5085
    %v5087 = vrot.slane %v4466, 4
    %v5088 = vadd.f32 %v4466, %v5087
    %v5089 = vrot.slane %v5088, 2
    %v5090 = vadd.f32 %v5088, %v5089
    %v5091 = vrot.slane %v5090, 1
    %v5092 = vadd.f32 %v5090, %v5091
    %v5093 = vrot.slane %v4467, 4
    %v5094 = vadd.f32 %v4467, %v5093
    %v5095 = vrot.slane %v5094, 2
    %v5096 = vadd.f32 %v5094, %v5095
    %v5097 = vrot.slane %v5096, 1
    %v5098 = vadd.f32 %v5096, %v5097
    %v5099 = vrot.slane %v4468, 4
    %v5100 = vadd.f32 %v4468, %v5099
    %v5101 = vrot.slane %v5100, 2
    %v5102 = vadd.f32 %v5100, %v5101
    %v5103 = vrot.slane %v5102, 1
    %v5104 = vadd.f32 %v5102, %v5103
    %v5105 = vrot.slane %v4469, 4
    %v5106 = vadd.f32 %v4469, %v5105
    %v5107 = vrot.slane %v5106, 2
    %v5108 = vadd.f32 %v5106, %v5107
    %v5109 = vrot.slane %v5108, 1
    %v5110 = vadd.f32 %v5108, %v5109
    %v5111 = vrot.slane %v4470, 4
    %v5112 = vadd.f32 %v4470, %v5111
    %v5113 = vrot.slane %v5112, 2
    %v5114 = vadd.f32 %v5112, %v5113
    %v5115 = vrot.slane %v5114, 1
    %v5116 = vadd.f32 %v5114, %v5115
    %v5117 = vrot.slane %v4471, 4
    %v5118 = vadd.f32 %v4471, %v5117
    %v5119 = vrot.slane %v5118, 2
    %v5120 = vadd.f32 %v5118, %v5119
    %v5121 = vrot.slane %v5120, 1
    %v5122 = vadd.f32 %v5120, %v5121
    %v5123 = vrot.slane %v4472, 4
    %v5124 = vadd.f32 %v4472, %v5123
    %v5125 = vrot.slane %v5124, 2
    %v5126 = vadd.f32 %v5124, %v5125
    %v5127 = vrot.slane %v5126, 1
    %v5128 = vadd.f32 %v5126, %v5127
    %v5129 = vrot.slane %v4473, 4
    %v5130 = vadd.f32 %v4473, %v5129
    %v5131 = vrot.slane %v5130, 2
    %v5132 = vadd.f32 %v5130, %v5131
    %v5133 = vrot.slane %v5132, 1
    %v5134 = vadd.f32 %v5132, %v5133
    %v5135 = vrot.slane %v4474, 4
    %v5136 = vadd.f32 %v4474, %v5135
    %v5137 = vrot.slane %v5136, 2
    %v5138 = vadd.f32 %v5136, %v5137
    %v5139 = vrot.slane %v5138, 1
    %v5140 = vadd.f32 %v5138, %v5139
    %v5141 = vrot.slane %v4475, 4
    %v5142 = vadd.f32 %v4475, %v5141
    %v5143 = vrot.slane %v5142, 2
    %v5144 = vadd.f32 %v5142, %v5143
    %v5145 = vrot.slane %v5144, 1
    %v5146 = vadd.f32 %v5144, %v5145
    %v5147 = vrot.slane %v4476, 4
    %v5148 = vadd.f32 %v4476, %v5147
    %v5149 = vrot.slane %v5148, 2
    %v5150 = vadd.f32 %v5148, %v5149
    %v5151 = vrot.slane %v5150, 1
    %v5152 = vadd.f32 %v5150, %v5151
    %v5153 = vrot.slane %v4477, 4
    %v5154 = vadd.f32 %v4477, %v5153
    %v5155 = vrot.slane %v5154, 2
    %v5156 = vadd.f32 %v5154, %v5155
    %v5157 = vrot.slane %v5156, 1
    %v5158 = vadd.f32 %v5156, %v5157
    %v5159 = vrot.slane %v4478, 4
    %v5160 = vadd.f32 %v4478, %v5159
    %v5161 = vrot.slane %v5160, 2
    %v5162 = vadd.f32 %v5160, %v5161
    %v5163 = vrot.slane %v5162, 1
    %v5164 = vadd.f32 %v5162, %v5163
    %v5165 = vrot.slane %v4479, 4
    %v5166 = vadd.f32 %v4479, %v5165
    %v5167 = vrot.slane %v5166, 2
    %v5168 = vadd.f32 %v5166, %v5167
    %v5169 = vrot.slane %v5168, 1
    %v5170 = vadd.f32 %v5168, %v5169
    %v5171 = vrot.slane %v4480, 4
    %v5172 = vadd.f32 %v4480, %v5171
    %v5173 = vrot.slane %v5172, 2
    %v5174 = vadd.f32 %v5172, %v5173
    %v5175 = vrot.slane %v5174, 1
    %v5176 = vadd.f32 %v5174, %v5175
    %v5177 = vrot.slane %v4481, 4
    %v5178 = vadd.f32 %v4481, %v5177
    %v5179 = vrot.slane %v5178, 2
    %v5180 = vadd.f32 %v5178, %v5179
    %v5181 = vrot.slane %v5180, 1
    %v5182 = vadd.f32 %v5180, %v5181
    %v5183 = vrot.slane %v4482, 4
    %v5184 = vadd.f32 %v4482, %v5183
    %v5185 = vrot.slane %v5184, 2
    %v5186 = vadd.f32 %v5184, %v5185
    %v5187 = vrot.slane %v5186, 1
    %v5188 = vadd.f32 %v5186, %v5187
    %v5189 = vrot.slane %v4483, 4
    %v5190 = vadd.f32 %v4483, %v5189
    %v5191 = vrot.slane %v5190, 2
    %v5192 = vadd.f32 %v5190, %v5191
    %v5193 = vrot.slane %v5192, 1
    %v5194 = vadd.f32 %v5192, %v5193
    %v5195 = vrot.slane %v4484, 4
    %v5196 = vadd.f32 %v4484, %v5195
    %v5197 = vrot.slane %v5196, 2
    %v5198 = vadd.f32 %v5196, %v5197
    %v5199 = vrot.slane %v5198, 1
    %v5200 = vadd.f32 %v5198, %v5199
    %v5201 = vrot.slane %v4485, 4
    %v5202 = vadd.f32 %v4485, %v5201
    %v5203 = vrot.slane %v5202, 2
    %v5204 = vadd.f32 %v5202, %v5203
    %v5205 = vrot.slane %v5204, 1
    %v5206 = vadd.f32 %v5204, %v5205
    %v5207 = vrot.slane %v4486, 4
    %v5208 = vadd.f32 %v4486, %v5207
    %v5209 = vrot.slane %v5208, 2
    %v5210 = vadd.f32 %v5208, %v5209
    %v5211 = vrot.slane %v5210, 1
    %v5212 = vadd.f32 %v5210, %v5211
    %v5213 = vrot.slane %v4487, 4
    %v5214 = vadd.f32 %v4487, %v5213
    %v5215 = vrot.slane %v5214, 2
    %v5216 = vadd.f32 %v5214, %v5215
    %v5217 = vrot.slane %v5216, 1
    %v5218 = vadd.f32 %v5216, %v5217
    %v5219 = vrot.slane %v4488, 4
    %v5220 = vadd.f32 %v4488, %v5219
    %v5221 = vrot.slane %v5220, 2
    %v5222 = vadd.f32 %v5220, %v5221
    %v5223 = vrot.slane %v5222, 1
    %v5224 = vadd.f32 %v5222, %v5223
    %v5225 = vrot.slane %v4489, 4
    %v5226 = vadd.f32 %v4489, %v5225
    %v5227 = vrot.slane %v5226, 2
    %v5228 = vadd.f32 %v5226, %v5227
    %v5229 = vrot.slane %v5228, 1
    %v5230 = vadd.f32 %v5228, %v5229
    %v5231 = vrot.slane %v4490, 4
    %v5232 = vadd.f32 %v4490, %v5231
    %v5233 = vrot.slane %v5232, 2
    %v5234 = vadd.f32 %v5232, %v5233
    %v5235 = vrot.slane %v5234, 1
    %v5236 = vadd.f32 %v5234, %v5235
    %v5237 = vrot.slane %v4491, 4
    %v5238 = vadd.f32 %v4491, %v5237
    %v5239 = vrot.slane %v5238, 2
    %v5240 = vadd.f32 %v5238, %v5239
    %v5241 = vrot.slane %v5240, 1
    %v5242 = vadd.f32 %v5240, %v5241
    %v5243 = vrot.slane %v4492, 4
    %v5244 = vadd.f32 %v4492, %v5243
    %v5245 = vrot.slane %v5244, 2
    %v5246 = vadd.f32 %v5244, %v5245
    %v5247 = vrot.slane %v5246, 1
    %v5248 = vadd.f32 %v5246, %v5247
    %v5249 = vrot.slane %v4493, 4
    %v5250 = vadd.f32 %v4493, %v5249
    %v5251 = vrot.slane %v5250, 2
    %v5252 = vadd.f32 %v5250, %v5251
    %v5253 = vrot.slane %v5252, 1
    %v5254 = vadd.f32 %v5252, %v5253
    %v5255 = vrot.slane %v4494, 4
    %v5256 = vadd.f32 %v4494, %v5255
    %v5257 = vrot.slane %v5256, 2
    %v5258 = vadd.f32 %v5256, %v5257
    %v5259 = vrot.slane %v5258, 1
    %v5260 = vadd.f32 %v5258, %v5259
    %v5261 = vrot.slane %v4495, 4
    %v5262 = vadd.f32 %v4495, %v5261
    %v5263 = vrot.slane %v5262, 2
    %v5264 = vadd.f32 %v5262, %v5263
    %v5265 = vrot.slane %v5264, 1
    %v5266 = vadd.f32 %v5264, %v5265
    %v5267 = vrot.slane %v4496, 4
    %v5268 = vadd.f32 %v4496, %v5267
    %v5269 = vrot.slane %v5268, 2
    %v5270 = vadd.f32 %v5268, %v5269
    %v5271 = vrot.slane %v5270, 1
    %v5272 = vadd.f32 %v5270, %v5271
    %v5273 = vrot.slane %v4497, 4
    %v5274 = vadd.f32 %v4497, %v5273
    %v5275 = vrot.slane %v5274, 2
    %v5276 = vadd.f32 %v5274, %v5275
    %v5277 = vrot.slane %v5276, 1
    %v5278 = vadd.f32 %v5276, %v5277
    %v5279 = vrot.slane %v4498, 4
    %v5280 = vadd.f32 %v4498, %v5279
    %v5281 = vrot.slane %v5280, 2
    %v5282 = vadd.f32 %v5280, %v5281
    %v5283 = vrot.slane %v5282, 1
    %v5284 = vadd.f32 %v5282, %v5283
    %v5285 = vrot.slane %v4499, 4
    %v5286 = vadd.f32 %v4499, %v5285
    %v5287 = vrot.slane %v5286, 2
    %v5288 = vadd.f32 %v5286, %v5287
    %v5289 = vrot.slane %v5288, 1
    %v5290 = vadd.f32 %v5288, %v5289
    %v5291 = vrot.slane %v4500, 4
    %v5292 = vadd.f32 %v4500, %v5291
    %v5293 = vrot.slane %v5292, 2
    %v5294 = vadd.f32 %v5292, %v5293
    %v5295 = vrot.slane %v5294, 1
    %v5296 = vadd.f32 %v5294, %v5295
    %v5297 = vrot.slane %v4501, 4
    %v5298 = vadd.f32 %v4501, %v5297
    %v5299 = vrot.slane %v5298, 2
    %v5300 = vadd.f32 %v5298, %v5299
    %v5301 = vrot.slane %v5300, 1
    %v5302 = vadd.f32 %v5300, %v5301
    %v5303 = vrot.slane %v4502, 4
    %v5304 = vadd.f32 %v4502, %v5303
    %v5305 = vrot.slane %v5304, 2
    %v5306 = vadd.f32 %v5304, %v5305
    %v5307 = vrot.slane %v5306, 1
    %v5308 = vadd.f32 %v5306, %v5307
    %v5309 = vrot.slane %v4503, 4
    %v5310 = vadd.f32 %v4503, %v5309
    %v5311 = vrot.slane %v5310, 2
    %v5312 = vadd.f32 %v5310, %v5311
    %v5313 = vrot.slane %v5312, 1
    %v5314 = vadd.f32 %v5312, %v5313
    %v5315 = vrot.slane %v4504, 4
    %v5316 = vadd.f32 %v4504, %v5315
    %v5317 = vrot.slane %v5316, 2
    %v5318 = vadd.f32 %v5316, %v5317
    %v5319 = vrot.slane %v5318, 1
    %v5320 = vadd.f32 %v5318, %v5319
    %v5321 = vrot.slane %v4505, 4
    %v5322 = vadd.f32 %v4505, %v5321
    %v5323 = vrot.slane %v5322, 2
    %v5324 = vadd.f32 %v5322, %v5323
    %v5325 = vrot.slane %v5324, 1
    %v5326 = vadd.f32 %v5324, %v5325
    %v5327 = vrot.slane %v4506, 4
    %v5328 = vadd.f32 %v4506, %v5327
    %v5329 = vrot.slane %v5328, 2
    %v5330 = vadd.f32 %v5328, %v5329
    %v5331 = vrot.slane %v5330, 1
    %v5332 = vadd.f32 %v5330, %v5331
    %v5333 = vrot.slane %v4507, 4
    %v5334 = vadd.f32 %v4507, %v5333
    %v5335 = vrot.slane %v5334, 2
    %v5336 = vadd.f32 %v5334, %v5335
    %v5337 = vrot.slane %v5336, 1
    %v5338 = vadd.f32 %v5336, %v5337
    %v5339 = vrot.slane %v4508, 4
    %v5340 = vadd.f32 %v4508, %v5339
    %v5341 = vrot.slane %v5340, 2
    %v5342 = vadd.f32 %v5340, %v5341
    %v5343 = vrot.slane %v5342, 1
    %v5344 = vadd.f32 %v5342, %v5343
    %v5345 = vrot.slane %v4509, 4
    %v5346 = vadd.f32 %v4509, %v5345
    %v5347 = vrot.slane %v5346, 2
    %v5348 = vadd.f32 %v5346, %v5347
    %v5349 = vrot.slane %v5348, 1
    %v5350 = vadd.f32 %v5348, %v5349
    %v5351 = vrot.slane %v4510, 4
    %v5352 = vadd.f32 %v4510, %v5351
    %v5353 = vrot.slane %v5352, 2
    %v5354 = vadd.f32 %v5352, %v5353
    %v5355 = vrot.slane %v5354, 1
    %v5356 = vadd.f32 %v5354, %v5355
    %v5357 = vrot.slane %v4511, 4
    %v5358 = vadd.f32 %v4511, %v5357
    %v5359 = vrot.slane %v5358, 2
    %v5360 = vadd.f32 %v5358, %v5359
    %v5361 = vrot.slane %v5360, 1
    %v5362 = vadd.f32 %v5360, %v5361
    %v5363 = vrot.slane %v4512, 4
    %v5364 = vadd.f32 %v4512, %v5363
    %v5365 = vrot.slane %v5364, 2
    %v5366 = vadd.f32 %v5364, %v5365
    %v5367 = vrot.slane %v5366, 1
    %v5368 = vadd.f32 %v5366, %v5367
    %v5369 = vrot.slane %v4513, 4
    %v5370 = vadd.f32 %v4513, %v5369
    %v5371 = vrot.slane %v5370, 2
    %v5372 = vadd.f32 %v5370, %v5371
    %v5373 = vrot.slane %v5372, 1
    %v5374 = vadd.f32 %v5372, %v5373
    %v5375 = vrot.slane %v4514, 4
    %v5376 = vadd.f32 %v4514, %v5375
    %v5377 = vrot.slane %v5376, 2
    %v5378 = vadd.f32 %v5376, %v5377
    %v5379 = vrot.slane %v5378, 1
    %v5380 = vadd.f32 %v5378, %v5379
    %v5381 = vrot.slane %v4515, 4
    %v5382 = vadd.f32 %v4515, %v5381
    %v5383 = vrot.slane %v5382, 2
    %v5384 = vadd.f32 %v5382, %v5383
    %v5385 = vrot.slane %v5384, 1
    %v5386 = vadd.f32 %v5384, %v5385
    %v5387 = vrot.slane %v4516, 4
    %v5388 = vadd.f32 %v4516, %v5387
    %v5389 = vrot.slane %v5388, 2
    %v5390 = vadd.f32 %v5388, %v5389
    %v5391 = vrot.slane %v5390, 1
    %v5392 = vadd.f32 %v5390, %v5391
    %v5393 = vrot.slane %v4517, 4
    %v5394 = vadd.f32 %v4517, %v5393
    %v5395 = vrot.slane %v5394, 2
    %v5396 = vadd.f32 %v5394, %v5395
    %v5397 = vrot.slane %v5396, 1
    %v5398 = vadd.f32 %v5396, %v5397
    %v5399 = vrot.slane %v4518, 4
    %v5400 = vadd.f32 %v4518, %v5399
    %v5401 = vrot.slane %v5400, 2
    %v5402 = vadd.f32 %v5400, %v5401
    %v5403 = vrot.slane %v5402, 1
    %v5404 = vadd.f32 %v5402, %v5403
    %v5405 = vrot.slane %v4519, 4
    %v5406 = vadd.f32 %v4519, %v5405
    %v5407 = vrot.slane %v5406, 2
    %v5408 = vadd.f32 %v5406, %v5407
    %v5409 = vrot.slane %v5408, 1
    %v5410 = vadd.f32 %v5408, %v5409
    %v5411 = vrot.slane %v4520, 4
    %v5412 = vadd.f32 %v4520, %v5411
    %v5413 = vrot.slane %v5412, 2
    %v5414 = vadd.f32 %v5412, %v5413
    %v5415 = vrot.slane %v5414, 1
    %v5416 = vadd.f32 %v5414, %v5415
    %v5417 = vrot.slane %v4521, 4
    %v5418 = vadd.f32 %v4521, %v5417
    %v5419 = vrot.slane %v5418, 2
    %v5420 = vadd.f32 %v5418, %v5419
    %v5421 = vrot.slane %v5420, 1
    %v5422 = vadd.f32 %v5420, %v5421
    %v5423 = vrot.slane %v4522, 4
    %v5424 = vadd.f32 %v4522, %v5423
    %v5425 = vrot.slane %v5424, 2
    %v5426 = vadd.f32 %v5424, %v5425
    %v5427 = vrot.slane %v5426, 1
    %v5428 = vadd.f32 %v5426, %v5427
    %v5429 = vrot.slane %v4523, 4
    %v5430 = vadd.f32 %v4523, %v5429
    %v5431 = vrot.slane %v5430, 2
    %v5432 = vadd.f32 %v5430, %v5431
    %v5433 = vrot.slane %v5432, 1
    %v5434 = vadd.f32 %v5432, %v5433
    %v5435 = vrot.slane %v4524, 4
    %v5436 = vadd.f32 %v4524, %v5435
    %v5437 = vrot.slane %v5436, 2
    %v5438 = vadd.f32 %v5436, %v5437
    %v5439 = vrot.slane %v5438, 1
    %v5440 = vadd.f32 %v5438, %v5439
    %v5441 = vrot.slane %v4525, 4
    %v5442 = vadd.f32 %v4525, %v5441
    %v5443 = vrot.slane %v5442, 2
    %v5444 = vadd.f32 %v5442, %v5443
    %v5445 = vrot.slane %v5444, 1
    %v5446 = vadd.f32 %v5444, %v5445
    %v5447 = vrot.slane %v4526, 4
    %v5448 = vadd.f32 %v4526, %v5447
    %v5449 = vrot.slane %v5448, 2
    %v5450 = vadd.f32 %v5448, %v5449
    %v5451 = vrot.slane %v5450, 1
    %v5452 = vadd.f32 %v5450, %v5451
    %v5453 = vrot.slane %v4527, 4
    %v5454 = vadd.f32 %v4527, %v5453
    %v5455 = vrot.slane %v5454, 2
    %v5456 = vadd.f32 %v5454, %v5455
    %v5457 = vrot.slane %v5456, 1
    %v5458 = vadd.f32 %v5456, %v5457
    %v5459 = vrot.slane %v4528, 4
    %v5460 = vadd.f32 %v4528, %v5459
    %v5461 = vrot.slane %v5460, 2
    %v5462 = vadd.f32 %v5460, %v5461
    %v5463 = vrot.slane %v5462, 1
    %v5464 = vadd.f32 %v5462, %v5463
    %v5465 = vrot.slane %v4529, 4
    %v5466 = vadd.f32 %v4529, %v5465
    %v5467 = vrot.slane %v5466, 2
    %v5468 = vadd.f32 %v5466, %v5467
    %v5469 = vrot.slane %v5468, 1
    %v5470 = vadd.f32 %v5468, %v5469
    %v5471 = vrot.slane %v4530, 4
    %v5472 = vadd.f32 %v4530, %v5471
    %v5473 = vrot.slane %v5472, 2
    %v5474 = vadd.f32 %v5472, %v5473
    %v5475 = vrot.slane %v5474, 1
    %v5476 = vadd.f32 %v5474, %v5475
    %v5477 = vrot.slane %v4531, 4
    %v5478 = vadd.f32 %v4531, %v5477
    %v5479 = vrot.slane %v5478, 2
    %v5480 = vadd.f32 %v5478, %v5479
    %v5481 = vrot.slane %v5480, 1
    %v5482 = vadd.f32 %v5480, %v5481
    %v5483 = vrot.slane %v4532, 4
    %v5484 = vadd.f32 %v4532, %v5483
    %v5485 = vrot.slane %v5484, 2
    %v5486 = vadd.f32 %v5484, %v5485
    %v5487 = vrot.slane %v5486, 1
    %v5488 = vadd.f32 %v5486, %v5487
    %v5489 = vrot.slane %v4533, 4
    %v5490 = vadd.f32 %v4533, %v5489
    %v5491 = vrot.slane %v5490, 2
    %v5492 = vadd.f32 %v5490, %v5491
    %v5493 = vrot.slane %v5492, 1
    %v5494 = vadd.f32 %v5492, %v5493
    %v5495 = vrot.slane %v4534, 4
    %v5496 = vadd.f32 %v4534, %v5495
    %v5497 = vrot.slane %v5496, 2
    %v5498 = vadd.f32 %v5496, %v5497
    %v5499 = vrot.slane %v5498, 1
    %v5500 = vadd.f32 %v5498, %v5499
    %v5501 = vrot.slane %v4535, 4
    %v5502 = vadd.f32 %v4535, %v5501
    %v5503 = vrot.slane %v5502, 2
    %v5504 = vadd.f32 %v5502, %v5503
    %v5505 = vrot.slane %v5504, 1
    %v5506 = vadd.f32 %v5504, %v5505
    %v5507 = vrot.slane %v4536, 4
    %v5508 = vadd.f32 %v4536, %v5507
    %v5509 = vrot.slane %v5508, 2
    %v5510 = vadd.f32 %v5508, %v5509
    %v5511 = vrot.slane %v5510, 1
    %v5512 = vadd.f32 %v5510, %v5511
    %v5513 = vrot.slane %v4537, 4
    %v5514 = vadd.f32 %v4537, %v5513
    %v5515 = vrot.slane %v5514, 2
    %v5516 = vadd.f32 %v5514, %v5515
    %v5517 = vrot.slane %v5516, 1
    %v5518 = vadd.f32 %v5516, %v5517
    %v5519 = vrot.slane %v4538, 4
    %v5520 = vadd.f32 %v4538, %v5519
    %v5521 = vrot.slane %v5520, 2
    %v5522 = vadd.f32 %v5520, %v5521
    %v5523 = vrot.slane %v5522, 1
    %v5524 = vadd.f32 %v5522, %v5523
    %v5525 = vrot.slane %v4539, 4
    %v5526 = vadd.f32 %v4539, %v5525
    %v5527 = vrot.slane %v5526, 2
    %v5528 = vadd.f32 %v5526, %v5527
    %v5529 = vrot.slane %v5528, 1
    %v5530 = vadd.f32 %v5528, %v5529
    %v5531 = vrot.slane %v4540, 4
    %v5532 = vadd.f32 %v4540, %v5531
    %v5533 = vrot.slane %v5532, 2
    %v5534 = vadd.f32 %v5532, %v5533
    %v5535 = vrot.slane %v5534, 1
    %v5536 = vadd.f32 %v5534, %v5535
    %v5537 = vrot.slane %v4541, 4
    %v5538 = vadd.f32 %v4541, %v5537
    %v5539 = vrot.slane %v5538, 2
    %v5540 = vadd.f32 %v5538, %v5539
    %v5541 = vrot.slane %v5540, 1
    %v5542 = vadd.f32 %v5540, %v5541
    %v5543 = vrot.slane %v4542, 4
    %v5544 = vadd.f32 %v4542, %v5543
    %v5545 = vrot.slane %v5544, 2
    %v5546 = vadd.f32 %v5544, %v5545
    %v5547 = vrot.slane %v5546, 1
    %v5548 = vadd.f32 %v5546, %v5547
    %v5549 = vrot.slane %v4543, 4
    %v5550 = vadd.f32 %v4543, %v5549
    %v5551 = vrot.slane %v5550, 2
    %v5552 = vadd.f32 %v5550, %v5551
    %v5553 = vrot.slane %v5552, 1
    %v5554 = vadd.f32 %v5552, %v5553
    %v5555 = vrot.slane %v4544, 4
    %v5556 = vadd.f32 %v4544, %v5555
    %v5557 = vrot.slane %v5556, 2
    %v5558 = vadd.f32 %v5556, %v5557
    %v5559 = vrot.slane %v5558, 1
    %v5560 = vadd.f32 %v5558, %v5559
    %v5561 = vrot.slane %v4545, 4
    %v5562 = vadd.f32 %v4545, %v5561
    %v5563 = vrot.slane %v5562, 2
    %v5564 = vadd.f32 %v5562, %v5563
    %v5565 = vrot.slane %v5564, 1
    %v5566 = vadd.f32 %v5564, %v5565
    %v5567 = vrot.slane %v4546, 4
    %v5568 = vadd.f32 %v4546, %v5567
    %v5569 = vrot.slane %v5568, 2
    %v5570 = vadd.f32 %v5568, %v5569
    %v5571 = vrot.slane %v5570, 1
    %v5572 = vadd.f32 %v5570, %v5571
    %v5573 = vrot.slane %v4547, 4
    %v5574 = vadd.f32 %v4547, %v5573
    %v5575 = vrot.slane %v5574, 2
    %v5576 = vadd.f32 %v5574, %v5575
    %v5577 = vrot.slane %v5576, 1
    %v5578 = vadd.f32 %v5576, %v5577
    %v5579 = vrot.slane %v4548, 4
    %v5580 = vadd.f32 %v4548, %v5579
    %v5581 = vrot.slane %v5580, 2
    %v5582 = vadd.f32 %v5580, %v5581
    %v5583 = vrot.slane %v5582, 1
    %v5584 = vadd.f32 %v5582, %v5583
    %v5585 = vrot.slane %v4549, 4
    %v5586 = vadd.f32 %v4549, %v5585
    %v5587 = vrot.slane %v5586, 2
    %v5588 = vadd.f32 %v5586, %v5587
    %v5589 = vrot.slane %v5588, 1
    %v5590 = vadd.f32 %v5588, %v5589
    %v5591 = vrot.slane %v4550, 4
    %v5592 = vadd.f32 %v4550, %v5591
    %v5593 = vrot.slane %v5592, 2
    %v5594 = vadd.f32 %v5592, %v5593
    %v5595 = vrot.slane %v5594, 1
    %v5596 = vadd.f32 %v5594, %v5595
    %v5597 = vrot.slane %v4551, 4
    %v5598 = vadd.f32 %v4551, %v5597
    %v5599 = vrot.slane %v5598, 2
    %v5600 = vadd.f32 %v5598, %v5599
    %v5601 = vrot.slane %v5600, 1
    %v5602 = vadd.f32 %v5600, %v5601
    %v5603 = vrot.slane %v4552, 4
    %v5604 = vadd.f32 %v4552, %v5603
    %v5605 = vrot.slane %v5604, 2
    %v5606 = vadd.f32 %v5604, %v5605
    %v5607 = vrot.slane %v5606, 1
    %v5608 = vadd.f32 %v5606, %v5607
    %v5609 = vrot.slane %v4553, 4
    %v5610 = vadd.f32 %v4553, %v5609
    %v5611 = vrot.slane %v5610, 2
    %v5612 = vadd.f32 %v5610, %v5611
    %v5613 = vrot.slane %v5612, 1
    %v5614 = vadd.f32 %v5612, %v5613
    %v5615 = vrot.slane %v4554, 4
    %v5616 = vadd.f32 %v4554, %v5615
    %v5617 = vrot.slane %v5616, 2
    %v5618 = vadd.f32 %v5616, %v5617
    %v5619 = vrot.slane %v5618, 1
    %v5620 = vadd.f32 %v5618, %v5619
    %v5621 = vrot.slane %v4555, 4
    %v5622 = vadd.f32 %v4555, %v5621
    %v5623 = vrot.slane %v5622, 2
    %v5624 = vadd.f32 %v5622, %v5623
    %v5625 = vrot.slane %v5624, 1
    %v5626 = vadd.f32 %v5624, %v5625
    %v5627 = vrot.slane %v4556, 4
    %v5628 = vadd.f32 %v4556, %v5627
    %v5629 = vrot.slane %v5628, 2
    %v5630 = vadd.f32 %v5628, %v5629
    %v5631 = vrot.slane %v5630, 1
    %v5632 = vadd.f32 %v5630, %v5631
    %v5633 = vrot.slane %v4557, 4
    %v5634 = vadd.f32 %v4557, %v5633
    %v5635 = vrot.slane %v5634, 2
    %v5636 = vadd.f32 %v5634, %v5635
    %v5637 = vrot.slane %v5636, 1
    %v5638 = vadd.f32 %v5636, %v5637
    %v5639 = vrot.slane %v4558, 4
    %v5640 = vadd.f32 %v4558, %v5639
    %v5641 = vrot.slane %v5640, 2
    %v5642 = vadd.f32 %v5640, %v5641
    %v5643 = vrot.slane %v5642, 1
    %v5644 = vadd.f32 %v5642, %v5643
    %v5645 = vrot.slane %v4559, 4
    %v5646 = vadd.f32 %v4559, %v5645
    %v5647 = vrot.slane %v5646, 2
    %v5648 = vadd.f32 %v5646, %v5647
    %v5649 = vrot.slane %v5648, 1
    %v5650 = vadd.f32 %v5648, %v5649
    %v5651 = vrot.slane %v4560, 4
    %v5652 = vadd.f32 %v4560, %v5651
    %v5653 = vrot.slane %v5652, 2
    %v5654 = vadd.f32 %v5652, %v5653
    %v5655 = vrot.slane %v5654, 1
    %v5656 = vadd.f32 %v5654, %v5655
    %v5657 = vrot.slane %v4561, 4
    %v5658 = vadd.f32 %v4561, %v5657
    %v5659 = vrot.slane %v5658, 2
    %v5660 = vadd.f32 %v5658, %v5659
    %v5661 = vrot.slane %v5660, 1
    %v5662 = vadd.f32 %v5660, %v5661
    %v5663 = vrot.slane %v4562, 4
    %v5664 = vadd.f32 %v4562, %v5663
    %v5665 = vrot.slane %v5664, 2
    %v5666 = vadd.f32 %v5664, %v5665
    %v5667 = vrot.slane %v5666, 1
    %v5668 = vadd.f32 %v5666, %v5667
    %v5669 = vrot.slane %v4563, 4
    %v5670 = vadd.f32 %v4563, %v5669
    %v5671 = vrot.slane %v5670, 2
    %v5672 = vadd.f32 %v5670, %v5671
    %v5673 = vrot.slane %v5672, 1
    %v5674 = vadd.f32 %v5672, %v5673
    %v5675 = vrot.slane %v4564, 4
    %v5676 = vadd.f32 %v4564, %v5675
    %v5677 = vrot.slane %v5676, 2
    %v5678 = vadd.f32 %v5676, %v5677
    %v5679 = vrot.slane %v5678, 1
    %v5680 = vadd.f32 %v5678, %v5679
    %v5681 = vrot.slane %v4565, 4
    %v5682 = vadd.f32 %v4565, %v5681
    %v5683 = vrot.slane %v5682, 2
    %v5684 = vadd.f32 %v5682, %v5683
    %v5685 = vrot.slane %v5684, 1
    %v5686 = vadd.f32 %v5684, %v5685
    %v5687 = vrot.slane %v4566, 4
    %v5688 = vadd.f32 %v4566, %v5687
    %v5689 = vrot.slane %v5688, 2
    %v5690 = vadd.f32 %v5688, %v5689
    %v5691 = vrot.slane %v5690, 1
    %v5692 = vadd.f32 %v5690, %v5691
    %v5693 = vrot.slane %v4567, 4
    %v5694 = vadd.f32 %v4567, %v5693
    %v5695 = vrot.slane %v5694, 2
    %v5696 = vadd.f32 %v5694, %v5695
    %v5697 = vrot.slane %v5696, 1
    %v5698 = vadd.f32 %v5696, %v5697
    %v5699 = vrot.slane %v4568, 4
    %v5700 = vadd.f32 %v4568, %v5699
    %v5701 = vrot.slane %v5700, 2
    %v5702 = vadd.f32 %v5700, %v5701
    %v5703 = vrot.slane %v5702, 1
    %v5704 = vadd.f32 %v5702, %v5703
    %v5705 = vrot.slane %v4569, 4
    %v5706 = vadd.f32 %v4569, %v5705
    %v5707 = vrot.slane %v5706, 2
    %v5708 = vadd.f32 %v5706, %v5707
    %v5709 = vrot.slane %v5708, 1
    %v5710 = vadd.f32 %v5708, %v5709
    %v5711 = vrot.slane %v4570, 4
    %v5712 = vadd.f32 %v4570, %v5711
    %v5713 = vrot.slane %v5712, 2
    %v5714 = vadd.f32 %v5712, %v5713
    %v5715 = vrot.slane %v5714, 1
    %v5716 = vadd.f32 %v5714, %v5715
    %v5717 = vrot.slane %v4571, 4
    %v5718 = vadd.f32 %v4571, %v5717
    %v5719 = vrot.slane %v5718, 2
    %v5720 = vadd.f32 %v5718, %v5719
    %v5721 = vrot.slane %v5720, 1
    %v5722 = vadd.f32 %v5720, %v5721
    %v5723 = vrot.slane %v4572, 4
    %v5724 = vadd.f32 %v4572, %v5723
    %v5725 = vrot.slane %v5724, 2
    %v5726 = vadd.f32 %v5724, %v5725
    %v5727 = vrot.slane %v5726, 1
    %v5728 = vadd.f32 %v5726, %v5727
    %v5729 = vrot.slane %v4573, 4
    %v5730 = vadd.f32 %v4573, %v5729
    %v5731 = vrot.slane %v5730, 2
    %v5732 = vadd.f32 %v5730, %v5731
    %v5733 = vrot.slane %v5732, 1
    %v5734 = vadd.f32 %v5732, %v5733
    %v5735 = vrot.slane %v4574, 4
    %v5736 = vadd.f32 %v4574, %v5735
    %v5737 = vrot.slane %v5736, 2
    %v5738 = vadd.f32 %v5736, %v5737
    %v5739 = vrot.slane %v5738, 1
    %v5740 = vadd.f32 %v5738, %v5739
    %v5741 = vrot.slane %v4575, 4
    %v5742 = vadd.f32 %v4575, %v5741
    %v5743 = vrot.slane %v5742, 2
    %v5744 = vadd.f32 %v5742, %v5743
    %v5745 = vrot.slane %v5744, 1
    %v5746 = vadd.f32 %v5744, %v5745
    %v5747 = vrot.slane %v4576, 4
    %v5748 = vadd.f32 %v4576, %v5747
    %v5749 = vrot.slane %v5748, 2
    %v5750 = vadd.f32 %v5748, %v5749
    %v5751 = vrot.slane %v5750, 1
    %v5752 = vadd.f32 %v5750, %v5751
    %v5753 = vrot.slane %v4577, 4
    %v5754 = vadd.f32 %v4577, %v5753
    %v5755 = vrot.slane %v5754, 2
    %v5756 = vadd.f32 %v5754, %v5755
    %v5757 = vrot.slane %v5756, 1
    %v5758 = vadd.f32 %v5756, %v5757
    %v5759 = vrot.slane %v4578, 4
    %v5760 = vadd.f32 %v4578, %v5759
    %v5761 = vrot.slane %v5760, 2
    %v5762 = vadd.f32 %v5760, %v5761
    %v5763 = vrot.slane %v5762, 1
    %v5764 = vadd.f32 %v5762, %v5763
    %v5765 = vrot.slane %v4579, 4
    %v5766 = vadd.f32 %v4579, %v5765
    %v5767 = vrot.slane %v5766, 2
    %v5768 = vadd.f32 %v5766, %v5767
    %v5769 = vrot.slane %v5768, 1
    %v5770 = vadd.f32 %v5768, %v5769
    %v5771 = vrot.slane %v4580, 4
    %v5772 = vadd.f32 %v4580, %v5771
    %v5773 = vrot.slane %v5772, 2
    %v5774 = vadd.f32 %v5772, %v5773
    %v5775 = vrot.slane %v5774, 1
    %v5776 = vadd.f32 %v5774, %v5775
    %v5777 = vrot.slane %v4581, 4
    %v5778 = vadd.f32 %v4581, %v5777
    %v5779 = vrot.slane %v5778, 2
    %v5780 = vadd.f32 %v5778, %v5779
    %v5781 = vrot.slane %v5780, 1
    %v5782 = vadd.f32 %v5780, %v5781
    %v5783 = vrot.slane %v4582, 4
    %v5784 = vadd.f32 %v4582, %v5783
    %v5785 = vrot.slane %v5784, 2
    %v5786 = vadd.f32 %v5784, %v5785
    %v5787 = vrot.slane %v5786, 1
    %v5788 = vadd.f32 %v5786, %v5787
    %v5789 = vrot.slane %v4583, 4
    %v5790 = vadd.f32 %v4583, %v5789
    %v5791 = vrot.slane %v5790, 2
    %v5792 = vadd.f32 %v5790, %v5791
    %v5793 = vrot.slane %v5792, 1
    %v5794 = vadd.f32 %v5792, %v5793
    %v5795 = vrot.slane %v4584, 4
    %v5796 = vadd.f32 %v4584, %v5795
    %v5797 = vrot.slane %v5796, 2
    %v5798 = vadd.f32 %v5796, %v5797
    %v5799 = vrot.slane %v5798, 1
    %v5800 = vadd.f32 %v5798, %v5799
    %v5801 = vrot.slane %v4585, 4
    %v5802 = vadd.f32 %v4585, %v5801
    %v5803 = vrot.slane %v5802, 2
    %v5804 = vadd.f32 %v5802, %v5803
    %v5805 = vrot.slane %v5804, 1
    %v5806 = vadd.f32 %v5804, %v5805
    %v5807 = vrot.slane %v4586, 4
    %v5808 = vadd.f32 %v4586, %v5807
    %v5809 = vrot.slane %v5808, 2
    %v5810 = vadd.f32 %v5808, %v5809
    %v5811 = vrot.slane %v5810, 1
    %v5812 = vadd.f32 %v5810, %v5811
    %v5813 = vrot.slane %v4587, 4
    %v5814 = vadd.f32 %v4587, %v5813
    %v5815 = vrot.slane %v5814, 2
    %v5816 = vadd.f32 %v5814, %v5815
    %v5817 = vrot.slane %v5816, 1
    %v5818 = vadd.f32 %v5816, %v5817
    %v5819 = vrot.slane %v4588, 4
    %v5820 = vadd.f32 %v4588, %v5819
    %v5821 = vrot.slane %v5820, 2
    %v5822 = vadd.f32 %v5820, %v5821
    %v5823 = vrot.slane %v5822, 1
    %v5824 = vadd.f32 %v5822, %v5823
    %v5825 = vrot.slane %v4589, 4
    %v5826 = vadd.f32 %v4589, %v5825
    %v5827 = vrot.slane %v5826, 2
    %v5828 = vadd.f32 %v5826, %v5827
    %v5829 = vrot.slane %v5828, 1
    %v5830 = vadd.f32 %v5828, %v5829
    %v5831 = vrot.slane %v4590, 4
    %v5832 = vadd.f32 %v4590, %v5831
    %v5833 = vrot.slane %v5832, 2
    %v5834 = vadd.f32 %v5832, %v5833
    %v5835 = vrot.slane %v5834, 1
    %v5836 = vadd.f32 %v5834, %v5835
    %v5837 = vrot.slane %v4591, 4
    %v5838 = vadd.f32 %v4591, %v5837
    %v5839 = vrot.slane %v5838, 2
    %v5840 = vadd.f32 %v5838, %v5839
    %v5841 = vrot.slane %v5840, 1
    %v5842 = vadd.f32 %v5840, %v5841
    %v5843 = vrot.slane %v4592, 4
    %v5844 = vadd.f32 %v4592, %v5843
    %v5845 = vrot.slane %v5844, 2
    %v5846 = vadd.f32 %v5844, %v5845
    %v5847 = vrot.slane %v5846, 1
    %v5848 = vadd.f32 %v5846, %v5847
    %v5849 = vrot.slane %v4593, 4
    %v5850 = vadd.f32 %v4593, %v5849
    %v5851 = vrot.slane %v5850, 2
    %v5852 = vadd.f32 %v5850, %v5851
    %v5853 = vrot.slane %v5852, 1
    %v5854 = vadd.f32 %v5852, %v5853
    %v5855 = vrot.slane %v4594, 4
    %v5856 = vadd.f32 %v4594, %v5855
    %v5857 = vrot.slane %v5856, 2
    %v5858 = vadd.f32 %v5856, %v5857
    %v5859 = vrot.slane %v5858, 1
    %v5860 = vadd.f32 %v5858, %v5859
    %v5861 = vrot.slane %v4595, 4
    %v5862 = vadd.f32 %v4595, %v5861
    %v5863 = vrot.slane %v5862, 2
    %v5864 = vadd.f32 %v5862, %v5863
    %v5865 = vrot.slane %v5864, 1
    %v5866 = vadd.f32 %v5864, %v5865
    %v5867 = vrot.slane %v4596, 4
    %v5868 = vadd.f32 %v4596, %v5867
    %v5869 = vrot.slane %v5868, 2
    %v5870 = vadd.f32 %v5868, %v5869
    %v5871 = vrot.slane %v5870, 1
    %v5872 = vadd.f32 %v5870, %v5871
    %v5873 = vrot.slane %v4597, 4
    %v5874 = vadd.f32 %v4597, %v5873
    %v5875 = vrot.slane %v5874, 2
    %v5876 = vadd.f32 %v5874, %v5875
    %v5877 = vrot.slane %v5876, 1
    %v5878 = vadd.f32 %v5876, %v5877
    %v5879 = vrot.slane %v4598, 4
    %v5880 = vadd.f32 %v4598, %v5879
    %v5881 = vrot.slane %v5880, 2
    %v5882 = vadd.f32 %v5880, %v5881
    %v5883 = vrot.slane %v5882, 1
    %v5884 = vadd.f32 %v5882, %v5883
    %v5885 = vrot.slane %v4599, 4
    %v5886 = vadd.f32 %v4599, %v5885
    %v5887 = vrot.slane %v5886, 2
    %v5888 = vadd.f32 %v5886, %v5887
    %v5889 = vrot.slane %v5888, 1
    %v5890 = vadd.f32 %v5888, %v5889
    %v5891 = vrot.slane %v4600, 4
    %v5892 = vadd.f32 %v4600, %v5891
    %v5893 = vrot.slane %v5892, 2
    %v5894 = vadd.f32 %v5892, %v5893
    %v5895 = vrot.slane %v5894, 1
    %v5896 = vadd.f32 %v5894, %v5895
    %v5897 = vrot.slane %v4601, 4
    %v5898 = vadd.f32 %v4601, %v5897
    %v5899 = vrot.slane %v5898, 2
    %v5900 = vadd.f32 %v5898, %v5899
    %v5901 = vrot.slane %v5900, 1
    %v5902 = vadd.f32 %v5900, %v5901
    %v5903 = vrot.slane %v4602, 4
    %v5904 = vadd.f32 %v4602, %v5903
    %v5905 = vrot.slane %v5904, 2
    %v5906 = vadd.f32 %v5904, %v5905
    %v5907 = vrot.slane %v5906, 1
    %v5908 = vadd.f32 %v5906, %v5907
    %v5909 = vrot.slane %v4603, 4
    %v5910 = vadd.f32 %v4603, %v5909
    %v5911 = vrot.slane %v5910, 2
    %v5912 = vadd.f32 %v5910, %v5911
    %v5913 = vrot.slane %v5912, 1
    %v5914 = vadd.f32 %v5912, %v5913
    %v5915 = vrot.slane %v4604, 4
    %v5916 = vadd.f32 %v4604, %v5915
    %v5917 = vrot.slane %v5916, 2
    %v5918 = vadd.f32 %v5916, %v5917
    %v5919 = vrot.slane %v5918, 1
    %v5920 = vadd.f32 %v5918, %v5919
    %v5921 = vrot.slane %v4605, 4
    %v5922 = vadd.f32 %v4605, %v5921
    %v5923 = vrot.slane %v5922, 2
    %v5924 = vadd.f32 %v5922, %v5923
    %v5925 = vrot.slane %v5924, 1
    %v5926 = vadd.f32 %v5924, %v5925
    %v5927 = vrot.slane %v4606, 4
    %v5928 = vadd.f32 %v4606, %v5927
    %v5929 = vrot.slane %v5928, 2
    %v5930 = vadd.f32 %v5928, %v5929
    %v5931 = vrot.slane %v5930, 1
    %v5932 = vadd.f32 %v5930, %v5931
    %v5933 = vrot.slane %v4607, 4
    %v5934 = vadd.f32 %v4607, %v5933
    %v5935 = vrot.slane %v5934, 2
    %v5936 = vadd.f32 %v5934, %v5935
    %v5937 = vrot.slane %v5936, 1
    %v5938 = vadd.f32 %v5936, %v5937
    %v5939 = vrot.slane %v4608, 4
    %v5940 = vadd.f32 %v4608, %v5939
    %v5941 = vrot.slane %v5940, 2
    %v5942 = vadd.f32 %v5940, %v5941
    %v5943 = vrot.slane %v5942, 1
    %v5944 = vadd.f32 %v5942, %v5943
    %v5945 = vrot.slane %v4609, 4
    %v5946 = vadd.f32 %v4609, %v5945
    %v5947 = vrot.slane %v5946, 2
    %v5948 = vadd.f32 %v5946, %v5947
    %v5949 = vrot.slane %v5948, 1
    %v5950 = vadd.f32 %v5948, %v5949
    %v5951 = vrot.slane %v4610, 4
    %v5952 = vadd.f32 %v4610, %v5951
    %v5953 = vrot.slane %v5952, 2
    %v5954 = vadd.f32 %v5952, %v5953
    %v5955 = vrot.slane %v5954, 1
    %v5956 = vadd.f32 %v5954, %v5955
    %v5957 = vrot.slane %v4611, 4
    %v5958 = vadd.f32 %v4611, %v5957
    %v5959 = vrot.slane %v5958, 2
    %v5960 = vadd.f32 %v5958, %v5959
    %v5961 = vrot.slane %v5960, 1
    %v5962 = vadd.f32 %v5960, %v5961
    %v5963 = vrot.slane %v4612, 4
    %v5964 = vadd.f32 %v4612, %v5963
    %v5965 = vrot.slane %v5964, 2
    %v5966 = vadd.f32 %v5964, %v5965
    %v5967 = vrot.slane %v5966, 1
    %v5968 = vadd.f32 %v5966, %v5967
    %v5969 = vrot.slane %v4613, 4
    %v5970 = vadd.f32 %v4613, %v5969
    %v5971 = vrot.slane %v5970, 2
    %v5972 = vadd.f32 %v5970, %v5971
    %v5973 = vrot.slane %v5972, 1
    %v5974 = vadd.f32 %v5972, %v5973
    %v5975 = vrot.slane %v4614, 4
    %v5976 = vadd.f32 %v4614, %v5975
    %v5977 = vrot.slane %v5976, 2
    %v5978 = vadd.f32 %v5976, %v5977
    %v5979 = vrot.slane %v5978, 1
    %v5980 = vadd.f32 %v5978, %v5979
    %v5981 = vrot.slane %v4615, 4
    %v5982 = vadd.f32 %v4615, %v5981
    %v5983 = vrot.slane %v5982, 2
    %v5984 = vadd.f32 %v5982, %v5983
    %v5985 = vrot.slane %v5984, 1
    %v5986 = vadd.f32 %v5984, %v5985
    %v5987 = vrot.slane %v4616, 4
    %v5988 = vadd.f32 %v4616, %v5987
    %v5989 = vrot.slane %v5988, 2
    %v5990 = vadd.f32 %v5988, %v5989
    %v5991 = vrot.slane %v5990, 1
    %v5992 = vadd.f32 %v5990, %v5991
    %v5993 = vrot.slane %v4617, 4
    %v5994 = vadd.f32 %v4617, %v5993
    %v5995 = vrot.slane %v5994, 2
    %v5996 = vadd.f32 %v5994, %v5995
    %v5997 = vrot.slane %v5996, 1
    %v5998 = vadd.f32 %v5996, %v5997
    %v5999 = vrot.slane %v4618, 4
    %v6000 = vadd.f32 %v4618, %v5999
    %v6001 = vrot.slane %v6000, 2
    %v6002 = vadd.f32 %v6000, %v6001
    %v6003 = vrot.slane %v6002, 1
    %v6004 = vadd.f32 %v6002, %v6003
    %v6005 = vrot.slane %v4619, 4
    %v6006 = vadd.f32 %v4619, %v6005
    %v6007 = vrot.slane %v6006, 2
    %v6008 = vadd.f32 %v6006, %v6007
    %v6009 = vrot.slane %v6008, 1
    %v6010 = vadd.f32 %v6008, %v6009
    %v6011 = vrot.slane %v4620, 4
    %v6012 = vadd.f32 %v4620, %v6011
    %v6013 = vrot.slane %v6012, 2
    %v6014 = vadd.f32 %v6012, %v6013
    %v6015 = vrot.slane %v6014, 1
    %v6016 = vadd.f32 %v6014, %v6015
    %v6017 = vrot.slane %v4621, 4
    %v6018 = vadd.f32 %v4621, %v6017
    %v6019 = vrot.slane %v6018, 2
    %v6020 = vadd.f32 %v6018, %v6019
    %v6021 = vrot.slane %v6020, 1
    %v6022 = vadd.f32 %v6020, %v6021
    %v6023 = vrot.slane %v4622, 4
    %v6024 = vadd.f32 %v4622, %v6023
    %v6025 = vrot.slane %v6024, 2
    %v6026 = vadd.f32 %v6024, %v6025
    %v6027 = vrot.slane %v6026, 1
    %v6028 = vadd.f32 %v6026, %v6027
    %v6029 = vrot.slane %v4623, 4
    %v6030 = vadd.f32 %v4623, %v6029
    %v6031 = vrot.slane %v6030, 2
    %v6032 = vadd.f32 %v6030, %v6031
    %v6033 = vrot.slane %v6032, 1
    %v6034 = vadd.f32 %v6032, %v6033
    %v6035 = vrot.slane %v4624, 4
    %v6036 = vadd.f32 %v4624, %v6035
    %v6037 = vrot.slane %v6036, 2
    %v6038 = vadd.f32 %v6036, %v6037
    %v6039 = vrot.slane %v6038, 1
    %v6040 = vadd.f32 %v6038, %v6039
    %v6041 = vrot.slane %v4625, 4
    %v6042 = vadd.f32 %v4625, %v6041
    %v6043 = vrot.slane %v6042, 2
    %v6044 = vadd.f32 %v6042, %v6043
    %v6045 = vrot.slane %v6044, 1
    %v6046 = vadd.f32 %v6044, %v6045
    %v6047 = vrot.slane %v4626, 4
    %v6048 = vadd.f32 %v4626, %v6047
    %v6049 = vrot.slane %v6048, 2
    %v6050 = vadd.f32 %v6048, %v6049
    %v6051 = vrot.slane %v6050, 1
    %v6052 = vadd.f32 %v6050, %v6051
    %v6053 = vrot.slane %v4627, 4
    %v6054 = vadd.f32 %v4627, %v6053
    %v6055 = vrot.slane %v6054, 2
    %v6056 = vadd.f32 %v6054, %v6055
    %v6057 = vrot.slane %v6056, 1
    %v6058 = vadd.f32 %v6056, %v6057
    %v6059 = vrot.slane %v4628, 4
    %v6060 = vadd.f32 %v4628, %v6059
    %v6061 = vrot.slane %v6060, 2
    %v6062 = vadd.f32 %v6060, %v6061
    %v6063 = vrot.slane %v6062, 1
    %v6064 = vadd.f32 %v6062, %v6063
    %v6065 = vrot.slane %v4629, 4
    %v6066 = vadd.f32 %v4629, %v6065
    %v6067 = vrot.slane %v6066, 2
    %v6068 = vadd.f32 %v6066, %v6067
    %v6069 = vrot.slane %v6068, 1
    %v6070 = vadd.f32 %v6068, %v6069
    %v6071 = vrot.slane %v4630, 4
    %v6072 = vadd.f32 %v4630, %v6071
    %v6073 = vrot.slane %v6072, 2
    %v6074 = vadd.f32 %v6072, %v6073
    %v6075 = vrot.slane %v6074, 1
    %v6076 = vadd.f32 %v6074, %v6075
    %v6077 = vrot.slane %v4631, 4
    %v6078 = vadd.f32 %v4631, %v6077
    %v6079 = vrot.slane %v6078, 2
    %v6080 = vadd.f32 %v6078, %v6079
    %v6081 = vrot.slane %v6080, 1
    %v6082 = vadd.f32 %v6080, %v6081
    %v6083 = vrot.slane %v4632, 4
    %v6084 = vadd.f32 %v4632, %v6083
    %v6085 = vrot.slane %v6084, 2
    %v6086 = vadd.f32 %v6084, %v6085
    %v6087 = vrot.slane %v6086, 1
    %v6088 = vadd.f32 %v6086, %v6087
    %v6089 = vrot.slane %v4633, 4
    %v6090 = vadd.f32 %v4633, %v6089
    %v6091 = vrot.slane %v6090, 2
    %v6092 = vadd.f32 %v6090, %v6091
    %v6093 = vrot.slane %v6092, 1
    %v6094 = vadd.f32 %v6092, %v6093
    %v6095 = vrot.slane %v4634, 4
    %v6096 = vadd.f32 %v4634, %v6095
    %v6097 = vrot.slane %v6096, 2
    %v6098 = vadd.f32 %v6096, %v6097
    %v6099 = vrot.slane %v6098, 1
    %v6100 = vadd.f32 %v6098, %v6099
    %v6101 = vrot.slane %v4635, 4
    %v6102 = vadd.f32 %v4635, %v6101
    %v6103 = vrot.slane %v6102, 2
    %v6104 = vadd.f32 %v6102, %v6103
    %v6105 = vrot.slane %v6104, 1
    %v6106 = vadd.f32 %v6104, %v6105
    %v6107 = vrot.slane %v4636, 4
    %v6108 = vadd.f32 %v4636, %v6107
    %v6109 = vrot.slane %v6108, 2
    %v6110 = vadd.f32 %v6108, %v6109
    %v6111 = vrot.slane %v6110, 1
    %v6112 = vadd.f32 %v6110, %v6111
    %v6113 = vrot.slane %v4637, 4
    %v6114 = vadd.f32 %v4637, %v6113
    %v6115 = vrot.slane %v6114, 2
    %v6116 = vadd.f32 %v6114, %v6115
    %v6117 = vrot.slane %v6116, 1
    %v6118 = vadd.f32 %v6116, %v6117
    %v6119 = vrot.slane %v4638, 4
    %v6120 = vadd.f32 %v4638, %v6119
    %v6121 = vrot.slane %v6120, 2
    %v6122 = vadd.f32 %v6120, %v6121
    %v6123 = vrot.slane %v6122, 1
    %v6124 = vadd.f32 %v6122, %v6123
    %v6125 = vrot.slane %v4639, 4
    %v6126 = vadd.f32 %v4639, %v6125
    %v6127 = vrot.slane %v6126, 2
    %v6128 = vadd.f32 %v6126, %v6127
    %v6129 = vrot.slane %v6128, 1
    %v6130 = vadd.f32 %v6128, %v6129
    %v6131 = vrot.slane %v4640, 4
    %v6132 = vadd.f32 %v4640, %v6131
    %v6133 = vrot.slane %v6132, 2
    %v6134 = vadd.f32 %v6132, %v6133
    %v6135 = vrot.slane %v6134, 1
    %v6136 = vadd.f32 %v6134, %v6135
    %v6137 = vrot.slane %v4641, 4
    %v6138 = vadd.f32 %v4641, %v6137
    %v6139 = vrot.slane %v6138, 2
    %v6140 = vadd.f32 %v6138, %v6139
    %v6141 = vrot.slane %v6140, 1
    %v6142 = vadd.f32 %v6140, %v6141
    %v6143 = vrot.slane %v4642, 4
    %v6144 = vadd.f32 %v4642, %v6143
    %v6145 = vrot.slane %v6144, 2
    %v6146 = vadd.f32 %v6144, %v6145
    %v6147 = vrot.slane %v6146, 1
    %v6148 = vadd.f32 %v6146, %v6147
    %v6149 = vrot.slane %v4643, 4
    %v6150 = vadd.f32 %v4643, %v6149
    %v6151 = vrot.slane %v6150, 2
    %v6152 = vadd.f32 %v6150, %v6151
    %v6153 = vrot.slane %v6152, 1
    %v6154 = vadd.f32 %v6152, %v6153
    %v6155 = vrot.slane %v4644, 4
    %v6156 = vadd.f32 %v4644, %v6155
    %v6157 = vrot.slane %v6156, 2
    %v6158 = vadd.f32 %v6156, %v6157
    %v6159 = vrot.slane %v6158, 1
    %v6160 = vadd.f32 %v6158, %v6159
    %v6161 = vrot.slane %v4645, 4
    %v6162 = vadd.f32 %v4645, %v6161
    %v6163 = vrot.slane %v6162, 2
    %v6164 = vadd.f32 %v6162, %v6163
    %v6165 = vrot.slane %v6164, 1
    %v6166 = vadd.f32 %v6164, %v6165
    %v6167 = vrot.slane %v4646, 4
    %v6168 = vadd.f32 %v4646, %v6167
    %v6169 = vrot.slane %v6168, 2
    %v6170 = vadd.f32 %v6168, %v6169
    %v6171 = vrot.slane %v6170, 1
    %v6172 = vadd.f32 %v6170, %v6171
    %v6173 = vrot.slane %v4647, 4
    %v6174 = vadd.f32 %v4647, %v6173
    %v6175 = vrot.slane %v6174, 2
    %v6176 = vadd.f32 %v6174, %v6175
    %v6177 = vrot.slane %v6176, 1
    %v6178 = vadd.f32 %v6176, %v6177
    %v6179 = vrot.slane %v4648, 4
    %v6180 = vadd.f32 %v4648, %v6179
    %v6181 = vrot.slane %v6180, 2
    %v6182 = vadd.f32 %v6180, %v6181
    %v6183 = vrot.slane %v6182, 1
    %v6184 = vadd.f32 %v6182, %v6183
    %vm6185 = vcmask 15360
    %v6186 = vsel %vm6185, %v2852, 0.0
    %v6187 = vrot.slane %v6186, 4
    %v6188 = vadd.f32 %v6186, %v6187
    %v6189 = vrot.slane %v6188, 2
    %v6190 = vadd.f32 %v6188, %v6189
    %v6191 = vrot.slane %v6190, 1
    %v6192 = vadd.f32 %v6190, %v6191
    %v6193 = vsel %vm6185, %v2853, 0.0
    %v6194 = vrot.slane %v6193, 4
    %v6195 = vadd.f32 %v6193, %v6194
    %v6196 = vrot.slane %v6195, 2
    %v6197 = vadd.f32 %v6195, %v6196
    %v6198 = vrot.slane %v6197, 1
    %v6199 = vadd.f32 %v6197, %v6198
    %v6200 = vsel %vm6185, %v2854, 0.0
    %v6201 = vrot.slane %v6200, 4
    %v6202 = vadd.f32 %v6200, %v6201
    %v6203 = vrot.slane %v6202, 2
    %v6204 = vadd.f32 %v6202, %v6203
    %v6205 = vrot.slane %v6204, 1
    %v6206 = vadd.f32 %v6204, %v6205
    %v6207 = vsel %vm6185, %v2855, 0.0
    %v6208 = vrot.slane %v6207, 4
    %v6209 = vadd.f32 %v6207, %v6208
    %v6210 = vrot.slane %v6209, 2
    %v6211 = vadd.f32 %v6209, %v6210
    %v6212 = vrot.slane %v6211, 1
    %v6213 = vadd.f32 %v6211, %v6212
    %v6214 = vsel %vm6185, %v2856, 0.0
    %v6215 = vrot.slane %v6214, 4
    %v6216 = vadd.f32 %v6214, %v6215
    %v6217 = vrot.slane %v6216, 2
    %v6218 = vadd.f32 %v6216, %v6217
    %v6219 = vrot.slane %v6218, 1
    %v6220 = vadd.f32 %v6218, %v6219
    %v6221 = vsel %vm6185, %v2857, 0.0
    %v6222 = vrot.slane %v6221, 4
    %v6223 = vadd.f32 %v6221, %v6222
    %v6224 = vrot.slane %v6223, 2
    %v6225 = vadd.f32 %v6223, %v6224
    %v6226 = vrot.slane %v6225, 1
    %v6227 = vadd.f32 %v6225, %v6226
    %v6228 = vsel %vm6185, %v2858, 0.0
    %v6229 = vrot.slane %v6228, 4
    %v6230 = vadd.f32 %v6228, %v6229
    %v6231 = vrot.slane %v6230, 2
    %v6232 = vadd.f32 %v6230, %v6231
    %v6233 = vrot.slane %v6232, 1
    %v6234 = vadd.f32 %v6232, %v6233
    %v6235 = vsel %vm6185, %v2859, 0.0
    %v6236 = vrot.slane %v6235, 4
    %v6237 = vadd.f32 %v6235, %v6236
    %v6238 = vrot.slane %v6237, 2
    %v6239 = vadd.f32 %v6237, %v6238
    %v6240 = vrot.slane %v6239, 1
    %v6241 = vadd.f32 %v6239, %v6240
    %v6242 = vsel %vm6185, %v2860, 0.0
    %v6243 = vrot.slane %v6242, 4
    %v6244 = vadd.f32 %v6242, %v6243
    %v6245 = vrot.slane %v6244, 2
    %v6246 = vadd.f32 %v6244, %v6245
    %v6247 = vrot.slane %v6246, 1
    %v6248 = vadd.f32 %v6246, %v6247
    %v6249 = vsel %vm6185, %v2861, 0.0
    %v6250 = vrot.slane %v6249, 4
    %v6251 = vadd.f32 %v6249, %v6250
    %v6252 = vrot.slane %v6251, 2
    %v6253 = vadd.f32 %v6251, %v6252
    %v6254 = vrot.slane %v6253, 1
    %v6255 = vadd.f32 %v6253, %v6254
    %v6256 = vsel %vm6185, %v2862, 0.0
    %v6257 = vrot.slane %v6256, 4
    %v6258 = vadd.f32 %v6256, %v6257
    %v6259 = vrot.slane %v6258, 2
    %v6260 = vadd.f32 %v6258, %v6259
    %v6261 = vrot.slane %v6260, 1
    %v6262 = vadd.f32 %v6260, %v6261
    %v6263 = vsel %vm6185, %v2863, 0.0
    %v6264 = vrot.slane %v6263, 4
    %v6265 = vadd.f32 %v6263, %v6264
    %v6266 = vrot.slane %v6265, 2
    %v6267 = vadd.f32 %v6265, %v6266
    %v6268 = vrot.slane %v6267, 1
    %v6269 = vadd.f32 %v6267, %v6268
    %v6270 = vsel %vm6185, %v2864, 0.0
    %v6271 = vrot.slane %v6270, 4
    %v6272 = vadd.f32 %v6270, %v6271
    %v6273 = vrot.slane %v6272, 2
    %v6274 = vadd.f32 %v6272, %v6273
    %v6275 = vrot.slane %v6274, 1
    %v6276 = vadd.f32 %v6274, %v6275
    %v6277 = vsel %vm6185, %v2865, 0.0
    %v6278 = vrot.slane %v6277, 4
    %v6279 = vadd.f32 %v6277, %v6278
    %v6280 = vrot.slane %v6279, 2
    %v6281 = vadd.f32 %v6279, %v6280
    %v6282 = vrot.slane %v6281, 1
    %v6283 = vadd.f32 %v6281, %v6282
    %v6284 = vsel %vm6185, %v2866, 0.0
    %v6285 = vrot.slane %v6284, 4
    %v6286 = vadd.f32 %v6284, %v6285
    %v6287 = vrot.slane %v6286, 2
    %v6288 = vadd.f32 %v6286, %v6287
    %v6289 = vrot.slane %v6288, 1
    %v6290 = vadd.f32 %v6288, %v6289
    %v6291 = vsel %vm6185, %v2867, 0.0
    %v6292 = vrot.slane %v6291, 4
    %v6293 = vadd.f32 %v6291, %v6292
    %v6294 = vrot.slane %v6293, 2
    %v6295 = vadd.f32 %v6293, %v6294
    %v6296 = vrot.slane %v6295, 1
    %v6297 = vadd.f32 %v6295, %v6296
    %v6298 = vsel %vm6185, %v2868, 0.0
    %v6299 = vrot.slane %v6298, 4
    %v6300 = vadd.f32 %v6298, %v6299
    %v6301 = vrot.slane %v6300, 2
    %v6302 = vadd.f32 %v6300, %v6301
    %v6303 = vrot.slane %v6302, 1
    %v6304 = vadd.f32 %v6302, %v6303
    %v6305 = vsel %vm6185, %v2869, 0.0
    %v6306 = vrot.slane %v6305, 4
    %v6307 = vadd.f32 %v6305, %v6306
    %v6308 = vrot.slane %v6307, 2
    %v6309 = vadd.f32 %v6307, %v6308
    %v6310 = vrot.slane %v6309, 1
    %v6311 = vadd.f32 %v6309, %v6310
    %v6312 = vsel %vm6185, %v2870, 0.0
    %v6313 = vrot.slane %v6312, 4
    %v6314 = vadd.f32 %v6312, %v6313
    %v6315 = vrot.slane %v6314, 2
    %v6316 = vadd.f32 %v6314, %v6315
    %v6317 = vrot.slane %v6316, 1
    %v6318 = vadd.f32 %v6316, %v6317
    %v6319 = vsel %vm6185, %v2871, 0.0
    %v6320 = vrot.slane %v6319, 4
    %v6321 = vadd.f32 %v6319, %v6320
    %v6322 = vrot.slane %v6321, 2
    %v6323 = vadd.f32 %v6321, %v6322
    %v6324 = vrot.slane %v6323, 1
    %v6325 = vadd.f32 %v6323, %v6324
    %v6326 = vsel %vm6185, %v2872, 0.0
    %v6327 = vrot.slane %v6326, 4
    %v6328 = vadd.f32 %v6326, %v6327
    %v6329 = vrot.slane %v6328, 2
    %v6330 = vadd.f32 %v6328, %v6329
    %v6331 = vrot.slane %v6330, 1
    %v6332 = vadd.f32 %v6330, %v6331
    %v6333 = vsel %vm6185, %v2873, 0.0
    %v6334 = vrot.slane %v6333, 4
    %v6335 = vadd.f32 %v6333, %v6334
    %v6336 = vrot.slane %v6335, 2
    %v6337 = vadd.f32 %v6335, %v6336
    %v6338 = vrot.slane %v6337, 1
    %v6339 = vadd.f32 %v6337, %v6338
    %v6340 = vsel %vm6185, %v2874, 0.0
    %v6341 = vrot.slane %v6340, 4
    %v6342 = vadd.f32 %v6340, %v6341
    %v6343 = vrot.slane %v6342, 2
    %v6344 = vadd.f32 %v6342, %v6343
    %v6345 = vrot.slane %v6344, 1
    %v6346 = vadd.f32 %v6344, %v6345
    %v6347 = vsel %vm6185, %v2875, 0.0
    %v6348 = vrot.slane %v6347, 4
    %v6349 = vadd.f32 %v6347, %v6348
    %v6350 = vrot.slane %v6349, 2
    %v6351 = vadd.f32 %v6349, %v6350
    %v6352 = vrot.slane %v6351, 1
    %v6353 = vadd.f32 %v6351, %v6352
    %v6354 = vsel %vm6185, %v2876, 0.0
    %v6355 = vrot.slane %v6354, 4
    %v6356 = vadd.f32 %v6354, %v6355
    %v6357 = vrot.slane %v6356, 2
    %v6358 = vadd.f32 %v6356, %v6357
    %v6359 = vrot.slane %v6358, 1
    %v6360 = vadd.f32 %v6358, %v6359
    %v6361 = vsel %vm6185, %v2877, 0.0
    %v6362 = vrot.slane %v6361, 4
    %v6363 = vadd.f32 %v6361, %v6362
    %v6364 = vrot.slane %v6363, 2
    %v6365 = vadd.f32 %v6363, %v6364
    %v6366 = vrot.slane %v6365, 1
    %v6367 = vadd.f32 %v6365, %v6366
    %v6368 = vsel %vm6185, %v2878, 0.0
    %v6369 = vrot.slane %v6368, 4
    %v6370 = vadd.f32 %v6368, %v6369
    %v6371 = vrot.slane %v6370, 2
    %v6372 = vadd.f32 %v6370, %v6371
    %v6373 = vrot.slane %v6372, 1
    %v6374 = vadd.f32 %v6372, %v6373
    %v6375 = vsel %vm6185, %v2879, 0.0
    %v6376 = vrot.slane %v6375, 4
    %v6377 = vadd.f32 %v6375, %v6376
    %v6378 = vrot.slane %v6377, 2
    %v6379 = vadd.f32 %v6377, %v6378
    %v6380 = vrot.slane %v6379, 1
    %v6381 = vadd.f32 %v6379, %v6380
    %v6382 = vsel %vm6185, %v2880, 0.0
    %v6383 = vrot.slane %v6382, 4
    %v6384 = vadd.f32 %v6382, %v6383
    %v6385 = vrot.slane %v6384, 2
    %v6386 = vadd.f32 %v6384, %v6385
    %v6387 = vrot.slane %v6386, 1
    %v6388 = vadd.f32 %v6386, %v6387
    %v6389 = vsel %vm6185, %v2881, 0.0
    %v6390 = vrot.slane %v6389, 4
    %v6391 = vadd.f32 %v6389, %v6390
    %v6392 = vrot.slane %v6391, 2
    %v6393 = vadd.f32 %v6391, %v6392
    %v6394 = vrot.slane %v6393, 1
    %v6395 = vadd.f32 %v6393, %v6394
    %v6396 = vsel %vm6185, %v2882, 0.0
    %v6397 = vrot.slane %v6396, 4
    %v6398 = vadd.f32 %v6396, %v6397
    %v6399 = vrot.slane %v6398, 2
    %v6400 = vadd.f32 %v6398, %v6399
    %v6401 = vrot.slane %v6400, 1
    %v6402 = vadd.f32 %v6400, %v6401
    %v6403 = vsel %vm6185, %v2883, 0.0
    %v6404 = vrot.slane %v6403, 4
    %v6405 = vadd.f32 %v6403, %v6404
    %v6406 = vrot.slane %v6405, 2
    %v6407 = vadd.f32 %v6405, %v6406
    %v6408 = vrot.slane %v6407, 1
    %v6409 = vadd.f32 %v6407, %v6408
    %v6410 = vsel %vm6185, %v2884, 0.0
    %v6411 = vrot.slane %v6410, 4
    %v6412 = vadd.f32 %v6410, %v6411
    %v6413 = vrot.slane %v6412, 2
    %v6414 = vadd.f32 %v6412, %v6413
    %v6415 = vrot.slane %v6414, 1
    %v6416 = vadd.f32 %v6414, %v6415
    %v6417 = vsel %vm6185, %v2885, 0.0
    %v6418 = vrot.slane %v6417, 4
    %v6419 = vadd.f32 %v6417, %v6418
    %v6420 = vrot.slane %v6419, 2
    %v6421 = vadd.f32 %v6419, %v6420
    %v6422 = vrot.slane %v6421, 1
    %v6423 = vadd.f32 %v6421, %v6422
    %v6424 = vsel %vm6185, %v2886, 0.0
    %v6425 = vrot.slane %v6424, 4
    %v6426 = vadd.f32 %v6424, %v6425
    %v6427 = vrot.slane %v6426, 2
    %v6428 = vadd.f32 %v6426, %v6427
    %v6429 = vrot.slane %v6428, 1
    %v6430 = vadd.f32 %v6428, %v6429
    %v6431 = vsel %vm6185, %v2887, 0.0
    %v6432 = vrot.slane %v6431, 4
    %v6433 = vadd.f32 %v6431, %v6432
    %v6434 = vrot.slane %v6433, 2
    %v6435 = vadd.f32 %v6433, %v6434
    %v6436 = vrot.slane %v6435, 1
    %v6437 = vadd.f32 %v6435, %v6436
    %v6438 = vsel %vm6185, %v2888, 0.0
    %v6439 = vrot.slane %v6438, 4
    %v6440 = vadd.f32 %v6438, %v6439
    %v6441 = vrot.slane %v6440, 2
    %v6442 = vadd.f32 %v6440, %v6441
    %v6443 = vrot.slane %v6442, 1
    %v6444 = vadd.f32 %v6442, %v6443
    %v6445 = vsel %vm6185, %v2889, 0.0
    %v6446 = vrot.slane %v6445, 4
    %v6447 = vadd.f32 %v6445, %v6446
    %v6448 = vrot.slane %v6447, 2
    %v6449 = vadd.f32 %v6447, %v6448
    %v6450 = vrot.slane %v6449, 1
    %v6451 = vadd.f32 %v6449, %v6450
    %v6452 = vsel %vm6185, %v2890, 0.0
    %v6453 = vrot.slane %v6452, 4
    %v6454 = vadd.f32 %v6452, %v6453
    %v6455 = vrot.slane %v6454, 2
    %v6456 = vadd.f32 %v6454, %v6455
    %v6457 = vrot.slane %v6456, 1
    %v6458 = vadd.f32 %v6456, %v6457
    %v6459 = vsel %vm6185, %v2891, 0.0
    %v6460 = vrot.slane %v6459, 4
    %v6461 = vadd.f32 %v6459, %v6460
    %v6462 = vrot.slane %v6461, 2
    %v6463 = vadd.f32 %v6461, %v6462
    %v6464 = vrot.slane %v6463, 1
    %v6465 = vadd.f32 %v6463, %v6464
    %v6466 = vsel %vm6185, %v2892, 0.0
    %v6467 = vrot.slane %v6466, 4
    %v6468 = vadd.f32 %v6466, %v6467
    %v6469 = vrot.slane %v6468, 2
    %v6470 = vadd.f32 %v6468, %v6469
    %v6471 = vrot.slane %v6470, 1
    %v6472 = vadd.f32 %v6470, %v6471
    %v6473 = vsel %vm6185, %v2893, 0.0
    %v6474 = vrot.slane %v6473, 4
    %v6475 = vadd.f32 %v6473, %v6474
    %v6476 = vrot.slane %v6475, 2
    %v6477 = vadd.f32 %v6475, %v6476
    %v6478 = vrot.slane %v6477, 1
    %v6479 = vadd.f32 %v6477, %v6478
    %v6480 = vsel %vm6185, %v2894, 0.0
    %v6481 = vrot.slane %v6480, 4
    %v6482 = vadd.f32 %v6480, %v6481
    %v6483 = vrot.slane %v6482, 2
    %v6484 = vadd.f32 %v6482, %v6483
    %v6485 = vrot.slane %v6484, 1
    %v6486 = vadd.f32 %v6484, %v6485
    %v6487 = vsel %vm6185, %v2895, 0.0
    %v6488 = vrot.slane %v6487, 4
    %v6489 = vadd.f32 %v6487, %v6488
    %v6490 = vrot.slane %v6489, 2
    %v6491 = vadd.f32 %v6489, %v6490
    %v6492 = vrot.slane %v6491, 1
    %v6493 = vadd.f32 %v6491, %v6492
    %v6494 = vsel %vm6185, %v2896, 0.0
    %v6495 = vrot.slane %v6494, 4
    %v6496 = vadd.f32 %v6494, %v6495
    %v6497 = vrot.slane %v6496, 2
    %v6498 = vadd.f32 %v6496, %v6497
    %v6499 = vrot.slane %v6498, 1
    %v6500 = vadd.f32 %v6498, %v6499
    %v6501 = vsel %vm6185, %v2897, 0.0
    %v6502 = vrot.slane %v6501, 4
    %v6503 = vadd.f32 %v6501, %v6502
    %v6504 = vrot.slane %v6503, 2
    %v6505 = vadd.f32 %v6503, %v6504
    %v6506 = vrot.slane %v6505, 1
    %v6507 = vadd.f32 %v6505, %v6506
    %v6508 = vsel %vm6185, %v2898, 0.0
    %v6509 = vrot.slane %v6508, 4
    %v6510 = vadd.f32 %v6508, %v6509
    %v6511 = vrot.slane %v6510, 2
    %v6512 = vadd.f32 %v6510, %v6511
    %v6513 = vrot.slane %v6512, 1
    %v6514 = vadd.f32 %v6512, %v6513
    %v6515 = vsel %vm6185, %v2899, 0.0
    %v6516 = vrot.slane %v6515, 4
    %v6517 = vadd.f32 %v6515, %v6516
    %v6518 = vrot.slane %v6517, 2
    %v6519 = vadd.f32 %v6517, %v6518
    %v6520 = vrot.slane %v6519, 1
    %v6521 = vadd.f32 %v6519, %v6520
    %v6522 = vsel %vm6185, %v2900, 0.0
    %v6523 = vrot.slane %v6522, 4
    %v6524 = vadd.f32 %v6522, %v6523
    %v6525 = vrot.slane %v6524, 2
    %v6526 = vadd.f32 %v6524, %v6525
    %v6527 = vrot.slane %v6526, 1
    %v6528 = vadd.f32 %v6526, %v6527
    %v6529 = vsel %vm6185, %v2901, 0.0
    %v6530 = vrot.slane %v6529, 4
    %v6531 = vadd.f32 %v6529, %v6530
    %v6532 = vrot.slane %v6531, 2
    %v6533 = vadd.f32 %v6531, %v6532
    %v6534 = vrot.slane %v6533, 1
    %v6535 = vadd.f32 %v6533, %v6534
    %v6536 = vsel %vm6185, %v2902, 0.0
    %v6537 = vrot.slane %v6536, 4
    %v6538 = vadd.f32 %v6536, %v6537
    %v6539 = vrot.slane %v6538, 2
    %v6540 = vadd.f32 %v6538, %v6539
    %v6541 = vrot.slane %v6540, 1
    %v6542 = vadd.f32 %v6540, %v6541
    %v6543 = vsel %vm6185, %v2903, 0.0
    %v6544 = vrot.slane %v6543, 4
    %v6545 = vadd.f32 %v6543, %v6544
    %v6546 = vrot.slane %v6545, 2
    %v6547 = vadd.f32 %v6545, %v6546
    %v6548 = vrot.slane %v6547, 1
    %v6549 = vadd.f32 %v6547, %v6548
    %v6550 = vsel %vm6185, %v2904, 0.0
    %v6551 = vrot.slane %v6550, 4
    %v6552 = vadd.f32 %v6550, %v6551
    %v6553 = vrot.slane %v6552, 2
    %v6554 = vadd.f32 %v6552, %v6553
    %v6555 = vrot.slane %v6554, 1
    %v6556 = vadd.f32 %v6554, %v6555
    %v6557 = vsel %vm6185, %v2905, 0.0
    %v6558 = vrot.slane %v6557, 4
    %v6559 = vadd.f32 %v6557, %v6558
    %v6560 = vrot.slane %v6559, 2
    %v6561 = vadd.f32 %v6559, %v6560
    %v6562 = vrot.slane %v6561, 1
    %v6563 = vadd.f32 %v6561, %v6562
    %v6564 = vsel %vm6185, %v2906, 0.0
    %v6565 = vrot.slane %v6564, 4
    %v6566 = vadd.f32 %v6564, %v6565
    %v6567 = vrot.slane %v6566, 2
    %v6568 = vadd.f32 %v6566, %v6567
    %v6569 = vrot.slane %v6568, 1
    %v6570 = vadd.f32 %v6568, %v6569
    %v6571 = vsel %vm6185, %v2907, 0.0
    %v6572 = vrot.slane %v6571, 4
    %v6573 = vadd.f32 %v6571, %v6572
    %v6574 = vrot.slane %v6573, 2
    %v6575 = vadd.f32 %v6573, %v6574
    %v6576 = vrot.slane %v6575, 1
    %v6577 = vadd.f32 %v6575, %v6576
    %v6578 = vsel %vm6185, %v2908, 0.0
    %v6579 = vrot.slane %v6578, 4
    %v6580 = vadd.f32 %v6578, %v6579
    %v6581 = vrot.slane %v6580, 2
    %v6582 = vadd.f32 %v6580, %v6581
    %v6583 = vrot.slane %v6582, 1
    %v6584 = vadd.f32 %v6582, %v6583
    %v6585 = vsel %vm6185, %v2909, 0.0
    %v6586 = vrot.slane %v6585, 4
    %v6587 = vadd.f32 %v6585, %v6586
    %v6588 = vrot.slane %v6587, 2
    %v6589 = vadd.f32 %v6587, %v6588
    %v6590 = vrot.slane %v6589, 1
    %v6591 = vadd.f32 %v6589, %v6590
    %v6592 = vsel %vm6185, %v2910, 0.0
    %v6593 = vrot.slane %v6592, 4
    %v6594 = vadd.f32 %v6592, %v6593
    %v6595 = vrot.slane %v6594, 2
    %v6596 = vadd.f32 %v6594, %v6595
    %v6597 = vrot.slane %v6596, 1
    %v6598 = vadd.f32 %v6596, %v6597
    %v6599 = vsel %vm6185, %v2911, 0.0
    %v6600 = vrot.slane %v6599, 4
    %v6601 = vadd.f32 %v6599, %v6600
    %v6602 = vrot.slane %v6601, 2
    %v6603 = vadd.f32 %v6601, %v6602
    %v6604 = vrot.slane %v6603, 1
    %v6605 = vadd.f32 %v6603, %v6604
    %v6606 = vsel %vm6185, %v2912, 0.0
    %v6607 = vrot.slane %v6606, 4
    %v6608 = vadd.f32 %v6606, %v6607
    %v6609 = vrot.slane %v6608, 2
    %v6610 = vadd.f32 %v6608, %v6609
    %v6611 = vrot.slane %v6610, 1
    %v6612 = vadd.f32 %v6610, %v6611
    %v6613 = vsel %vm6185, %v2913, 0.0
    %v6614 = vrot.slane %v6613, 4
    %v6615 = vadd.f32 %v6613, %v6614
    %v6616 = vrot.slane %v6615, 2
    %v6617 = vadd.f32 %v6615, %v6616
    %v6618 = vrot.slane %v6617, 1
    %v6619 = vadd.f32 %v6617, %v6618
    %v6620 = vsel %vm6185, %v2914, 0.0
    %v6621 = vrot.slane %v6620, 4
    %v6622 = vadd.f32 %v6620, %v6621
    %v6623 = vrot.slane %v6622, 2
    %v6624 = vadd.f32 %v6622, %v6623
    %v6625 = vrot.slane %v6624, 1
    %v6626 = vadd.f32 %v6624, %v6625
    %v6627 = vsel %vm6185, %v2915, 0.0
    %v6628 = vrot.slane %v6627, 4
    %v6629 = vadd.f32 %v6627, %v6628
    %v6630 = vrot.slane %v6629, 2
    %v6631 = vadd.f32 %v6629, %v6630
    %v6632 = vrot.slane %v6631, 1
    %v6633 = vadd.f32 %v6631, %v6632
    %v6634 = vsel %vm6185, %v2916, 0.0
    %v6635 = vrot.slane %v6634, 4
    %v6636 = vadd.f32 %v6634, %v6635
    %v6637 = vrot.slane %v6636, 2
    %v6638 = vadd.f32 %v6636, %v6637
    %v6639 = vrot.slane %v6638, 1
    %v6640 = vadd.f32 %v6638, %v6639
    %v6641 = vsel %vm6185, %v2917, 0.0
    %v6642 = vrot.slane %v6641, 4
    %v6643 = vadd.f32 %v6641, %v6642
    %v6644 = vrot.slane %v6643, 2
    %v6645 = vadd.f32 %v6643, %v6644
    %v6646 = vrot.slane %v6645, 1
    %v6647 = vadd.f32 %v6645, %v6646
    %v6648 = vsel %vm6185, %v2918, 0.0
    %v6649 = vrot.slane %v6648, 4
    %v6650 = vadd.f32 %v6648, %v6649
    %v6651 = vrot.slane %v6650, 2
    %v6652 = vadd.f32 %v6650, %v6651
    %v6653 = vrot.slane %v6652, 1
    %v6654 = vadd.f32 %v6652, %v6653
    %v6655 = vsel %vm6185, %v2919, 0.0
    %v6656 = vrot.slane %v6655, 4
    %v6657 = vadd.f32 %v6655, %v6656
    %v6658 = vrot.slane %v6657, 2
    %v6659 = vadd.f32 %v6657, %v6658
    %v6660 = vrot.slane %v6659, 1
    %v6661 = vadd.f32 %v6659, %v6660
    %v6662 = vsel %vm6185, %v2920, 0.0
    %v6663 = vrot.slane %v6662, 4
    %v6664 = vadd.f32 %v6662, %v6663
    %v6665 = vrot.slane %v6664, 2
    %v6666 = vadd.f32 %v6664, %v6665
    %v6667 = vrot.slane %v6666, 1
    %v6668 = vadd.f32 %v6666, %v6667
    %v6669 = vsel %vm6185, %v2921, 0.0
    %v6670 = vrot.slane %v6669, 4
    %v6671 = vadd.f32 %v6669, %v6670
    %v6672 = vrot.slane %v6671, 2
    %v6673 = vadd.f32 %v6671, %v6672
    %v6674 = vrot.slane %v6673, 1
    %v6675 = vadd.f32 %v6673, %v6674
    %v6676 = vsel %vm6185, %v2922, 0.0
    %v6677 = vrot.slane %v6676, 4
    %v6678 = vadd.f32 %v6676, %v6677
    %v6679 = vrot.slane %v6678, 2
    %v6680 = vadd.f32 %v6678, %v6679
    %v6681 = vrot.slane %v6680, 1
    %v6682 = vadd.f32 %v6680, %v6681
    %v6683 = vsel %vm6185, %v2923, 0.0
    %v6684 = vrot.slane %v6683, 4
    %v6685 = vadd.f32 %v6683, %v6684
    %v6686 = vrot.slane %v6685, 2
    %v6687 = vadd.f32 %v6685, %v6686
    %v6688 = vrot.slane %v6687, 1
    %v6689 = vadd.f32 %v6687, %v6688
    %v6690 = vsel %vm6185, %v2924, 0.0
    %v6691 = vrot.slane %v6690, 4
    %v6692 = vadd.f32 %v6690, %v6691
    %v6693 = vrot.slane %v6692, 2
    %v6694 = vadd.f32 %v6692, %v6693
    %v6695 = vrot.slane %v6694, 1
    %v6696 = vadd.f32 %v6694, %v6695
    %v6697 = vsel %vm6185, %v2925, 0.0
    %v6698 = vrot.slane %v6697, 4
    %v6699 = vadd.f32 %v6697, %v6698
    %v6700 = vrot.slane %v6699, 2
    %v6701 = vadd.f32 %v6699, %v6700
    %v6702 = vrot.slane %v6701, 1
    %v6703 = vadd.f32 %v6701, %v6702
    %v6704 = vsel %vm6185, %v2926, 0.0
    %v6705 = vrot.slane %v6704, 4
    %v6706 = vadd.f32 %v6704, %v6705
    %v6707 = vrot.slane %v6706, 2
    %v6708 = vadd.f32 %v6706, %v6707
    %v6709 = vrot.slane %v6708, 1
    %v6710 = vadd.f32 %v6708, %v6709
    %v6711 = vsel %vm6185, %v2927, 0.0
    %v6712 = vrot.slane %v6711, 4
    %v6713 = vadd.f32 %v6711, %v6712
    %v6714 = vrot.slane %v6713, 2
    %v6715 = vadd.f32 %v6713, %v6714
    %v6716 = vrot.slane %v6715, 1
    %v6717 = vadd.f32 %v6715, %v6716
    %v6718 = vsel %vm6185, %v2928, 0.0
    %v6719 = vrot.slane %v6718, 4
    %v6720 = vadd.f32 %v6718, %v6719
    %v6721 = vrot.slane %v6720, 2
    %v6722 = vadd.f32 %v6720, %v6721
    %v6723 = vrot.slane %v6722, 1
    %v6724 = vadd.f32 %v6722, %v6723
    %v6725 = vsel %vm6185, %v2929, 0.0
    %v6726 = vrot.slane %v6725, 4
    %v6727 = vadd.f32 %v6725, %v6726
    %v6728 = vrot.slane %v6727, 2
    %v6729 = vadd.f32 %v6727, %v6728
    %v6730 = vrot.slane %v6729, 1
    %v6731 = vadd.f32 %v6729, %v6730
    %v6732 = vsel %vm6185, %v2930, 0.0
    %v6733 = vrot.slane %v6732, 4
    %v6734 = vadd.f32 %v6732, %v6733
    %v6735 = vrot.slane %v6734, 2
    %v6736 = vadd.f32 %v6734, %v6735
    %v6737 = vrot.slane %v6736, 1
    %v6738 = vadd.f32 %v6736, %v6737
    %v6739 = vsel %vm6185, %v2931, 0.0
    %v6740 = vrot.slane %v6739, 4
    %v6741 = vadd.f32 %v6739, %v6740
    %v6742 = vrot.slane %v6741, 2
    %v6743 = vadd.f32 %v6741, %v6742
    %v6744 = vrot.slane %v6743, 1
    %v6745 = vadd.f32 %v6743, %v6744
    %v6746 = vsel %vm6185, %v2932, 0.0
    %v6747 = vrot.slane %v6746, 4
    %v6748 = vadd.f32 %v6746, %v6747
    %v6749 = vrot.slane %v6748, 2
    %v6750 = vadd.f32 %v6748, %v6749
    %v6751 = vrot.slane %v6750, 1
    %v6752 = vadd.f32 %v6750, %v6751
    %v6753 = vsel %vm6185, %v2933, 0.0
    %v6754 = vrot.slane %v6753, 4
    %v6755 = vadd.f32 %v6753, %v6754
    %v6756 = vrot.slane %v6755, 2
    %v6757 = vadd.f32 %v6755, %v6756
    %v6758 = vrot.slane %v6757, 1
    %v6759 = vadd.f32 %v6757, %v6758
    %v6760 = vsel %vm6185, %v2934, 0.0
    %v6761 = vrot.slane %v6760, 4
    %v6762 = vadd.f32 %v6760, %v6761
    %v6763 = vrot.slane %v6762, 2
    %v6764 = vadd.f32 %v6762, %v6763
    %v6765 = vrot.slane %v6764, 1
    %v6766 = vadd.f32 %v6764, %v6765
    %v6767 = vsel %vm6185, %v2935, 0.0
    %v6768 = vrot.slane %v6767, 4
    %v6769 = vadd.f32 %v6767, %v6768
    %v6770 = vrot.slane %v6769, 2
    %v6771 = vadd.f32 %v6769, %v6770
    %v6772 = vrot.slane %v6771, 1
    %v6773 = vadd.f32 %v6771, %v6772
    %v6774 = vsel %vm6185, %v2936, 0.0
    %v6775 = vrot.slane %v6774, 4
    %v6776 = vadd.f32 %v6774, %v6775
    %v6777 = vrot.slane %v6776, 2
    %v6778 = vadd.f32 %v6776, %v6777
    %v6779 = vrot.slane %v6778, 1
    %v6780 = vadd.f32 %v6778, %v6779
    %v6781 = vsel %vm6185, %v2937, 0.0
    %v6782 = vrot.slane %v6781, 4
    %v6783 = vadd.f32 %v6781, %v6782
    %v6784 = vrot.slane %v6783, 2
    %v6785 = vadd.f32 %v6783, %v6784
    %v6786 = vrot.slane %v6785, 1
    %v6787 = vadd.f32 %v6785, %v6786
    %v6788 = vsel %vm6185, %v2938, 0.0
    %v6789 = vrot.slane %v6788, 4
    %v6790 = vadd.f32 %v6788, %v6789
    %v6791 = vrot.slane %v6790, 2
    %v6792 = vadd.f32 %v6790, %v6791
    %v6793 = vrot.slane %v6792, 1
    %v6794 = vadd.f32 %v6792, %v6793
    %v6795 = vsel %vm6185, %v2939, 0.0
    %v6796 = vrot.slane %v6795, 4
    %v6797 = vadd.f32 %v6795, %v6796
    %v6798 = vrot.slane %v6797, 2
    %v6799 = vadd.f32 %v6797, %v6798
    %v6800 = vrot.slane %v6799, 1
    %v6801 = vadd.f32 %v6799, %v6800
    %v6802 = vsel %vm6185, %v2940, 0.0
    %v6803 = vrot.slane %v6802, 4
    %v6804 = vadd.f32 %v6802, %v6803
    %v6805 = vrot.slane %v6804, 2
    %v6806 = vadd.f32 %v6804, %v6805
    %v6807 = vrot.slane %v6806, 1
    %v6808 = vadd.f32 %v6806, %v6807
    %v6809 = vsel %vm6185, %v2941, 0.0
    %v6810 = vrot.slane %v6809, 4
    %v6811 = vadd.f32 %v6809, %v6810
    %v6812 = vrot.slane %v6811, 2
    %v6813 = vadd.f32 %v6811, %v6812
    %v6814 = vrot.slane %v6813, 1
    %v6815 = vadd.f32 %v6813, %v6814
    %v6816 = vsel %vm6185, %v2942, 0.0
    %v6817 = vrot.slane %v6816, 4
    %v6818 = vadd.f32 %v6816, %v6817
    %v6819 = vrot.slane %v6818, 2
    %v6820 = vadd.f32 %v6818, %v6819
    %v6821 = vrot.slane %v6820, 1
    %v6822 = vadd.f32 %v6820, %v6821
    %v6823 = vsel %vm6185, %v2943, 0.0
    %v6824 = vrot.slane %v6823, 4
    %v6825 = vadd.f32 %v6823, %v6824
    %v6826 = vrot.slane %v6825, 2
    %v6827 = vadd.f32 %v6825, %v6826
    %v6828 = vrot.slane %v6827, 1
    %v6829 = vadd.f32 %v6827, %v6828
    %v6830 = vsel %vm6185, %v2944, 0.0
    %v6831 = vrot.slane %v6830, 4
    %v6832 = vadd.f32 %v6830, %v6831
    %v6833 = vrot.slane %v6832, 2
    %v6834 = vadd.f32 %v6832, %v6833
    %v6835 = vrot.slane %v6834, 1
    %v6836 = vadd.f32 %v6834, %v6835
    %v6837 = vsel %vm6185, %v2945, 0.0
    %v6838 = vrot.slane %v6837, 4
    %v6839 = vadd.f32 %v6837, %v6838
    %v6840 = vrot.slane %v6839, 2
    %v6841 = vadd.f32 %v6839, %v6840
    %v6842 = vrot.slane %v6841, 1
    %v6843 = vadd.f32 %v6841, %v6842
    %v6844 = vsel %vm6185, %v2946, 0.0
    %v6845 = vrot.slane %v6844, 4
    %v6846 = vadd.f32 %v6844, %v6845
    %v6847 = vrot.slane %v6846, 2
    %v6848 = vadd.f32 %v6846, %v6847
    %v6849 = vrot.slane %v6848, 1
    %v6850 = vadd.f32 %v6848, %v6849
    %v6851 = vsel %vm6185, %v2947, 0.0
    %v6852 = vrot.slane %v6851, 4
    %v6853 = vadd.f32 %v6851, %v6852
    %v6854 = vrot.slane %v6853, 2
    %v6855 = vadd.f32 %v6853, %v6854
    %v6856 = vrot.slane %v6855, 1
    %v6857 = vadd.f32 %v6855, %v6856
    %v6858 = vsel %vm6185, %v2948, 0.0
    %v6859 = vrot.slane %v6858, 4
    %v6860 = vadd.f32 %v6858, %v6859
    %v6861 = vrot.slane %v6860, 2
    %v6862 = vadd.f32 %v6860, %v6861
    %v6863 = vrot.slane %v6862, 1
    %v6864 = vadd.f32 %v6862, %v6863
    %v6865 = vsel %vm6185, %v2949, 0.0
    %v6866 = vrot.slane %v6865, 4
    %v6867 = vadd.f32 %v6865, %v6866
    %v6868 = vrot.slane %v6867, 2
    %v6869 = vadd.f32 %v6867, %v6868
    %v6870 = vrot.slane %v6869, 1
    %v6871 = vadd.f32 %v6869, %v6870
    %v6872 = vsel %vm6185, %v2950, 0.0
    %v6873 = vrot.slane %v6872, 4
    %v6874 = vadd.f32 %v6872, %v6873
    %v6875 = vrot.slane %v6874, 2
    %v6876 = vadd.f32 %v6874, %v6875
    %v6877 = vrot.slane %v6876, 1
    %v6878 = vadd.f32 %v6876, %v6877
    %v6879 = vsel %vm6185, %v2951, 0.0
    %v6880 = vrot.slane %v6879, 4
    %v6881 = vadd.f32 %v6879, %v6880
    %v6882 = vrot.slane %v6881, 2
    %v6883 = vadd.f32 %v6881, %v6882
    %v6884 = vrot.slane %v6883, 1
    %v6885 = vadd.f32 %v6883, %v6884
    %v6886 = vsel %vm6185, %v2952, 0.0
    %v6887 = vrot.slane %v6886, 4
    %v6888 = vadd.f32 %v6886, %v6887
    %v6889 = vrot.slane %v6888, 2
    %v6890 = vadd.f32 %v6888, %v6889
    %v6891 = vrot.slane %v6890, 1
    %v6892 = vadd.f32 %v6890, %v6891
    %v6893 = vsel %vm6185, %v2953, 0.0
    %v6894 = vrot.slane %v6893, 4
    %v6895 = vadd.f32 %v6893, %v6894
    %v6896 = vrot.slane %v6895, 2
    %v6897 = vadd.f32 %v6895, %v6896
    %v6898 = vrot.slane %v6897, 1
    %v6899 = vadd.f32 %v6897, %v6898
    %v6900 = vsel %vm6185, %v2954, 0.0
    %v6901 = vrot.slane %v6900, 4
    %v6902 = vadd.f32 %v6900, %v6901
    %v6903 = vrot.slane %v6902, 2
    %v6904 = vadd.f32 %v6902, %v6903
    %v6905 = vrot.slane %v6904, 1
    %v6906 = vadd.f32 %v6904, %v6905
    %v6907 = vsel %vm6185, %v2955, 0.0
    %v6908 = vrot.slane %v6907, 4
    %v6909 = vadd.f32 %v6907, %v6908
    %v6910 = vrot.slane %v6909, 2
    %v6911 = vadd.f32 %v6909, %v6910
    %v6912 = vrot.slane %v6911, 1
    %v6913 = vadd.f32 %v6911, %v6912
    %v6914 = vsel %vm6185, %v2956, 0.0
    %v6915 = vrot.slane %v6914, 4
    %v6916 = vadd.f32 %v6914, %v6915
    %v6917 = vrot.slane %v6916, 2
    %v6918 = vadd.f32 %v6916, %v6917
    %v6919 = vrot.slane %v6918, 1
    %v6920 = vadd.f32 %v6918, %v6919
    %v6921 = vsel %vm6185, %v2957, 0.0
    %v6922 = vrot.slane %v6921, 4
    %v6923 = vadd.f32 %v6921, %v6922
    %v6924 = vrot.slane %v6923, 2
    %v6925 = vadd.f32 %v6923, %v6924
    %v6926 = vrot.slane %v6925, 1
    %v6927 = vadd.f32 %v6925, %v6926
    %v6928 = vsel %vm6185, %v2958, 0.0
    %v6929 = vrot.slane %v6928, 4
    %v6930 = vadd.f32 %v6928, %v6929
    %v6931 = vrot.slane %v6930, 2
    %v6932 = vadd.f32 %v6930, %v6931
    %v6933 = vrot.slane %v6932, 1
    %v6934 = vadd.f32 %v6932, %v6933
    %v6935 = vsel %vm6185, %v2959, 0.0
    %v6936 = vrot.slane %v6935, 4
    %v6937 = vadd.f32 %v6935, %v6936
    %v6938 = vrot.slane %v6937, 2
    %v6939 = vadd.f32 %v6937, %v6938
    %v6940 = vrot.slane %v6939, 1
    %v6941 = vadd.f32 %v6939, %v6940
    %v6942 = vsel %vm6185, %v2960, 0.0
    %v6943 = vrot.slane %v6942, 4
    %v6944 = vadd.f32 %v6942, %v6943
    %v6945 = vrot.slane %v6944, 2
    %v6946 = vadd.f32 %v6944, %v6945
    %v6947 = vrot.slane %v6946, 1
    %v6948 = vadd.f32 %v6946, %v6947
    %v6949 = vsel %vm6185, %v2961, 0.0
    %v6950 = vrot.slane %v6949, 4
    %v6951 = vadd.f32 %v6949, %v6950
    %v6952 = vrot.slane %v6951, 2
    %v6953 = vadd.f32 %v6951, %v6952
    %v6954 = vrot.slane %v6953, 1
    %v6955 = vadd.f32 %v6953, %v6954
    %v6956 = vsel %vm6185, %v2962, 0.0
    %v6957 = vrot.slane %v6956, 4
    %v6958 = vadd.f32 %v6956, %v6957
    %v6959 = vrot.slane %v6958, 2
    %v6960 = vadd.f32 %v6958, %v6959
    %v6961 = vrot.slane %v6960, 1
    %v6962 = vadd.f32 %v6960, %v6961
    %v6963 = vsel %vm6185, %v2963, 0.0
    %v6964 = vrot.slane %v6963, 4
    %v6965 = vadd.f32 %v6963, %v6964
    %v6966 = vrot.slane %v6965, 2
    %v6967 = vadd.f32 %v6965, %v6966
    %v6968 = vrot.slane %v6967, 1
    %v6969 = vadd.f32 %v6967, %v6968
    %v6970 = vsel %vm6185, %v2964, 0.0
    %v6971 = vrot.slane %v6970, 4
    %v6972 = vadd.f32 %v6970, %v6971
    %v6973 = vrot.slane %v6972, 2
    %v6974 = vadd.f32 %v6972, %v6973
    %v6975 = vrot.slane %v6974, 1
    %v6976 = vadd.f32 %v6974, %v6975
    %v6977 = vsel %vm6185, %v2965, 0.0
    %v6978 = vrot.slane %v6977, 4
    %v6979 = vadd.f32 %v6977, %v6978
    %v6980 = vrot.slane %v6979, 2
    %v6981 = vadd.f32 %v6979, %v6980
    %v6982 = vrot.slane %v6981, 1
    %v6983 = vadd.f32 %v6981, %v6982
    %v6984 = vsel %vm6185, %v2966, 0.0
    %v6985 = vrot.slane %v6984, 4
    %v6986 = vadd.f32 %v6984, %v6985
    %v6987 = vrot.slane %v6986, 2
    %v6988 = vadd.f32 %v6986, %v6987
    %v6989 = vrot.slane %v6988, 1
    %v6990 = vadd.f32 %v6988, %v6989
    %v6991 = vsel %vm6185, %v2967, 0.0
    %v6992 = vrot.slane %v6991, 4
    %v6993 = vadd.f32 %v6991, %v6992
    %v6994 = vrot.slane %v6993, 2
    %v6995 = vadd.f32 %v6993, %v6994
    %v6996 = vrot.slane %v6995, 1
    %v6997 = vadd.f32 %v6995, %v6996
    %v6998 = vsel %vm6185, %v2968, 0.0
    %v6999 = vrot.slane %v6998, 4
    %v7000 = vadd.f32 %v6998, %v6999
    %v7001 = vrot.slane %v7000, 2
    %v7002 = vadd.f32 %v7000, %v7001
    %v7003 = vrot.slane %v7002, 1
    %v7004 = vadd.f32 %v7002, %v7003
    %v7005 = vsel %vm6185, %v2969, 0.0
    %v7006 = vrot.slane %v7005, 4
    %v7007 = vadd.f32 %v7005, %v7006
    %v7008 = vrot.slane %v7007, 2
    %v7009 = vadd.f32 %v7007, %v7008
    %v7010 = vrot.slane %v7009, 1
    %v7011 = vadd.f32 %v7009, %v7010
    %v7012 = vsel %vm6185, %v2970, 0.0
    %v7013 = vrot.slane %v7012, 4
    %v7014 = vadd.f32 %v7012, %v7013
    %v7015 = vrot.slane %v7014, 2
    %v7016 = vadd.f32 %v7014, %v7015
    %v7017 = vrot.slane %v7016, 1
    %v7018 = vadd.f32 %v7016, %v7017
    %v7019 = vsel %vm6185, %v2971, 0.0
    %v7020 = vrot.slane %v7019, 4
    %v7021 = vadd.f32 %v7019, %v7020
    %v7022 = vrot.slane %v7021, 2
    %v7023 = vadd.f32 %v7021, %v7022
    %v7024 = vrot.slane %v7023, 1
    %v7025 = vadd.f32 %v7023, %v7024
    %v7026 = vsel %vm6185, %v2972, 0.0
    %v7027 = vrot.slane %v7026, 4
    %v7028 = vadd.f32 %v7026, %v7027
    %v7029 = vrot.slane %v7028, 2
    %v7030 = vadd.f32 %v7028, %v7029
    %v7031 = vrot.slane %v7030, 1
    %v7032 = vadd.f32 %v7030, %v7031
    %v7033 = vsel %vm6185, %v2973, 0.0
    %v7034 = vrot.slane %v7033, 4
    %v7035 = vadd.f32 %v7033, %v7034
    %v7036 = vrot.slane %v7035, 2
    %v7037 = vadd.f32 %v7035, %v7036
    %v7038 = vrot.slane %v7037, 1
    %v7039 = vadd.f32 %v7037, %v7038
    %v7040 = vsel %vm6185, %v2974, 0.0
    %v7041 = vrot.slane %v7040, 4
    %v7042 = vadd.f32 %v7040, %v7041
    %v7043 = vrot.slane %v7042, 2
    %v7044 = vadd.f32 %v7042, %v7043
    %v7045 = vrot.slane %v7044, 1
    %v7046 = vadd.f32 %v7044, %v7045
    %v7047 = vsel %vm6185, %v2975, 0.0
    %v7048 = vrot.slane %v7047, 4
    %v7049 = vadd.f32 %v7047, %v7048
    %v7050 = vrot.slane %v7049, 2
    %v7051 = vadd.f32 %v7049, %v7050
    %v7052 = vrot.slane %v7051, 1
    %v7053 = vadd.f32 %v7051, %v7052
    %v7054 = vsel %vm6185, %v2976, 0.0
    %v7055 = vrot.slane %v7054, 4
    %v7056 = vadd.f32 %v7054, %v7055
    %v7057 = vrot.slane %v7056, 2
    %v7058 = vadd.f32 %v7056, %v7057
    %v7059 = vrot.slane %v7058, 1
    %v7060 = vadd.f32 %v7058, %v7059
    %v7061 = vsel %vm6185, %v2977, 0.0
    %v7062 = vrot.slane %v7061, 4
    %v7063 = vadd.f32 %v7061, %v7062
    %v7064 = vrot.slane %v7063, 2
    %v7065 = vadd.f32 %v7063, %v7064
    %v7066 = vrot.slane %v7065, 1
    %v7067 = vadd.f32 %v7065, %v7066
    %v7068 = vsel %vm6185, %v2978, 0.0
    %v7069 = vrot.slane %v7068, 4
    %v7070 = vadd.f32 %v7068, %v7069
    %v7071 = vrot.slane %v7070, 2
    %v7072 = vadd.f32 %v7070, %v7071
    %v7073 = vrot.slane %v7072, 1
    %v7074 = vadd.f32 %v7072, %v7073
    %v7075 = vsel %vm6185, %v2979, 0.0
    %v7076 = vrot.slane %v7075, 4
    %v7077 = vadd.f32 %v7075, %v7076
    %v7078 = vrot.slane %v7077, 2
    %v7079 = vadd.f32 %v7077, %v7078
    %v7080 = vrot.slane %v7079, 1
    %v7081 = vadd.f32 %v7079, %v7080
    %v7082 = vmax.f32 %v6192, 1e-30
    %v7083 = vmax.f32 %v6199, 1e-30
    %v7084 = vmax.f32 %v6206, 1e-30
    %v7085 = vmax.f32 %v6213, 1e-30
    %v7086 = vmax.f32 %v6220, 1e-30
    %v7087 = vmax.f32 %v6227, 1e-30
    %v7088 = vmax.f32 %v6234, 1e-30
    %v7089 = vmax.f32 %v6241, 1e-30
    %v7090 = vmax.f32 %v6248, 1e-30
    %v7091 = vmax.f32 %v6255, 1e-30
    %v7092 = vmax.f32 %v6262, 1e-30
    %v7093 = vmax.f32 %v6269, 1e-30
    %v7094 = vmax.f32 %v6276, 1e-30
    %v7095 = vmax.f32 %v6283, 1e-30
    %v7096 = vmax.f32 %v6290, 1e-30
    %v7097 = vmax.f32 %v6297, 1e-30
    %v7098 = vmax.f32 %v6304, 1e-30
    %v7099 = vmax.f32 %v6311, 1e-30
    %v7100 = vmax.f32 %v6318, 1e-30
    %v7101 = vmax.f32 %v6325, 1e-30
    %v7102 = vmax.f32 %v6332, 1e-30
    %v7103 = vmax.f32 %v6339, 1e-30
    %v7104 = vmax.f32 %v6346, 1e-30
    %v7105 = vmax.f32 %v6353, 1e-30
    %v7106 = vmax.f32 %v6360, 1e-30
    %v7107 = vmax.f32 %v6367, 1e-30
    %v7108 = vmax.f32 %v6374, 1e-30
    %v7109 = vmax.f32 %v6381, 1e-30
    %v7110 = vmax.f32 %v6388, 1e-30
    %v7111 = vmax.f32 %v6395, 1e-30
    %v7112 = vmax.f32 %v6402, 1e-30
    %v7113 = vmax.f32 %v6409, 1e-30
    %v7114 = vmax.f32 %v6416, 1e-30
    %v7115 = vmax.f32 %v6423, 1e-30
    %v7116 = vmax.f32 %v6430, 1e-30
    %v7117 = vmax.f32 %v6437, 1e-30
    %v7118 = vmax.f32 %v6444, 1e-30
    %v7119 = vmax.f32 %v6451, 1e-30
    %v7120 = vmax.f32 %v6458, 1e-30
    %v7121 = vmax.f32 %v6465, 1e-30
    %v7122 = vmax.f32 %v6472, 1e-30
    %v7123 = vmax.f32 %v6479, 1e-30
    %v7124 = vmax.f32 %v6486, 1e-30
    %v7125 = vmax.f32 %v6493, 1e-30
    %v7126 = vmax.f32 %v6500, 1e-30
    %v7127 = vmax.f32 %v6507, 1e-30
    %v7128 = vmax.f32 %v6514, 1e-30
    %v7129 = vmax.f32 %v6521, 1e-30
    %v7130 = vmax.f32 %v6528, 1e-30
    %v7131 = vmax.f32 %v6535, 1e-30
    %v7132 = vmax.f32 %v6542, 1e-30
    %v7133 = vmax.f32 %v6549, 1e-30
    %v7134 = vmax.f32 %v6556, 1e-30
    %v7135 = vmax.f32 %v6563, 1e-30
    %v7136 = vmax.f32 %v6570, 1e-30
    %v7137 = vmax.f32 %v6577, 1e-30
    %v7138 = vmax.f32 %v6584, 1e-30
    %v7139 = vmax.f32 %v6591, 1e-30
    %v7140 = vmax.f32 %v6598, 1e-30
    %v7141 = vmax.f32 %v6605, 1e-30
    %v7142 = vmax.f32 %v6612, 1e-30
    %v7143 = vmax.f32 %v6619, 1e-30
    %v7144 = vmax.f32 %v6626, 1e-30
    %v7145 = vmax.f32 %v6633, 1e-30
    %v7146 = vmax.f32 %v6640, 1e-30
    %v7147 = vmax.f32 %v6647, 1e-30
    %v7148 = vmax.f32 %v6654, 1e-30
    %v7149 = vmax.f32 %v6661, 1e-30
    %v7150 = vmax.f32 %v6668, 1e-30
    %v7151 = vmax.f32 %v6675, 1e-30
    %v7152 = vmax.f32 %v6682, 1e-30
    %v7153 = vmax.f32 %v6689, 1e-30
    %v7154 = vmax.f32 %v6696, 1e-30
    %v7155 = vmax.f32 %v6703, 1e-30
    %v7156 = vmax.f32 %v6710, 1e-30
    %v7157 = vmax.f32 %v6717, 1e-30
    %v7158 = vmax.f32 %v6724, 1e-30
    %v7159 = vmax.f32 %v6731, 1e-30
    %v7160 = vmax.f32 %v6738, 1e-30
    %v7161 = vmax.f32 %v6745, 1e-30
    %v7162 = vmax.f32 %v6752, 1e-30
    %v7163 = vmax.f32 %v6759, 1e-30
    %v7164 = vmax.f32 %v6766, 1e-30
    %v7165 = vmax.f32 %v6773, 1e-30
    %v7166 = vmax.f32 %v6780, 1e-30
    %v7167 = vmax.f32 %v6787, 1e-30
    %v7168 = vmax.f32 %v6794, 1e-30
    %v7169 = vmax.f32 %v6801, 1e-30
    %v7170 = vmax.f32 %v6808, 1e-30
    %v7171 = vmax.f32 %v6815, 1e-30
    %v7172 = vmax.f32 %v6822, 1e-30
    %v7173 = vmax.f32 %v6829, 1e-30
    %v7174 = vmax.f32 %v6836, 1e-30
    %v7175 = vmax.f32 %v6843, 1e-30
    %v7176 = vmax.f32 %v6850, 1e-30
    %v7177 = vmax.f32 %v6857, 1e-30
    %v7178 = vmax.f32 %v6864, 1e-30
    %v7179 = vmax.f32 %v6871, 1e-30
    %v7180 = vmax.f32 %v6878, 1e-30
    %v7181 = vmax.f32 %v6885, 1e-30
    %v7182 = vmax.f32 %v6892, 1e-30
    %v7183 = vmax.f32 %v6899, 1e-30
    %v7184 = vmax.f32 %v6906, 1e-30
    %v7185 = vmax.f32 %v6913, 1e-30
    %v7186 = vmax.f32 %v6920, 1e-30
    %v7187 = vmax.f32 %v6927, 1e-30
    %v7188 = vmax.f32 %v6934, 1e-30
    %v7189 = vmax.f32 %v6941, 1e-30
    %v7190 = vmax.f32 %v6948, 1e-30
    %v7191 = vmax.f32 %v6955, 1e-30
    %v7192 = vmax.f32 %v6962, 1e-30
    %v7193 = vmax.f32 %v6969, 1e-30
    %v7194 = vmax.f32 %v6976, 1e-30
    %v7195 = vmax.f32 %v6983, 1e-30
    %v7196 = vmax.f32 %v6990, 1e-30
    %v7197 = vmax.f32 %v6997, 1e-30
    %v7198 = vmax.f32 %v7004, 1e-30
    %v7199 = vmax.f32 %v7011, 1e-30
    %v7200 = vmax.f32 %v7018, 1e-30
    %v7201 = vmax.f32 %v7025, 1e-30
    %v7202 = vmax.f32 %v7032, 1e-30
    %v7203 = vmax.f32 %v7039, 1e-30
    %v7204 = vmax.f32 %v7046, 1e-30
    %v7205 = vmax.f32 %v7053, 1e-30
    %v7206 = vmax.f32 %v7060, 1e-30
    %v7207 = vmax.f32 %v7067, 1e-30
    %v7208 = vmax.f32 %v7074, 1e-30
    %v7209 = vmax.f32 %v7081, 1e-30
    %v7210 = vrcp.pop %v7082
    %v7211 = vrcp.pop %v7083
    %v7212 = vrcp.pop %v7084
    %v7213 = vrcp.pop %v7085
    %v7214 = vrcp.pop %v7086
    %v7215 = vrcp.pop %v7087
    %v7216 = vrcp.pop %v7088
    %v7217 = vrcp.pop %v7089
    %v7218 = vrcp.pop %v7090
    %v7219 = vrcp.pop %v7091
    %v7220 = vrcp.pop %v7092
    %v7221 = vrcp.pop %v7093
    %v7222 = vrcp.pop %v7094
    %v7223 = vrcp.pop %v7095
    %v7224 = vrcp.pop %v7096
    %v7225 = vrcp.pop %v7097
    %v7226 = vrcp.pop %v7098
    %v7227 = vrcp.pop %v7099
    %v7228 = vrcp.pop %v7100
    %v7229 = vrcp.pop %v7101
    %v7230 = vrcp.pop %v7102
    %v7231 = vrcp.pop %v7103
    %v7232 = vrcp.pop %v7104
    %v7233 = vrcp.pop %v7105
    %v7234 = vrcp.pop %v7106
    %v7235 = vrcp.pop %v7107
    %v7236 = vrcp.pop %v7108
    %v7237 = vrcp.pop %v7109
    %v7238 = vrcp.pop %v7110
    %v7239 = vrcp.pop %v7111
    %v7240 = vrcp.pop %v7112
    %v7241 = vrcp.pop %v7113
    %v7242 = vrcp.pop %v7114
    %v7243 = vrcp.pop %v7115
    %v7244 = vrcp.pop %v7116
    %v7245 = vrcp.pop %v7117
    %v7246 = vrcp.pop %v7118
    %v7247 = vrcp.pop %v7119
    %v7248 = vrcp.pop %v7120
    %v7249 = vrcp.pop %v7121
    %v7250 = vrcp.pop %v7122
    %v7251 = vrcp.pop %v7123
    %v7252 = vrcp.pop %v7124
    %v7253 = vrcp.pop %v7125
    %v7254 = vrcp.pop %v7126
    %v7255 = vrcp.pop %v7127
    %v7256 = vrcp.pop %v7128
    %v7257 = vrcp.pop %v7129
    %v7258 = vrcp.pop %v7130
    %v7259 = vrcp.pop %v7131
    %v7260 = vrcp.pop %v7132
    %v7261 = vrcp.pop %v7133
    %v7262 = vrcp.pop %v7134
    %v7263 = vrcp.pop %v7135
    %v7264 = vrcp.pop %v7136
    %v7265 = vrcp.pop %v7137
    %v7266 = vrcp.pop %v7138
    %v7267 = vrcp.pop %v7139
    %v7268 = vrcp.pop %v7140
    %v7269 = vrcp.pop %v7141
    %v7270 = vrcp.pop %v7142
    %v7271 = vrcp.pop %v7143
    %v7272 = vrcp.pop %v7144
    %v7273 = vrcp.pop %v7145
    %v7274 = vrcp.pop %v7146
    %v7275 = vrcp.pop %v7147
    %v7276 = vrcp.pop %v7148
    %v7277 = vrcp.pop %v7149
    %v7278 = vrcp.pop %v7150
    %v7279 = vrcp.pop %v7151
    %v7280 = vrcp.pop %v7152
    %v7281 = vrcp.pop %v7153
    %v7282 = vrcp.pop %v7154
    %v7283 = vrcp.pop %v7155
    %v7284 = vrcp.pop %v7156
    %v7285 = vrcp.pop %v7157
    %v7286 = vrcp.pop %v7158
    %v7287 = vrcp.pop %v7159
    %v7288 = vrcp.pop %v7160
    %v7289 = vrcp.pop %v7161
    %v7290 = vrcp.pop %v7162
    %v7291 = vrcp.pop %v7163
    %v7292 = vrcp.pop %v7164
    %v7293 = vrcp.pop %v7165
    %v7294 = vrcp.pop %v7166
    %v7295 = vrcp.pop %v7167
    %v7296 = vrcp.pop %v7168
    %v7297 = vrcp.pop %v7169
    %v7298 = vrcp.pop %v7170
    %v7299 = vrcp.pop %v7171
    %v7300 = vrcp.pop %v7172
    %v7301 = vrcp.pop %v7173
    %v7302 = vrcp.pop %v7174
    %v7303 = vrcp.pop %v7175
    %v7304 = vrcp.pop %v7176
    %v7305 = vrcp.pop %v7177
    %v7306 = vrcp.pop %v7178
    %v7307 = vrcp.pop %v7179
    %v7308 = vrcp.pop %v7180
    %v7309 = vrcp.pop %v7181
    %v7310 = vrcp.pop %v7182
    %v7311 = vrcp.pop %v7183
    %v7312 = vrcp.pop %v7184
    %v7313 = vrcp.pop %v7185
    %v7314 = vrcp.pop %v7186
    %v7315 = vrcp.pop %v7187
    %v7316 = vrcp.pop %v7188
    %v7317 = vrcp.pop %v7189
    %v7318 = vrcp.pop %v7190
    %v7319 = vrcp.pop %v7191
    %v7320 = vrcp.pop %v7192
    %v7321 = vrcp.pop %v7193
    %v7322 = vrcp.pop %v7194
    %v7323 = vrcp.pop %v7195
    %v7324 = vrcp.pop %v7196
    %v7325 = vrcp.pop %v7197
    %v7326 = vrcp.pop %v7198
    %v7327 = vrcp.pop %v7199
    %v7328 = vrcp.pop %v7200
    %v7329 = vrcp.pop %v7201
    %v7330 = vrcp.pop %v7202
    %v7331 = vrcp.pop %v7203
    %v7332 = vrcp.pop %v7204
    %v7333 = vrcp.pop %v7205
    %v7334 = vrcp.pop %v7206
    %v7335 = vrcp.pop %v7207
    %v7336 = vrcp.pop %v7208
    %v7337 = vrcp.pop %v7209
    %7339 = vset.pattern.permute.xlu0 0
    %7340 = vperm.xlu0 %7339, %v7210
    %v7341 = vpop.permute.xlu0 %7340
    %7343 = vset.pattern.permute.xlu0 0
    %7344 = vperm.xlu0 %7343, %v7211
    %v7345 = vpop.permute.xlu0 %7344
    %7347 = vset.pattern.permute.xlu0 0
    %7348 = vperm.xlu0 %7347, %v7212
    %v7349 = vpop.permute.xlu0 %7348
    %7351 = vset.pattern.permute.xlu0 0
    %7352 = vperm.xlu0 %7351, %v7213
    %v7353 = vpop.permute.xlu0 %7352
    %7355 = vset.pattern.permute.xlu0 0
    %7356 = vperm.xlu0 %7355, %v7214
    %v7357 = vpop.permute.xlu0 %7356
    %7359 = vset.pattern.permute.xlu0 0
    %7360 = vperm.xlu0 %7359, %v7215
    %v7361 = vpop.permute.xlu0 %7360
    %7363 = vset.pattern.permute.xlu0 0
    %7364 = vperm.xlu0 %7363, %v7216
    %v7365 = vpop.permute.xlu0 %7364
    %7367 = vset.pattern.permute.xlu0 0
    %7368 = vperm.xlu0 %7367, %v7217
    %v7369 = vpop.permute.xlu0 %7368
    %7371 = vset.pattern.permute.xlu0 0
    %7372 = vperm.xlu0 %7371, %v7218
    %v7373 = vpop.permute.xlu0 %7372
    %7375 = vset.pattern.permute.xlu0 0
    %7376 = vperm.xlu0 %7375, %v7219
    %v7377 = vpop.permute.xlu0 %7376
    %7379 = vset.pattern.permute.xlu0 0
    %7380 = vperm.xlu0 %7379, %v7220
    %v7381 = vpop.permute.xlu0 %7380
    %7383 = vset.pattern.permute.xlu0 0
    %7384 = vperm.xlu0 %7383, %v7221
    %v7385 = vpop.permute.xlu0 %7384
    %7387 = vset.pattern.permute.xlu0 0
    %7388 = vperm.xlu0 %7387, %v7222
    %v7389 = vpop.permute.xlu0 %7388
    %7391 = vset.pattern.permute.xlu0 0
    %7392 = vperm.xlu0 %7391, %v7223
    %v7393 = vpop.permute.xlu0 %7392
    %7395 = vset.pattern.permute.xlu0 0
    %7396 = vperm.xlu0 %7395, %v7224
    %v7397 = vpop.permute.xlu0 %7396
    %7399 = vset.pattern.permute.xlu0 0
    %7400 = vperm.xlu0 %7399, %v7225
    %v7401 = vpop.permute.xlu0 %7400
    %7403 = vset.pattern.permute.xlu0 0
    %7404 = vperm.xlu0 %7403, %v7226
    %v7405 = vpop.permute.xlu0 %7404
    %7407 = vset.pattern.permute.xlu0 0
    %7408 = vperm.xlu0 %7407, %v7227
    %v7409 = vpop.permute.xlu0 %7408
    %7411 = vset.pattern.permute.xlu0 0
    %7412 = vperm.xlu0 %7411, %v7228
    %v7413 = vpop.permute.xlu0 %7412
    %7415 = vset.pattern.permute.xlu0 0
    %7416 = vperm.xlu0 %7415, %v7229
    %v7417 = vpop.permute.xlu0 %7416
    %7419 = vset.pattern.permute.xlu0 0
    %7420 = vperm.xlu0 %7419, %v7230
    %v7421 = vpop.permute.xlu0 %7420
    %7423 = vset.pattern.permute.xlu0 0
    %7424 = vperm.xlu0 %7423, %v7231
    %v7425 = vpop.permute.xlu0 %7424
    %7427 = vset.pattern.permute.xlu0 0
    %7428 = vperm.xlu0 %7427, %v7232
    %v7429 = vpop.permute.xlu0 %7428
    %7431 = vset.pattern.permute.xlu0 0
    %7432 = vperm.xlu0 %7431, %v7233
    %v7433 = vpop.permute.xlu0 %7432
    %7435 = vset.pattern.permute.xlu0 0
    %7436 = vperm.xlu0 %7435, %v7234
    %v7437 = vpop.permute.xlu0 %7436
    %7439 = vset.pattern.permute.xlu0 0
    %7440 = vperm.xlu0 %7439, %v7235
    %v7441 = vpop.permute.xlu0 %7440
    %7443 = vset.pattern.permute.xlu0 0
    %7444 = vperm.xlu0 %7443, %v7236
    %v7445 = vpop.permute.xlu0 %7444
    %7447 = vset.pattern.permute.xlu0 0
    %7448 = vperm.xlu0 %7447, %v7237
    %v7449 = vpop.permute.xlu0 %7448
    %7451 = vset.pattern.permute.xlu0 0
    %7452 = vperm.xlu0 %7451, %v7238
    %v7453 = vpop.permute.xlu0 %7452
    %7455 = vset.pattern.permute.xlu0 0
    %7456 = vperm.xlu0 %7455, %v7239
    %v7457 = vpop.permute.xlu0 %7456
    %7459 = vset.pattern.permute.xlu0 0
    %7460 = vperm.xlu0 %7459, %v7240
    %v7461 = vpop.permute.xlu0 %7460
    %7463 = vset.pattern.permute.xlu0 0
    %7464 = vperm.xlu0 %7463, %v7241
    %v7465 = vpop.permute.xlu0 %7464
    %7467 = vset.pattern.permute.xlu0 0
    %7468 = vperm.xlu0 %7467, %v7242
    %v7469 = vpop.permute.xlu0 %7468
    %7471 = vset.pattern.permute.xlu0 0
    %7472 = vperm.xlu0 %7471, %v7243
    %v7473 = vpop.permute.xlu0 %7472
    %7475 = vset.pattern.permute.xlu0 0
    %7476 = vperm.xlu0 %7475, %v7244
    %v7477 = vpop.permute.xlu0 %7476
    %7479 = vset.pattern.permute.xlu0 0
    %7480 = vperm.xlu0 %7479, %v7245
    %v7481 = vpop.permute.xlu0 %7480
    %7483 = vset.pattern.permute.xlu0 0
    %7484 = vperm.xlu0 %7483, %v7246
    %v7485 = vpop.permute.xlu0 %7484
    %7487 = vset.pattern.permute.xlu0 0
    %7488 = vperm.xlu0 %7487, %v7247
    %v7489 = vpop.permute.xlu0 %7488
    %7491 = vset.pattern.permute.xlu0 0
    %7492 = vperm.xlu0 %7491, %v7248
    %v7493 = vpop.permute.xlu0 %7492
    %7495 = vset.pattern.permute.xlu0 0
    %7496 = vperm.xlu0 %7495, %v7249
    %v7497 = vpop.permute.xlu0 %7496
    %7499 = vset.pattern.permute.xlu0 0
    %7500 = vperm.xlu0 %7499, %v7250
    %v7501 = vpop.permute.xlu0 %7500
    %7503 = vset.pattern.permute.xlu0 0
    %7504 = vperm.xlu0 %7503, %v7251
    %v7505 = vpop.permute.xlu0 %7504
    %7507 = vset.pattern.permute.xlu0 0
    %7508 = vperm.xlu0 %7507, %v7252
    %v7509 = vpop.permute.xlu0 %7508
    %7511 = vset.pattern.permute.xlu0 0
    %7512 = vperm.xlu0 %7511, %v7253
    %v7513 = vpop.permute.xlu0 %7512
    %7515 = vset.pattern.permute.xlu0 0
    %7516 = vperm.xlu0 %7515, %v7254
    %v7517 = vpop.permute.xlu0 %7516
    %7519 = vset.pattern.permute.xlu0 0
    %7520 = vperm.xlu0 %7519, %v7255
    %v7521 = vpop.permute.xlu0 %7520
    %7523 = vset.pattern.permute.xlu0 0
    %7524 = vperm.xlu0 %7523, %v7256
    %v7525 = vpop.permute.xlu0 %7524
    %7527 = vset.pattern.permute.xlu0 0
    %7528 = vperm.xlu0 %7527, %v7257
    %v7529 = vpop.permute.xlu0 %7528
    %7531 = vset.pattern.permute.xlu0 0
    %7532 = vperm.xlu0 %7531, %v7258
    %v7533 = vpop.permute.xlu0 %7532
    %7535 = vset.pattern.permute.xlu0 0
    %7536 = vperm.xlu0 %7535, %v7259
    %v7537 = vpop.permute.xlu0 %7536
    %7539 = vset.pattern.permute.xlu0 0
    %7540 = vperm.xlu0 %7539, %v7260
    %v7541 = vpop.permute.xlu0 %7540
    %7543 = vset.pattern.permute.xlu0 0
    %7544 = vperm.xlu0 %7543, %v7261
    %v7545 = vpop.permute.xlu0 %7544
    %7547 = vset.pattern.permute.xlu0 0
    %7548 = vperm.xlu0 %7547, %v7262
    %v7549 = vpop.permute.xlu0 %7548
    %7551 = vset.pattern.permute.xlu0 0
    %7552 = vperm.xlu0 %7551, %v7263
    %v7553 = vpop.permute.xlu0 %7552
    %7555 = vset.pattern.permute.xlu0 0
    %7556 = vperm.xlu0 %7555, %v7264
    %v7557 = vpop.permute.xlu0 %7556
    %7559 = vset.pattern.permute.xlu0 0
    %7560 = vperm.xlu0 %7559, %v7265
    %v7561 = vpop.permute.xlu0 %7560
    %7563 = vset.pattern.permute.xlu0 0
    %7564 = vperm.xlu0 %7563, %v7266
    %v7565 = vpop.permute.xlu0 %7564
    %7567 = vset.pattern.permute.xlu0 0
    %7568 = vperm.xlu0 %7567, %v7267
    %v7569 = vpop.permute.xlu0 %7568
    %7571 = vset.pattern.permute.xlu0 0
    %7572 = vperm.xlu0 %7571, %v7268
    %v7573 = vpop.permute.xlu0 %7572
    %7575 = vset.pattern.permute.xlu0 0
    %7576 = vperm.xlu0 %7575, %v7269
    %v7577 = vpop.permute.xlu0 %7576
    %7579 = vset.pattern.permute.xlu0 0
    %7580 = vperm.xlu0 %7579, %v7270
    %v7581 = vpop.permute.xlu0 %7580
    %7583 = vset.pattern.permute.xlu0 0
    %7584 = vperm.xlu0 %7583, %v7271
    %v7585 = vpop.permute.xlu0 %7584
    %7587 = vset.pattern.permute.xlu0 0
    %7588 = vperm.xlu0 %7587, %v7272
    %v7589 = vpop.permute.xlu0 %7588
    %7591 = vset.pattern.permute.xlu0 0
    %7592 = vperm.xlu0 %7591, %v7273
    %v7593 = vpop.permute.xlu0 %7592
    %7595 = vset.pattern.permute.xlu0 0
    %7596 = vperm.xlu0 %7595, %v7274
    %v7597 = vpop.permute.xlu0 %7596
    %7599 = vset.pattern.permute.xlu0 0
    %7600 = vperm.xlu0 %7599, %v7275
    %v7601 = vpop.permute.xlu0 %7600
    %7603 = vset.pattern.permute.xlu0 0
    %7604 = vperm.xlu0 %7603, %v7276
    %v7605 = vpop.permute.xlu0 %7604
    %7607 = vset.pattern.permute.xlu0 0
    %7608 = vperm.xlu0 %7607, %v7277
    %v7609 = vpop.permute.xlu0 %7608
    %7611 = vset.pattern.permute.xlu0 0
    %7612 = vperm.xlu0 %7611, %v7278
    %v7613 = vpop.permute.xlu0 %7612
    %7615 = vset.pattern.permute.xlu0 0
    %7616 = vperm.xlu0 %7615, %v7279
    %v7617 = vpop.permute.xlu0 %7616
    %7619 = vset.pattern.permute.xlu0 0
    %7620 = vperm.xlu0 %7619, %v7280
    %v7621 = vpop.permute.xlu0 %7620
    %7623 = vset.pattern.permute.xlu0 0
    %7624 = vperm.xlu0 %7623, %v7281
    %v7625 = vpop.permute.xlu0 %7624
    %7627 = vset.pattern.permute.xlu0 0
    %7628 = vperm.xlu0 %7627, %v7282
    %v7629 = vpop.permute.xlu0 %7628
    %7631 = vset.pattern.permute.xlu0 0
    %7632 = vperm.xlu0 %7631, %v7283
    %v7633 = vpop.permute.xlu0 %7632
    %7635 = vset.pattern.permute.xlu0 0
    %7636 = vperm.xlu0 %7635, %v7284
    %v7637 = vpop.permute.xlu0 %7636
    %7639 = vset.pattern.permute.xlu0 0
    %7640 = vperm.xlu0 %7639, %v7285
    %v7641 = vpop.permute.xlu0 %7640
    %7643 = vset.pattern.permute.xlu0 0
    %7644 = vperm.xlu0 %7643, %v7286
    %v7645 = vpop.permute.xlu0 %7644
    %7647 = vset.pattern.permute.xlu0 0
    %7648 = vperm.xlu0 %7647, %v7287
    %v7649 = vpop.permute.xlu0 %7648
    %7651 = vset.pattern.permute.xlu0 0
    %7652 = vperm.xlu0 %7651, %v7288
    %v7653 = vpop.permute.xlu0 %7652
    %7655 = vset.pattern.permute.xlu0 0
    %7656 = vperm.xlu0 %7655, %v7289
    %v7657 = vpop.permute.xlu0 %7656
    %7659 = vset.pattern.permute.xlu0 0
    %7660 = vperm.xlu0 %7659, %v7290
    %v7661 = vpop.permute.xlu0 %7660
    %7663 = vset.pattern.permute.xlu0 0
    %7664 = vperm.xlu0 %7663, %v7291
    %v7665 = vpop.permute.xlu0 %7664
    %7667 = vset.pattern.permute.xlu0 0
    %7668 = vperm.xlu0 %7667, %v7292
    %v7669 = vpop.permute.xlu0 %7668
    %7671 = vset.pattern.permute.xlu0 0
    %7672 = vperm.xlu0 %7671, %v7293
    %v7673 = vpop.permute.xlu0 %7672
    %7675 = vset.pattern.permute.xlu0 0
    %7676 = vperm.xlu0 %7675, %v7294
    %v7677 = vpop.permute.xlu0 %7676
    %7679 = vset.pattern.permute.xlu0 0
    %7680 = vperm.xlu0 %7679, %v7295
    %v7681 = vpop.permute.xlu0 %7680
    %7683 = vset.pattern.permute.xlu0 0
    %7684 = vperm.xlu0 %7683, %v7296
    %v7685 = vpop.permute.xlu0 %7684
    %7687 = vset.pattern.permute.xlu0 0
    %7688 = vperm.xlu0 %7687, %v7297
    %v7689 = vpop.permute.xlu0 %7688
    %7691 = vset.pattern.permute.xlu0 0
    %7692 = vperm.xlu0 %7691, %v7298
    %v7693 = vpop.permute.xlu0 %7692
    %7695 = vset.pattern.permute.xlu0 0
    %7696 = vperm.xlu0 %7695, %v7299
    %v7697 = vpop.permute.xlu0 %7696
    %7699 = vset.pattern.permute.xlu0 0
    %7700 = vperm.xlu0 %7699, %v7300
    %v7701 = vpop.permute.xlu0 %7700
    %7703 = vset.pattern.permute.xlu0 0
    %7704 = vperm.xlu0 %7703, %v7301
    %v7705 = vpop.permute.xlu0 %7704
    %7707 = vset.pattern.permute.xlu0 0
    %7708 = vperm.xlu0 %7707, %v7302
    %v7709 = vpop.permute.xlu0 %7708
    %7711 = vset.pattern.permute.xlu0 0
    %7712 = vperm.xlu0 %7711, %v7303
    %v7713 = vpop.permute.xlu0 %7712
    %7715 = vset.pattern.permute.xlu0 0
    %7716 = vperm.xlu0 %7715, %v7304
    %v7717 = vpop.permute.xlu0 %7716
    %7719 = vset.pattern.permute.xlu0 0
    %7720 = vperm.xlu0 %7719, %v7305
    %v7721 = vpop.permute.xlu0 %7720
    %7723 = vset.pattern.permute.xlu0 0
    %7724 = vperm.xlu0 %7723, %v7306
    %v7725 = vpop.permute.xlu0 %7724
    %7727 = vset.pattern.permute.xlu0 0
    %7728 = vperm.xlu0 %7727, %v7307
    %v7729 = vpop.permute.xlu0 %7728
    %7731 = vset.pattern.permute.xlu0 0
    %7732 = vperm.xlu0 %7731, %v7308
    %v7733 = vpop.permute.xlu0 %7732
    %7735 = vset.pattern.permute.xlu0 0
    %7736 = vperm.xlu0 %7735, %v7309
    %v7737 = vpop.permute.xlu0 %7736
    %7739 = vset.pattern.permute.xlu0 0
    %7740 = vperm.xlu0 %7739, %v7310
    %v7741 = vpop.permute.xlu0 %7740
    %7743 = vset.pattern.permute.xlu0 0
    %7744 = vperm.xlu0 %7743, %v7311
    %v7745 = vpop.permute.xlu0 %7744
    %7747 = vset.pattern.permute.xlu0 0
    %7748 = vperm.xlu0 %7747, %v7312
    %v7749 = vpop.permute.xlu0 %7748
    %7751 = vset.pattern.permute.xlu0 0
    %7752 = vperm.xlu0 %7751, %v7313
    %v7753 = vpop.permute.xlu0 %7752
    %7755 = vset.pattern.permute.xlu0 0
    %7756 = vperm.xlu0 %7755, %v7314
    %v7757 = vpop.permute.xlu0 %7756
    %7759 = vset.pattern.permute.xlu0 0
    %7760 = vperm.xlu0 %7759, %v7315
    %v7761 = vpop.permute.xlu0 %7760
    %7763 = vset.pattern.permute.xlu0 0
    %7764 = vperm.xlu0 %7763, %v7316
    %v7765 = vpop.permute.xlu0 %7764
    %7767 = vset.pattern.permute.xlu0 0
    %7768 = vperm.xlu0 %7767, %v7317
    %v7769 = vpop.permute.xlu0 %7768
    %7771 = vset.pattern.permute.xlu0 0
    %7772 = vperm.xlu0 %7771, %v7318
    %v7773 = vpop.permute.xlu0 %7772
    %7775 = vset.pattern.permute.xlu0 0
    %7776 = vperm.xlu0 %7775, %v7319
    %v7777 = vpop.permute.xlu0 %7776
    %7779 = vset.pattern.permute.xlu0 0
    %7780 = vperm.xlu0 %7779, %v7320
    %v7781 = vpop.permute.xlu0 %7780
    %7783 = vset.pattern.permute.xlu0 0
    %7784 = vperm.xlu0 %7783, %v7321
    %v7785 = vpop.permute.xlu0 %7784
    %7787 = vset.pattern.permute.xlu0 0
    %7788 = vperm.xlu0 %7787, %v7322
    %v7789 = vpop.permute.xlu0 %7788
    %7791 = vset.pattern.permute.xlu0 0
    %7792 = vperm.xlu0 %7791, %v7323
    %v7793 = vpop.permute.xlu0 %7792
    %7795 = vset.pattern.permute.xlu0 0
    %7796 = vperm.xlu0 %7795, %v7324
    %v7797 = vpop.permute.xlu0 %7796
    %7799 = vset.pattern.permute.xlu0 0
    %7800 = vperm.xlu0 %7799, %v7325
    %v7801 = vpop.permute.xlu0 %7800
    %7803 = vset.pattern.permute.xlu0 0
    %7804 = vperm.xlu0 %7803, %v7326
    %v7805 = vpop.permute.xlu0 %7804
    %7807 = vset.pattern.permute.xlu0 0
    %7808 = vperm.xlu0 %7807, %v7327
    %v7809 = vpop.permute.xlu0 %7808
    %7811 = vset.pattern.permute.xlu0 0
    %7812 = vperm.xlu0 %7811, %v7328
    %v7813 = vpop.permute.xlu0 %7812
    %7815 = vset.pattern.permute.xlu0 0
    %7816 = vperm.xlu0 %7815, %v7329
    %v7817 = vpop.permute.xlu0 %7816
    %7819 = vset.pattern.permute.xlu0 0
    %7820 = vperm.xlu0 %7819, %v7330
    %v7821 = vpop.permute.xlu0 %7820
    %7823 = vset.pattern.permute.xlu0 0
    %7824 = vperm.xlu0 %7823, %v7331
    %v7825 = vpop.permute.xlu0 %7824
    %7827 = vset.pattern.permute.xlu0 0
    %7828 = vperm.xlu0 %7827, %v7332
    %v7829 = vpop.permute.xlu0 %7828
    %7831 = vset.pattern.permute.xlu0 0
    %7832 = vperm.xlu0 %7831, %v7333
    %v7833 = vpop.permute.xlu0 %7832
    %7835 = vset.pattern.permute.xlu0 0
    %7836 = vperm.xlu0 %7835, %v7334
    %v7837 = vpop.permute.xlu0 %7836
    %7839 = vset.pattern.permute.xlu0 0
    %7840 = vperm.xlu0 %7839, %v7335
    %v7841 = vpop.permute.xlu0 %7840
    %7843 = vset.pattern.permute.xlu0 0
    %7844 = vperm.xlu0 %7843, %v7336
    %v7845 = vpop.permute.xlu0 %7844
    %7847 = vset.pattern.permute.xlu0 0
    %7848 = vperm.xlu0 %7847, %v7337
    %v7849 = vpop.permute.xlu0 %7848
    %7850 = vset.pattern.permute.xlu0 1
    %7851 = vperm.xlu0 %7850, %v7210
    %v7852 = vpop.permute.xlu0 %7851
    %7853 = vset.pattern.permute.xlu0 1
    %7854 = vperm.xlu0 %7853, %v7211
    %v7855 = vpop.permute.xlu0 %7854
    %7856 = vset.pattern.permute.xlu0 1
    %7857 = vperm.xlu0 %7856, %v7212
    %v7858 = vpop.permute.xlu0 %7857
    %7859 = vset.pattern.permute.xlu0 1
    %7860 = vperm.xlu0 %7859, %v7213
    %v7861 = vpop.permute.xlu0 %7860
    %7862 = vset.pattern.permute.xlu0 1
    %7863 = vperm.xlu0 %7862, %v7214
    %v7864 = vpop.permute.xlu0 %7863
    %7865 = vset.pattern.permute.xlu0 1
    %7866 = vperm.xlu0 %7865, %v7215
    %v7867 = vpop.permute.xlu0 %7866
    %7868 = vset.pattern.permute.xlu0 1
    %7869 = vperm.xlu0 %7868, %v7216
    %v7870 = vpop.permute.xlu0 %7869
    %7871 = vset.pattern.permute.xlu0 1
    %7872 = vperm.xlu0 %7871, %v7217
    %v7873 = vpop.permute.xlu0 %7872
    %7874 = vset.pattern.permute.xlu0 1
    %7875 = vperm.xlu0 %7874, %v7218
    %v7876 = vpop.permute.xlu0 %7875
    %7877 = vset.pattern.permute.xlu0 1
    %7878 = vperm.xlu0 %7877, %v7219
    %v7879 = vpop.permute.xlu0 %7878
    %7880 = vset.pattern.permute.xlu0 1
    %7881 = vperm.xlu0 %7880, %v7220
    %v7882 = vpop.permute.xlu0 %7881
    %7883 = vset.pattern.permute.xlu0 1
    %7884 = vperm.xlu0 %7883, %v7221
    %v7885 = vpop.permute.xlu0 %7884
    %7886 = vset.pattern.permute.xlu0 1
    %7887 = vperm.xlu0 %7886, %v7222
    %v7888 = vpop.permute.xlu0 %7887
    %7889 = vset.pattern.permute.xlu0 1
    %7890 = vperm.xlu0 %7889, %v7223
    %v7891 = vpop.permute.xlu0 %7890
    %7892 = vset.pattern.permute.xlu0 1
    %7893 = vperm.xlu0 %7892, %v7224
    %v7894 = vpop.permute.xlu0 %7893
    %7895 = vset.pattern.permute.xlu0 1
    %7896 = vperm.xlu0 %7895, %v7225
    %v7897 = vpop.permute.xlu0 %7896
    %7898 = vset.pattern.permute.xlu0 1
    %7899 = vperm.xlu0 %7898, %v7226
    %v7900 = vpop.permute.xlu0 %7899
    %7901 = vset.pattern.permute.xlu0 1
    %7902 = vperm.xlu0 %7901, %v7227
    %v7903 = vpop.permute.xlu0 %7902
    %7904 = vset.pattern.permute.xlu0 1
    %7905 = vperm.xlu0 %7904, %v7228
    %v7906 = vpop.permute.xlu0 %7905
    %7907 = vset.pattern.permute.xlu0 1
    %7908 = vperm.xlu0 %7907, %v7229
    %v7909 = vpop.permute.xlu0 %7908
    %7910 = vset.pattern.permute.xlu0 1
    %7911 = vperm.xlu0 %7910, %v7230
    %v7912 = vpop.permute.xlu0 %7911
    %7913 = vset.pattern.permute.xlu0 1
    %7914 = vperm.xlu0 %7913, %v7231
    %v7915 = vpop.permute.xlu0 %7914
    %7916 = vset.pattern.permute.xlu0 1
    %7917 = vperm.xlu0 %7916, %v7232
    %v7918 = vpop.permute.xlu0 %7917
    %7919 = vset.pattern.permute.xlu0 1
    %7920 = vperm.xlu0 %7919, %v7233
    %v7921 = vpop.permute.xlu0 %7920
    %7922 = vset.pattern.permute.xlu0 1
    %7923 = vperm.xlu0 %7922, %v7234
    %v7924 = vpop.permute.xlu0 %7923
    %7925 = vset.pattern.permute.xlu0 1
    %7926 = vperm.xlu0 %7925, %v7235
    %v7927 = vpop.permute.xlu0 %7926
    %7928 = vset.pattern.permute.xlu0 1
    %7929 = vperm.xlu0 %7928, %v7236
    %v7930 = vpop.permute.xlu0 %7929
    %7931 = vset.pattern.permute.xlu0 1
    %7932 = vperm.xlu0 %7931, %v7237
    %v7933 = vpop.permute.xlu0 %7932
    %7934 = vset.pattern.permute.xlu0 1
    %7935 = vperm.xlu0 %7934, %v7238
    %v7936 = vpop.permute.xlu0 %7935
    %7937 = vset.pattern.permute.xlu0 1
    %7938 = vperm.xlu0 %7937, %v7239
    %v7939 = vpop.permute.xlu0 %7938
    %7940 = vset.pattern.permute.xlu0 1
    %7941 = vperm.xlu0 %7940, %v7240
    %v7942 = vpop.permute.xlu0 %7941
    %7943 = vset.pattern.permute.xlu0 1
    %7944 = vperm.xlu0 %7943, %v7241
    %v7945 = vpop.permute.xlu0 %7944
    %7946 = vset.pattern.permute.xlu0 1
    %7947 = vperm.xlu0 %7946, %v7242
    %v7948 = vpop.permute.xlu0 %7947
    %7949 = vset.pattern.permute.xlu0 1
    %7950 = vperm.xlu0 %7949, %v7243
    %v7951 = vpop.permute.xlu0 %7950
    %7952 = vset.pattern.permute.xlu0 1
    %7953 = vperm.xlu0 %7952, %v7244
    %v7954 = vpop.permute.xlu0 %7953
    %7955 = vset.pattern.permute.xlu0 1
    %7956 = vperm.xlu0 %7955, %v7245
    %v7957 = vpop.permute.xlu0 %7956
    %7958 = vset.pattern.permute.xlu0 1
    %7959 = vperm.xlu0 %7958, %v7246
    %v7960 = vpop.permute.xlu0 %7959
    %7961 = vset.pattern.permute.xlu0 1
    %7962 = vperm.xlu0 %7961, %v7247
    %v7963 = vpop.permute.xlu0 %7962
    %7964 = vset.pattern.permute.xlu0 1
    %7965 = vperm.xlu0 %7964, %v7248
    %v7966 = vpop.permute.xlu0 %7965
    %7967 = vset.pattern.permute.xlu0 1
    %7968 = vperm.xlu0 %7967, %v7249
    %v7969 = vpop.permute.xlu0 %7968
    %7970 = vset.pattern.permute.xlu0 1
    %7971 = vperm.xlu0 %7970, %v7250
    %v7972 = vpop.permute.xlu0 %7971
    %7973 = vset.pattern.permute.xlu0 1
    %7974 = vperm.xlu0 %7973, %v7251
    %v7975 = vpop.permute.xlu0 %7974
    %7976 = vset.pattern.permute.xlu0 1
    %7977 = vperm.xlu0 %7976, %v7252
    %v7978 = vpop.permute.xlu0 %7977
    %7979 = vset.pattern.permute.xlu0 1
    %7980 = vperm.xlu0 %7979, %v7253
    %v7981 = vpop.permute.xlu0 %7980
    %7982 = vset.pattern.permute.xlu0 1
    %7983 = vperm.xlu0 %7982, %v7254
    %v7984 = vpop.permute.xlu0 %7983
    %7985 = vset.pattern.permute.xlu0 1
    %7986 = vperm.xlu0 %7985, %v7255
    %v7987 = vpop.permute.xlu0 %7986
    %7988 = vset.pattern.permute.xlu0 1
    %7989 = vperm.xlu0 %7988, %v7256
    %v7990 = vpop.permute.xlu0 %7989
    %7991 = vset.pattern.permute.xlu0 1
    %7992 = vperm.xlu0 %7991, %v7257
    %v7993 = vpop.permute.xlu0 %7992
    %7994 = vset.pattern.permute.xlu0 1
    %7995 = vperm.xlu0 %7994, %v7258
    %v7996 = vpop.permute.xlu0 %7995
    %7997 = vset.pattern.permute.xlu0 1
    %7998 = vperm.xlu0 %7997, %v7259
    %v7999 = vpop.permute.xlu0 %7998
    %8000 = vset.pattern.permute.xlu0 1
    %8001 = vperm.xlu0 %8000, %v7260
    %v8002 = vpop.permute.xlu0 %8001
    %8003 = vset.pattern.permute.xlu0 1
    %8004 = vperm.xlu0 %8003, %v7261
    %v8005 = vpop.permute.xlu0 %8004
    %8006 = vset.pattern.permute.xlu0 1
    %8007 = vperm.xlu0 %8006, %v7262
    %v8008 = vpop.permute.xlu0 %8007
    %8009 = vset.pattern.permute.xlu0 1
    %8010 = vperm.xlu0 %8009, %v7263
    %v8011 = vpop.permute.xlu0 %8010
    %8012 = vset.pattern.permute.xlu0 1
    %8013 = vperm.xlu0 %8012, %v7264
    %v8014 = vpop.permute.xlu0 %8013
    %8015 = vset.pattern.permute.xlu0 1
    %8016 = vperm.xlu0 %8015, %v7265
    %v8017 = vpop.permute.xlu0 %8016
    %8018 = vset.pattern.permute.xlu0 1
    %8019 = vperm.xlu0 %8018, %v7266
    %v8020 = vpop.permute.xlu0 %8019
    %8021 = vset.pattern.permute.xlu0 1
    %8022 = vperm.xlu0 %8021, %v7267
    %v8023 = vpop.permute.xlu0 %8022
    %8024 = vset.pattern.permute.xlu0 1
    %8025 = vperm.xlu0 %8024, %v7268
    %v8026 = vpop.permute.xlu0 %8025
    %8027 = vset.pattern.permute.xlu0 1
    %8028 = vperm.xlu0 %8027, %v7269
    %v8029 = vpop.permute.xlu0 %8028
    %8030 = vset.pattern.permute.xlu0 1
    %8031 = vperm.xlu0 %8030, %v7270
    %v8032 = vpop.permute.xlu0 %8031
    %8033 = vset.pattern.permute.xlu0 1
    %8034 = vperm.xlu0 %8033, %v7271
    %v8035 = vpop.permute.xlu0 %8034
    %8036 = vset.pattern.permute.xlu0 1
    %8037 = vperm.xlu0 %8036, %v7272
    %v8038 = vpop.permute.xlu0 %8037
    %8039 = vset.pattern.permute.xlu0 1
    %8040 = vperm.xlu0 %8039, %v7273
    %v8041 = vpop.permute.xlu0 %8040
    %8042 = vset.pattern.permute.xlu0 1
    %8043 = vperm.xlu0 %8042, %v7274
    %v8044 = vpop.permute.xlu0 %8043
    %8045 = vset.pattern.permute.xlu0 1
    %8046 = vperm.xlu0 %8045, %v7275
    %v8047 = vpop.permute.xlu0 %8046
    %8048 = vset.pattern.permute.xlu0 1
    %8049 = vperm.xlu0 %8048, %v7276
    %v8050 = vpop.permute.xlu0 %8049
    %8051 = vset.pattern.permute.xlu0 1
    %8052 = vperm.xlu0 %8051, %v7277
    %v8053 = vpop.permute.xlu0 %8052
    %8054 = vset.pattern.permute.xlu0 1
    %8055 = vperm.xlu0 %8054, %v7278
    %v8056 = vpop.permute.xlu0 %8055
    %8057 = vset.pattern.permute.xlu0 1
    %8058 = vperm.xlu0 %8057, %v7279
    %v8059 = vpop.permute.xlu0 %8058
    %8060 = vset.pattern.permute.xlu0 1
    %8061 = vperm.xlu0 %8060, %v7280
    %v8062 = vpop.permute.xlu0 %8061
    %8063 = vset.pattern.permute.xlu0 1
    %8064 = vperm.xlu0 %8063, %v7281
    %v8065 = vpop.permute.xlu0 %8064
    %8066 = vset.pattern.permute.xlu0 1
    %8067 = vperm.xlu0 %8066, %v7282
    %v8068 = vpop.permute.xlu0 %8067
    %8069 = vset.pattern.permute.xlu0 1
    %8070 = vperm.xlu0 %8069, %v7283
    %v8071 = vpop.permute.xlu0 %8070
    %8072 = vset.pattern.permute.xlu0 1
    %8073 = vperm.xlu0 %8072, %v7284
    %v8074 = vpop.permute.xlu0 %8073
    %8075 = vset.pattern.permute.xlu0 1
    %8076 = vperm.xlu0 %8075, %v7285
    %v8077 = vpop.permute.xlu0 %8076
    %8078 = vset.pattern.permute.xlu0 1
    %8079 = vperm.xlu0 %8078, %v7286
    %v8080 = vpop.permute.xlu0 %8079
    %8081 = vset.pattern.permute.xlu0 1
    %8082 = vperm.xlu0 %8081, %v7287
    %v8083 = vpop.permute.xlu0 %8082
    %8084 = vset.pattern.permute.xlu0 1
    %8085 = vperm.xlu0 %8084, %v7288
    %v8086 = vpop.permute.xlu0 %8085
    %8087 = vset.pattern.permute.xlu0 1
    %8088 = vperm.xlu0 %8087, %v7289
    %v8089 = vpop.permute.xlu0 %8088
    %8090 = vset.pattern.permute.xlu0 1
    %8091 = vperm.xlu0 %8090, %v7290
    %v8092 = vpop.permute.xlu0 %8091
    %8093 = vset.pattern.permute.xlu0 1
    %8094 = vperm.xlu0 %8093, %v7291
    %v8095 = vpop.permute.xlu0 %8094
    %8096 = vset.pattern.permute.xlu0 1
    %8097 = vperm.xlu0 %8096, %v7292
    %v8098 = vpop.permute.xlu0 %8097
    %8099 = vset.pattern.permute.xlu0 1
    %8100 = vperm.xlu0 %8099, %v7293
    %v8101 = vpop.permute.xlu0 %8100
    %8102 = vset.pattern.permute.xlu0 1
    %8103 = vperm.xlu0 %8102, %v7294
    %v8104 = vpop.permute.xlu0 %8103
    %8105 = vset.pattern.permute.xlu0 1
    %8106 = vperm.xlu0 %8105, %v7295
    %v8107 = vpop.permute.xlu0 %8106
    %8108 = vset.pattern.permute.xlu0 1
    %8109 = vperm.xlu0 %8108, %v7296
    %v8110 = vpop.permute.xlu0 %8109
    %8111 = vset.pattern.permute.xlu0 1
    %8112 = vperm.xlu0 %8111, %v7297
    %v8113 = vpop.permute.xlu0 %8112
    %8114 = vset.pattern.permute.xlu0 1
    %8115 = vperm.xlu0 %8114, %v7298
    %v8116 = vpop.permute.xlu0 %8115
    %8117 = vset.pattern.permute.xlu0 1
    %8118 = vperm.xlu0 %8117, %v7299
    %v8119 = vpop.permute.xlu0 %8118
    %8120 = vset.pattern.permute.xlu0 1
    %8121 = vperm.xlu0 %8120, %v7300
    %v8122 = vpop.permute.xlu0 %8121
    %8123 = vset.pattern.permute.xlu0 1
    %8124 = vperm.xlu0 %8123, %v7301
    %v8125 = vpop.permute.xlu0 %8124
    %8126 = vset.pattern.permute.xlu0 1
    %8127 = vperm.xlu0 %8126, %v7302
    %v8128 = vpop.permute.xlu0 %8127
    %8129 = vset.pattern.permute.xlu0 1
    %8130 = vperm.xlu0 %8129, %v7303
    %v8131 = vpop.permute.xlu0 %8130
    %8132 = vset.pattern.permute.xlu0 1
    %8133 = vperm.xlu0 %8132, %v7304
    %v8134 = vpop.permute.xlu0 %8133
    %8135 = vset.pattern.permute.xlu0 1
    %8136 = vperm.xlu0 %8135, %v7305
    %v8137 = vpop.permute.xlu0 %8136
    %8138 = vset.pattern.permute.xlu0 1
    %8139 = vperm.xlu0 %8138, %v7306
    %v8140 = vpop.permute.xlu0 %8139
    %8141 = vset.pattern.permute.xlu0 1
    %8142 = vperm.xlu0 %8141, %v7307
    %v8143 = vpop.permute.xlu0 %8142
    %8144 = vset.pattern.permute.xlu0 1
    %8145 = vperm.xlu0 %8144, %v7308
    %v8146 = vpop.permute.xlu0 %8145
    %8147 = vset.pattern.permute.xlu0 1
    %8148 = vperm.xlu0 %8147, %v7309
    %v8149 = vpop.permute.xlu0 %8148
    %8150 = vset.pattern.permute.xlu0 1
    %8151 = vperm.xlu0 %8150, %v7310
    %v8152 = vpop.permute.xlu0 %8151
    %8153 = vset.pattern.permute.xlu0 1
    %8154 = vperm.xlu0 %8153, %v7311
    %v8155 = vpop.permute.xlu0 %8154
    %8156 = vset.pattern.permute.xlu0 1
    %8157 = vperm.xlu0 %8156, %v7312
    %v8158 = vpop.permute.xlu0 %8157
    %8159 = vset.pattern.permute.xlu0 1
    %8160 = vperm.xlu0 %8159, %v7313
    %v8161 = vpop.permute.xlu0 %8160
    %8162 = vset.pattern.permute.xlu0 1
    %8163 = vperm.xlu0 %8162, %v7314
    %v8164 = vpop.permute.xlu0 %8163
    %8165 = vset.pattern.permute.xlu0 1
    %8166 = vperm.xlu0 %8165, %v7315
    %v8167 = vpop.permute.xlu0 %8166
    %8168 = vset.pattern.permute.xlu0 1
    %8169 = vperm.xlu0 %8168, %v7316
    %v8170 = vpop.permute.xlu0 %8169
    %8171 = vset.pattern.permute.xlu0 1
    %8172 = vperm.xlu0 %8171, %v7317
    %v8173 = vpop.permute.xlu0 %8172
    %8174 = vset.pattern.permute.xlu0 1
    %8175 = vperm.xlu0 %8174, %v7318
    %v8176 = vpop.permute.xlu0 %8175
    %8177 = vset.pattern.permute.xlu0 1
    %8178 = vperm.xlu0 %8177, %v7319
    %v8179 = vpop.permute.xlu0 %8178
    %8180 = vset.pattern.permute.xlu0 1
    %8181 = vperm.xlu0 %8180, %v7320
    %v8182 = vpop.permute.xlu0 %8181
    %8183 = vset.pattern.permute.xlu0 1
    %8184 = vperm.xlu0 %8183, %v7321
    %v8185 = vpop.permute.xlu0 %8184
    %8186 = vset.pattern.permute.xlu0 1
    %8187 = vperm.xlu0 %8186, %v7322
    %v8188 = vpop.permute.xlu0 %8187
    %8189 = vset.pattern.permute.xlu0 1
    %8190 = vperm.xlu0 %8189, %v7323
    %v8191 = vpop.permute.xlu0 %8190
    %8192 = vset.pattern.permute.xlu0 1
    %8193 = vperm.xlu0 %8192, %v7324
    %v8194 = vpop.permute.xlu0 %8193
    %8195 = vset.pattern.permute.xlu0 1
    %8196 = vperm.xlu0 %8195, %v7325
    %v8197 = vpop.permute.xlu0 %8196
    %8198 = vset.pattern.permute.xlu0 1
    %8199 = vperm.xlu0 %8198, %v7326
    %v8200 = vpop.permute.xlu0 %8199
    %8201 = vset.pattern.permute.xlu0 1
    %8202 = vperm.xlu0 %8201, %v7327
    %v8203 = vpop.permute.xlu0 %8202
    %8204 = vset.pattern.permute.xlu0 1
    %8205 = vperm.xlu0 %8204, %v7328
    %v8206 = vpop.permute.xlu0 %8205
    %8207 = vset.pattern.permute.xlu0 1
    %8208 = vperm.xlu0 %8207, %v7329
    %v8209 = vpop.permute.xlu0 %8208
    %8210 = vset.pattern.permute.xlu0 1
    %8211 = vperm.xlu0 %8210, %v7330
    %v8212 = vpop.permute.xlu0 %8211
    %8213 = vset.pattern.permute.xlu0 1
    %8214 = vperm.xlu0 %8213, %v7331
    %v8215 = vpop.permute.xlu0 %8214
    %8216 = vset.pattern.permute.xlu0 1
    %8217 = vperm.xlu0 %8216, %v7332
    %v8218 = vpop.permute.xlu0 %8217
    %8219 = vset.pattern.permute.xlu0 1
    %8220 = vperm.xlu0 %8219, %v7333
    %v8221 = vpop.permute.xlu0 %8220
    %8222 = vset.pattern.permute.xlu0 1
    %8223 = vperm.xlu0 %8222, %v7334
    %v8224 = vpop.permute.xlu0 %8223
    %8225 = vset.pattern.permute.xlu0 1
    %8226 = vperm.xlu0 %8225, %v7335
    %v8227 = vpop.permute.xlu0 %8226
    %8228 = vset.pattern.permute.xlu0 1
    %8229 = vperm.xlu0 %8228, %v7336
    %v8230 = vpop.permute.xlu0 %8229
    %8231 = vset.pattern.permute.xlu0 1
    %8232 = vperm.xlu0 %8231, %v7337
    %v8233 = vpop.permute.xlu0 %8232
    %vm8234 = vcmask 1041409
    %v8235 = vsel %vm8234, %v7345, %v7341
    %vm8236 = vcmask 1042434
    %v8237 = vsel %vm8236, %v7349, %v8235
    %vm8238 = vcmask 1043459
    %v8239 = vsel %vm8238, %v7353, %v8237
    %vm8240 = vcmask 1044484
    %v8241 = vsel %vm8240, %v7357, %v8239
    %vm8242 = vcmask 1045509
    %v8243 = vsel %vm8242, %v7361, %v8241
    %vm8244 = vcmask 1046534
    %v8245 = vsel %vm8244, %v7365, %v8243
    %vm8246 = vcmask 1047559
    %v8247 = vsel %vm8246, %v7369, %v8245
    %v8248 = vsel %vm8234, %v7377, %v7373
    %v8249 = vsel %vm8236, %v7381, %v8248
    %v8250 = vsel %vm8238, %v7385, %v8249
    %v8251 = vsel %vm8240, %v7389, %v8250
    %v8252 = vsel %vm8242, %v7393, %v8251
    %v8253 = vsel %vm8244, %v7397, %v8252
    %v8254 = vsel %vm8246, %v7401, %v8253
    %v8255 = vsel %vm8234, %v7409, %v7405
    %v8256 = vsel %vm8236, %v7413, %v8255
    %v8257 = vsel %vm8238, %v7417, %v8256
    %v8258 = vsel %vm8240, %v7421, %v8257
    %v8259 = vsel %vm8242, %v7425, %v8258
    %v8260 = vsel %vm8244, %v7429, %v8259
    %v8261 = vsel %vm8246, %v7433, %v8260
    %v8262 = vsel %vm8234, %v7441, %v7437
    %v8263 = vsel %vm8236, %v7445, %v8262
    %v8264 = vsel %vm8238, %v7449, %v8263
    %v8265 = vsel %vm8240, %v7453, %v8264
    %v8266 = vsel %vm8242, %v7457, %v8265
    %v8267 = vsel %vm8244, %v7461, %v8266
    %v8268 = vsel %vm8246, %v7465, %v8267
    %v8269 = vsel %vm8234, %v7473, %v7469
    %v8270 = vsel %vm8236, %v7477, %v8269
    %v8271 = vsel %vm8238, %v7481, %v8270
    %v8272 = vsel %vm8240, %v7485, %v8271
    %v8273 = vsel %vm8242, %v7489, %v8272
    %v8274 = vsel %vm8244, %v7493, %v8273
    %v8275 = vsel %vm8246, %v7497, %v8274
    %v8276 = vsel %vm8234, %v7505, %v7501
    %v8277 = vsel %vm8236, %v7509, %v8276
    %v8278 = vsel %vm8238, %v7513, %v8277
    %v8279 = vsel %vm8240, %v7517, %v8278
    %v8280 = vsel %vm8242, %v7521, %v8279
    %v8281 = vsel %vm8244, %v7525, %v8280
    %v8282 = vsel %vm8246, %v7529, %v8281
    %v8283 = vsel %vm8234, %v7537, %v7533
    %v8284 = vsel %vm8236, %v7541, %v8283
    %v8285 = vsel %vm8238, %v7545, %v8284
    %v8286 = vsel %vm8240, %v7549, %v8285
    %v8287 = vsel %vm8242, %v7553, %v8286
    %v8288 = vsel %vm8244, %v7557, %v8287
    %v8289 = vsel %vm8246, %v7561, %v8288
    %v8290 = vsel %vm8234, %v7569, %v7565
    %v8291 = vsel %vm8236, %v7573, %v8290
    %v8292 = vsel %vm8238, %v7577, %v8291
    %v8293 = vsel %vm8240, %v7581, %v8292
    %v8294 = vsel %vm8242, %v7585, %v8293
    %v8295 = vsel %vm8244, %v7589, %v8294
    %v8296 = vsel %vm8246, %v7593, %v8295
    %v8297 = vsel %vm8234, %v7601, %v7597
    %v8298 = vsel %vm8236, %v7605, %v8297
    %v8299 = vsel %vm8238, %v7609, %v8298
    %v8300 = vsel %vm8240, %v7613, %v8299
    %v8301 = vsel %vm8242, %v7617, %v8300
    %v8302 = vsel %vm8244, %v7621, %v8301
    %v8303 = vsel %vm8246, %v7625, %v8302
    %v8304 = vsel %vm8234, %v7633, %v7629
    %v8305 = vsel %vm8236, %v7637, %v8304
    %v8306 = vsel %vm8238, %v7641, %v8305
    %v8307 = vsel %vm8240, %v7645, %v8306
    %v8308 = vsel %vm8242, %v7649, %v8307
    %v8309 = vsel %vm8244, %v7653, %v8308
    %v8310 = vsel %vm8246, %v7657, %v8309
    %v8311 = vsel %vm8234, %v7665, %v7661
    %v8312 = vsel %vm8236, %v7669, %v8311
    %v8313 = vsel %vm8238, %v7673, %v8312
    %v8314 = vsel %vm8240, %v7677, %v8313
    %v8315 = vsel %vm8242, %v7681, %v8314
    %v8316 = vsel %vm8244, %v7685, %v8315
    %v8317 = vsel %vm8246, %v7689, %v8316
    %v8318 = vsel %vm8234, %v7697, %v7693
    %v8319 = vsel %vm8236, %v7701, %v8318
    %v8320 = vsel %vm8238, %v7705, %v8319
    %v8321 = vsel %vm8240, %v7709, %v8320
    %v8322 = vsel %vm8242, %v7713, %v8321
    %v8323 = vsel %vm8244, %v7717, %v8322
    %v8324 = vsel %vm8246, %v7721, %v8323
    %v8325 = vsel %vm8234, %v7729, %v7725
    %v8326 = vsel %vm8236, %v7733, %v8325
    %v8327 = vsel %vm8238, %v7737, %v8326
    %v8328 = vsel %vm8240, %v7741, %v8327
    %v8329 = vsel %vm8242, %v7745, %v8328
    %v8330 = vsel %vm8244, %v7749, %v8329
    %v8331 = vsel %vm8246, %v7753, %v8330
    %v8332 = vsel %vm8234, %v7761, %v7757
    %v8333 = vsel %vm8236, %v7765, %v8332
    %v8334 = vsel %vm8238, %v7769, %v8333
    %v8335 = vsel %vm8240, %v7773, %v8334
    %v8336 = vsel %vm8242, %v7777, %v8335
    %v8337 = vsel %vm8244, %v7781, %v8336
    %v8338 = vsel %vm8246, %v7785, %v8337
    %v8339 = vsel %vm8234, %v7793, %v7789
    %v8340 = vsel %vm8236, %v7797, %v8339
    %v8341 = vsel %vm8238, %v7801, %v8340
    %v8342 = vsel %vm8240, %v7805, %v8341
    %v8343 = vsel %vm8242, %v7809, %v8342
    %v8344 = vsel %vm8244, %v7813, %v8343
    %v8345 = vsel %vm8246, %v7817, %v8344
    %v8346 = vsel %vm8234, %v7825, %v7821
    %v8347 = vsel %vm8236, %v7829, %v8346
    %v8348 = vsel %vm8238, %v7833, %v8347
    %v8349 = vsel %vm8240, %v7837, %v8348
    %v8350 = vsel %vm8242, %v7841, %v8349
    %v8351 = vsel %vm8244, %v7845, %v8350
    %v8352 = vsel %vm8246, %v7849, %v8351
    %v8369 = vsel %vm8234, %v7855, %v7852
    %v8370 = vsel %vm8236, %v7858, %v8369
    %v8371 = vsel %vm8238, %v7861, %v8370
    %v8372 = vsel %vm8240, %v7864, %v8371
    %v8373 = vsel %vm8242, %v7867, %v8372
    %v8374 = vsel %vm8244, %v7870, %v8373
    %v8375 = vsel %vm8246, %v7873, %v8374
    %v8376 = vsel %vm8234, %v7879, %v7876
    %v8377 = vsel %vm8236, %v7882, %v8376
    %v8378 = vsel %vm8238, %v7885, %v8377
    %v8379 = vsel %vm8240, %v7888, %v8378
    %v8380 = vsel %vm8242, %v7891, %v8379
    %v8381 = vsel %vm8244, %v7894, %v8380
    %v8382 = vsel %vm8246, %v7897, %v8381
    %v8383 = vsel %vm8234, %v7903, %v7900
    %v8384 = vsel %vm8236, %v7906, %v8383
    %v8385 = vsel %vm8238, %v7909, %v8384
    %v8386 = vsel %vm8240, %v7912, %v8385
    %v8387 = vsel %vm8242, %v7915, %v8386
    %v8388 = vsel %vm8244, %v7918, %v8387
    %v8389 = vsel %vm8246, %v7921, %v8388
    %v8390 = vsel %vm8234, %v7927, %v7924
    %v8391 = vsel %vm8236, %v7930, %v8390
    %v8392 = vsel %vm8238, %v7933, %v8391
    %v8393 = vsel %vm8240, %v7936, %v8392
    %v8394 = vsel %vm8242, %v7939, %v8393
    %v8395 = vsel %vm8244, %v7942, %v8394
    %v8396 = vsel %vm8246, %v7945, %v8395
    %v8397 = vsel %vm8234, %v7951, %v7948
    %v8398 = vsel %vm8236, %v7954, %v8397
    %v8399 = vsel %vm8238, %v7957, %v8398
    %v8400 = vsel %vm8240, %v7960, %v8399
    %v8401 = vsel %vm8242, %v7963, %v8400
    %v8402 = vsel %vm8244, %v7966, %v8401
    %v8403 = vsel %vm8246, %v7969, %v8402
    %v8404 = vsel %vm8234, %v7975, %v7972
    %v8405 = vsel %vm8236, %v7978, %v8404
    %v8406 = vsel %vm8238, %v7981, %v8405
    %v8407 = vsel %vm8240, %v7984, %v8406
    %v8408 = vsel %vm8242, %v7987, %v8407
    %v8409 = vsel %vm8244, %v7990, %v8408
    %v8410 = vsel %vm8246, %v7993, %v8409
    %v8411 = vsel %vm8234, %v7999, %v7996
    %v8412 = vsel %vm8236, %v8002, %v8411
    %v8413 = vsel %vm8238, %v8005, %v8412
    %v8414 = vsel %vm8240, %v8008, %v8413
    %v8415 = vsel %vm8242, %v8011, %v8414
    %v8416 = vsel %vm8244, %v8014, %v8415
    %v8417 = vsel %vm8246, %v8017, %v8416
    %v8418 = vsel %vm8234, %v8023, %v8020
    %v8419 = vsel %vm8236, %v8026, %v8418
    %v8420 = vsel %vm8238, %v8029, %v8419
    %v8421 = vsel %vm8240, %v8032, %v8420
    %v8422 = vsel %vm8242, %v8035, %v8421
    %v8423 = vsel %vm8244, %v8038, %v8422
    %v8424 = vsel %vm8246, %v8041, %v8423
    %v8425 = vsel %vm8234, %v8047, %v8044
    %v8426 = vsel %vm8236, %v8050, %v8425
    %v8427 = vsel %vm8238, %v8053, %v8426
    %v8428 = vsel %vm8240, %v8056, %v8427
    %v8429 = vsel %vm8242, %v8059, %v8428
    %v8430 = vsel %vm8244, %v8062, %v8429
    %v8431 = vsel %vm8246, %v8065, %v8430
    %v8432 = vsel %vm8234, %v8071, %v8068
    %v8433 = vsel %vm8236, %v8074, %v8432
    %v8434 = vsel %vm8238, %v8077, %v8433
    %v8435 = vsel %vm8240, %v8080, %v8434
    %v8436 = vsel %vm8242, %v8083, %v8435
    %v8437 = vsel %vm8244, %v8086, %v8436
    %v8438 = vsel %vm8246, %v8089, %v8437
    %v8439 = vsel %vm8234, %v8095, %v8092
    %v8440 = vsel %vm8236, %v8098, %v8439
    %v8441 = vsel %vm8238, %v8101, %v8440
    %v8442 = vsel %vm8240, %v8104, %v8441
    %v8443 = vsel %vm8242, %v8107, %v8442
    %v8444 = vsel %vm8244, %v8110, %v8443
    %v8445 = vsel %vm8246, %v8113, %v8444
    %v8446 = vsel %vm8234, %v8119, %v8116
    %v8447 = vsel %vm8236, %v8122, %v8446
    %v8448 = vsel %vm8238, %v8125, %v8447
    %v8449 = vsel %vm8240, %v8128, %v8448
    %v8450 = vsel %vm8242, %v8131, %v8449
    %v8451 = vsel %vm8244, %v8134, %v8450
    %v8452 = vsel %vm8246, %v8137, %v8451
    %v8453 = vsel %vm8234, %v8143, %v8140
    %v8454 = vsel %vm8236, %v8146, %v8453
    %v8455 = vsel %vm8238, %v8149, %v8454
    %v8456 = vsel %vm8240, %v8152, %v8455
    %v8457 = vsel %vm8242, %v8155, %v8456
    %v8458 = vsel %vm8244, %v8158, %v8457
    %v8459 = vsel %vm8246, %v8161, %v8458
    %v8460 = vsel %vm8234, %v8167, %v8164
    %v8461 = vsel %vm8236, %v8170, %v8460
    %v8462 = vsel %vm8238, %v8173, %v8461
    %v8463 = vsel %vm8240, %v8176, %v8462
    %v8464 = vsel %vm8242, %v8179, %v8463
    %v8465 = vsel %vm8244, %v8182, %v8464
    %v8466 = vsel %vm8246, %v8185, %v8465
    %v8467 = vsel %vm8234, %v8191, %v8188
    %v8468 = vsel %vm8236, %v8194, %v8467
    %v8469 = vsel %vm8238, %v8197, %v8468
    %v8470 = vsel %vm8240, %v8200, %v8469
    %v8471 = vsel %vm8242, %v8203, %v8470
    %v8472 = vsel %vm8244, %v8206, %v8471
    %v8473 = vsel %vm8246, %v8209, %v8472
    %v8474 = vsel %vm8234, %v8215, %v8212
    %v8475 = vsel %vm8236, %v8218, %v8474
    %v8476 = vsel %vm8238, %v8221, %v8475
    %v8477 = vsel %vm8240, %v8224, %v8476
    %v8478 = vsel %vm8242, %v8227, %v8477
    %v8479 = vsel %vm8244, %v8230, %v8478
    %v8480 = vsel %vm8246, %v8233, %v8479
    %v8497 = vsel %vm2983, %v8247, %v8375
    %v8498 = vsel %vm2984, %v8247, %v8375
    %v8499 = vsel %vm2983, %v8254, %v8382
    %v8500 = vsel %vm2984, %v8254, %v8382
    %v8501 = vsel %vm2983, %v8261, %v8389
    %v8502 = vsel %vm2984, %v8261, %v8389
    %v8503 = vsel %vm2983, %v8268, %v8396
    %v8504 = vsel %vm2984, %v8268, %v8396
    %v8505 = vsel %vm2983, %v8275, %v8403
    %v8506 = vsel %vm2984, %v8275, %v8403
    %v8507 = vsel %vm2983, %v8282, %v8410
    %v8508 = vsel %vm2984, %v8282, %v8410
    %v8509 = vsel %vm2983, %v8289, %v8417
    %v8510 = vsel %vm2984, %v8289, %v8417
    %v8511 = vsel %vm2983, %v8296, %v8424
    %v8512 = vsel %vm2984, %v8296, %v8424
    %v8513 = vsel %vm2983, %v8303, %v8431
    %v8514 = vsel %vm2984, %v8303, %v8431
    %v8515 = vsel %vm2983, %v8310, %v8438
    %v8516 = vsel %vm2984, %v8310, %v8438
    %v8517 = vsel %vm2983, %v8317, %v8445
    %v8518 = vsel %vm2984, %v8317, %v8445
    %v8519 = vsel %vm2983, %v8324, %v8452
    %v8520 = vsel %vm2984, %v8324, %v8452
    %v8521 = vsel %vm2983, %v8331, %v8459
    %v8522 = vsel %vm2984, %v8331, %v8459
    %v8523 = vsel %vm2983, %v8338, %v8466
    %v8524 = vsel %vm2984, %v8338, %v8466
    %v8525 = vsel %vm2983, %v8345, %v8473
    %v8526 = vsel %vm2984, %v8345, %v8473
    %v8527 = vsel %vm2983, %v8352, %v8480
    %v8528 = vsel %vm2984, %v8352, %v8480
    %v8561 = vrot.slane %v8497, 1
    %v8562 = vrot.slane %v8498, 1
    %v8563 = vrot.slane %v8497, 2
    %v8564 = vrot.slane %v8498, 2
    %v8565 = vrot.slane %v8497, 3
    %v8566 = vrot.slane %v8498, 3
    %v8567 = vrot.slane %v8497, 4
    %v8568 = vrot.slane %v8498, 4
    %v8569 = vrot.slane %v8497, 5
    %v8570 = vrot.slane %v8498, 5
    %v8571 = vrot.slane %v8497, 6
    %v8572 = vrot.slane %v8498, 6
    %v8573 = vrot.slane %v8497, 7
    %v8574 = vrot.slane %v8498, 7
    %v8575 = vrot.slane %v8499, 1
    %v8576 = vrot.slane %v8500, 1
    %v8577 = vrot.slane %v8499, 2
    %v8578 = vrot.slane %v8500, 2
    %v8579 = vrot.slane %v8499, 3
    %v8580 = vrot.slane %v8500, 3
    %v8581 = vrot.slane %v8499, 4
    %v8582 = vrot.slane %v8500, 4
    %v8583 = vrot.slane %v8499, 5
    %v8584 = vrot.slane %v8500, 5
    %v8585 = vrot.slane %v8499, 6
    %v8586 = vrot.slane %v8500, 6
    %v8587 = vrot.slane %v8499, 7
    %v8588 = vrot.slane %v8500, 7
    %v8589 = vrot.slane %v8501, 1
    %v8590 = vrot.slane %v8502, 1
    %v8591 = vrot.slane %v8501, 2
    %v8592 = vrot.slane %v8502, 2
    %v8593 = vrot.slane %v8501, 3
    %v8594 = vrot.slane %v8502, 3
    %v8595 = vrot.slane %v8501, 4
    %v8596 = vrot.slane %v8502, 4
    %v8597 = vrot.slane %v8501, 5
    %v8598 = vrot.slane %v8502, 5
    %v8599 = vrot.slane %v8501, 6
    %v8600 = vrot.slane %v8502, 6
    %v8601 = vrot.slane %v8501, 7
    %v8602 = vrot.slane %v8502, 7
    %v8603 = vrot.slane %v8503, 1
    %v8604 = vrot.slane %v8504, 1
    %v8605 = vrot.slane %v8503, 2
    %v8606 = vrot.slane %v8504, 2
    %v8607 = vrot.slane %v8503, 3
    %v8608 = vrot.slane %v8504, 3
    %v8609 = vrot.slane %v8503, 4
    %v8610 = vrot.slane %v8504, 4
    %v8611 = vrot.slane %v8503, 5
    %v8612 = vrot.slane %v8504, 5
    %v8613 = vrot.slane %v8503, 6
    %v8614 = vrot.slane %v8504, 6
    %v8615 = vrot.slane %v8503, 7
    %v8616 = vrot.slane %v8504, 7
    %v8617 = vrot.slane %v8505, 1
    %v8618 = vrot.slane %v8506, 1
    %v8619 = vrot.slane %v8505, 2
    %v8620 = vrot.slane %v8506, 2
    %v8621 = vrot.slane %v8505, 3
    %v8622 = vrot.slane %v8506, 3
    %v8623 = vrot.slane %v8505, 4
    %v8624 = vrot.slane %v8506, 4
    %v8625 = vrot.slane %v8505, 5
    %v8626 = vrot.slane %v8506, 5
    %v8627 = vrot.slane %v8505, 6
    %v8628 = vrot.slane %v8506, 6
    %v8629 = vrot.slane %v8505, 7
    %v8630 = vrot.slane %v8506, 7
    %v8631 = vrot.slane %v8507, 1
    %v8632 = vrot.slane %v8508, 1
    %v8633 = vrot.slane %v8507, 2
    %v8634 = vrot.slane %v8508, 2
    %v8635 = vrot.slane %v8507, 3
    %v8636 = vrot.slane %v8508, 3
    %v8637 = vrot.slane %v8507, 4
    %v8638 = vrot.slane %v8508, 4
    %v8639 = vrot.slane %v8507, 5
    %v8640 = vrot.slane %v8508, 5
    %v8641 = vrot.slane %v8507, 6
    %v8642 = vrot.slane %v8508, 6
    %v8643 = vrot.slane %v8507, 7
    %v8644 = vrot.slane %v8508, 7
    %v8645 = vrot.slane %v8509, 1
    %v8646 = vrot.slane %v8510, 1
    %v8647 = vrot.slane %v8509, 2
    %v8648 = vrot.slane %v8510, 2
    %v8649 = vrot.slane %v8509, 3
    %v8650 = vrot.slane %v8510, 3
    %v8651 = vrot.slane %v8509, 4
    %v8652 = vrot.slane %v8510, 4
    %v8653 = vrot.slane %v8509, 5
    %v8654 = vrot.slane %v8510, 5
    %v8655 = vrot.slane %v8509, 6
    %v8656 = vrot.slane %v8510, 6
    %v8657 = vrot.slane %v8509, 7
    %v8658 = vrot.slane %v8510, 7
    %v8659 = vrot.slane %v8511, 1
    %v8660 = vrot.slane %v8512, 1
    %v8661 = vrot.slane %v8511, 2
    %v8662 = vrot.slane %v8512, 2
    %v8663 = vrot.slane %v8511, 3
    %v8664 = vrot.slane %v8512, 3
    %v8665 = vrot.slane %v8511, 4
    %v8666 = vrot.slane %v8512, 4
    %v8667 = vrot.slane %v8511, 5
    %v8668 = vrot.slane %v8512, 5
    %v8669 = vrot.slane %v8511, 6
    %v8670 = vrot.slane %v8512, 6
    %v8671 = vrot.slane %v8511, 7
    %v8672 = vrot.slane %v8512, 7
    %v8673 = vrot.slane %v8513, 1
    %v8674 = vrot.slane %v8514, 1
    %v8675 = vrot.slane %v8513, 2
    %v8676 = vrot.slane %v8514, 2
    %v8677 = vrot.slane %v8513, 3
    %v8678 = vrot.slane %v8514, 3
    %v8679 = vrot.slane %v8513, 4
    %v8680 = vrot.slane %v8514, 4
    %v8681 = vrot.slane %v8513, 5
    %v8682 = vrot.slane %v8514, 5
    %v8683 = vrot.slane %v8513, 6
    %v8684 = vrot.slane %v8514, 6
    %v8685 = vrot.slane %v8513, 7
    %v8686 = vrot.slane %v8514, 7
    %v8687 = vrot.slane %v8515, 1
    %v8688 = vrot.slane %v8516, 1
    %v8689 = vrot.slane %v8515, 2
    %v8690 = vrot.slane %v8516, 2
    %v8691 = vrot.slane %v8515, 3
    %v8692 = vrot.slane %v8516, 3
    %v8693 = vrot.slane %v8515, 4
    %v8694 = vrot.slane %v8516, 4
    %v8695 = vrot.slane %v8515, 5
    %v8696 = vrot.slane %v8516, 5
    %v8697 = vrot.slane %v8515, 6
    %v8698 = vrot.slane %v8516, 6
    %v8699 = vrot.slane %v8515, 7
    %v8700 = vrot.slane %v8516, 7
    %v8701 = vrot.slane %v8517, 1
    %v8702 = vrot.slane %v8518, 1
    %v8703 = vrot.slane %v8517, 2
    %v8704 = vrot.slane %v8518, 2
    %v8705 = vrot.slane %v8517, 3
    %v8706 = vrot.slane %v8518, 3
    %v8707 = vrot.slane %v8517, 4
    %v8708 = vrot.slane %v8518, 4
    %v8709 = vrot.slane %v8517, 5
    %v8710 = vrot.slane %v8518, 5
    %v8711 = vrot.slane %v8517, 6
    %v8712 = vrot.slane %v8518, 6
    %v8713 = vrot.slane %v8517, 7
    %v8714 = vrot.slane %v8518, 7
    %v8715 = vrot.slane %v8519, 1
    %v8716 = vrot.slane %v8520, 1
    %v8717 = vrot.slane %v8519, 2
    %v8718 = vrot.slane %v8520, 2
    %v8719 = vrot.slane %v8519, 3
    %v8720 = vrot.slane %v8520, 3
    %v8721 = vrot.slane %v8519, 4
    %v8722 = vrot.slane %v8520, 4
    %v8723 = vrot.slane %v8519, 5
    %v8724 = vrot.slane %v8520, 5
    %v8725 = vrot.slane %v8519, 6
    %v8726 = vrot.slane %v8520, 6
    %v8727 = vrot.slane %v8519, 7
    %v8728 = vrot.slane %v8520, 7
    %v8729 = vrot.slane %v8521, 1
    %v8730 = vrot.slane %v8522, 1
    %v8731 = vrot.slane %v8521, 2
    %v8732 = vrot.slane %v8522, 2
    %v8733 = vrot.slane %v8521, 3
    %v8734 = vrot.slane %v8522, 3
    %v8735 = vrot.slane %v8521, 4
    %v8736 = vrot.slane %v8522, 4
    %v8737 = vrot.slane %v8521, 5
    %v8738 = vrot.slane %v8522, 5
    %v8739 = vrot.slane %v8521, 6
    %v8740 = vrot.slane %v8522, 6
    %v8741 = vrot.slane %v8521, 7
    %v8742 = vrot.slane %v8522, 7
    %v8743 = vrot.slane %v8523, 1
    %v8744 = vrot.slane %v8524, 1
    %v8745 = vrot.slane %v8523, 2
    %v8746 = vrot.slane %v8524, 2
    %v8747 = vrot.slane %v8523, 3
    %v8748 = vrot.slane %v8524, 3
    %v8749 = vrot.slane %v8523, 4
    %v8750 = vrot.slane %v8524, 4
    %v8751 = vrot.slane %v8523, 5
    %v8752 = vrot.slane %v8524, 5
    %v8753 = vrot.slane %v8523, 6
    %v8754 = vrot.slane %v8524, 6
    %v8755 = vrot.slane %v8523, 7
    %v8756 = vrot.slane %v8524, 7
    %v8757 = vrot.slane %v8525, 1
    %v8758 = vrot.slane %v8526, 1
    %v8759 = vrot.slane %v8525, 2
    %v8760 = vrot.slane %v8526, 2
    %v8761 = vrot.slane %v8525, 3
    %v8762 = vrot.slane %v8526, 3
    %v8763 = vrot.slane %v8525, 4
    %v8764 = vrot.slane %v8526, 4
    %v8765 = vrot.slane %v8525, 5
    %v8766 = vrot.slane %v8526, 5
    %v8767 = vrot.slane %v8525, 6
    %v8768 = vrot.slane %v8526, 6
    %v8769 = vrot.slane %v8525, 7
    %v8770 = vrot.slane %v8526, 7
    %v8771 = vrot.slane %v8527, 1
    %v8772 = vrot.slane %v8528, 1
    %v8773 = vrot.slane %v8527, 2
    %v8774 = vrot.slane %v8528, 2
    %v8775 = vrot.slane %v8527, 3
    %v8776 = vrot.slane %v8528, 3
    %v8777 = vrot.slane %v8527, 4
    %v8778 = vrot.slane %v8528, 4
    %v8779 = vrot.slane %v8527, 5
    %v8780 = vrot.slane %v8528, 5
    %v8781 = vrot.slane %v8527, 6
    %v8782 = vrot.slane %v8528, 6
    %v8783 = vrot.slane %v8527, 7
    %v8784 = vrot.slane %v8528, 7
    %v9041 = vmul.f32 %v4654, %v8497
    %v9042 = vmul.f32 %v4660, %v8498
    %v9043 = vmul.f32 %v4666, %v8561
    %v9044 = vmul.f32 %v4672, %v8562
    %v9045 = vmul.f32 %v4678, %v8563
    %v9046 = vmul.f32 %v4684, %v8564
    %v9047 = vmul.f32 %v4690, %v8565
    %v9048 = vmul.f32 %v4696, %v8566
    %v9049 = vmul.f32 %v4702, %v8567
    %v9050 = vmul.f32 %v4708, %v8568
    %v9051 = vmul.f32 %v4714, %v8569
    %v9052 = vmul.f32 %v4720, %v8570
    %v9053 = vmul.f32 %v4726, %v8571
    %v9054 = vmul.f32 %v4732, %v8572
    %v9055 = vmul.f32 %v4738, %v8573
    %v9056 = vmul.f32 %v4744, %v8574
    %v9057 = vmul.f32 %v4750, %v8499
    %v9058 = vmul.f32 %v4756, %v8500
    %v9059 = vmul.f32 %v4762, %v8575
    %v9060 = vmul.f32 %v4768, %v8576
    %v9061 = vmul.f32 %v4774, %v8577
    %v9062 = vmul.f32 %v4780, %v8578
    %v9063 = vmul.f32 %v4786, %v8579
    %v9064 = vmul.f32 %v4792, %v8580
    %v9065 = vmul.f32 %v4798, %v8581
    %v9066 = vmul.f32 %v4804, %v8582
    %v9067 = vmul.f32 %v4810, %v8583
    %v9068 = vmul.f32 %v4816, %v8584
    %v9069 = vmul.f32 %v4822, %v8585
    %v9070 = vmul.f32 %v4828, %v8586
    %v9071 = vmul.f32 %v4834, %v8587
    %v9072 = vmul.f32 %v4840, %v8588
    %v9073 = vmul.f32 %v4846, %v8501
    %v9074 = vmul.f32 %v4852, %v8502
    %v9075 = vmul.f32 %v4858, %v8589
    %v9076 = vmul.f32 %v4864, %v8590
    %v9077 = vmul.f32 %v4870, %v8591
    %v9078 = vmul.f32 %v4876, %v8592
    %v9079 = vmul.f32 %v4882, %v8593
    %v9080 = vmul.f32 %v4888, %v8594
    %v9081 = vmul.f32 %v4894, %v8595
    %v9082 = vmul.f32 %v4900, %v8596
    %v9083 = vmul.f32 %v4906, %v8597
    %v9084 = vmul.f32 %v4912, %v8598
    %v9085 = vmul.f32 %v4918, %v8599
    %v9086 = vmul.f32 %v4924, %v8600
    %v9087 = vmul.f32 %v4930, %v8601
    %v9088 = vmul.f32 %v4936, %v8602
    %v9089 = vmul.f32 %v4942, %v8503
    %v9090 = vmul.f32 %v4948, %v8504
    %v9091 = vmul.f32 %v4954, %v8603
    %v9092 = vmul.f32 %v4960, %v8604
    %v9093 = vmul.f32 %v4966, %v8605
    %v9094 = vmul.f32 %v4972, %v8606
    %v9095 = vmul.f32 %v4978, %v8607
    %v9096 = vmul.f32 %v4984, %v8608
    %v9097 = vmul.f32 %v4990, %v8609
    %v9098 = vmul.f32 %v4996, %v8610
    %v9099 = vmul.f32 %v5002, %v8611
    %v9100 = vmul.f32 %v5008, %v8612
    %v9101 = vmul.f32 %v5014, %v8613
    %v9102 = vmul.f32 %v5020, %v8614
    %v9103 = vmul.f32 %v5026, %v8615
    %v9104 = vmul.f32 %v5032, %v8616
    %v9105 = vmul.f32 %v5038, %v8505
    %v9106 = vmul.f32 %v5044, %v8506
    %v9107 = vmul.f32 %v5050, %v8617
    %v9108 = vmul.f32 %v5056, %v8618
    %v9109 = vmul.f32 %v5062, %v8619
    %v9110 = vmul.f32 %v5068, %v8620
    %v9111 = vmul.f32 %v5074, %v8621
    %v9112 = vmul.f32 %v5080, %v8622
    %v9113 = vmul.f32 %v5086, %v8623
    %v9114 = vmul.f32 %v5092, %v8624
    %v9115 = vmul.f32 %v5098, %v8625
    %v9116 = vmul.f32 %v5104, %v8626
    %v9117 = vmul.f32 %v5110, %v8627
    %v9118 = vmul.f32 %v5116, %v8628
    %v9119 = vmul.f32 %v5122, %v8629
    %v9120 = vmul.f32 %v5128, %v8630
    %v9121 = vmul.f32 %v5134, %v8507
    %v9122 = vmul.f32 %v5140, %v8508
    %v9123 = vmul.f32 %v5146, %v8631
    %v9124 = vmul.f32 %v5152, %v8632
    %v9125 = vmul.f32 %v5158, %v8633
    %v9126 = vmul.f32 %v5164, %v8634
    %v9127 = vmul.f32 %v5170, %v8635
    %v9128 = vmul.f32 %v5176, %v8636
    %v9129 = vmul.f32 %v5182, %v8637
    %v9130 = vmul.f32 %v5188, %v8638
    %v9131 = vmul.f32 %v5194, %v8639
    %v9132 = vmul.f32 %v5200, %v8640
    %v9133 = vmul.f32 %v5206, %v8641
    %v9134 = vmul.f32 %v5212, %v8642
    %v9135 = vmul.f32 %v5218, %v8643
    %v9136 = vmul.f32 %v5224, %v8644
    %v9137 = vmul.f32 %v5230, %v8509
    %v9138 = vmul.f32 %v5236, %v8510
    %v9139 = vmul.f32 %v5242, %v8645
    %v9140 = vmul.f32 %v5248, %v8646
    %v9141 = vmul.f32 %v5254, %v8647
    %v9142 = vmul.f32 %v5260, %v8648
    %v9143 = vmul.f32 %v5266, %v8649
    %v9144 = vmul.f32 %v5272, %v8650
    %v9145 = vmul.f32 %v5278, %v8651
    %v9146 = vmul.f32 %v5284, %v8652
    %v9147 = vmul.f32 %v5290, %v8653
    %v9148 = vmul.f32 %v5296, %v8654
    %v9149 = vmul.f32 %v5302, %v8655
    %v9150 = vmul.f32 %v5308, %v8656
    %v9151 = vmul.f32 %v5314, %v8657
    %v9152 = vmul.f32 %v5320, %v8658
    %v9153 = vmul.f32 %v5326, %v8511
    %v9154 = vmul.f32 %v5332, %v8512
    %v9155 = vmul.f32 %v5338, %v8659
    %v9156 = vmul.f32 %v5344, %v8660
    %v9157 = vmul.f32 %v5350, %v8661
    %v9158 = vmul.f32 %v5356, %v8662
    %v9159 = vmul.f32 %v5362, %v8663
    %v9160 = vmul.f32 %v5368, %v8664
    %v9161 = vmul.f32 %v5374, %v8665
    %v9162 = vmul.f32 %v5380, %v8666
    %v9163 = vmul.f32 %v5386, %v8667
    %v9164 = vmul.f32 %v5392, %v8668
    %v9165 = vmul.f32 %v5398, %v8669
    %v9166 = vmul.f32 %v5404, %v8670
    %v9167 = vmul.f32 %v5410, %v8671
    %v9168 = vmul.f32 %v5416, %v8672
    %v9169 = vmul.f32 %v5422, %v8513
    %v9170 = vmul.f32 %v5428, %v8514
    %v9171 = vmul.f32 %v5434, %v8673
    %v9172 = vmul.f32 %v5440, %v8674
    %v9173 = vmul.f32 %v5446, %v8675
    %v9174 = vmul.f32 %v5452, %v8676
    %v9175 = vmul.f32 %v5458, %v8677
    %v9176 = vmul.f32 %v5464, %v8678
    %v9177 = vmul.f32 %v5470, %v8679
    %v9178 = vmul.f32 %v5476, %v8680
    %v9179 = vmul.f32 %v5482, %v8681
    %v9180 = vmul.f32 %v5488, %v8682
    %v9181 = vmul.f32 %v5494, %v8683
    %v9182 = vmul.f32 %v5500, %v8684
    %v9183 = vmul.f32 %v5506, %v8685
    %v9184 = vmul.f32 %v5512, %v8686
    %v9185 = vmul.f32 %v5518, %v8515
    %v9186 = vmul.f32 %v5524, %v8516
    %v9187 = vmul.f32 %v5530, %v8687
    %v9188 = vmul.f32 %v5536, %v8688
    %v9189 = vmul.f32 %v5542, %v8689
    %v9190 = vmul.f32 %v5548, %v8690
    %v9191 = vmul.f32 %v5554, %v8691
    %v9192 = vmul.f32 %v5560, %v8692
    %v9193 = vmul.f32 %v5566, %v8693
    %v9194 = vmul.f32 %v5572, %v8694
    %v9195 = vmul.f32 %v5578, %v8695
    %v9196 = vmul.f32 %v5584, %v8696
    %v9197 = vmul.f32 %v5590, %v8697
    %v9198 = vmul.f32 %v5596, %v8698
    %v9199 = vmul.f32 %v5602, %v8699
    %v9200 = vmul.f32 %v5608, %v8700
    %v9201 = vmul.f32 %v5614, %v8517
    %v9202 = vmul.f32 %v5620, %v8518
    %v9203 = vmul.f32 %v5626, %v8701
    %v9204 = vmul.f32 %v5632, %v8702
    %v9205 = vmul.f32 %v5638, %v8703
    %v9206 = vmul.f32 %v5644, %v8704
    %v9207 = vmul.f32 %v5650, %v8705
    %v9208 = vmul.f32 %v5656, %v8706
    %v9209 = vmul.f32 %v5662, %v8707
    %v9210 = vmul.f32 %v5668, %v8708
    %v9211 = vmul.f32 %v5674, %v8709
    %v9212 = vmul.f32 %v5680, %v8710
    %v9213 = vmul.f32 %v5686, %v8711
    %v9214 = vmul.f32 %v5692, %v8712
    %v9215 = vmul.f32 %v5698, %v8713
    %v9216 = vmul.f32 %v5704, %v8714
    %v9217 = vmul.f32 %v5710, %v8519
    %v9218 = vmul.f32 %v5716, %v8520
    %v9219 = vmul.f32 %v5722, %v8715
    %v9220 = vmul.f32 %v5728, %v8716
    %v9221 = vmul.f32 %v5734, %v8717
    %v9222 = vmul.f32 %v5740, %v8718
    %v9223 = vmul.f32 %v5746, %v8719
    %v9224 = vmul.f32 %v5752, %v8720
    %v9225 = vmul.f32 %v5758, %v8721
    %v9226 = vmul.f32 %v5764, %v8722
    %v9227 = vmul.f32 %v5770, %v8723
    %v9228 = vmul.f32 %v5776, %v8724
    %v9229 = vmul.f32 %v5782, %v8725
    %v9230 = vmul.f32 %v5788, %v8726
    %v9231 = vmul.f32 %v5794, %v8727
    %v9232 = vmul.f32 %v5800, %v8728
    %v9233 = vmul.f32 %v5806, %v8521
    %v9234 = vmul.f32 %v5812, %v8522
    %v9235 = vmul.f32 %v5818, %v8729
    %v9236 = vmul.f32 %v5824, %v8730
    %v9237 = vmul.f32 %v5830, %v8731
    %v9238 = vmul.f32 %v5836, %v8732
    %v9239 = vmul.f32 %v5842, %v8733
    %v9240 = vmul.f32 %v5848, %v8734
    %v9241 = vmul.f32 %v5854, %v8735
    %v9242 = vmul.f32 %v5860, %v8736
    %v9243 = vmul.f32 %v5866, %v8737
    %v9244 = vmul.f32 %v5872, %v8738
    %v9245 = vmul.f32 %v5878, %v8739
    %v9246 = vmul.f32 %v5884, %v8740
    %v9247 = vmul.f32 %v5890, %v8741
    %v9248 = vmul.f32 %v5896, %v8742
    %v9249 = vmul.f32 %v5902, %v8523
    %v9250 = vmul.f32 %v5908, %v8524
    %v9251 = vmul.f32 %v5914, %v8743
    %v9252 = vmul.f32 %v5920, %v8744
    %v9253 = vmul.f32 %v5926, %v8745
    %v9254 = vmul.f32 %v5932, %v8746
    %v9255 = vmul.f32 %v5938, %v8747
    %v9256 = vmul.f32 %v5944, %v8748
    %v9257 = vmul.f32 %v5950, %v8749
    %v9258 = vmul.f32 %v5956, %v8750
    %v9259 = vmul.f32 %v5962, %v8751
    %v9260 = vmul.f32 %v5968, %v8752
    %v9261 = vmul.f32 %v5974, %v8753
    %v9262 = vmul.f32 %v5980, %v8754
    %v9263 = vmul.f32 %v5986, %v8755
    %v9264 = vmul.f32 %v5992, %v8756
    %v9265 = vmul.f32 %v5998, %v8525
    %v9266 = vmul.f32 %v6004, %v8526
    %v9267 = vmul.f32 %v6010, %v8757
    %v9268 = vmul.f32 %v6016, %v8758
    %v9269 = vmul.f32 %v6022, %v8759
    %v9270 = vmul.f32 %v6028, %v8760
    %v9271 = vmul.f32 %v6034, %v8761
    %v9272 = vmul.f32 %v6040, %v8762
    %v9273 = vmul.f32 %v6046, %v8763
    %v9274 = vmul.f32 %v6052, %v8764
    %v9275 = vmul.f32 %v6058, %v8765
    %v9276 = vmul.f32 %v6064, %v8766
    %v9277 = vmul.f32 %v6070, %v8767
    %v9278 = vmul.f32 %v6076, %v8768
    %v9279 = vmul.f32 %v6082, %v8769
    %v9280 = vmul.f32 %v6088, %v8770
    %v9281 = vmul.f32 %v6094, %v8527
    %v9282 = vmul.f32 %v6100, %v8528
    %v9283 = vmul.f32 %v6106, %v8771
    %v9284 = vmul.f32 %v6112, %v8772
    %v9285 = vmul.f32 %v6118, %v8773
    %v9286 = vmul.f32 %v6124, %v8774
    %v9287 = vmul.f32 %v6130, %v8775
    %v9288 = vmul.f32 %v6136, %v8776
    %v9289 = vmul.f32 %v6142, %v8777
    %v9290 = vmul.f32 %v6148, %v8778
    %v9291 = vmul.f32 %v6154, %v8779
    %v9292 = vmul.f32 %v6160, %v8780
    %v9293 = vmul.f32 %v6166, %v8781
    %v9294 = vmul.f32 %v6172, %v8782
    %v9295 = vmul.f32 %v6178, %v8783
    %v9296 = vmul.f32 %v6184, %v8784
    %v9297 = vld [vmem:[#allocation5] sm:$0xff]
    %v9298 = vld [vmem:[#allocation5 + $0x8] sm:$0xff]
    %v9299 = vld [vmem:[#allocation5 + $0x10] sm:$0xff]
    %v9300 = vld [vmem:[#allocation5 + $0x18] sm:$0xff]
    %v9301 = vld [vmem:[#allocation5 + $0x20] sm:$0xff]
    %v9302 = vld [vmem:[#allocation5 + $0x28] sm:$0xff]
    %v9303 = vld [vmem:[#allocation5 + $0x30] sm:$0xff]
    %v9304 = vld [vmem:[#allocation5 + $0x38] sm:$0xff]
    %v9305 = vld [vmem:[#allocation5 + $0x40] sm:$0xff]
    %v9306 = vld [vmem:[#allocation5 + $0x48] sm:$0xff]
    %v9307 = vld [vmem:[#allocation5 + $0x50] sm:$0xff]
    %v9308 = vld [vmem:[#allocation5 + $0x58] sm:$0xff]
    %v9309 = vld [vmem:[#allocation5 + $0x60] sm:$0xff]
    %v9310 = vld [vmem:[#allocation5 + $0x68] sm:$0xff]
    %v9311 = vld [vmem:[#allocation5 + $0x70] sm:$0xff]
    %v9312 = vld [vmem:[#allocation5 + $0x78] sm:$0xff]
    %v9313 = vld [vmem:[#allocation5 + $0x80] sm:$0xff]
    %v9314 = vld [vmem:[#allocation5 + $0x88] sm:$0xff]
    %v9315 = vld [vmem:[#allocation5 + $0x90] sm:$0xff]
    %v9316 = vld [vmem:[#allocation5 + $0x98] sm:$0xff]
    %v9317 = vld [vmem:[#allocation5 + $0xa0] sm:$0xff]
    %v9318 = vld [vmem:[#allocation5 + $0xa8] sm:$0xff]
    %v9319 = vld [vmem:[#allocation5 + $0xb0] sm:$0xff]
    %v9320 = vld [vmem:[#allocation5 + $0xb8] sm:$0xff]
    %v9321 = vld [vmem:[#allocation5 + $0xc0] sm:$0xff]
    %v9322 = vld [vmem:[#allocation5 + $0xc8] sm:$0xff]
    %v9323 = vld [vmem:[#allocation5 + $0xd0] sm:$0xff]
    %v9324 = vld [vmem:[#allocation5 + $0xd8] sm:$0xff]
    %v9325 = vld [vmem:[#allocation5 + $0xe0] sm:$0xff]
    %v9326 = vld [vmem:[#allocation5 + $0xe8] sm:$0xff]
    %v9327 = vld [vmem:[#allocation5 + $0xf0] sm:$0xff]
    %v9328 = vld [vmem:[#allocation5 + $0xf8] sm:$0xff]
    %v9329 = vld [vmem:[%s7] sm:$0x1]
    %v9331 = vlaneseq
    %v9332 = vshrl.u32 %v9331, 7
    %v9333 = vsub.s32 0, %v9332
    %v9334 = vrot.slane %v9329, %v9333
    %v9592 = vrot.slane %v9043, 7
    %v9593 = vsel %vm8234, %v9592, %v9041
    %v9594 = vrot.slane %v9045, 6
    %v9595 = vsel %vm8236, %v9594, %v9593
    %v9596 = vrot.slane %v9047, 5
    %v9597 = vsel %vm8238, %v9596, %v9595
    %v9598 = vrot.slane %v9049, 4
    %v9599 = vsel %vm8240, %v9598, %v9597
    %v9600 = vrot.slane %v9051, 3
    %v9601 = vsel %vm8242, %v9600, %v9599
    %v9602 = vrot.slane %v9053, 2
    %v9603 = vsel %vm8244, %v9602, %v9601
    %v9604 = vrot.slane %v9055, 1
    %v9605 = vsel %vm8246, %v9604, %v9603
    %v9606 = vrot.slane %v9044, 7
    %v9607 = vsel %vm8234, %v9606, %v9042
    %v9608 = vrot.slane %v9046, 6
    %v9609 = vsel %vm8236, %v9608, %v9607
    %v9610 = vrot.slane %v9048, 5
    %v9611 = vsel %vm8238, %v9610, %v9609
    %v9612 = vrot.slane %v9050, 4
    %v9613 = vsel %vm8240, %v9612, %v9611
    %v9614 = vrot.slane %v9052, 3
    %v9615 = vsel %vm8242, %v9614, %v9613
    %v9616 = vrot.slane %v9054, 2
    %v9617 = vsel %vm8244, %v9616, %v9615
    %v9618 = vrot.slane %v9056, 1
    %v9619 = vsel %vm8246, %v9618, %v9617
    %v9620 = vrot.slane %v9059, 7
    %v9621 = vsel %vm8234, %v9620, %v9057
    %v9622 = vrot.slane %v9061, 6
    %v9623 = vsel %vm8236, %v9622, %v9621
    %v9624 = vrot.slane %v9063, 5
    %v9625 = vsel %vm8238, %v9624, %v9623
    %v9626 = vrot.slane %v9065, 4
    %v9627 = vsel %vm8240, %v9626, %v9625
    %v9628 = vrot.slane %v9067, 3
    %v9629 = vsel %vm8242, %v9628, %v9627
    %v9630 = vrot.slane %v9069, 2
    %v9631 = vsel %vm8244, %v9630, %v9629
    %v9632 = vrot.slane %v9071, 1
    %v9633 = vsel %vm8246, %v9632, %v9631
    %v9634 = vrot.slane %v9060, 7
    %v9635 = vsel %vm8234, %v9634, %v9058
    %v9636 = vrot.slane %v9062, 6
    %v9637 = vsel %vm8236, %v9636, %v9635
    %v9638 = vrot.slane %v9064, 5
    %v9639 = vsel %vm8238, %v9638, %v9637
    %v9640 = vrot.slane %v9066, 4
    %v9641 = vsel %vm8240, %v9640, %v9639
    %v9642 = vrot.slane %v9068, 3
    %v9643 = vsel %vm8242, %v9642, %v9641
    %v9644 = vrot.slane %v9070, 2
    %v9645 = vsel %vm8244, %v9644, %v9643
    %v9646 = vrot.slane %v9072, 1
    %v9647 = vsel %vm8246, %v9646, %v9645
    %v9648 = vrot.slane %v9075, 7
    %v9649 = vsel %vm8234, %v9648, %v9073
    %v9650 = vrot.slane %v9077, 6
    %v9651 = vsel %vm8236, %v9650, %v9649
    %v9652 = vrot.slane %v9079, 5
    %v9653 = vsel %vm8238, %v9652, %v9651
    %v9654 = vrot.slane %v9081, 4
    %v9655 = vsel %vm8240, %v9654, %v9653
    %v9656 = vrot.slane %v9083, 3
    %v9657 = vsel %vm8242, %v9656, %v9655
    %v9658 = vrot.slane %v9085, 2
    %v9659 = vsel %vm8244, %v9658, %v9657
    %v9660 = vrot.slane %v9087, 1
    %v9661 = vsel %vm8246, %v9660, %v9659
    %v9662 = vrot.slane %v9076, 7
    %v9663 = vsel %vm8234, %v9662, %v9074
    %v9664 = vrot.slane %v9078, 6
    %v9665 = vsel %vm8236, %v9664, %v9663
    %v9666 = vrot.slane %v9080, 5
    %v9667 = vsel %vm8238, %v9666, %v9665
    %v9668 = vrot.slane %v9082, 4
    %v9669 = vsel %vm8240, %v9668, %v9667
    %v9670 = vrot.slane %v9084, 3
    %v9671 = vsel %vm8242, %v9670, %v9669
    %v9672 = vrot.slane %v9086, 2
    %v9673 = vsel %vm8244, %v9672, %v9671
    %v9674 = vrot.slane %v9088, 1
    %v9675 = vsel %vm8246, %v9674, %v9673
    %v9676 = vrot.slane %v9091, 7
    %v9677 = vsel %vm8234, %v9676, %v9089
    %v9678 = vrot.slane %v9093, 6
    %v9679 = vsel %vm8236, %v9678, %v9677
    %v9680 = vrot.slane %v9095, 5
    %v9681 = vsel %vm8238, %v9680, %v9679
    %v9682 = vrot.slane %v9097, 4
    %v9683 = vsel %vm8240, %v9682, %v9681
    %v9684 = vrot.slane %v9099, 3
    %v9685 = vsel %vm8242, %v9684, %v9683
    %v9686 = vrot.slane %v9101, 2
    %v9687 = vsel %vm8244, %v9686, %v9685
    %v9688 = vrot.slane %v9103, 1
    %v9689 = vsel %vm8246, %v9688, %v9687
    %v9690 = vrot.slane %v9092, 7
    %v9691 = vsel %vm8234, %v9690, %v9090
    %v9692 = vrot.slane %v9094, 6
    %v9693 = vsel %vm8236, %v9692, %v9691
    %v9694 = vrot.slane %v9096, 5
    %v9695 = vsel %vm8238, %v9694, %v9693
    %v9696 = vrot.slane %v9098, 4
    %v9697 = vsel %vm8240, %v9696, %v9695
    %v9698 = vrot.slane %v9100, 3
    %v9699 = vsel %vm8242, %v9698, %v9697
    %v9700 = vrot.slane %v9102, 2
    %v9701 = vsel %vm8244, %v9700, %v9699
    %v9702 = vrot.slane %v9104, 1
    %v9703 = vsel %vm8246, %v9702, %v9701
    %v9704 = vrot.slane %v9107, 7
    %v9705 = vsel %vm8234, %v9704, %v9105
    %v9706 = vrot.slane %v9109, 6
    %v9707 = vsel %vm8236, %v9706, %v9705
    %v9708 = vrot.slane %v9111, 5
    %v9709 = vsel %vm8238, %v9708, %v9707
    %v9710 = vrot.slane %v9113, 4
    %v9711 = vsel %vm8240, %v9710, %v9709
    %v9712 = vrot.slane %v9115, 3
    %v9713 = vsel %vm8242, %v9712, %v9711
    %v9714 = vrot.slane %v9117, 2
    %v9715 = vsel %vm8244, %v9714, %v9713
    %v9716 = vrot.slane %v9119, 1
    %v9717 = vsel %vm8246, %v9716, %v9715
    %v9718 = vrot.slane %v9108, 7
    %v9719 = vsel %vm8234, %v9718, %v9106
    %v9720 = vrot.slane %v9110, 6
    %v9721 = vsel %vm8236, %v9720, %v9719
    %v9722 = vrot.slane %v9112, 5
    %v9723 = vsel %vm8238, %v9722, %v9721
    %v9724 = vrot.slane %v9114, 4
    %v9725 = vsel %vm8240, %v9724, %v9723
    %v9726 = vrot.slane %v9116, 3
    %v9727 = vsel %vm8242, %v9726, %v9725
    %v9728 = vrot.slane %v9118, 2
    %v9729 = vsel %vm8244, %v9728, %v9727
    %v9730 = vrot.slane %v9120, 1
    %v9731 = vsel %vm8246, %v9730, %v9729
    %v9732 = vrot.slane %v9123, 7
    %v9733 = vsel %vm8234, %v9732, %v9121
    %v9734 = vrot.slane %v9125, 6
    %v9735 = vsel %vm8236, %v9734, %v9733
    %v9736 = vrot.slane %v9127, 5
    %v9737 = vsel %vm8238, %v9736, %v9735
    %v9738 = vrot.slane %v9129, 4
    %v9739 = vsel %vm8240, %v9738, %v9737
    %v9740 = vrot.slane %v9131, 3
    %v9741 = vsel %vm8242, %v9740, %v9739
    %v9742 = vrot.slane %v9133, 2
    %v9743 = vsel %vm8244, %v9742, %v9741
    %v9744 = vrot.slane %v9135, 1
    %v9745 = vsel %vm8246, %v9744, %v9743
    %v9746 = vrot.slane %v9124, 7
    %v9747 = vsel %vm8234, %v9746, %v9122
    %v9748 = vrot.slane %v9126, 6
    %v9749 = vsel %vm8236, %v9748, %v9747
    %v9750 = vrot.slane %v9128, 5
    %v9751 = vsel %vm8238, %v9750, %v9749
    %v9752 = vrot.slane %v9130, 4
    %v9753 = vsel %vm8240, %v9752, %v9751
    %v9754 = vrot.slane %v9132, 3
    %v9755 = vsel %vm8242, %v9754, %v9753
    %v9756 = vrot.slane %v9134, 2
    %v9757 = vsel %vm8244, %v9756, %v9755
    %v9758 = vrot.slane %v9136, 1
    %v9759 = vsel %vm8246, %v9758, %v9757
    %v9760 = vrot.slane %v9139, 7
    %v9761 = vsel %vm8234, %v9760, %v9137
    %v9762 = vrot.slane %v9141, 6
    %v9763 = vsel %vm8236, %v9762, %v9761
    %v9764 = vrot.slane %v9143, 5
    %v9765 = vsel %vm8238, %v9764, %v9763
    %v9766 = vrot.slane %v9145, 4
    %v9767 = vsel %vm8240, %v9766, %v9765
    %v9768 = vrot.slane %v9147, 3
    %v9769 = vsel %vm8242, %v9768, %v9767
    %v9770 = vrot.slane %v9149, 2
    %v9771 = vsel %vm8244, %v9770, %v9769
    %v9772 = vrot.slane %v9151, 1
    %v9773 = vsel %vm8246, %v9772, %v9771
    %v9774 = vrot.slane %v9140, 7
    %v9775 = vsel %vm8234, %v9774, %v9138
    %v9776 = vrot.slane %v9142, 6
    %v9777 = vsel %vm8236, %v9776, %v9775
    %v9778 = vrot.slane %v9144, 5
    %v9779 = vsel %vm8238, %v9778, %v9777
    %v9780 = vrot.slane %v9146, 4
    %v9781 = vsel %vm8240, %v9780, %v9779
    %v9782 = vrot.slane %v9148, 3
    %v9783 = vsel %vm8242, %v9782, %v9781
    %v9784 = vrot.slane %v9150, 2
    %v9785 = vsel %vm8244, %v9784, %v9783
    %v9786 = vrot.slane %v9152, 1
    %v9787 = vsel %vm8246, %v9786, %v9785
    %v9788 = vrot.slane %v9155, 7
    %v9789 = vsel %vm8234, %v9788, %v9153
    %v9790 = vrot.slane %v9157, 6
    %v9791 = vsel %vm8236, %v9790, %v9789
    %v9792 = vrot.slane %v9159, 5
    %v9793 = vsel %vm8238, %v9792, %v9791
    %v9794 = vrot.slane %v9161, 4
    %v9795 = vsel %vm8240, %v9794, %v9793
    %v9796 = vrot.slane %v9163, 3
    %v9797 = vsel %vm8242, %v9796, %v9795
    %v9798 = vrot.slane %v9165, 2
    %v9799 = vsel %vm8244, %v9798, %v9797
    %v9800 = vrot.slane %v9167, 1
    %v9801 = vsel %vm8246, %v9800, %v9799
    %v9802 = vrot.slane %v9156, 7
    %v9803 = vsel %vm8234, %v9802, %v9154
    %v9804 = vrot.slane %v9158, 6
    %v9805 = vsel %vm8236, %v9804, %v9803
    %v9806 = vrot.slane %v9160, 5
    %v9807 = vsel %vm8238, %v9806, %v9805
    %v9808 = vrot.slane %v9162, 4
    %v9809 = vsel %vm8240, %v9808, %v9807
    %v9810 = vrot.slane %v9164, 3
    %v9811 = vsel %vm8242, %v9810, %v9809
    %v9812 = vrot.slane %v9166, 2
    %v9813 = vsel %vm8244, %v9812, %v9811
    %v9814 = vrot.slane %v9168, 1
    %v9815 = vsel %vm8246, %v9814, %v9813
    %v9816 = vrot.slane %v9171, 7
    %v9817 = vsel %vm8234, %v9816, %v9169
    %v9818 = vrot.slane %v9173, 6
    %v9819 = vsel %vm8236, %v9818, %v9817
    %v9820 = vrot.slane %v9175, 5
    %v9821 = vsel %vm8238, %v9820, %v9819
    %v9822 = vrot.slane %v9177, 4
    %v9823 = vsel %vm8240, %v9822, %v9821
    %v9824 = vrot.slane %v9179, 3
    %v9825 = vsel %vm8242, %v9824, %v9823
    %v9826 = vrot.slane %v9181, 2
    %v9827 = vsel %vm8244, %v9826, %v9825
    %v9828 = vrot.slane %v9183, 1
    %v9829 = vsel %vm8246, %v9828, %v9827
    %v9830 = vrot.slane %v9172, 7
    %v9831 = vsel %vm8234, %v9830, %v9170
    %v9832 = vrot.slane %v9174, 6
    %v9833 = vsel %vm8236, %v9832, %v9831
    %v9834 = vrot.slane %v9176, 5
    %v9835 = vsel %vm8238, %v9834, %v9833
    %v9836 = vrot.slane %v9178, 4
    %v9837 = vsel %vm8240, %v9836, %v9835
    %v9838 = vrot.slane %v9180, 3
    %v9839 = vsel %vm8242, %v9838, %v9837
    %v9840 = vrot.slane %v9182, 2
    %v9841 = vsel %vm8244, %v9840, %v9839
    %v9842 = vrot.slane %v9184, 1
    %v9843 = vsel %vm8246, %v9842, %v9841
    %v9844 = vrot.slane %v9187, 7
    %v9845 = vsel %vm8234, %v9844, %v9185
    %v9846 = vrot.slane %v9189, 6
    %v9847 = vsel %vm8236, %v9846, %v9845
    %v9848 = vrot.slane %v9191, 5
    %v9849 = vsel %vm8238, %v9848, %v9847
    %v9850 = vrot.slane %v9193, 4
    %v9851 = vsel %vm8240, %v9850, %v9849
    %v9852 = vrot.slane %v9195, 3
    %v9853 = vsel %vm8242, %v9852, %v9851
    %v9854 = vrot.slane %v9197, 2
    %v9855 = vsel %vm8244, %v9854, %v9853
    %v9856 = vrot.slane %v9199, 1
    %v9857 = vsel %vm8246, %v9856, %v9855
    %v9858 = vrot.slane %v9188, 7
    %v9859 = vsel %vm8234, %v9858, %v9186
    %v9860 = vrot.slane %v9190, 6
    %v9861 = vsel %vm8236, %v9860, %v9859
    %v9862 = vrot.slane %v9192, 5
    %v9863 = vsel %vm8238, %v9862, %v9861
    %v9864 = vrot.slane %v9194, 4
    %v9865 = vsel %vm8240, %v9864, %v9863
    %v9866 = vrot.slane %v9196, 3
    %v9867 = vsel %vm8242, %v9866, %v9865
    %v9868 = vrot.slane %v9198, 2
    %v9869 = vsel %vm8244, %v9868, %v9867
    %v9870 = vrot.slane %v9200, 1
    %v9871 = vsel %vm8246, %v9870, %v9869
    %v9872 = vrot.slane %v9203, 7
    %v9873 = vsel %vm8234, %v9872, %v9201
    %v9874 = vrot.slane %v9205, 6
    %v9875 = vsel %vm8236, %v9874, %v9873
    %v9876 = vrot.slane %v9207, 5
    %v9877 = vsel %vm8238, %v9876, %v9875
    %v9878 = vrot.slane %v9209, 4
    %v9879 = vsel %vm8240, %v9878, %v9877
    %v9880 = vrot.slane %v9211, 3
    %v9881 = vsel %vm8242, %v9880, %v9879
    %v9882 = vrot.slane %v9213, 2
    %v9883 = vsel %vm8244, %v9882, %v9881
    %v9884 = vrot.slane %v9215, 1
    %v9885 = vsel %vm8246, %v9884, %v9883
    %v9886 = vrot.slane %v9204, 7
    %v9887 = vsel %vm8234, %v9886, %v9202
    %v9888 = vrot.slane %v9206, 6
    %v9889 = vsel %vm8236, %v9888, %v9887
    %v9890 = vrot.slane %v9208, 5
    %v9891 = vsel %vm8238, %v9890, %v9889
    %v9892 = vrot.slane %v9210, 4
    %v9893 = vsel %vm8240, %v9892, %v9891
    %v9894 = vrot.slane %v9212, 3
    %v9895 = vsel %vm8242, %v9894, %v9893
    %v9896 = vrot.slane %v9214, 2
    %v9897 = vsel %vm8244, %v9896, %v9895
    %v9898 = vrot.slane %v9216, 1
    %v9899 = vsel %vm8246, %v9898, %v9897
    %v9900 = vrot.slane %v9219, 7
    %v9901 = vsel %vm8234, %v9900, %v9217
    %v9902 = vrot.slane %v9221, 6
    %v9903 = vsel %vm8236, %v9902, %v9901
    %v9904 = vrot.slane %v9223, 5
    %v9905 = vsel %vm8238, %v9904, %v9903
    %v9906 = vrot.slane %v9225, 4
    %v9907 = vsel %vm8240, %v9906, %v9905
    %v9908 = vrot.slane %v9227, 3
    %v9909 = vsel %vm8242, %v9908, %v9907
    %v9910 = vrot.slane %v9229, 2
    %v9911 = vsel %vm8244, %v9910, %v9909
    %v9912 = vrot.slane %v9231, 1
    %v9913 = vsel %vm8246, %v9912, %v9911
    %v9914 = vrot.slane %v9220, 7
    %v9915 = vsel %vm8234, %v9914, %v9218
    %v9916 = vrot.slane %v9222, 6
    %v9917 = vsel %vm8236, %v9916, %v9915
    %v9918 = vrot.slane %v9224, 5
    %v9919 = vsel %vm8238, %v9918, %v9917
    %v9920 = vrot.slane %v9226, 4
    %v9921 = vsel %vm8240, %v9920, %v9919
    %v9922 = vrot.slane %v9228, 3
    %v9923 = vsel %vm8242, %v9922, %v9921
    %v9924 = vrot.slane %v9230, 2
    %v9925 = vsel %vm8244, %v9924, %v9923
    %v9926 = vrot.slane %v9232, 1
    %v9927 = vsel %vm8246, %v9926, %v9925
    %v9928 = vrot.slane %v9235, 7
    %v9929 = vsel %vm8234, %v9928, %v9233
    %v9930 = vrot.slane %v9237, 6
    %v9931 = vsel %vm8236, %v9930, %v9929
    %v9932 = vrot.slane %v9239, 5
    %v9933 = vsel %vm8238, %v9932, %v9931
    %v9934 = vrot.slane %v9241, 4
    %v9935 = vsel %vm8240, %v9934, %v9933
    %v9936 = vrot.slane %v9243, 3
    %v9937 = vsel %vm8242, %v9936, %v9935
    %v9938 = vrot.slane %v9245, 2
    %v9939 = vsel %vm8244, %v9938, %v9937
    %v9940 = vrot.slane %v9247, 1
    %v9941 = vsel %vm8246, %v9940, %v9939
    %v9942 = vrot.slane %v9236, 7
    %v9943 = vsel %vm8234, %v9942, %v9234
    %v9944 = vrot.slane %v9238, 6
    %v9945 = vsel %vm8236, %v9944, %v9943
    %v9946 = vrot.slane %v9240, 5
    %v9947 = vsel %vm8238, %v9946, %v9945
    %v9948 = vrot.slane %v9242, 4
    %v9949 = vsel %vm8240, %v9948, %v9947
    %v9950 = vrot.slane %v9244, 3
    %v9951 = vsel %vm8242, %v9950, %v9949
    %v9952 = vrot.slane %v9246, 2
    %v9953 = vsel %vm8244, %v9952, %v9951
    %v9954 = vrot.slane %v9248, 1
    %v9955 = vsel %vm8246, %v9954, %v9953
    %v9956 = vrot.slane %v9251, 7
    %v9957 = vsel %vm8234, %v9956, %v9249
    %v9958 = vrot.slane %v9253, 6
    %v9959 = vsel %vm8236, %v9958, %v9957
    %v9960 = vrot.slane %v9255, 5
    %v9961 = vsel %vm8238, %v9960, %v9959
    %v9962 = vrot.slane %v9257, 4
    %v9963 = vsel %vm8240, %v9962, %v9961
    %v9964 = vrot.slane %v9259, 3
    %v9965 = vsel %vm8242, %v9964, %v9963
    %v9966 = vrot.slane %v9261, 2
    %v9967 = vsel %vm8244, %v9966, %v9965
    %v9968 = vrot.slane %v9263, 1
    %v9969 = vsel %vm8246, %v9968, %v9967
    %v9970 = vrot.slane %v9252, 7
    %v9971 = vsel %vm8234, %v9970, %v9250
    %v9972 = vrot.slane %v9254, 6
    %v9973 = vsel %vm8236, %v9972, %v9971
    %v9974 = vrot.slane %v9256, 5
    %v9975 = vsel %vm8238, %v9974, %v9973
    %v9976 = vrot.slane %v9258, 4
    %v9977 = vsel %vm8240, %v9976, %v9975
    %v9978 = vrot.slane %v9260, 3
    %v9979 = vsel %vm8242, %v9978, %v9977
    %v9980 = vrot.slane %v9262, 2
    %v9981 = vsel %vm8244, %v9980, %v9979
    %v9982 = vrot.slane %v9264, 1
    %v9983 = vsel %vm8246, %v9982, %v9981
    %v9984 = vrot.slane %v9267, 7
    %v9985 = vsel %vm8234, %v9984, %v9265
    %v9986 = vrot.slane %v9269, 6
    %v9987 = vsel %vm8236, %v9986, %v9985
    %v9988 = vrot.slane %v9271, 5
    %v9989 = vsel %vm8238, %v9988, %v9987
    %v9990 = vrot.slane %v9273, 4
    %v9991 = vsel %vm8240, %v9990, %v9989
    %v9992 = vrot.slane %v9275, 3
    %v9993 = vsel %vm8242, %v9992, %v9991
    %v9994 = vrot.slane %v9277, 2
    %v9995 = vsel %vm8244, %v9994, %v9993
    %v9996 = vrot.slane %v9279, 1
    %v9997 = vsel %vm8246, %v9996, %v9995
    %v9998 = vrot.slane %v9268, 7
    %v9999 = vsel %vm8234, %v9998, %v9266
    %v10000 = vrot.slane %v9270, 6
    %v10001 = vsel %vm8236, %v10000, %v9999
    %v10002 = vrot.slane %v9272, 5
    %v10003 = vsel %vm8238, %v10002, %v10001
    %v10004 = vrot.slane %v9274, 4
    %v10005 = vsel %vm8240, %v10004, %v10003
    %v10006 = vrot.slane %v9276, 3
    %v10007 = vsel %vm8242, %v10006, %v10005
    %v10008 = vrot.slane %v9278, 2
    %v10009 = vsel %vm8244, %v10008, %v10007
    %v10010 = vrot.slane %v9280, 1
    %v10011 = vsel %vm8246, %v10010, %v10009
    %v10012 = vrot.slane %v9283, 7
    %v10013 = vsel %vm8234, %v10012, %v9281
    %v10014 = vrot.slane %v9285, 6
    %v10015 = vsel %vm8236, %v10014, %v10013
    %v10016 = vrot.slane %v9287, 5
    %v10017 = vsel %vm8238, %v10016, %v10015
    %v10018 = vrot.slane %v9289, 4
    %v10019 = vsel %vm8240, %v10018, %v10017
    %v10020 = vrot.slane %v9291, 3
    %v10021 = vsel %vm8242, %v10020, %v10019
    %v10022 = vrot.slane %v9293, 2
    %v10023 = vsel %vm8244, %v10022, %v10021
    %v10024 = vrot.slane %v9295, 1
    %v10025 = vsel %vm8246, %v10024, %v10023
    %v10026 = vrot.slane %v9284, 7
    %v10027 = vsel %vm8234, %v10026, %v9282
    %v10028 = vrot.slane %v9286, 6
    %v10029 = vsel %vm8236, %v10028, %v10027
    %v10030 = vrot.slane %v9288, 5
    %v10031 = vsel %vm8238, %v10030, %v10029
    %v10032 = vrot.slane %v9290, 4
    %v10033 = vsel %vm8240, %v10032, %v10031
    %v10034 = vrot.slane %v9292, 3
    %v10035 = vsel %vm8242, %v10034, %v10033
    %v10036 = vrot.slane %v9294, 2
    %v10037 = vsel %vm8244, %v10036, %v10035
    %v10038 = vrot.slane %v9296, 1
    %v10039 = vsel %vm8246, %v10038, %v10037
    %10072 = vmatprep.subr.mxu0 0.0
    %10073 = vmatpush1.msra.mxu0 %v9297
    %10074 = vmatprep.subr.mxu0 0.0
    %10075 = vmatpush1.msra.mxu0 %v9298
    %10076 = vmatprep.subr.mxu0 0.0
    %10077 = vmatpush1.msra.mxu0 %v9299
    %10078 = vmatprep.subr.mxu0 0.0
    %10079 = vmatpush1.msra.mxu0 %v9300
    %10080 = vmatprep.subr.mxu0 0.0
    %10081 = vmatpush1.msra.mxu0 %v9301
    %10082 = vmatprep.subr.mxu0 0.0
    %10083 = vmatpush1.msra.mxu0 %v9302
    %10084 = vmatprep.subr.mxu0 0.0
    %10085 = vmatpush1.msra.mxu0 %v9303
    %10086 = vmatprep.subr.mxu0 0.0
    %10087 = vmatpush1.msra.mxu0 %v9304
    %10088 = vmatprep.subr.mxu0 0.0
    %10089 = vmatpush1.msra.mxu0 %v9305
    %10090 = vmatprep.subr.mxu0 0.0
    %10091 = vmatpush1.msra.mxu0 %v9306
    %10092 = vmatprep.subr.mxu0 0.0
    %10093 = vmatpush1.msra.mxu0 %v9307
    %10094 = vmatprep.subr.mxu0 0.0
    %10095 = vmatpush1.msra.mxu0 %v9308
    %10096 = vmatprep.subr.mxu0 0.0
    %10097 = vmatpush1.msra.mxu0 %v9309
    %10098 = vmatprep.subr.mxu0 0.0
    %10099 = vmatpush1.msra.mxu0 %v9310
    %10100 = vmatprep.subr.mxu0 0.0
    %10101 = vmatpush1.msra.mxu0 %v9311
    %10102 = vmatprep.subr.mxu0 0.0
    %10103 = vmatpush1.msra.mxu0 %v9312
    %10104 = vmatprep.subr.mxu0 0.0
    %10105 = vmatpush1.msra.mxu0 %v9313
    %10106 = vmatprep.subr.mxu0 0.0
    %10107 = vmatpush1.msra.mxu0 %v9314
    %10108 = vmatprep.subr.mxu0 0.0
    %10109 = vmatpush1.msra.mxu0 %v9315
    %10110 = vmatprep.subr.mxu0 0.0
    %10111 = vmatpush1.msra.mxu0 %v9316
    %10112 = vmatprep.subr.mxu0 0.0
    %10113 = vmatpush1.msra.mxu0 %v9317
    %10114 = vmatprep.subr.mxu0 0.0
    %10115 = vmatpush1.msra.mxu0 %v9318
    %10116 = vmatprep.subr.mxu0 0.0
    %10117 = vmatpush1.msra.mxu0 %v9319
    %10118 = vmatprep.subr.mxu0 0.0
    %10119 = vmatpush1.msra.mxu0 %v9320
    %10120 = vmatprep.subr.mxu0 0.0
    %10121 = vmatpush1.msra.mxu0 %v9321
    %10122 = vmatprep.subr.mxu0 0.0
    %10123 = vmatpush1.msra.mxu0 %v9322
    %10124 = vmatprep.subr.mxu0 0.0
    %10125 = vmatpush1.msra.mxu0 %v9323
    %10126 = vmatprep.subr.mxu0 0.0
    %10127 = vmatpush1.msra.mxu0 %v9324
    %10128 = vmatprep.subr.mxu0 0.0
    %10129 = vmatpush1.msra.mxu0 %v9325
    %10130 = vmatprep.subr.mxu0 0.0
    %10131 = vmatpush1.msra.mxu0 %v9326
    %10132 = vmatprep.subr.mxu0 0.0
    %10133 = vmatpush1.msra.mxu0 %v9327
    %10134 = vmatprep.subr.mxu0 0.0
    %10135 = vmatpush1.msra.mxu0 %v9328
    %10136 = vmatprep.mubr.f32.mxu0 %v9619
    %10137 = vmatmul.mubr.f32.gmra.mrb[0].mxu0 %v9605
    %v10138 = vpop.f32.mrb[0].mxu0
    %v10139 = vadd.f32 %v9334, %v10138
    %v10140 = vpop.f32.mrb[0].mxu0
    %10141 = vmatprep.mubr.f32.mxu0 %v9647
    %10142 = vmatmul.mubr.f32.gmra.mrb[0].mxu0 %v9633
    %v10143 = vpop.f32.mrb[0].mxu0
    %v10144 = vadd.f32 %v9334, %v10143
    %v10145 = vpop.f32.mrb[0].mxu0
    %10146 = vmatprep.mubr.f32.mxu0 %v9675
    %10147 = vmatmul.mubr.f32.gmra.mrb[0].mxu0 %v9661
    %v10148 = vpop.f32.mrb[0].mxu0
    %v10149 = vadd.f32 %v9334, %v10148
    %v10150 = vpop.f32.mrb[0].mxu0
    %10151 = vmatprep.mubr.f32.mxu0 %v9703
    %10152 = vmatmul.mubr.f32.gmra.mrb[0].mxu0 %v9689
    %v10153 = vpop.f32.mrb[0].mxu0
    %v10154 = vadd.f32 %v9334, %v10153
    %v10155 = vpop.f32.mrb[0].mxu0
    %10156 = vmatprep.mubr.f32.mxu0 %v9731
    %10157 = vmatmul.mubr.f32.gmra.mrb[0].mxu0 %v9717
    %v10158 = vpop.f32.mrb[0].mxu0
    %v10159 = vadd.f32 %v9334, %v10158
    %v10160 = vpop.f32.mrb[0].mxu0
    %10161 = vmatprep.mubr.f32.mxu0 %v9759
    %10162 = vmatmul.mubr.f32.gmra.mrb[0].mxu0 %v9745
    %v10163 = vpop.f32.mrb[0].mxu0
    %v10164 = vadd.f32 %v9334, %v10163
    %v10165 = vpop.f32.mrb[0].mxu0
    %10166 = vmatprep.mubr.f32.mxu0 %v9787
    %10167 = vmatmul.mubr.f32.gmra.mrb[0].mxu0 %v9773
    %v10168 = vpop.f32.mrb[0].mxu0
    %v10169 = vadd.f32 %v9334, %v10168
    %v10170 = vpop.f32.mrb[0].mxu0
    %10171 = vmatprep.mubr.f32.mxu0 %v9815
    %10172 = vmatmul.mubr.f32.gmra.mrb[0].mxu0 %v9801
    %v10173 = vpop.f32.mrb[0].mxu0
    %v10174 = vadd.f32 %v9334, %v10173
    %v10175 = vpop.f32.mrb[0].mxu0
    %10176 = vmatprep.mubr.f32.mxu0 %v9843
    %10177 = vmatmul.mubr.f32.gmra.mrb[0].mxu0 %v9829
    %v10178 = vpop.f32.mrb[0].mxu0
    %v10179 = vadd.f32 %v9334, %v10178
    %v10180 = vpop.f32.mrb[0].mxu0
    %10181 = vmatprep.mubr.f32.mxu0 %v9871
    %10182 = vmatmul.mubr.f32.gmra.mrb[0].mxu0 %v9857
    %v10183 = vpop.f32.mrb[0].mxu0
    %v10184 = vadd.f32 %v9334, %v10183
    %v10185 = vpop.f32.mrb[0].mxu0
    %10186 = vmatprep.mubr.f32.mxu0 %v9899
    %10187 = vmatmul.mubr.f32.gmra.mrb[0].mxu0 %v9885
    %v10188 = vpop.f32.mrb[0].mxu0
    %v10189 = vadd.f32 %v9334, %v10188
    %v10190 = vpop.f32.mrb[0].mxu0
    %10191 = vmatprep.mubr.f32.mxu0 %v9927
    %10192 = vmatmul.mubr.f32.gmra.mrb[0].mxu0 %v9913
    %v10193 = vpop.f32.mrb[0].mxu0
    %v10194 = vadd.f32 %v9334, %v10193
    %v10195 = vpop.f32.mrb[0].mxu0
    %10196 = vmatprep.mubr.f32.mxu0 %v9955
    %10197 = vmatmul.mubr.f32.gmra.mrb[0].mxu0 %v9941
    %v10198 = vpop.f32.mrb[0].mxu0
    %v10199 = vadd.f32 %v9334, %v10198
    %v10200 = vpop.f32.mrb[0].mxu0
    %10201 = vmatprep.mubr.f32.mxu0 %v9983
    %10202 = vmatmul.mubr.f32.gmra.mrb[0].mxu0 %v9969
    %v10203 = vpop.f32.mrb[0].mxu0
    %v10204 = vadd.f32 %v9334, %v10203
    %v10205 = vpop.f32.mrb[0].mxu0
    %10206 = vmatprep.mubr.f32.mxu0 %v10011
    %10207 = vmatmul.mubr.f32.gmra.mrb[0].mxu0 %v9997
    %v10208 = vpop.f32.mrb[0].mxu0
    %v10209 = vadd.f32 %v9334, %v10208
    %v10210 = vpop.f32.mrb[0].mxu0
    %10211 = vmatprep.mubr.f32.mxu0 %v10039
    %10212 = vmatmul.mubr.f32.gmra.mrb[0].mxu0 %v10025
    %v10213 = vpop.f32.mrb[0].mxu0
    %v10214 = vadd.f32 %v9334, %v10213
    %v10215 = vpop.f32.mrb[0].mxu0
    %10216 = vdwg.mxu0
    %v10217 = vmax.f32 %v10139, 0.0
    %v10218 = vmax.f32 %v10144, 0.0
    %v10219 = vmax.f32 %v10149, 0.0
    %v10220 = vmax.f32 %v10154, 0.0
    %v10221 = vmax.f32 %v10159, 0.0
    %v10222 = vmax.f32 %v10164, 0.0
    %v10223 = vmax.f32 %v10169, 0.0
    %v10224 = vmax.f32 %v10174, 0.0
    %v10225 = vmax.f32 %v10179, 0.0
    %v10226 = vmax.f32 %v10184, 0.0
    %v10227 = vmax.f32 %v10189, 0.0
    %v10228 = vmax.f32 %v10194, 0.0
    %v10229 = vmax.f32 %v10199, 0.0
    %v10230 = vmax.f32 %v10204, 0.0
    %v10231 = vmax.f32 %v10209, 0.0
    %v10232 = vmax.f32 %v10214, 0.0
    %v10233 = vld [vmem:[%s8] sm:$0x1]
    %v10235 = vlaneseq
    %v10236 = vshrl.u32 %v10235, 7
    %v10237 = vsub.s32 0, %v10236
    %v10238 = vrot.slane %v10233, %v10237
    %v10240 = vmul.f32 %v10217, %v10238
    %v10241 = vmul.f32 %v10218, %v10238
    %v10242 = vmul.f32 %v10219, %v10238
    %v10243 = vmul.f32 %v10220, %v10238
    %v10244 = vmul.f32 %v10221, %v10238
    %v10245 = vmul.f32 %v10222, %v10238
    %v10246 = vmul.f32 %v10223, %v10238
    %v10247 = vmul.f32 %v10224, %v10238
    %v10248 = vmul.f32 %v10225, %v10238
    %v10249 = vmul.f32 %v10226, %v10238
    %v10250 = vmul.f32 %v10227, %v10238
    %v10251 = vmul.f32 %v10228, %v10238
    %v10252 = vmul.f32 %v10229, %v10238
    %v10253 = vmul.f32 %v10230, %v10238
    %v10254 = vmul.f32 %v10231, %v10238
    %v10255 = vmul.f32 %v10232, %v10238
    %10256 = vadd.xlane.f32.xlu0 %v10240
    %v10257 = vpop.xlane.xlu0 %10256
    %10258 = vadd.xlane.f32.xlu0 %v10241
    %v10259 = vpop.xlane.xlu0 %10258
    %10260 = vadd.xlane.f32.xlu0 %v10242
    %v10261 = vpop.xlane.xlu0 %10260
    %10262 = vadd.xlane.f32.xlu0 %v10243
    %v10263 = vpop.xlane.xlu0 %10262
    %10264 = vadd.xlane.f32.xlu0 %v10244
    %v10265 = vpop.xlane.xlu0 %10264
    %10266 = vadd.xlane.f32.xlu0 %v10245
    %v10267 = vpop.xlane.xlu0 %10266
    %10268 = vadd.xlane.f32.xlu0 %v10246
    %v10269 = vpop.xlane.xlu0 %10268
    %10270 = vadd.xlane.f32.xlu0 %v10247
    %v10271 = vpop.xlane.xlu0 %10270
    %10272 = vadd.xlane.f32.xlu0 %v10248
    %v10273 = vpop.xlane.xlu0 %10272
    %10274 = vadd.xlane.f32.xlu0 %v10249
    %v10275 = vpop.xlane.xlu0 %10274
    %10276 = vadd.xlane.f32.xlu0 %v10250
    %v10277 = vpop.xlane.xlu0 %10276
    %10278 = vadd.xlane.f32.xlu0 %v10251
    %v10279 = vpop.xlane.xlu0 %10278
    %10280 = vadd.xlane.f32.xlu0 %v10252
    %v10281 = vpop.xlane.xlu0 %10280
    %10282 = vadd.xlane.f32.xlu0 %v10253
    %v10283 = vpop.xlane.xlu0 %10282
    %10284 = vadd.xlane.f32.xlu0 %v10254
    %v10285 = vpop.xlane.xlu0 %10284
    %10286 = vadd.xlane.f32.xlu0 %v10255
    %v10287 = vpop.xlane.xlu0 %10286
    %v10288 = vld [vmem:[#allocation2] sm:$0x1]
    %v10290 = vlaneseq
    %v10291 = vshrl.u32 %v10290, 7
    %v10292 = vsub.s32 0, %v10291
    %v10293 = vrot.slane %v10288, %v10292
    %v10295 = vadd.f32 %v10257, %v10293
    %v10296 = vadd.f32 %v10259, %v10293
    %v10297 = vadd.f32 %v10261, %v10293
    %v10298 = vadd.f32 %v10263, %v10293
    %v10299 = vadd.f32 %v10265, %v10293
    %v10300 = vadd.f32 %v10267, %v10293
    %v10301 = vadd.f32 %v10269, %v10293
    %v10302 = vadd.f32 %v10271, %v10293
    %v10303 = vadd.f32 %v10273, %v10293
    %v10304 = vadd.f32 %v10275, %v10293
    %v10305 = vadd.f32 %v10277, %v10293
    %v10306 = vadd.f32 %v10279, %v10293
    %v10307 = vadd.f32 %v10281, %v10293
    %v10308 = vadd.f32 %v10283, %v10293
    %v10309 = vadd.f32 %v10285, %v10293
    %v10310 = vadd.f32 %v10287, %v10293
    %v10311 = vxor.u32 %v10295, 2147483648
    %v10312 = vxor.u32 %v10296, 2147483648
    %v10313 = vxor.u32 %v10297, 2147483648
    %v10314 = vxor.u32 %v10298, 2147483648
    %v10315 = vxor.u32 %v10299, 2147483648
    %v10316 = vxor.u32 %v10300, 2147483648
    %v10317 = vxor.u32 %v10301, 2147483648
    %v10318 = vxor.u32 %v10302, 2147483648
    %v10319 = vxor.u32 %v10303, 2147483648
    %v10320 = vxor.u32 %v10304, 2147483648
    %v10321 = vxor.u32 %v10305, 2147483648
    %v10322 = vxor.u32 %v10306, 2147483648
    %v10323 = vxor.u32 %v10307, 2147483648
    %v10324 = vxor.u32 %v10308, 2147483648
    %v10325 = vxor.u32 %v10309, 2147483648
    %v10326 = vxor.u32 %v10310, 2147483648
    %v10327 = vmul.f32 %v10311, 1.442695
    %v10328 = vpow.pop %v10327
    %v10329 = vmul.f32 %v10312, 1.442695
    %v10330 = vpow.pop %v10329
    %v10331 = vmul.f32 %v10313, 1.442695
    %v10332 = vpow.pop %v10331
    %v10333 = vmul.f32 %v10314, 1.442695
    %v10334 = vpow.pop %v10333
    %v10335 = vmul.f32 %v10315, 1.442695
    %v10336 = vpow.pop %v10335
    %v10337 = vmul.f32 %v10316, 1.442695
    %v10338 = vpow.pop %v10337
    %v10339 = vmul.f32 %v10317, 1.442695
    %v10340 = vpow.pop %v10339
    %v10341 = vmul.f32 %v10318, 1.442695
    %v10342 = vpow.pop %v10341
    %v10343 = vmul.f32 %v10319, 1.442695
    %v10344 = vpow.pop %v10343
    %v10345 = vmul.f32 %v10320, 1.442695
    %v10346 = vpow.pop %v10345
    %v10347 = vmul.f32 %v10321, 1.442695
    %v10348 = vpow.pop %v10347
    %v10349 = vmul.f32 %v10322, 1.442695
    %v10350 = vpow.pop %v10349
    %v10351 = vmul.f32 %v10323, 1.442695
    %v10352 = vpow.pop %v10351
    %v10353 = vmul.f32 %v10324, 1.442695
    %v10354 = vpow.pop %v10353
    %v10355 = vmul.f32 %v10325, 1.442695
    %v10356 = vpow.pop %v10355
    %v10357 = vmul.f32 %v10326, 1.442695
    %v10358 = vpow.pop %v10357
    %v10359 = vadd.f32 %v10328, 1.0
    %v10360 = vadd.f32 %v10330, 1.0
    %v10361 = vadd.f32 %v10332, 1.0
    %v10362 = vadd.f32 %v10334, 1.0
    %v10363 = vadd.f32 %v10336, 1.0
    %v10364 = vadd.f32 %v10338, 1.0
    %v10365 = vadd.f32 %v10340, 1.0
    %v10366 = vadd.f32 %v10342, 1.0
    %v10367 = vadd.f32 %v10344, 1.0
    %v10368 = vadd.f32 %v10346, 1.0
    %v10369 = vadd.f32 %v10348, 1.0
    %v10370 = vadd.f32 %v10350, 1.0
    %v10371 = vadd.f32 %v10352, 1.0
    %v10372 = vadd.f32 %v10354, 1.0
    %v10373 = vadd.f32 %v10356, 1.0
    %v10374 = vadd.f32 %v10358, 1.0
    %v10375 = vrcp.pop %v10359
    %v10376 = vmul.f32 1.0, %v10375
    %v10377 = vrcp.pop %v10360
    %v10378 = vmul.f32 1.0, %v10377
    %v10379 = vrcp.pop %v10361
    %v10380 = vmul.f32 1.0, %v10379
    %v10381 = vrcp.pop %v10362
    %v10382 = vmul.f32 1.0, %v10381
    %v10383 = vrcp.pop %v10363
    %v10384 = vmul.f32 1.0, %v10383
    %v10385 = vrcp.pop %v10364
    %v10386 = vmul.f32 1.0, %v10385
    %v10387 = vrcp.pop %v10365
    %v10388 = vmul.f32 1.0, %v10387
    %v10389 = vrcp.pop %v10366
    %v10390 = vmul.f32 1.0, %v10389
    %v10391 = vrcp.pop %v10367
    %v10392 = vmul.f32 1.0, %v10391
    %v10393 = vrcp.pop %v10368
    %v10394 = vmul.f32 1.0, %v10393
    %v10395 = vrcp.pop %v10369
    %v10396 = vmul.f32 1.0, %v10395
    %v10397 = vrcp.pop %v10370
    %v10398 = vmul.f32 1.0, %v10397
    %v10399 = vrcp.pop %v10371
    %v10400 = vmul.f32 1.0, %v10399
    %v10401 = vrcp.pop %v10372
    %v10402 = vmul.f32 1.0, %v10401
    %v10403 = vrcp.pop %v10373
    %v10404 = vmul.f32 1.0, %v10403
    %v10405 = vrcp.pop %v10374
    %v10406 = vmul.f32 1.0, %v10405
    %10407 = vxpose.xlu0.b32.start [1/16] %v10376, 128
    %10408 = vxpose.xlu0.b32.cont [2/16] %v10378, 128
    %10409 = vxpose.xlu0.b32.cont [3/16] %v10380, 128
    %10410 = vxpose.xlu0.b32.cont [4/16] %v10382, 128
    %10411 = vxpose.xlu0.b32.cont [5/16] %v10384, 128
    %10412 = vxpose.xlu0.b32.cont [6/16] %v10386, 128
    %10413 = vxpose.xlu0.b32.cont [7/16] %v10388, 128
    %10414 = vxpose.xlu0.b32.cont [8/16] %v10390, 128
    %10415 = vxpose.xlu0.b32.cont [9/16] %v10392, 128
    %10416 = vxpose.xlu0.b32.cont [10/16] %v10394, 128
    %10417 = vxpose.xlu0.b32.cont [11/16] %v10396, 128
    %10418 = vxpose.xlu0.b32.cont [12/16] %v10398, 128
    %10419 = vxpose.xlu0.b32.cont [13/16] %v10400, 128
    %10420 = vxpose.xlu0.b32.cont [14/16] %v10402, 128
    %10421 = vxpose.xlu0.b32.cont [15/16] %v10404, 128
    %10422 = vxpose.xlu0.b32.end [16/16] %v10406, 128
    %v10423 = vpop.trf.xlu0
    %v10424 = vpop.trf.xlu0
    %v10425 = vpop.trf.xlu0
    %v10426 = vpop.trf.xlu0
    %v10427 = vpop.trf.xlu0
    %v10428 = vpop.trf.xlu0
    %v10429 = vpop.trf.xlu0
    %v10430 = vpop.trf.xlu0
    %v10431 = vpop.trf.xlu0
    %v10432 = vpop.trf.xlu0
    %v10433 = vpop.trf.xlu0
    %v10434 = vpop.trf.xlu0
    %v10435 = vpop.trf.xlu0
    %v10436 = vpop.trf.xlu0
    %v10437 = vpop.trf.xlu0
    %v10438 = vpop.trf.xlu0
    %10439 = vst [vmem:[%s10] sm:$0x1] %v10423
    // Predicated region
    $region50: #{nopred_setconv_forward.1} parent=1 // pred_check
      _
    $region51: #{nopred_setconv_forward.1} parent=1 // pred_check_branch
      %10441 = sbr.rel (0) target = $region53
    $region52: #{nopred_setconv_forward.1} parent=1 // pred_region
      _
    $region53: #{nopred_setconv_forward.1} parent=1 // pred_fallthru
      _
    // Predicated region
    $region54: #{nopred_setconv_forward.1} parent=1 // pred_check
      _
    $region55: #{nopred_setconv_forward.1} parent=1 // pred_check_branch
      %10443 = sbr.rel (0) target = $region57
    $region56: #{nopred_setconv_forward.1} parent=1 // pred_region
      _
    $region57: #{nopred_setconv_forward.1} parent=1 // pred_fallthru
      _
    %10444 = vsyncpa [#allocation4], 1
    %10445 = vsyncpa [#allocation6], 1

</llo_original>
